<compile_context>
chip_gen: v7x
topology: tpu7x:2x2x1
jax: 0.10.0
libtpu: 0.0.40
codegen_flags: <defaults>
</compile_context>

<pallas_src>
import functools

import jax
import jax.numpy as jnp
from jax import lax
from jax.experimental import pallas as pl
from jax.experimental.pallas import tpu as pltpu


_LN_EPS = 1e-5                       # torch nn.LayerNorm default
_VMEM_LIMIT = 32 * 1024 * 1024       # safe on v5e/v6e/v7x scoped VMEM


# --------------------------------------------------------------------------
# Shared math helpers (used both inside Pallas kernels and in the reference)
# --------------------------------------------------------------------------
def _layernorm(x, gamma, beta):
    mu = jnp.mean(x, axis=-1, keepdims=True)
    xc = x - mu
    var = jnp.mean(xc * xc, axis=-1, keepdims=True)
    return xc * lax.rsqrt(var + _LN_EPS) * gamma + beta


def _gelu_tanh(x):
    # TODO(synk): torch nn.GELU() defaults to the exact erf form; we use the
    # tanh approximation (guaranteed to lower on the TPU EUP).
    c = 0.7978845608028654  # sqrt(2/pi)
    return 0.5 * x * (1.0 + jnp.tanh(c * (x + 0.044715 * x * x * x)))


# --------------------------------------------------------------------------
# Kernel 1: fused  LayerNorm(q) + LayerNorm(kv) + MHA + out-proj + residual
# --------------------------------------------------------------------------
def _make_attn_layer_kernel(num_heads, dp_scale):
    def kernel(xq_ref, xkv_ref,
               gq_ref, bq_ref, gkv_ref, bkv_ref,
               wq_ref, bqw_ref, wk_ref, bkw_ref,
               wv_ref, bvw_ref, wo_ref, bow_ref,
               o_ref):
        xq = xq_ref[0]     # (N, Dq)
        xkv = xkv_ref[0]   # (L, C)

        qn = _layernorm(xq, gq_ref[...], bq_ref[...])
        kvn = _layernorm(xkv, gkv_ref[...], bkv_ref[...])

        q = jnp.dot(qn, wq_ref[...], preferred_element_type=jnp.float32) + bqw_ref[...]
        k = jnp.dot(kvn, wk_ref[...], preferred_element_type=jnp.float32) + bkw_ref[...]
        v = jnp.dot(kvn, wv_ref[...], preferred_element_type=jnp.float32) + bvw_ref[...]

        n_q = xq.shape[0]
        d_out = o_ref.shape[-1]
        dk = q.shape[-1] // num_heads
        dv = v.shape[-1] // num_heads

        acc = jnp.zeros((n_q, d_out), jnp.float32)
        for h in range(num_heads):                      # static unroll (small H)
            qh = q[:, h * dk:(h + 1) * dk]
            kh = k[:, h * dk:(h + 1) * dk]
            vh = v[:, h * dv:(h + 1) * dv]
            # scores (N, L): contract the head dim, no materialized transpose
            s = lax.dot_general(qh, kh, (((1,), (1,)), ((), ())),
                                preferred_element_type=jnp.float32) * dp_scale
            s = s - jnp.max(s, axis=-1, keepdims=True)
            p = jnp.exp(s)
            p = p / jnp.sum(p, axis=-1, keepdims=True)
            oh = jnp.dot(p, vh, preferred_element_type=jnp.float32)       # (N, dv)
            # fold this head's slice of the output projection into the loop
            acc = acc + jnp.dot(oh, wo_ref[h * dv:(h + 1) * dv, :],
                                preferred_element_type=jnp.float32)

        o_ref[0] = (acc + bow_ref[...] + xq).astype(o_ref.dtype)
    return kernel


def _attention_residual(x_q, x_kv, p, num_heads):
    """Residual(CrossAttention)/Residual(SelfAttention) as one fused kernel."""
    B, N, Dq = x_q.shape
    _, L, C = x_kv.shape
    QK = p["wq"].shape[1]
    V = p["wv"].shape[1]
    dp_scale = float((QK // num_heads) ** -0.5)

    def full(shape):
        return pl.BlockSpec(shape, lambda b, _s=shape: (0,) * len(_s))

    return pl.pallas_call(
        _make_attn_layer_kernel(num_heads, dp_scale),
        out_shape=jax.ShapeDtypeStruct((B, N, Dq), x_q.dtype),
        grid=(B,),
        in_specs=[
            pl.BlockSpec((1, N, Dq), lambda b: (b, 0, 0)),   # latent / query
            pl.BlockSpec((1, L, C), lambda b: (b, 0, 0)),    # key/value input
            full((1, Dq)), full((1, Dq)),                    # q_norm gamma/beta
            full((1, C)), full((1, C)),                      # kv_norm gamma/beta
            full((Dq, QK)), full((1, QK)),                   # W_q, b_q
            full((C, QK)), full((1, QK)),                    # W_k, b_k
            full((C, V)), full((1, V)),                      # W_v, b_v
            full((V, Dq)), full((1, Dq)),                    # W_o, b_o
        ],
        out_specs=pl.BlockSpec((1, N, Dq), lambda b: (b, 0, 0)),
        compiler_params=pltpu.CompilerParams(
            dimension_semantics=("parallel",),
            vmem_limit_bytes=_VMEM_LIMIT),
    )(x_q, x_kv,
      p["q_norm_g"], p["q_norm_b"], p["kv_norm_g"], p["kv_norm_b"],
      p["wq"], p["bq"], p["wk"], p["bk"], p["wv"], p["bv"], p["wo"], p["bo"])


# --------------------------------------------------------------------------
# Kernel 2: fused  LayerNorm + Linear + GELU + Linear + residual  (MLP)
# --------------------------------------------------------------------------
def _mlp_residual_kernel(x_ref, g_ref, b_ref, w1_ref, b1_ref, w2_ref, b2_ref,
                         o_ref):
    x = x_ref[0]                                            # (N, D)
    h = _layernorm(x, g_ref[...], b_ref[...])
    h = jnp.dot(h, w1_ref[...], preferred_element_type=jnp.float32) + b1_ref[...]
    h = _gelu_tanh(h)
    h = jnp.dot(h, w2_ref[...], preferred_element_type=jnp.float32) + b2_ref[...]
    o_ref[0] = (h + x).astype(o_ref.dtype)


def _mlp_residual(x, p):
    B, N, D = x.shape
    Dh = p["w1"].shape[1]

    def full(shape):
        return pl.BlockSpec(shape, lambda b, _s=shape: (0,) * len(_s))

    return pl.pallas_call(
        _mlp_residual_kernel,
        out_shape=jax.ShapeDtypeStruct((B, N, D), x.dtype),
        grid=(B,),
        in_specs=[
            pl.BlockSpec((1, N, D), lambda b: (b, 0, 0)),
            full((1, D)), full((1, D)),                      # LayerNorm gamma/beta
            full((D, Dh)), full((1, Dh)),                    # W1, b1
            full((Dh, D)), full((1, D)),                     # W2, b2
        ],
        out_specs=pl.BlockSpec((1, N, D), lambda b: (b, 0, 0)),
        compiler_params=pltpu.CompilerParams(
            dimension_semantics=("parallel",),
            vmem_limit_bytes=_VMEM_LIMIT),
    )(x, p["ln_g"], p["ln_b"], p["w1"], p["b1"], p["w2"], p["b2"])


# --------------------------------------------------------------------------
# Parameter construction (matches torch _init_parameters: Linear ~ N(0, s),
# biases zero; LayerNorm stays gamma=1 / beta=0; latent ~ N(0, s)).
# --------------------------------------------------------------------------
def _linear_params(key, d_in, d_out, init_scale):
    w = init_scale * jax.random.normal(key, (d_in, d_out), jnp.float32)
    b = jnp.zeros((1, d_out), jnp.float32)
    return w, b


def _init_attn_layer_params(key, dq_in, dkv_in, qk, v, widening, init_scale):
    ks = jax.random.split(key, 6)
    wq, bq = _linear_params(ks[0], dq_in, qk, init_scale)
    wk, bk = _linear_params(ks[1], dkv_in, qk, init_scale)
    wv, bv = _linear_params(ks[2], dkv_in, v, init_scale)
    wo, bo = _linear_params(ks[3], v, dq_in, init_scale)
    w1, b1 = _linear_params(ks[4], dq_in, widening * dq_in, init_scale)
    w2, b2 = _linear_params(ks[5], widening * dq_in, dq_in, init_scale)
    ones = lambda d: jnp.ones((1, d), jnp.float32)
    zeros = lambda d: jnp.zeros((1, d), jnp.float32)
    return {
        "attn": {
            "q_norm_g": ones(dq_in), "q_norm_b": zeros(dq_in),
            "kv_norm_g": ones(dkv_in), "kv_norm_b": zeros(dkv_in),
            "wq": wq, "bq": bq, "wk": wk, "bk": bk,
            "wv": wv, "bv": bv, "wo": wo, "bo": bo,
        },
        "mlp": {
            "ln_g": ones(dq_in), "ln_b": zeros(dq_in),
            "w1": w1, "b1": b1, "w2": w2, "b2": b2,
        },
    }


def _resolve_channels(qk, v, dq):
    qk = dq if qk is None else qk
    v = qk if v is None else v
    return qk, v


def init_perceiver_encoder(key, cfg):
    if cfg["num_cross_attention_layers"] <= 0:
        raise ValueError("num_cross_attention_layers must be > 0")
    if cfg["num_self_attention_blocks"] <= 0:
        raise ValueError("num_self_attention_blocks must be > 0")
    if cfg["num_cross_attention_layers"] > cfg["num_self_attention_blocks"]:
        raise ValueError("num_cross_attention_layers must be <= num_self_attention_blocks")

    D = cfg["num_latent_channels"]
    C = cfg["num_input_channels"]
    cross_qk, cross_v = _resolve_channels(
        cfg["num_cross_attention_qk_channels"], cfg["num_cross_attention_v_channels"], D)
    self_qk, self_v = _resolve_channels(
        cfg["num_self_attention_qk_channels"], cfg["num_self_attention_v_channels"], D)
    if cross_qk % cfg["num_cross_attention_heads"] or cross_v % cfg["num_cross_attention_heads"]:
        raise ValueError("cross-attention qk/v channels must be divisible by num_heads")
    if self_qk % cfg["num_self_attention_heads"] or self_v % cfg["num_self_attention_heads"]:
        raise ValueError("self-attention qk/v channels must be divisible by num_heads")

    init_scale = cfg["init_scale"]
    k_lat, k_c1, k_s1, k_cn, k_sn = jax.random.split(key, 5)
    latent = init_scale * jax.random.normal(k_lat, (cfg["num_latents"], D), jnp.float32)

    def cross_layer(k):
        return _init_attn_layer_params(k, D, C, cross_qk, cross_v,
                                       cfg["cross_attention_widening_factor"], init_scale)

    def self_block(k):
        ks = jax.random.split(k, cfg["num_self_attention_layers_per_block"])
        return [_init_attn_layer_params(kk, D, D, self_qk, self_v,
                                        cfg["self_attention_widening_factor"], init_scale)
                for kk in ks]

    params = {"latent": latent,
              "cross_attn_1": cross_layer(k_c1),
              "self_attn_1": self_block(k_s1)}

    extra_cross = (cfg["num_cross_attention_layers"] > 1
                   and not cfg["first_cross_attention_layer_shared"])
    extra_self = (cfg["num_self_attention_blocks"] > 1
                  and not cfg["first_self_attention_block_shared"])
    if extra_cross:
        params["cross_attn_n"] = cross_layer(k_cn)
    if extra_self:
        params["self_attn_n"] = self_block(k_sn)
    return params


# --------------------------------------------------------------------------
# Encoder forward (shared skeleton for Pallas and pure-JAX reference)
# --------------------------------------------------------------------------
def _encoder_forward(params, cfg, x_adapted, attn_fn, mlp_fn, pad_mask=None):
    if pad_mask is not None:
        raise NotImplementedError("pad_mask not supported")  # TODO(synk)
    b = x_adapted.shape[0]
    lat = jnp.broadcast_to(params["latent"][None], (b,) + params["latent"].shape)

    def cross(p, lat):
        lat = attn_fn(lat, x_adapted, p["attn"], cfg["num_cross_attention_heads"])
        return mlp_fn(lat, p["mlp"])

    def self_block(block_params, lat):
        for p in block_params:
            lat = attn_fn(lat, lat, p["attn"], cfg["num_self_attention_heads"])
            lat = mlp_fn(lat, p["mlp"])
        return lat

    lat = cross(params["cross_attn_1"], lat)
    lat = self_block(params["self_attn_1"], lat)

    cross_n = params.get("cross_attn_n", params["cross_attn_1"])
    self_n = params.get("self_attn_n", params["self_attn_1"])
    for i in range(1, cfg["num_self_attention_blocks"]):
        if i < cfg["num_cross_attention_layers"]:
            lat = cross(cross_n, lat)
        lat = self_block(self_n, lat)
    return lat


def perceiver_encoder_forward(params, cfg, x_adapted, pad_mask=None):
    return _encoder_forward(params, cfg, x_adapted,
                            _attention_residual, _mlp_residual, pad_mask)


# --------------------------------------------------------------------------
# Pure-JAX reference (for correctness check)
# --------------------------------------------------------------------------
def _ref_attention_residual(xq, xkv, p, num_heads):
    hp = lax.Precision.HIGHEST
    qn = _layernorm(xq, p["q_norm_g"], p["q_norm_b"])
    kvn = _layernorm(xkv, p["kv_norm_g"], p["kv_norm_b"])
    q = jnp.einsum("bnc,cd->bnd", qn, p["wq"], precision=hp) + p["bq"]
    k = jnp.einsum("blc,cd->bld", kvn, p["wk"], precision=hp) + p["bk"]
    v = jnp.einsum("blc,cd->bld", kvn, p["wv"], precision=hp) + p["bv"]
    B, N, QK = q.shape
    L, V = k.shape[1], v.shape[-1]
    dk, dv = QK // num_heads, V // num_heads
    q = q.reshape(B, N, num_heads, dk)
    k = k.reshape(B, L, num_heads, dk)
    v = v.reshape(B, L, num_heads, dv)
    s = jnp.einsum("bnhd,blhd->bhnl", q, k, precision=hp) * (dk ** -0.5)
    a = jax.nn.softmax(s, axis=-1)
    o = jnp.einsum("bhnl,blhd->bnhd", a, v, precision=hp).reshape(B, N, V)
    return jnp.einsum("bnv,vd->bnd", o, p["wo"], precision=hp) + p["bo"] + xq


def _ref_mlp_residual(x, p):
    hp = lax.Precision.HIGHEST
    h = _layernorm(x, p["ln_g"], p["ln_b"])
    h = jnp.einsum("bnd,de->bne", h, p["w1"], precision=hp) + p["b1"]
    h = _gelu_tanh(h)
    h = jnp.einsum("bne,ed->bnd", h, p["w2"], precision=hp) + p["b2"]
    return h + x


def reference_forward(params, cfg, x_adapted):
    return _encoder_forward(params, cfg, x_adapted,
                            _ref_attention_residual, _ref_mlp_residual)


# --------------------------------------------------------------------------
# Concrete input adapter (pure layout transform — no Pallas identity copy)
# --------------------------------------------------------------------------
class ImageFlattenInputAdapter:
    """NCHW image -> (B, H*W, C) generic encoder input (channels last -> lanes)."""
    # TODO(synk): real image adapters add Fourier position encodings.

    def __init__(self, num_input_channels):
        self._num_input_channels = num_input_channels

    @property
    def num_input_channels(self):
        return self._num_input_channels

    def __call__(self, x_nchw):
        B, C, H, W = x_nchw.shape
        if C != self._num_input_channels:
            raise ValueError("channel mismatch")
        return jnp.transpose(x_nchw, (0, 2, 3, 1)).reshape(B, H * W, C)


# --------------------------------------------------------------------------
if __name__ == "__main__":
    key = jax.random.PRNGKey(0)
    k_param, k_input = jax.random.split(key)

    B, C_in, H, W = 2, 32, 16, 16
    cfg = dict(
        num_input_channels=C_in,
        num_latents=32,
        num_latent_channels=128,            # lane-dense latent channels
        num_cross_attention_heads=4,
        num_cross_attention_qk_channels=None,
        num_cross_attention_v_channels=None,
        num_cross_attention_layers=1,
        first_cross_attention_layer_shared=False,
        cross_attention_widening_factor=1,
        num_self_attention_heads=4,
        num_self_attention_qk_channels=None,
        num_self_attention_v_channels=None,
        num_self_attention_layers_per_block=2,
        num_self_attention_blocks=2,        # second block re-uses shared weights
        first_self_attention_block_shared=True,
        self_attention_widening_factor=1,
        init_scale=0.02,
    )

    adapter = ImageFlattenInputAdapter(C_in)
    params = init_perceiver_encoder(k_param, cfg)

    x_img = jax.random.normal(k_input, (B, C_in, H, W), dtype=jnp.float32)
    x_adapted = adapter(x_img)                            # (2, 256, 32)

    encode = jax.jit(lambda p, x: perceiver_encoder_forward(p, cfg, x))
    out = jax.block_until_ready(encode(params, x_adapted))

    ref = reference_forward(params, cfg, x_adapted)

    assert out.shape == (B, cfg["num_latents"], cfg["num_latent_channels"])
    assert bool(jnp.all(jnp.isfinite(out)))
    max_err = float(jnp.max(jnp.abs(out - ref)))
    assert bool(jnp.allclose(out, ref, rtol=1e-2, atol=1e-3)), max_err
    print("KERNEL_OK")
</pallas_src>

<mosaic_0001>
module attributes {stable_mosaic.version = 11 : i64} {
  func.func @_mlp_residual_kernel(%arg0: i32, %arg1: memref<1x32x128xf32, #tpu.memory_space<vmem>>, %arg2: memref<1x128xf32, #tpu.memory_space<vmem>>, %arg3: memref<1x128xf32, #tpu.memory_space<vmem>>, %arg4: memref<128x128xf32, #tpu.memory_space<vmem>>, %arg5: memref<1x128xf32, #tpu.memory_space<vmem>>, %arg6: memref<128x128xf32, #tpu.memory_space<vmem>>, %arg7: memref<1x128xf32, #tpu.memory_space<vmem>>, %arg8: memref<1x32x128xf32, #tpu.memory_space<vmem>>) attributes {dimension_semantics = [#tpu.dimension_semantics<parallel>], iteration_bounds = array<i64: 2>, scalar_prefetch = 0 : i64, scratch_operands = 0 : i64, tpu.core_type = #tpu.core_type<tc>, window_params = [{transform_indices = @transform_0, window_bounds = array<i64: 1, 32, 128>}, {pipeline_mode = #tpu.pipeline_mode<synchronous>, transform_indices = @transform_1, window_bounds = array<i64: 1, 128>}, {pipeline_mode = #tpu.pipeline_mode<synchronous>, transform_indices = @transform_2, window_bounds = array<i64: 1, 128>}, {pipeline_mode = #tpu.pipeline_mode<synchronous>, transform_indices = @transform_3, window_bounds = array<i64: 128, 128>}, {pipeline_mode = #tpu.pipeline_mode<synchronous>, transform_indices = @transform_4, window_bounds = array<i64: 1, 128>}, {pipeline_mode = #tpu.pipeline_mode<synchronous>, transform_indices = @transform_5, window_bounds = array<i64: 128, 128>}, {pipeline_mode = #tpu.pipeline_mode<synchronous>, transform_indices = @transform_6, window_bounds = array<i64: 1, 128>}, {transform_indices = @transform_7, window_bounds = array<i64: 1, 32, 128>}]} {
    %c0 = arith.constant 0 : index
    %c0_0 = arith.constant 0 : index
    %c0_1 = arith.constant 0 : index
    %0 = vector.load %arg1[%c0, %c0_0, %c0_1] : memref<1x32x128xf32, #tpu.memory_space<vmem>>, vector<1x32x128xf32>
    %1 = vector.shape_cast %0 : vector<1x32x128xf32> to vector<32x128xf32>
    %c0_2 = arith.constant 0 : index
    %c0_3 = arith.constant 0 : index
    %2 = vector.load %arg2[%c0_2, %c0_3] : memref<1x128xf32, #tpu.memory_space<vmem>>, vector<1x128xf32>
    %c0_4 = arith.constant 0 : index
    %c0_5 = arith.constant 0 : index
    %3 = vector.load %arg3[%c0_4, %c0_5] : memref<1x128xf32, #tpu.memory_space<vmem>>, vector<1x128xf32>
    %cst = arith.constant dense<0.000000e+00> : vector<32xf32>
    %4 = vector.multi_reduction <add>, %1, %cst [1] : vector<32x128xf32> to vector<32xf32>
    %5 = vector.shape_cast %4 : vector<32xf32> to vector<32x1xf32>
    %cst_6 = arith.constant 1.280000e+02 : f32
    %6 = vector.broadcast %cst_6 : f32 to vector<32x1xf32>
    %7 = arith.divf %5, %6 : vector<32x1xf32>
    %8 = vector.broadcast %7 : vector<32x1xf32> to vector<32x128xf32>
    %9 = arith.subf %1, %8 : vector<32x128xf32>
    %10 = arith.mulf %9, %9 : vector<32x128xf32>
    %cst_7 = arith.constant dense<0.000000e+00> : vector<32xf32>
    %11 = vector.multi_reduction <add>, %10, %cst_7 [1] : vector<32x128xf32> to vector<32xf32>
    %12 = vector.shape_cast %11 : vector<32xf32> to vector<32x1xf32>
    %cst_8 = arith.constant 1.280000e+02 : f32
    %13 = vector.broadcast %cst_8 : f32 to vector<32x1xf32>
    %14 = arith.divf %12, %13 : vector<32x1xf32>
    %cst_9 = arith.constant 9.99999974E-6 : f32
    %15 = vector.broadcast %cst_9 : f32 to vector<32x1xf32>
    %16 = arith.addf %14, %15 : vector<32x1xf32>
    %17 = math.rsqrt %16 : vector<32x1xf32>
    %18 = vector.broadcast %17 : vector<32x1xf32> to vector<32x128xf32>
    %19 = arith.mulf %9, %18 : vector<32x128xf32>
    %20 = vector.broadcast %2 : vector<1x128xf32> to vector<32x128xf32>
    %21 = arith.mulf %19, %20 : vector<32x128xf32>
    %22 = vector.broadcast %3 : vector<1x128xf32> to vector<32x128xf32>
    %23 = arith.addf %21, %22 : vector<32x128xf32>
    %c0_10 = arith.constant 0 : index
    %c0_11 = arith.constant 0 : index
    %24 = vector.load %arg4[%c0_10, %c0_11] : memref<128x128xf32, #tpu.memory_space<vmem>>, vector<128x128xf32>
    %cst_12 = arith.constant dense<0.000000e+00> : vector<32x128xf32>
    %25 = tpu.matmul %23, %24, %cst_12 {dimension_numbers = #tpu.dot_dimension_numbers<[1], [0], [0], [1], [0, 0, 1, 1], [], []>} : vector<32x128xf32>, vector<128x128xf32>, vector<32x128xf32> -> vector<32x128xf32>
    %c0_13 = arith.constant 0 : index
    %c0_14 = arith.constant 0 : index
    %26 = vector.load %arg5[%c0_13, %c0_14] : memref<1x128xf32, #tpu.memory_space<vmem>>, vector<1x128xf32>
    %27 = vector.broadcast %26 : vector<1x128xf32> to vector<32x128xf32>
    %28 = arith.addf %25, %27 : vector<32x128xf32>
    %cst_15 = arith.constant 5.000000e-01 : f32
    %29 = vector.broadcast %cst_15 : f32 to vector<32x128xf32>
    %30 = arith.mulf %29, %28 : vector<32x128xf32>
    %cst_16 = arith.constant 4.471500e-02 : f32
    %31 = vector.broadcast %cst_16 : f32 to vector<32x128xf32>
    %32 = arith.mulf %31, %28 : vector<32x128xf32>
    %33 = arith.mulf %32, %28 : vector<32x128xf32>
    %34 = arith.mulf %33, %28 : vector<32x128xf32>
    %35 = arith.addf %28, %34 : vector<32x128xf32>
    %cst_17 = arith.constant 0.797884583 : f32
    %36 = vector.broadcast %cst_17 : f32 to vector<32x128xf32>
    %37 = arith.mulf %36, %35 : vector<32x128xf32>
    %38 = math.tanh %37 : vector<32x128xf32>
    %cst_18 = arith.constant 1.000000e+00 : f32
    %39 = vector.broadcast %cst_18 : f32 to vector<32x128xf32>
    %40 = arith.addf %39, %38 : vector<32x128xf32>
    %41 = arith.mulf %30, %40 : vector<32x128xf32>
    %c0_19 = arith.constant 0 : index
    %c0_20 = arith.constant 0 : index
    %42 = vector.load %arg6[%c0_19, %c0_20] : memref<128x128xf32, #tpu.memory_space<vmem>>, vector<128x128xf32>
    %cst_21 = arith.constant dense<0.000000e+00> : vector<32x128xf32>
    %43 = tpu.matmul %41, %42, %cst_21 {dimension_numbers = #tpu.dot_dimension_numbers<[1], [0], [0], [1], [0, 0, 1, 1], [], []>} : vector<32x128xf32>, vector<128x128xf32>, vector<32x128xf32> -> vector<32x128xf32>
    %c0_22 = arith.constant 0 : index
    %c0_23 = arith.constant 0 : index
    %44 = vector.load %arg7[%c0_22, %c0_23] : memref<1x128xf32, #tpu.memory_space<vmem>>, vector<1x128xf32>
    %45 = vector.broadcast %44 : vector<1x128xf32> to vector<32x128xf32>
    %46 = arith.addf %43, %45 : vector<32x128xf32>
    %47 = arith.addf %46, %1 : vector<32x128xf32>
    %c0_24 = arith.constant 0 : index
    %c0_25 = arith.constant 0 : index
    %c0_26 = arith.constant 0 : index
    %48 = vector.load %arg8[%c0_24, %c0_25, %c0_26] : memref<1x32x128xf32, #tpu.memory_space<vmem>>, vector<1x32x128xf32>
    %49 = vector.shape_cast %48 : vector<1x32x128xf32> to vector<32x128xf32>
    %50 = vector.shape_cast %47 : vector<32x128xf32> to vector<1x32x128xf32>
    tpu.vector_store %arg8[%c0_24, %c0_25, %c0_26], %50 {strides = array<i32>} : memref<1x32x128xf32, #tpu.memory_space<vmem>>, vector<1x32x128xf32>,
    return
  }
  func.func @transform_0(%arg0: i32) -> (i32, i32, i32) {
    %c0_i32 = arith.constant 0 : i32
    %c0_i32_0 = arith.constant 0 : i32
    %c0_i32_1 = arith.constant 0 : i32
    return %arg0, %c0_i32, %c0_i32_0 : i32, i32, i32
  }
  func.func @transform_1(%arg0: i32) -> (i32, i32) {
    %c0_i32 = arith.constant 0 : i32
    %c0_i32_0 = arith.constant 0 : i32
    %c0_i32_1 = arith.constant 0 : i32
    return %c0_i32, %c0_i32_0 : i32, i32
  }
  func.func @transform_2(%arg0: i32) -> (i32, i32) {
    %c0_i32 = arith.constant 0 : i32
    %c0_i32_0 = arith.constant 0 : i32
    %c0_i32_1 = arith.constant 0 : i32
    return %c0_i32, %c0_i32_0 : i32, i32
  }
  func.func @transform_3(%arg0: i32) -> (i32, i32) {
    %c0_i32 = arith.constant 0 : i32
    %c0_i32_0 = arith.constant 0 : i32
    %c0_i32_1 = arith.constant 0 : i32
    return %c0_i32, %c0_i32_0 : i32, i32
  }
  func.func @transform_4(%arg0: i32) -> (i32, i32) {
    %c0_i32 = arith.constant 0 : i32
    %c0_i32_0 = arith.constant 0 : i32
    %c0_i32_1 = arith.constant 0 : i32
    return %c0_i32, %c0_i32_0 : i32, i32
  }
  func.func @transform_5(%arg0: i32) -> (i32, i32) {
    %c0_i32 = arith.constant 0 : i32
    %c0_i32_0 = arith.constant 0 : i32
    %c0_i32_1 = arith.constant 0 : i32
    return %c0_i32, %c0_i32_0 : i32, i32
  }
  func.func @transform_6(%arg0: i32) -> (i32, i32) {
    %c0_i32 = arith.constant 0 : i32
    %c0_i32_0 = arith.constant 0 : i32
    %c0_i32_1 = arith.constant 0 : i32
    return %c0_i32, %c0_i32_0 : i32, i32
  }
  func.func @transform_7(%arg0: i32) -> (i32, i32, i32) {
    %c0_i32 = arith.constant 0 : i32
    %c0_i32_0 = arith.constant 0 : i32
    %c0_i32_1 = arith.constant 0 : i32
    return %arg0, %c0_i32, %c0_i32_0 : i32, i32, i32
  }
}

module attributes {stable_mosaic.version = 11 : i64} {
  func.func @kernel(%arg0: i32, %arg1: memref<1x32x128xf32, #tpu.memory_space<vmem>>, %arg2: memref<1x256x32xf32, #tpu.memory_space<vmem>>, %arg3: memref<1x128xf32, #tpu.memory_space<vmem>>, %arg4: memref<1x128xf32, #tpu.memory_space<vmem>>, %arg5: memref<1x32xf32, #tpu.memory_space<vmem>>, %arg6: memref<1x32xf32, #tpu.memory_space<vmem>>, %arg7: memref<128x128xf32, #tpu.memory_space<vmem>>, %arg8: memref<1x128xf32, #tpu.memory_space<vmem>>, %arg9: memref<32x128xf32, #tpu.memory_space<vmem>>, %arg10: memref<1x128xf32, #tpu.memory_space<vmem>>, %arg11: memref<32x128xf32, #tpu.memory_space<vmem>>, %arg12: memref<1x128xf32, #tpu.memory_space<vmem>>, %arg13: memref<128x128xf32, #tpu.memory_space<vmem>>, %arg14: memref<1x128xf32, #tpu.memory_space<vmem>>, %arg15: memref<1x32x128xf32, #tpu.memory_space<vmem>>) attributes {dimension_semantics = [#tpu.dimension_semantics<parallel>], iteration_bounds = array<i64: 2>, scalar_prefetch = 0 : i64, scratch_operands = 0 : i64, tpu.core_type = #tpu.core_type<tc>, window_params = [{transform_indices = @transform_0, window_bounds = array<i64: 1, 32, 128>}, {transform_indices = @transform_1, window_bounds = array<i64: 1, 256, 32>}, {pipeline_mode = #tpu.pipeline_mode<synchronous>, transform_indices = @transform_2, window_bounds = array<i64: 1, 128>}, {pipeline_mode = #tpu.pipeline_mode<synchronous>, transform_indices = @transform_3, window_bounds = array<i64: 1, 128>}, {pipeline_mode = #tpu.pipeline_mode<synchronous>, transform_indices = @transform_4, window_bounds = array<i64: 1, 32>}, {pipeline_mode = #tpu.pipeline_mode<synchronous>, transform_indices = @transform_5, window_bounds = array<i64: 1, 32>}, {pipeline_mode = #tpu.pipeline_mode<synchronous>, transform_indices = @transform_6, window_bounds = array<i64: 128, 128>}, {pipeline_mode = #tpu.pipeline_mode<synchronous>, transform_indices = @transform_7, window_bounds = array<i64: 1, 128>}, {pipeline_mode = #tpu.pipeline_mode<synchronous>, transform_indices = @transform_8, window_bounds = array<i64: 32, 128>}, {pipeline_mode = #tpu.pipeline_mode<synchronous>, transform_indices = @transform_9, window_bounds = array<i64: 1, 128>}, {pipeline_mode = #tpu.pipeline_mode<synchronous>, transform_indices = @transform_10, window_bounds = array<i64: 32, 128>}, {pipeline_mode = #tpu.pipeline_mode<synchronous>, transform_indices = @transform_11, window_bounds = array<i64: 1, 128>}, {pipeline_mode = #tpu.pipeline_mode<synchronous>, transform_indices = @transform_12, window_bounds = array<i64: 128, 128>}, {pipeline_mode = #tpu.pipeline_mode<synchronous>, transform_indices = @transform_13, window_bounds = array<i64: 1, 128>}, {transform_indices = @transform_14, window_bounds = array<i64: 1, 32, 128>}]} {
    %c0 = arith.constant 0 : index
    %c0_0 = arith.constant 0 : index
    %c0_1 = arith.constant 0 : index
    %0 = vector.load %arg1[%c0, %c0_0, %c0_1] : memref<1x32x128xf32, #tpu.memory_space<vmem>>, vector<1x32x128xf32>
    %1 = vector.shape_cast %0 : vector<1x32x128xf32> to vector<32x128xf32>
    %c0_2 = arith.constant 0 : index
    %c0_3 = arith.constant 0 : index
    %c0_4 = arith.constant 0 : index
    %2 = vector.load %arg2[%c0_2, %c0_3, %c0_4] : memref<1x256x32xf32, #tpu.memory_space<vmem>>, vector<1x256x32xf32>
    %3 = vector.shape_cast %2 : vector<1x256x32xf32> to vector<256x32xf32>
    %c0_5 = arith.constant 0 : index
    %c0_6 = arith.constant 0 : index
    %4 = vector.load %arg3[%c0_5, %c0_6] : memref<1x128xf32, #tpu.memory_space<vmem>>, vector<1x128xf32>
    %c0_7 = arith.constant 0 : index
    %c0_8 = arith.constant 0 : index
    %5 = vector.load %arg4[%c0_7, %c0_8] : memref<1x128xf32, #tpu.memory_space<vmem>>, vector<1x128xf32>
    %cst = arith.constant dense<0.000000e+00> : vector<32xf32>
    %6 = vector.multi_reduction <add>, %1, %cst [1] : vector<32x128xf32> to vector<32xf32>
    %7 = vector.shape_cast %6 : vector<32xf32> to vector<32x1xf32>
    %cst_9 = arith.constant 1.280000e+02 : f32
    %8 = vector.broadcast %cst_9 : f32 to vector<32x1xf32>
    %9 = arith.divf %7, %8 : vector<32x1xf32>
    %10 = vector.broadcast %9 : vector<32x1xf32> to vector<32x128xf32>
    %11 = arith.subf %1, %10 : vector<32x128xf32>
    %12 = arith.mulf %11, %11 : vector<32x128xf32>
    %cst_10 = arith.constant dense<0.000000e+00> : vector<32xf32>
    %13 = vector.multi_reduction <add>, %12, %cst_10 [1] : vector<32x128xf32> to vector<32xf32>
    %14 = vector.shape_cast %13 : vector<32xf32> to vector<32x1xf32>
    %cst_11 = arith.constant 1.280000e+02 : f32
    %15 = vector.broadcast %cst_11 : f32 to vector<32x1xf32>
    %16 = arith.divf %14, %15 : vector<32x1xf32>
    %cst_12 = arith.constant 9.99999974E-6 : f32
    %17 = vector.broadcast %cst_12 : f32 to vector<32x1xf32>
    %18 = arith.addf %16, %17 : vector<32x1xf32>
    %19 = math.rsqrt %18 : vector<32x1xf32>
    %20 = vector.broadcast %19 : vector<32x1xf32> to vector<32x128xf32>
    %21 = arith.mulf %11, %20 : vector<32x128xf32>
    %22 = vector.broadcast %4 : vector<1x128xf32> to vector<32x128xf32>
    %23 = arith.mulf %21, %22 : vector<32x128xf32>
    %24 = vector.broadcast %5 : vector<1x128xf32> to vector<32x128xf32>
    %25 = arith.addf %23, %24 : vector<32x128xf32>
    %c0_13 = arith.constant 0 : index
    %c0_14 = arith.constant 0 : index
    %26 = vector.load %arg5[%c0_13, %c0_14] : memref<1x32xf32, #tpu.memory_space<vmem>>, vector<1x32xf32>
    %c0_15 = arith.constant 0 : index
    %c0_16 = arith.constant 0 : index
    %27 = vector.load %arg6[%c0_15, %c0_16] : memref<1x32xf32, #tpu.memory_space<vmem>>, vector<1x32xf32>
    %cst_17 = arith.constant dense<0.000000e+00> : vector<256xf32>
    %28 = vector.multi_reduction <add>, %3, %cst_17 [1] : vector<256x32xf32> to vector<256xf32>
    %29 = vector.shape_cast %28 : vector<256xf32> to vector<256x1xf32>
    %cst_18 = arith.constant 3.200000e+01 : f32
    %30 = vector.broadcast %cst_18 : f32 to vector<256x1xf32>
    %31 = arith.divf %29, %30 : vector<256x1xf32>
    %32 = vector.broadcast %31 : vector<256x1xf32> to vector<256x32xf32>
    %33 = arith.subf %3, %32 : vector<256x32xf32>
    %34 = arith.mulf %33, %33 : vector<256x32xf32>
    %cst_19 = arith.constant dense<0.000000e+00> : vector<256xf32>
    %35 = vector.multi_reduction <add>, %34, %cst_19 [1] : vector<256x32xf32> to vector<256xf32>
    %36 = vector.shape_cast %35 : vector<256xf32> to vector<256x1xf32>
    %cst_20 = arith.constant 3.200000e+01 : f32
    %37 = vector.broadcast %cst_20 : f32 to vector<256x1xf32>
    %38 = arith.divf %36, %37 : vector<256x1xf32>
    %cst_21 = arith.constant 9.99999974E-6 : f32
    %39 = vector.broadcast %cst_21 : f32 to vector<256x1xf32>
    %40 = arith.addf %38, %39 : vector<256x1xf32>
    %41 = math.rsqrt %40 : vector<256x1xf32>
    %42 = vector.broadcast %41 : vector<256x1xf32> to vector<256x32xf32>
    %43 = arith.mulf %33, %42 : vector<256x32xf32>
    %44 = vector.broadcast %26 : vector<1x32xf32> to vector<256x32xf32>
    %45 = arith.mulf %43, %44 : vector<256x32xf32>
    %46 = vector.broadcast %27 : vector<1x32xf32> to vector<256x32xf32>
    %47 = arith.addf %45, %46 : vector<256x32xf32>
    %c0_22 = arith.constant 0 : index
    %c0_23 = arith.constant 0 : index
    %48 = vector.load %arg7[%c0_22, %c0_23] : memref<128x128xf32, #tpu.memory_space<vmem>>, vector<128x128xf32>
    %cst_24 = arith.constant dense<0.000000e+00> : vector<32x128xf32>
    %49 = tpu.matmul %25, %48, %cst_24 {dimension_numbers = #tpu.dot_dimension_numbers<[1], [0], [0], [1], [0, 0, 1, 1], [], []>} : vector<32x128xf32>, vector<128x128xf32>, vector<32x128xf32> -> vector<32x128xf32>
    %c0_25 = arith.constant 0 : index
    %c0_26 = arith.constant 0 : index
    %50 = vector.load %arg8[%c0_25, %c0_26] : memref<1x128xf32, #tpu.memory_space<vmem>>, vector<1x128xf32>
    %51 = vector.broadcast %50 : vector<1x128xf32> to vector<32x128xf32>
    %52 = arith.addf %49, %51 : vector<32x128xf32>
    %c0_27 = arith.constant 0 : index
    %c0_28 = arith.constant 0 : index
    %53 = vector.load %arg9[%c0_27, %c0_28] : memref<32x128xf32, #tpu.memory_space<vmem>>, vector<32x128xf32>
    %cst_29 = arith.constant dense<0.000000e+00> : vector<256x128xf32>
    %54 = tpu.matmul %47, %53, %cst_29 {dimension_numbers = #tpu.dot_dimension_numbers<[1], [0], [0], [1], [0, 0, 1, 1], [], []>} : vector<256x32xf32>, vector<32x128xf32>, vector<256x128xf32> -> vector<256x128xf32>
    %c0_30 = arith.constant 0 : index
    %c0_31 = arith.constant 0 : index
    %55 = vector.load %arg10[%c0_30, %c0_31] : memref<1x128xf32, #tpu.memory_space<vmem>>, vector<1x128xf32>
    %56 = vector.broadcast %55 : vector<1x128xf32> to vector<256x128xf32>
    %57 = arith.addf %54, %56 : vector<256x128xf32>
    %c0_32 = arith.constant 0 : index
    %c0_33 = arith.constant 0 : index
    %58 = vector.load %arg11[%c0_32, %c0_33] : memref<32x128xf32, #tpu.memory_space<vmem>>, vector<32x128xf32>
    %cst_34 = arith.constant dense<0.000000e+00> : vector<256x128xf32>
    %59 = tpu.matmul %47, %58, %cst_34 {dimension_numbers = #tpu.dot_dimension_numbers<[1], [0], [0], [1], [0, 0, 1, 1], [], []>} : vector<256x32xf32>, vector<32x128xf32>, vector<256x128xf32> -> vector<256x128xf32>
    %c0_35 = arith.constant 0 : index
    %c0_36 = arith.constant 0 : index
    %60 = vector.load %arg12[%c0_35, %c0_36] : memref<1x128xf32, #tpu.memory_space<vmem>>, vector<1x128xf32>
    %61 = vector.broadcast %60 : vector<1x128xf32> to vector<256x128xf32>
    %62 = arith.addf %59, %61 : vector<256x128xf32>
    %cst_37 = arith.constant 0.000000e+00 : f32
    %63 = vector.broadcast %cst_37 : f32 to vector<32x128xf32>
    %64 = vector.extract_strided_slice %52 {offsets = [0, 0], sizes = [32, 32], strides = [1, 1]} : vector<32x128xf32> to vector<32x32xf32>
    %65 = vector.extract_strided_slice %57 {offsets = [0, 0], sizes = [256, 32], strides = [1, 1]} : vector<256x128xf32> to vector<256x32xf32>
    %66 = vector.extract_strided_slice %62 {offsets = [0, 0], sizes = [256, 32], strides = [1, 1]} : vector<256x128xf32> to vector<256x32xf32>
    %cst_38 = arith.constant dense<0.000000e+00> : vector<32x256xf32>
    %67 = tpu.matmul %64, %65, %cst_38 {dimension_numbers = #tpu.dot_dimension_numbers<[1], [1], [0], [0], [0, 0, 1, 0], [], []>} : vector<32x32xf32>, vector<256x32xf32>, vector<32x256xf32> -> vector<32x256xf32>
    %cst_39 = arith.constant 0.176776692 : f32
    %68 = vector.broadcast %cst_39 : f32 to vector<32x256xf32>
    %69 = arith.mulf %67, %68 : vector<32x256xf32>
    %cst_40 = arith.constant dense<0xFF800000> : vector<32xf32>
    %70 = vector.multi_reduction <maximumf>, %69, %cst_40 [1] : vector<32x256xf32> to vector<32xf32>
    %71 = vector.shape_cast %70 : vector<32xf32> to vector<32x1xf32>
    %72 = vector.broadcast %71 : vector<32x1xf32> to vector<32x256xf32>
    %73 = arith.subf %69, %72 : vector<32x256xf32>
    %74 = math.exp %73 : vector<32x256xf32>
    %cst_41 = arith.constant dense<0.000000e+00> : vector<32xf32>
    %75 = vector.multi_reduction <add>, %74, %cst_41 [1] : vector<32x256xf32> to vector<32xf32>
    %76 = vector.shape_cast %75 : vector<32xf32> to vector<32x1xf32>
    %77 = vector.broadcast %76 : vector<32x1xf32> to vector<32x256xf32>
    %78 = arith.divf %74, %77 : vector<32x256xf32>
    %cst_42 = arith.constant dense<0.000000e+00> : vector<32x32xf32>
    %79 = tpu.matmul %78, %66, %cst_42 {dimension_numbers = #tpu.dot_dimension_numbers<[1], [0], [0], [1], [0, 0, 1, 1], [], []>} : vector<32x256xf32>, vector<256x32xf32>, vector<32x32xf32> -> vector<32x32xf32>
    %c0_43 = arith.constant 0 : index
    %c0_44 = arith.constant 0 : index
    %80 = vector.load %arg13[%c0_43, %c0_44] : memref<128x128xf32, #tpu.memory_space<vmem>>, vector<32x128xf32>
    %cst_45 = arith.constant dense<0.000000e+00> : vector<32x128xf32>
    %81 = tpu.matmul %79, %80, %cst_45 {dimension_numbers = #tpu.dot_dimension_numbers<[1], [0], [0], [1], [0, 0, 1, 1], [], []>} : vector<32x32xf32>, vector<32x128xf32>, vector<32x128xf32> -> vector<32x128xf32>
    %82 = arith.addf %63, %81 : vector<32x128xf32>
    %83 = vector.extract_strided_slice %52 {offsets = [0, 32], sizes = [32, 32], strides = [1, 1]} : vector<32x128xf32> to vector<32x32xf32>
    %84 = vector.extract_strided_slice %57 {offsets = [0, 32], sizes = [256, 32], strides = [1, 1]} : vector<256x128xf32> to vector<256x32xf32>
    %85 = vector.extract_strided_slice %62 {offsets = [0, 32], sizes = [256, 32], strides = [1, 1]} : vector<256x128xf32> to vector<256x32xf32>
    %cst_46 = arith.constant dense<0.000000e+00> : vector<32x256xf32>
    %86 = tpu.matmul %83, %84, %cst_46 {dimension_numbers = #tpu.dot_dimension_numbers<[1], [1], [0], [0], [0, 0, 1, 0], [], []>} : vector<32x32xf32>, vector<256x32xf32>, vector<32x256xf32> -> vector<32x256xf32>
    %cst_47 = arith.constant 0.176776692 : f32
    %87 = vector.broadcast %cst_47 : f32 to vector<32x256xf32>
    %88 = arith.mulf %86, %87 : vector<32x256xf32>
    %cst_48 = arith.constant dense<0xFF800000> : vector<32xf32>
    %89 = vector.multi_reduction <maximumf>, %88, %cst_48 [1] : vector<32x256xf32> to vector<32xf32>
    %90 = vector.shape_cast %89 : vector<32xf32> to vector<32x1xf32>
    %91 = vector.broadcast %90 : vector<32x1xf32> to vector<32x256xf32>
    %92 = arith.subf %88, %91 : vector<32x256xf32>
    %93 = math.exp %92 : vector<32x256xf32>
    %cst_49 = arith.constant dense<0.000000e+00> : vector<32xf32>
    %94 = vector.multi_reduction <add>, %93, %cst_49 [1] : vector<32x256xf32> to vector<32xf32>
    %95 = vector.shape_cast %94 : vector<32xf32> to vector<32x1xf32>
    %96 = vector.broadcast %95 : vector<32x1xf32> to vector<32x256xf32>
    %97 = arith.divf %93, %96 : vector<32x256xf32>
    %cst_50 = arith.constant dense<0.000000e+00> : vector<32x32xf32>
    %98 = tpu.matmul %97, %85, %cst_50 {dimension_numbers = #tpu.dot_dimension_numbers<[1], [0], [0], [1], [0, 0, 1, 1], [], []>} : vector<32x256xf32>, vector<256x32xf32>, vector<32x32xf32> -> vector<32x32xf32>
    %c32 = arith.constant 32 : index
    %c0_51 = arith.constant 0 : index
    %99 = vector.load %arg13[%c32, %c0_51] : memref<128x128xf32, #tpu.memory_space<vmem>>, vector<32x128xf32>
    %cst_52 = arith.constant dense<0.000000e+00> : vector<32x128xf32>
    %100 = tpu.matmul %98, %99, %cst_52 {dimension_numbers = #tpu.dot_dimension_numbers<[1], [0], [0], [1], [0, 0, 1, 1], [], []>} : vector<32x32xf32>, vector<32x128xf32>, vector<32x128xf32> -> vector<32x128xf32>
    %101 = arith.addf %82, %100 : vector<32x128xf32>
    %102 = vector.extract_strided_slice %52 {offsets = [0, 64], sizes = [32, 32], strides = [1, 1]} : vector<32x128xf32> to vector<32x32xf32>
    %103 = vector.extract_strided_slice %57 {offsets = [0, 64], sizes = [256, 32], strides = [1, 1]} : vector<256x128xf32> to vector<256x32xf32>
    %104 = vector.extract_strided_slice %62 {offsets = [0, 64], sizes = [256, 32], strides = [1, 1]} : vector<256x128xf32> to vector<256x32xf32>
    %cst_53 = arith.constant dense<0.000000e+00> : vector<32x256xf32>
    %105 = tpu.matmul %102, %103, %cst_53 {dimension_numbers = #tpu.dot_dimension_numbers<[1], [1], [0], [0], [0, 0, 1, 0], [], []>} : vector<32x32xf32>, vector<256x32xf32>, vector<32x256xf32> -> vector<32x256xf32>
    %cst_54 = arith.constant 0.176776692 : f32
    %106 = vector.broadcast %cst_54 : f32 to vector<32x256xf32>
    %107 = arith.mulf %105, %106 : vector<32x256xf32>
    %cst_55 = arith.constant dense<0xFF800000> : vector<32xf32>
    %108 = vector.multi_reduction <maximumf>, %107, %cst_55 [1] : vector<32x256xf32> to vector<32xf32>
    %109 = vector.shape_cast %108 : vector<32xf32> to vector<32x1xf32>
    %110 = vector.broadcast %109 : vector<32x1xf32> to vector<32x256xf32>
    %111 = arith.subf %107, %110 : vector<32x256xf32>
    %112 = math.exp %111 : vector<32x256xf32>
    %cst_56 = arith.constant dense<0.000000e+00> : vector<32xf32>
    %113 = vector.multi_reduction <add>, %112, %cst_56 [1] : vector<32x256xf32> to vector<32xf32>
    %114 = vector.shape_cast %113 : vector<32xf32> to vector<32x1xf32>
    %115 = vector.broadcast %114 : vector<32x1xf32> to vector<32x256xf32>
    %116 = arith.divf %112, %115 : vector<32x256xf32>
    %cst_57 = arith.constant dense<0.000000e+00> : vector<32x32xf32>
    %117 = tpu.matmul %116, %104, %cst_57 {dimension_numbers = #tpu.dot_dimension_numbers<[1], [0], [0], [1], [0, 0, 1, 1], [], []>} : vector<32x256xf32>, vector<256x32xf32>, vector<32x32xf32> -> vector<32x32xf32>
    %c64 = arith.constant 64 : index
    %c0_58 = arith.constant 0 : index
    %118 = vector.load %arg13[%c64, %c0_58] : memref<128x128xf32, #tpu.memory_space<vmem>>, vector<32x128xf32>
    %cst_59 = arith.constant dense<0.000000e+00> : vector<32x128xf32>
    %119 = tpu.matmul %117, %118, %cst_59 {dimension_numbers = #tpu.dot_dimension_numbers<[1], [0], [0], [1], [0, 0, 1, 1], [], []>} : vector<32x32xf32>, vector<32x128xf32>, vector<32x128xf32> -> vector<32x128xf32>
    %120 = arith.addf %101, %119 : vector<32x128xf32>
    %121 = vector.extract_strided_slice %52 {offsets = [0, 96], sizes = [32, 32], strides = [1, 1]} : vector<32x128xf32> to vector<32x32xf32>
    %122 = vector.extract_strided_slice %57 {offsets = [0, 96], sizes = [256, 32], strides = [1, 1]} : vector<256x128xf32> to vector<256x32xf32>
    %123 = vector.extract_strided_slice %62 {offsets = [0, 96], sizes = [256, 32], strides = [1, 1]} : vector<256x128xf32> to vector<256x32xf32>
    %cst_60 = arith.constant dense<0.000000e+00> : vector<32x256xf32>
    %124 = tpu.matmul %121, %122, %cst_60 {dimension_numbers = #tpu.dot_dimension_numbers<[1], [1], [0], [0], [0, 0, 1, 0], [], []>} : vector<32x32xf32>, vector<256x32xf32>, vector<32x256xf32> -> vector<32x256xf32>
    %cst_61 = arith.constant 0.176776692 : f32
    %125 = vector.broadcast %cst_61 : f32 to vector<32x256xf32>
    %126 = arith.mulf %124, %125 : vector<32x256xf32>
    %cst_62 = arith.constant dense<0xFF800000> : vector<32xf32>
    %127 = vector.multi_reduction <maximumf>, %126, %cst_62 [1] : vector<32x256xf32> to vector<32xf32>
    %128 = vector.shape_cast %127 : vector<32xf32> to vector<32x1xf32>
    %129 = vector.broadcast %128 : vector<32x1xf32> to vector<32x256xf32>
    %130 = arith.subf %126, %129 : vector<32x256xf32>
    %131 = math.exp %130 : vector<32x256xf32>
    %cst_63 = arith.constant dense<0.000000e+00> : vector<32xf32>
    %132 = vector.multi_reduction <add>, %131, %cst_63 [1] : vector<32x256xf32> to vector<32xf32>
    %133 = vector.shape_cast %132 : vector<32xf32> to vector<32x1xf32>
    %134 = vector.broadcast %133 : vector<32x1xf32> to vector<32x256xf32>
    %135 = arith.divf %131, %134 : vector<32x256xf32>
    %cst_64 = arith.constant dense<0.000000e+00> : vector<32x32xf32>
    %136 = tpu.matmul %135, %123, %cst_64 {dimension_numbers = #tpu.dot_dimension_numbers<[1], [0], [0], [1], [0, 0, 1, 1], [], []>} : vector<32x256xf32>, vector<256x32xf32>, vector<32x32xf32> -> vector<32x32xf32>
    %c96 = arith.constant 96 : index
    %c0_65 = arith.constant 0 : index
    %137 = vector.load %arg13[%c96, %c0_65] : memref<128x128xf32, #tpu.memory_space<vmem>>, vector<32x128xf32>
    %cst_66 = arith.constant dense<0.000000e+00> : vector<32x128xf32>
    %138 = tpu.matmul %136, %137, %cst_66 {dimension_numbers = #tpu.dot_dimension_numbers<[1], [0], [0], [1], [0, 0, 1, 1], [], []>} : vector<32x32xf32>, vector<32x128xf32>, vector<32x128xf32> -> vector<32x128xf32>
    %139 = arith.addf %120, %138 : vector<32x128xf32>
    %c0_67 = arith.constant 0 : index
    %c0_68 = arith.constant 0 : index
    %140 = vector.load %arg14[%c0_67, %c0_68] : memref<1x128xf32, #tpu.memory_space<vmem>>, vector<1x128xf32>
    %141 = vector.broadcast %140 : vector<1x128xf32> to vector<32x128xf32>
    %142 = arith.addf %139, %141 : vector<32x128xf32>
    %143 = arith.addf %142, %1 : vector<32x128xf32>
    %c0_69 = arith.constant 0 : index
    %c0_70 = arith.constant 0 : index
    %c0_71 = arith.constant 0 : index
    %144 = vector.load %arg15[%c0_69, %c0_70, %c0_71] : memref<1x32x128xf32, #tpu.memory_space<vmem>>, vector<1x32x128xf32>
    %145 = vector.shape_cast %144 : vector<1x32x128xf32> to vector<32x128xf32>
    %146 = vector.shape_cast %143 : vector<32x128xf32> to vector<1x32x128xf32>
    tpu.vector_store %arg15[%c0_69, %c0_70, %c0_71], %146 {strides = array<i32>} : memref<1x32x128xf32, #tpu.memory_space<vmem>>, vector<1x32x128xf32>,
    return
  }
  func.func @transform_0(%arg0: i32) -> (i32, i32, i32) {
    %c0_i32 = arith.constant 0 : i32
    %c0_i32_0 = arith.constant 0 : i32
    %c0_i32_1 = arith.constant 0 : i32
    return %arg0, %c0_i32, %c0_i32_0 : i32, i32, i32
  }
  func.func @transform_1(%arg0: i32) -> (i32, i32, i32) {
    %c0_i32 = arith.constant 0 : i32
    %c0_i32_0 = arith.constant 0 : i32
    %c0_i32_1 = arith.constant 0 : i32
    return %arg0, %c0_i32, %c0_i32_0 : i32, i32, i32
  }
  func.func @transform_2(%arg0: i32) -> (i32, i32) {
    %c0_i32 = arith.constant 0 : i32
    %c0_i32_0 = arith.constant 0 : i32
    %c0_i32_1 = arith.constant 0 : i32
    return %c0_i32, %c0_i32_0 : i32, i32
  }
  func.func @transform_3(%arg0: i32) -> (i32, i32) {
    %c0_i32 = arith.constant 0 : i32
    %c0_i32_0 = arith.constant 0 : i32
    %c0_i32_1 = arith.constant 0 : i32
    return %c0_i32, %c0_i32_0 : i32, i32
  }
  func.func @transform_4(%arg0: i32) -> (i32, i32) {
    %c0_i32 = arith.constant 0 : i32
    %c0_i32_0 = arith.constant 0 : i32
    %c0_i32_1 = arith.constant 0 : i32
    return %c0_i32, %c0_i32_0 : i32, i32
  }
  func.func @transform_5(%arg0: i32) -> (i32, i32) {
    %c0_i32 = arith.constant 0 : i32
    %c0_i32_0 = arith.constant 0 : i32
    %c0_i32_1 = arith.constant 0 : i32
    return %c0_i32, %c0_i32_0 : i32, i32
  }
  func.func @transform_6(%arg0: i32) -> (i32, i32) {
    %c0_i32 = arith.constant 0 : i32
    %c0_i32_0 = arith.constant 0 : i32
    %c0_i32_1 = arith.constant 0 : i32
    return %c0_i32, %c0_i32_0 : i32, i32
  }
  func.func @transform_7(%arg0: i32) -> (i32, i32) {
    %c0_i32 = arith.constant 0 : i32
    %c0_i32_0 = arith.constant 0 : i32
    %c0_i32_1 = arith.constant 0 : i32
    return %c0_i32, %c0_i32_0 : i32, i32
  }
  func.func @transform_8(%arg0: i32) -> (i32, i32) {
    %c0_i32 = arith.constant 0 : i32
    %c0_i32_0 = arith.constant 0 : i32
    %c0_i32_1 = arith.constant 0 : i32
    return %c0_i32, %c0_i32_0 : i32, i32
  }
  func.func @transform_9(%arg0: i32) -> (i32, i32) {
    %c0_i32 = arith.constant 0 : i32
    %c0_i32_0 = arith.constant 0 : i32
    %c0_i32_1 = arith.constant 0 : i32
    return %c0_i32, %c0_i32_0 : i32, i32
  }
  func.func @transform_10(%arg0: i32) -> (i32, i32) {
    %c0_i32 = arith.constant 0 : i32
    %c0_i32_0 = arith.constant 0 : i32
    %c0_i32_1 = arith.constant 0 : i32
    return %c0_i32, %c0_i32_0 : i32, i32
  }
  func.func @transform_11(%arg0: i32) -> (i32, i32) {
    %c0_i32 = arith.constant 0 : i32
    %c0_i32_0 = arith.constant 0 : i32
    %c0_i32_1 = arith.constant 0 : i32
    return %c0_i32, %c0_i32_0 : i32, i32
  }
  func.func @transform_12(%arg0: i32) -> (i32, i32) {
    %c0_i32 = arith.constant 0 : i32
    %c0_i32_0 = arith.constant 0 : i32
    %c0_i32_1 = arith.constant 0 : i32
    return %c0_i32, %c0_i32_0 : i32, i32
  }
  func.func @transform_13(%arg0: i32) -> (i32, i32) {
    %c0_i32 = arith.constant 0 : i32
    %c0_i32_0 = arith.constant 0 : i32
    %c0_i32_1 = arith.constant 0 : i32
    return %c0_i32, %c0_i32_0 : i32, i32
  }
  func.func @transform_14(%arg0: i32) -> (i32, i32, i32) {
    %c0_i32 = arith.constant 0 : i32
    %c0_i32_0 = arith.constant 0 : i32
    %c0_i32_1 = arith.constant 0 : i32
    return %arg0, %c0_i32, %c0_i32_0 : i32, i32, i32
  }
}

module attributes {stable_mosaic.version = 11 : i64} {
  func.func @_mlp_residual_kernel(%arg0: i32, %arg1: memref<1x32x128xf32, #tpu.memory_space<vmem>>, %arg2: memref<1x128xf32, #tpu.memory_space<vmem>>, %arg3: memref<1x128xf32, #tpu.memory_space<vmem>>, %arg4: memref<128x128xf32, #tpu.memory_space<vmem>>, %arg5: memref<1x128xf32, #tpu.memory_space<vmem>>, %arg6: memref<128x128xf32, #tpu.memory_space<vmem>>, %arg7: memref<1x128xf32, #tpu.memory_space<vmem>>, %arg8: memref<1x32x128xf32, #tpu.memory_space<vmem>>) attributes {dimension_semantics = [#tpu.dimension_semantics<parallel>], iteration_bounds = array<i64: 2>, scalar_prefetch = 0 : i64, scratch_operands = 0 : i64, tpu.core_type = #tpu.core_type<tc>, window_params = [{transform_indices = @transform_0, window_bounds = array<i64: 1, 32, 128>}, {pipeline_mode = #tpu.pipeline_mode<synchronous>, transform_indices = @transform_1, window_bounds = array<i64: 1, 128>}, {pipeline_mode = #tpu.pipeline_mode<synchronous>, transform_indices = @transform_2, window_bounds = array<i64: 1, 128>}, {pipeline_mode = #tpu.pipeline_mode<synchronous>, transform_indices = @transform_3, window_bounds = array<i64: 128, 128>}, {pipeline_mode = #tpu.pipeline_mode<synchronous>, transform_indices = @transform_4, window_bounds = array<i64: 1, 128>}, {pipeline_mode = #tpu.pipeline_mode<synchronous>, transform_indices = @transform_5, window_bounds = array<i64: 128, 128>}, {pipeline_mode = #tpu.pipeline_mode<synchronous>, transform_indices = @transform_6, window_bounds = array<i64: 1, 128>}, {transform_indices = @transform_7, window_bounds = array<i64: 1, 32, 128>}]} {
    %c0 = arith.constant 0 : index
    %c0_0 = arith.constant 0 : index
    %c0_1 = arith.constant 0 : index
    %0 = vector.load %arg1[%c0, %c0_0, %c0_1] : memref<1x32x128xf32, #tpu.memory_space<vmem>>, vector<1x32x128xf32>
    %1 = vector.shape_cast %0 : vector<1x32x128xf32> to vector<32x128xf32>
    %c0_2 = arith.constant 0 : index
    %c0_3 = arith.constant 0 : index
    %2 = vector.load %arg2[%c0_2, %c0_3] : memref<1x128xf32, #tpu.memory_space<vmem>>, vector<1x128xf32>
    %c0_4 = arith.constant 0 : index
    %c0_5 = arith.constant 0 : index
    %3 = vector.load %arg3[%c0_4, %c0_5] : memref<1x128xf32, #tpu.memory_space<vmem>>, vector<1x128xf32>
    %cst = arith.constant dense<0.000000e+00> : vector<32xf32>
    %4 = vector.multi_reduction <add>, %1, %cst [1] : vector<32x128xf32> to vector<32xf32>
    %5 = vector.shape_cast %4 : vector<32xf32> to vector<32x1xf32>
    %cst_6 = arith.constant 1.280000e+02 : f32
    %6 = vector.broadcast %cst_6 : f32 to vector<32x1xf32>
    %7 = arith.divf %5, %6 : vector<32x1xf32>
    %8 = vector.broadcast %7 : vector<32x1xf32> to vector<32x128xf32>
    %9 = arith.subf %1, %8 : vector<32x128xf32>
    %10 = arith.mulf %9, %9 : vector<32x128xf32>
    %cst_7 = arith.constant dense<0.000000e+00> : vector<32xf32>
    %11 = vector.multi_reduction <add>, %10, %cst_7 [1] : vector<32x128xf32> to vector<32xf32>
    %12 = vector.shape_cast %11 : vector<32xf32> to vector<32x1xf32>
    %cst_8 = arith.constant 1.280000e+02 : f32
    %13 = vector.broadcast %cst_8 : f32 to vector<32x1xf32>
    %14 = arith.divf %12, %13 : vector<32x1xf32>
    %cst_9 = arith.constant 9.99999974E-6 : f32
    %15 = vector.broadcast %cst_9 : f32 to vector<32x1xf32>
    %16 = arith.addf %14, %15 : vector<32x1xf32>
    %17 = math.rsqrt %16 : vector<32x1xf32>
    %18 = vector.broadcast %17 : vector<32x1xf32> to vector<32x128xf32>
    %19 = arith.mulf %9, %18 : vector<32x128xf32>
    %20 = vector.broadcast %2 : vector<1x128xf32> to vector<32x128xf32>
    %21 = arith.mulf %19, %20 : vector<32x128xf32>
    %22 = vector.broadcast %3 : vector<1x128xf32> to vector<32x128xf32>
    %23 = arith.addf %21, %22 : vector<32x128xf32>
    %c0_10 = arith.constant 0 : index
    %c0_11 = arith.constant 0 : index
    %24 = vector.load %arg4[%c0_10, %c0_11] : memref<128x128xf32, #tpu.memory_space<vmem>>, vector<128x128xf32>
    %cst_12 = arith.constant dense<0.000000e+00> : vector<32x128xf32>
    %25 = tpu.matmul %23, %24, %cst_12 {dimension_numbers = #tpu.dot_dimension_numbers<[1], [0], [0], [1], [0, 0, 1, 1], [], []>} : vector<32x128xf32>, vector<128x128xf32>, vector<32x128xf32> -> vector<32x128xf32>
    %c0_13 = arith.constant 0 : index
    %c0_14 = arith.constant 0 : index
    %26 = vector.load %arg5[%c0_13, %c0_14] : memref<1x128xf32, #tpu.memory_space<vmem>>, vector<1x128xf32>
    %27 = vector.broadcast %26 : vector<1x128xf32> to vector<32x128xf32>
    %28 = arith.addf %25, %27 : vector<32x128xf32>
    %cst_15 = arith.constant 5.000000e-01 : f32
    %29 = vector.broadcast %cst_15 : f32 to vector<32x128xf32>
    %30 = arith.mulf %29, %28 : vector<32x128xf32>
    %cst_16 = arith.constant 4.471500e-02 : f32
    %31 = vector.broadcast %cst_16 : f32 to vector<32x128xf32>
    %32 = arith.mulf %31, %28 : vector<32x128xf32>
    %33 = arith.mulf %32, %28 : vector<32x128xf32>
    %34 = arith.mulf %33, %28 : vector<32x128xf32>
    %35 = arith.addf %28, %34 : vector<32x128xf32>
    %cst_17 = arith.constant 0.797884583 : f32
    %36 = vector.broadcast %cst_17 : f32 to vector<32x128xf32>
    %37 = arith.mulf %36, %35 : vector<32x128xf32>
    %38 = math.tanh %37 : vector<32x128xf32>
    %cst_18 = arith.constant 1.000000e+00 : f32
    %39 = vector.broadcast %cst_18 : f32 to vector<32x128xf32>
    %40 = arith.addf %39, %38 : vector<32x128xf32>
    %41 = arith.mulf %30, %40 : vector<32x128xf32>
    %c0_19 = arith.constant 0 : index
    %c0_20 = arith.constant 0 : index
    %42 = vector.load %arg6[%c0_19, %c0_20] : memref<128x128xf32, #tpu.memory_space<vmem>>, vector<128x128xf32>
    %cst_21 = arith.constant dense<0.000000e+00> : vector<32x128xf32>
    %43 = tpu.matmul %41, %42, %cst_21 {dimension_numbers = #tpu.dot_dimension_numbers<[1], [0], [0], [1], [0, 0, 1, 1], [], []>} : vector<32x128xf32>, vector<128x128xf32>, vector<32x128xf32> -> vector<32x128xf32>
    %c0_22 = arith.constant 0 : index
    %c0_23 = arith.constant 0 : index
    %44 = vector.load %arg7[%c0_22, %c0_23] : memref<1x128xf32, #tpu.memory_space<vmem>>, vector<1x128xf32>
    %45 = vector.broadcast %44 : vector<1x128xf32> to vector<32x128xf32>
    %46 = arith.addf %43, %45 : vector<32x128xf32>
    %47 = arith.addf %46, %1 : vector<32x128xf32>
    %c0_24 = arith.constant 0 : index
    %c0_25 = arith.constant 0 : index
    %c0_26 = arith.constant 0 : index
    %48 = vector.load %arg8[%c0_24, %c0_25, %c0_26] : memref<1x32x128xf32, #tpu.memory_space<vmem>>, vector<1x32x128xf32>
    %49 = vector.shape_cast %48 : vector<1x32x128xf32> to vector<32x128xf32>
    %50 = vector.shape_cast %47 : vector<32x128xf32> to vector<1x32x128xf32>
    tpu.vector_store %arg8[%c0_24, %c0_25, %c0_26], %50 {strides = array<i32>} : memref<1x32x128xf32, #tpu.memory_space<vmem>>, vector<1x32x128xf32>,
    return
  }
  func.func @transform_0(%arg0: i32) -> (i32, i32, i32) {
    %c0_i32 = arith.constant 0 : i32
    %c0_i32_0 = arith.constant 0 : i32
    %c0_i32_1 = arith.constant 0 : i32
    return %arg0, %c0_i32, %c0_i32_0 : i32, i32, i32
  }
  func.func @transform_1(%arg0: i32) -> (i32, i32) {
    %c0_i32 = arith.constant 0 : i32
    %c0_i32_0 = arith.constant 0 : i32
    %c0_i32_1 = arith.constant 0 : i32
    return %c0_i32, %c0_i32_0 : i32, i32
  }
  func.func @transform_2(%arg0: i32) -> (i32, i32) {
    %c0_i32 = arith.constant 0 : i32
    %c0_i32_0 = arith.constant 0 : i32
    %c0_i32_1 = arith.constant 0 : i32
    return %c0_i32, %c0_i32_0 : i32, i32
  }
  func.func @transform_3(%arg0: i32) -> (i32, i32) {
    %c0_i32 = arith.constant 0 : i32
    %c0_i32_0 = arith.constant 0 : i32
    %c0_i32_1 = arith.constant 0 : i32
    return %c0_i32, %c0_i32_0 : i32, i32
  }
  func.func @transform_4(%arg0: i32) -> (i32, i32) {
    %c0_i32 = arith.constant 0 : i32
    %c0_i32_0 = arith.constant 0 : i32
    %c0_i32_1 = arith.constant 0 : i32
    return %c0_i32, %c0_i32_0 : i32, i32
  }
  func.func @transform_5(%arg0: i32) -> (i32, i32) {
    %c0_i32 = arith.constant 0 : i32
    %c0_i32_0 = arith.constant 0 : i32
    %c0_i32_1 = arith.constant 0 : i32
    return %c0_i32, %c0_i32_0 : i32, i32
  }
  func.func @transform_6(%arg0: i32) -> (i32, i32) {
    %c0_i32 = arith.constant 0 : i32
    %c0_i32_0 = arith.constant 0 : i32
    %c0_i32_1 = arith.constant 0 : i32
    return %c0_i32, %c0_i32_0 : i32, i32
  }
  func.func @transform_7(%arg0: i32) -> (i32, i32, i32) {
    %c0_i32 = arith.constant 0 : i32
    %c0_i32_0 = arith.constant 0 : i32
    %c0_i32_1 = arith.constant 0 : i32
    return %arg0, %c0_i32, %c0_i32_0 : i32, i32, i32
  }
}

module attributes {stable_mosaic.version = 11 : i64} {
  func.func @kernel(%arg0: i32, %arg1: memref<1x32x128xf32, #tpu.memory_space<vmem>>, %arg2: memref<1x32x128xf32, #tpu.memory_space<vmem>>, %arg3: memref<1x128xf32, #tpu.memory_space<vmem>>, %arg4: memref<1x128xf32, #tpu.memory_space<vmem>>, %arg5: memref<1x128xf32, #tpu.memory_space<vmem>>, %arg6: memref<1x128xf32, #tpu.memory_space<vmem>>, %arg7: memref<128x128xf32, #tpu.memory_space<vmem>>, %arg8: memref<1x128xf32, #tpu.memory_space<vmem>>, %arg9: memref<128x128xf32, #tpu.memory_space<vmem>>, %arg10: memref<1x128xf32, #tpu.memory_space<vmem>>, %arg11: memref<128x128xf32, #tpu.memory_space<vmem>>, %arg12: memref<1x128xf32, #tpu.memory_space<vmem>>, %arg13: memref<128x128xf32, #tpu.memory_space<vmem>>, %arg14: memref<1x128xf32, #tpu.memory_space<vmem>>, %arg15: memref<1x32x128xf32, #tpu.memory_space<vmem>>) attributes {dimension_semantics = [#tpu.dimension_semantics<parallel>], iteration_bounds = array<i64: 2>, scalar_prefetch = 0 : i64, scratch_operands = 0 : i64, tpu.core_type = #tpu.core_type<tc>, window_params = [{transform_indices = @transform_0, window_bounds = array<i64: 1, 32, 128>}, {transform_indices = @transform_1, window_bounds = array<i64: 1, 32, 128>}, {pipeline_mode = #tpu.pipeline_mode<synchronous>, transform_indices = @transform_2, window_bounds = array<i64: 1, 128>}, {pipeline_mode = #tpu.pipeline_mode<synchronous>, transform_indices = @transform_3, window_bounds = array<i64: 1, 128>}, {pipeline_mode = #tpu.pipeline_mode<synchronous>, transform_indices = @transform_4, window_bounds = array<i64: 1, 128>}, {pipeline_mode = #tpu.pipeline_mode<synchronous>, transform_indices = @transform_5, window_bounds = array<i64: 1, 128>}, {pipeline_mode = #tpu.pipeline_mode<synchronous>, transform_indices = @transform_6, window_bounds = array<i64: 128, 128>}, {pipeline_mode = #tpu.pipeline_mode<synchronous>, transform_indices = @transform_7, window_bounds = array<i64: 1, 128>}, {pipeline_mode = #tpu.pipeline_mode<synchronous>, transform_indices = @transform_8, window_bounds = array<i64: 128, 128>}, {pipeline_mode = #tpu.pipeline_mode<synchronous>, transform_indices = @transform_9, window_bounds = array<i64: 1, 128>}, {pipeline_mode = #tpu.pipeline_mode<synchronous>, transform_indices = @transform_10, window_bounds = array<i64: 128, 128>}, {pipeline_mode = #tpu.pipeline_mode<synchronous>, transform_indices = @transform_11, window_bounds = array<i64: 1, 128>}, {pipeline_mode = #tpu.pipeline_mode<synchronous>, transform_indices = @transform_12, window_bounds = array<i64: 128, 128>}, {pipeline_mode = #tpu.pipeline_mode<synchronous>, transform_indices = @transform_13, window_bounds = array<i64: 1, 128>}, {transform_indices = @transform_14, window_bounds = array<i64: 1, 32, 128>}]} {
    %c0 = arith.constant 0 : index
    %c0_0 = arith.constant 0 : index
    %c0_1 = arith.constant 0 : index
    %0 = vector.load %arg1[%c0, %c0_0, %c0_1] : memref<1x32x128xf32, #tpu.memory_space<vmem>>, vector<1x32x128xf32>
    %1 = vector.shape_cast %0 : vector<1x32x128xf32> to vector<32x128xf32>
    %c0_2 = arith.constant 0 : index
    %c0_3 = arith.constant 0 : index
    %c0_4 = arith.constant 0 : index
    %2 = vector.load %arg2[%c0_2, %c0_3, %c0_4] : memref<1x32x128xf32, #tpu.memory_space<vmem>>, vector<1x32x128xf32>
    %3 = vector.shape_cast %2 : vector<1x32x128xf32> to vector<32x128xf32>
    %c0_5 = arith.constant 0 : index
    %c0_6 = arith.constant 0 : index
    %4 = vector.load %arg3[%c0_5, %c0_6] : memref<1x128xf32, #tpu.memory_space<vmem>>, vector<1x128xf32>
    %c0_7 = arith.constant 0 : index
    %c0_8 = arith.constant 0 : index
    %5 = vector.load %arg4[%c0_7, %c0_8] : memref<1x128xf32, #tpu.memory_space<vmem>>, vector<1x128xf32>
    %cst = arith.constant dense<0.000000e+00> : vector<32xf32>
    %6 = vector.multi_reduction <add>, %1, %cst [1] : vector<32x128xf32> to vector<32xf32>
    %7 = vector.shape_cast %6 : vector<32xf32> to vector<32x1xf32>
    %cst_9 = arith.constant 1.280000e+02 : f32
    %8 = vector.broadcast %cst_9 : f32 to vector<32x1xf32>
    %9 = arith.divf %7, %8 : vector<32x1xf32>
    %10 = vector.broadcast %9 : vector<32x1xf32> to vector<32x128xf32>
    %11 = arith.subf %1, %10 : vector<32x128xf32>
    %12 = arith.mulf %11, %11 : vector<32x128xf32>
    %cst_10 = arith.constant dense<0.000000e+00> : vector<32xf32>
    %13 = vector.multi_reduction <add>, %12, %cst_10 [1] : vector<32x128xf32> to vector<32xf32>
    %14 = vector.shape_cast %13 : vector<32xf32> to vector<32x1xf32>
    %cst_11 = arith.constant 1.280000e+02 : f32
    %15 = vector.broadcast %cst_11 : f32 to vector<32x1xf32>
    %16 = arith.divf %14, %15 : vector<32x1xf32>
    %cst_12 = arith.constant 9.99999974E-6 : f32
    %17 = vector.broadcast %cst_12 : f32 to vector<32x1xf32>
    %18 = arith.addf %16, %17 : vector<32x1xf32>
    %19 = math.rsqrt %18 : vector<32x1xf32>
    %20 = vector.broadcast %19 : vector<32x1xf32> to vector<32x128xf32>
    %21 = arith.mulf %11, %20 : vector<32x128xf32>
    %22 = vector.broadcast %4 : vector<1x128xf32> to vector<32x128xf32>
    %23 = arith.mulf %21, %22 : vector<32x128xf32>
    %24 = vector.broadcast %5 : vector<1x128xf32> to vector<32x128xf32>
    %25 = arith.addf %23, %24 : vector<32x128xf32>
    %c0_13 = arith.constant 0 : index
    %c0_14 = arith.constant 0 : index
    %26 = vector.load %arg5[%c0_13, %c0_14] : memref<1x128xf32, #tpu.memory_space<vmem>>, vector<1x128xf32>
    %c0_15 = arith.constant 0 : index
    %c0_16 = arith.constant 0 : index
    %27 = vector.load %arg6[%c0_15, %c0_16] : memref<1x128xf32, #tpu.memory_space<vmem>>, vector<1x128xf32>
    %cst_17 = arith.constant dense<0.000000e+00> : vector<32xf32>
    %28 = vector.multi_reduction <add>, %3, %cst_17 [1] : vector<32x128xf32> to vector<32xf32>
    %29 = vector.shape_cast %28 : vector<32xf32> to vector<32x1xf32>
    %cst_18 = arith.constant 1.280000e+02 : f32
    %30 = vector.broadcast %cst_18 : f32 to vector<32x1xf32>
    %31 = arith.divf %29, %30 : vector<32x1xf32>
    %32 = vector.broadcast %31 : vector<32x1xf32> to vector<32x128xf32>
    %33 = arith.subf %3, %32 : vector<32x128xf32>
    %34 = arith.mulf %33, %33 : vector<32x128xf32>
    %cst_19 = arith.constant dense<0.000000e+00> : vector<32xf32>
    %35 = vector.multi_reduction <add>, %34, %cst_19 [1] : vector<32x128xf32> to vector<32xf32>
    %36 = vector.shape_cast %35 : vector<32xf32> to vector<32x1xf32>
    %cst_20 = arith.constant 1.280000e+02 : f32
    %37 = vector.broadcast %cst_20 : f32 to vector<32x1xf32>
    %38 = arith.divf %36, %37 : vector<32x1xf32>
    %cst_21 = arith.constant 9.99999974E-6 : f32
    %39 = vector.broadcast %cst_21 : f32 to vector<32x1xf32>
    %40 = arith.addf %38, %39 : vector<32x1xf32>
    %41 = math.rsqrt %40 : vector<32x1xf32>
    %42 = vector.broadcast %41 : vector<32x1xf32> to vector<32x128xf32>
    %43 = arith.mulf %33, %42 : vector<32x128xf32>
    %44 = vector.broadcast %26 : vector<1x128xf32> to vector<32x128xf32>
    %45 = arith.mulf %43, %44 : vector<32x128xf32>
    %46 = vector.broadcast %27 : vector<1x128xf32> to vector<32x128xf32>
    %47 = arith.addf %45, %46 : vector<32x128xf32>
    %c0_22 = arith.constant 0 : index
    %c0_23 = arith.constant 0 : index
    %48 = vector.load %arg7[%c0_22, %c0_23] : memref<128x128xf32, #tpu.memory_space<vmem>>, vector<128x128xf32>
    %cst_24 = arith.constant dense<0.000000e+00> : vector<32x128xf32>
    %49 = tpu.matmul %25, %48, %cst_24 {dimension_numbers = #tpu.dot_dimension_numbers<[1], [0], [0], [1], [0, 0, 1, 1], [], []>} : vector<32x128xf32>, vector<128x128xf32>, vector<32x128xf32> -> vector<32x128xf32>
    %c0_25 = arith.constant 0 : index
    %c0_26 = arith.constant 0 : index
    %50 = vector.load %arg8[%c0_25, %c0_26] : memref<1x128xf32, #tpu.memory_space<vmem>>, vector<1x128xf32>
    %51 = vector.broadcast %50 : vector<1x128xf32> to vector<32x128xf32>
    %52 = arith.addf %49, %51 : vector<32x128xf32>
    %c0_27 = arith.constant 0 : index
    %c0_28 = arith.constant 0 : index
    %53 = vector.load %arg9[%c0_27, %c0_28] : memref<128x128xf32, #tpu.memory_space<vmem>>, vector<128x128xf32>
    %cst_29 = arith.constant dense<0.000000e+00> : vector<32x128xf32>
    %54 = tpu.matmul %47, %53, %cst_29 {dimension_numbers = #tpu.dot_dimension_numbers<[1], [0], [0], [1], [0, 0, 1, 1], [], []>} : vector<32x128xf32>, vector<128x128xf32>, vector<32x128xf32> -> vector<32x128xf32>
    %c0_30 = arith.constant 0 : index
    %c0_31 = arith.constant 0 : index
    %55 = vector.load %arg10[%c0_30, %c0_31] : memref<1x128xf32, #tpu.memory_space<vmem>>, vector<1x128xf32>
    %56 = vector.broadcast %55 : vector<1x128xf32> to vector<32x128xf32>
    %57 = arith.addf %54, %56 : vector<32x128xf32>
    %c0_32 = arith.constant 0 : index
    %c0_33 = arith.constant 0 : index
    %58 = vector.load %arg11[%c0_32, %c0_33] : memref<128x128xf32, #tpu.memory_space<vmem>>, vector<128x128xf32>
    %cst_34 = arith.constant dense<0.000000e+00> : vector<32x128xf32>
    %59 = tpu.matmul %47, %58, %cst_34 {dimension_numbers = #tpu.dot_dimension_numbers<[1], [0], [0], [1], [0, 0, 1, 1], [], []>} : vector<32x128xf32>, vector<128x128xf32>, vector<32x128xf32> -> vector<32x128xf32>
    %c0_35 = arith.constant 0 : index
    %c0_36 = arith.constant 0 : index
    %60 = vector.load %arg12[%c0_35, %c0_36] : memref<1x128xf32, #tpu.memory_space<vmem>>, vector<1x128xf32>
    %61 = vector.broadcast %60 : vector<1x128xf32> to vector<32x128xf32>
    %62 = arith.addf %59, %61 : vector<32x128xf32>
    %cst_37 = arith.constant 0.000000e+00 : f32
    %63 = vector.broadcast %cst_37 : f32 to vector<32x128xf32>
    %64 = vector.extract_strided_slice %52 {offsets = [0, 0], sizes = [32, 32], strides = [1, 1]} : vector<32x128xf32> to vector<32x32xf32>
    %65 = vector.extract_strided_slice %57 {offsets = [0, 0], sizes = [32, 32], strides = [1, 1]} : vector<32x128xf32> to vector<32x32xf32>
    %66 = vector.extract_strided_slice %62 {offsets = [0, 0], sizes = [32, 32], strides = [1, 1]} : vector<32x128xf32> to vector<32x32xf32>
    %cst_38 = arith.constant dense<0.000000e+00> : vector<32x32xf32>
    %67 = tpu.matmul %64, %65, %cst_38 {dimension_numbers = #tpu.dot_dimension_numbers<[1], [1], [0], [0], [0, 0, 1, 0], [], []>} : vector<32x32xf32>, vector<32x32xf32>, vector<32x32xf32> -> vector<32x32xf32>
    %cst_39 = arith.constant 0.176776692 : f32
    %68 = vector.broadcast %cst_39 : f32 to vector<32x32xf32>
    %69 = arith.mulf %67, %68 : vector<32x32xf32>
    %cst_40 = arith.constant dense<0xFF800000> : vector<32xf32>
    %70 = vector.multi_reduction <maximumf>, %69, %cst_40 [1] : vector<32x32xf32> to vector<32xf32>
    %71 = vector.shape_cast %70 : vector<32xf32> to vector<32x1xf32>
    %72 = vector.broadcast %71 : vector<32x1xf32> to vector<32x32xf32>
    %73 = arith.subf %69, %72 : vector<32x32xf32>
    %74 = math.exp %73 : vector<32x32xf32>
    %cst_41 = arith.constant dense<0.000000e+00> : vector<32xf32>
    %75 = vector.multi_reduction <add>, %74, %cst_41 [1] : vector<32x32xf32> to vector<32xf32>
    %76 = vector.shape_cast %75 : vector<32xf32> to vector<32x1xf32>
    %77 = vector.broadcast %76 : vector<32x1xf32> to vector<32x32xf32>
    %78 = arith.divf %74, %77 : vector<32x32xf32>
    %cst_42 = arith.constant dense<0.000000e+00> : vector<32x32xf32>
    %79 = tpu.matmul %78, %66, %cst_42 {dimension_numbers = #tpu.dot_dimension_numbers<[1], [0], [0], [1], [0, 0, 1, 1], [], []>} : vector<32x32xf32>, vector<32x32xf32>, vector<32x32xf32> -> vector<32x32xf32>
    %c0_43 = arith.constant 0 : index
    %c0_44 = arith.constant 0 : index
    %80 = vector.load %arg13[%c0_43, %c0_44] : memref<128x128xf32, #tpu.memory_space<vmem>>, vector<32x128xf32>
    %cst_45 = arith.constant dense<0.000000e+00> : vector<32x128xf32>
    %81 = tpu.matmul %79, %80, %cst_45 {dimension_numbers = #tpu.dot_dimension_numbers<[1], [0], [0], [1], [0, 0, 1, 1], [], []>} : vector<32x32xf32>, vector<32x128xf32>, vector<32x128xf32> -> vector<32x128xf32>
    %82 = arith.addf %63, %81 : vector<32x128xf32>
    %83 = vector.extract_strided_slice %52 {offsets = [0, 32], sizes = [32, 32], strides = [1, 1]} : vector<32x128xf32> to vector<32x32xf32>
    %84 = vector.extract_strided_slice %57 {offsets = [0, 32], sizes = [32, 32], strides = [1, 1]} : vector<32x128xf32> to vector<32x32xf32>
    %85 = vector.extract_strided_slice %62 {offsets = [0, 32], sizes = [32, 32], strides = [1, 1]} : vector<32x128xf32> to vector<32x32xf32>
    %cst_46 = arith.constant dense<0.000000e+00> : vector<32x32xf32>
    %86 = tpu.matmul %83, %84, %cst_46 {dimension_numbers = #tpu.dot_dimension_numbers<[1], [1], [0], [0], [0, 0, 1, 0], [], []>} : vector<32x32xf32>, vector<32x32xf32>, vector<32x32xf32> -> vector<32x32xf32>
    %cst_47 = arith.constant 0.176776692 : f32
    %87 = vector.broadcast %cst_47 : f32 to vector<32x32xf32>
    %88 = arith.mulf %86, %87 : vector<32x32xf32>
    %cst_48 = arith.constant dense<0xFF800000> : vector<32xf32>
    %89 = vector.multi_reduction <maximumf>, %88, %cst_48 [1] : vector<32x32xf32> to vector<32xf32>
    %90 = vector.shape_cast %89 : vector<32xf32> to vector<32x1xf32>
    %91 = vector.broadcast %90 : vector<32x1xf32> to vector<32x32xf32>
    %92 = arith.subf %88, %91 : vector<32x32xf32>
    %93 = math.exp %92 : vector<32x32xf32>
    %cst_49 = arith.constant dense<0.000000e+00> : vector<32xf32>
    %94 = vector.multi_reduction <add>, %93, %cst_49 [1] : vector<32x32xf32> to vector<32xf32>
    %95 = vector.shape_cast %94 : vector<32xf32> to vector<32x1xf32>
    %96 = vector.broadcast %95 : vector<32x1xf32> to vector<32x32xf32>
    %97 = arith.divf %93, %96 : vector<32x32xf32>
    %cst_50 = arith.constant dense<0.000000e+00> : vector<32x32xf32>
    %98 = tpu.matmul %97, %85, %cst_50 {dimension_numbers = #tpu.dot_dimension_numbers<[1], [0], [0], [1], [0, 0, 1, 1], [], []>} : vector<32x32xf32>, vector<32x32xf32>, vector<32x32xf32> -> vector<32x32xf32>
    %c32 = arith.constant 32 : index
    %c0_51 = arith.constant 0 : index
    %99 = vector.load %arg13[%c32, %c0_51] : memref<128x128xf32, #tpu.memory_space<vmem>>, vector<32x128xf32>
    %cst_52 = arith.constant dense<0.000000e+00> : vector<32x128xf32>
    %100 = tpu.matmul %98, %99, %cst_52 {dimension_numbers = #tpu.dot_dimension_numbers<[1], [0], [0], [1], [0, 0, 1, 1], [], []>} : vector<32x32xf32>, vector<32x128xf32>, vector<32x128xf32> -> vector<32x128xf32>
    %101 = arith.addf %82, %100 : vector<32x128xf32>
    %102 = vector.extract_strided_slice %52 {offsets = [0, 64], sizes = [32, 32], strides = [1, 1]} : vector<32x128xf32> to vector<32x32xf32>
    %103 = vector.extract_strided_slice %57 {offsets = [0, 64], sizes = [32, 32], strides = [1, 1]} : vector<32x128xf32> to vector<32x32xf32>
    %104 = vector.extract_strided_slice %62 {offsets = [0, 64], sizes = [32, 32], strides = [1, 1]} : vector<32x128xf32> to vector<32x32xf32>
    %cst_53 = arith.constant dense<0.000000e+00> : vector<32x32xf32>
    %105 = tpu.matmul %102, %103, %cst_53 {dimension_numbers = #tpu.dot_dimension_numbers<[1], [1], [0], [0], [0, 0, 1, 0], [], []>} : vector<32x32xf32>, vector<32x32xf32>, vector<32x32xf32> -> vector<32x32xf32>
    %cst_54 = arith.constant 0.176776692 : f32
    %106 = vector.broadcast %cst_54 : f32 to vector<32x32xf32>
    %107 = arith.mulf %105, %106 : vector<32x32xf32>
    %cst_55 = arith.constant dense<0xFF800000> : vector<32xf32>
    %108 = vector.multi_reduction <maximumf>, %107, %cst_55 [1] : vector<32x32xf32> to vector<32xf32>
    %109 = vector.shape_cast %108 : vector<32xf32> to vector<32x1xf32>
    %110 = vector.broadcast %109 : vector<32x1xf32> to vector<32x32xf32>
    %111 = arith.subf %107, %110 : vector<32x32xf32>
    %112 = math.exp %111 : vector<32x32xf32>
    %cst_56 = arith.constant dense<0.000000e+00> : vector<32xf32>
    %113 = vector.multi_reduction <add>, %112, %cst_56 [1] : vector<32x32xf32> to vector<32xf32>
    %114 = vector.shape_cast %113 : vector<32xf32> to vector<32x1xf32>
    %115 = vector.broadcast %114 : vector<32x1xf32> to vector<32x32xf32>
    %116 = arith.divf %112, %115 : vector<32x32xf32>
    %cst_57 = arith.constant dense<0.000000e+00> : vector<32x32xf32>
    %117 = tpu.matmul %116, %104, %cst_57 {dimension_numbers = #tpu.dot_dimension_numbers<[1], [0], [0], [1], [0, 0, 1, 1], [], []>} : vector<32x32xf32>, vector<32x32xf32>, vector<32x32xf32> -> vector<32x32xf32>
    %c64 = arith.constant 64 : index
    %c0_58 = arith.constant 0 : index
    %118 = vector.load %arg13[%c64, %c0_58] : memref<128x128xf32, #tpu.memory_space<vmem>>, vector<32x128xf32>
    %cst_59 = arith.constant dense<0.000000e+00> : vector<32x128xf32>
    %119 = tpu.matmul %117, %118, %cst_59 {dimension_numbers = #tpu.dot_dimension_numbers<[1], [0], [0], [1], [0, 0, 1, 1], [], []>} : vector<32x32xf32>, vector<32x128xf32>, vector<32x128xf32> -> vector<32x128xf32>
    %120 = arith.addf %101, %119 : vector<32x128xf32>
    %121 = vector.extract_strided_slice %52 {offsets = [0, 96], sizes = [32, 32], strides = [1, 1]} : vector<32x128xf32> to vector<32x32xf32>
    %122 = vector.extract_strided_slice %57 {offsets = [0, 96], sizes = [32, 32], strides = [1, 1]} : vector<32x128xf32> to vector<32x32xf32>
    %123 = vector.extract_strided_slice %62 {offsets = [0, 96], sizes = [32, 32], strides = [1, 1]} : vector<32x128xf32> to vector<32x32xf32>
    %cst_60 = arith.constant dense<0.000000e+00> : vector<32x32xf32>
    %124 = tpu.matmul %121, %122, %cst_60 {dimension_numbers = #tpu.dot_dimension_numbers<[1], [1], [0], [0], [0, 0, 1, 0], [], []>} : vector<32x32xf32>, vector<32x32xf32>, vector<32x32xf32> -> vector<32x32xf32>
    %cst_61 = arith.constant 0.176776692 : f32
    %125 = vector.broadcast %cst_61 : f32 to vector<32x32xf32>
    %126 = arith.mulf %124, %125 : vector<32x32xf32>
    %cst_62 = arith.constant dense<0xFF800000> : vector<32xf32>
    %127 = vector.multi_reduction <maximumf>, %126, %cst_62 [1] : vector<32x32xf32> to vector<32xf32>
    %128 = vector.shape_cast %127 : vector<32xf32> to vector<32x1xf32>
    %129 = vector.broadcast %128 : vector<32x1xf32> to vector<32x32xf32>
    %130 = arith.subf %126, %129 : vector<32x32xf32>
    %131 = math.exp %130 : vector<32x32xf32>
    %cst_63 = arith.constant dense<0.000000e+00> : vector<32xf32>
    %132 = vector.multi_reduction <add>, %131, %cst_63 [1] : vector<32x32xf32> to vector<32xf32>
    %133 = vector.shape_cast %132 : vector<32xf32> to vector<32x1xf32>
    %134 = vector.broadcast %133 : vector<32x1xf32> to vector<32x32xf32>
    %135 = arith.divf %131, %134 : vector<32x32xf32>
    %cst_64 = arith.constant dense<0.000000e+00> : vector<32x32xf32>
    %136 = tpu.matmul %135, %123, %cst_64 {dimension_numbers = #tpu.dot_dimension_numbers<[1], [0], [0], [1], [0, 0, 1, 1], [], []>} : vector<32x32xf32>, vector<32x32xf32>, vector<32x32xf32> -> vector<32x32xf32>
    %c96 = arith.constant 96 : index
    %c0_65 = arith.constant 0 : index
    %137 = vector.load %arg13[%c96, %c0_65] : memref<128x128xf32, #tpu.memory_space<vmem>>, vector<32x128xf32>
    %cst_66 = arith.constant dense<0.000000e+00> : vector<32x128xf32>
    %138 = tpu.matmul %136, %137, %cst_66 {dimension_numbers = #tpu.dot_dimension_numbers<[1], [0], [0], [1], [0, 0, 1, 1], [], []>} : vector<32x32xf32>, vector<32x128xf32>, vector<32x128xf32> -> vector<32x128xf32>
    %139 = arith.addf %120, %138 : vector<32x128xf32>
    %c0_67 = arith.constant 0 : index
    %c0_68 = arith.constant 0 : index
    %140 = vector.load %arg14[%c0_67, %c0_68] : memref<1x128xf32, #tpu.memory_space<vmem>>, vector<1x128xf32>
    %141 = vector.broadcast %140 : vector<1x128xf32> to vector<32x128xf32>
    %142 = arith.addf %139, %141 : vector<32x128xf32>
    %143 = arith.addf %142, %1 : vector<32x128xf32>
    %c0_69 = arith.constant 0 : index
    %c0_70 = arith.constant 0 : index
    %c0_71 = arith.constant 0 : index
    %144 = vector.load %arg15[%c0_69, %c0_70, %c0_71] : memref<1x32x128xf32, #tpu.memory_space<vmem>>, vector<1x32x128xf32>
    %145 = vector.shape_cast %144 : vector<1x32x128xf32> to vector<32x128xf32>
    %146 = vector.shape_cast %143 : vector<32x128xf32> to vector<1x32x128xf32>
    tpu.vector_store %arg15[%c0_69, %c0_70, %c0_71], %146 {strides = array<i32>} : memref<1x32x128xf32, #tpu.memory_space<vmem>>, vector<1x32x128xf32>,
    return
  }
  func.func @transform_0(%arg0: i32) -> (i32, i32, i32) {
    %c0_i32 = arith.constant 0 : i32
    %c0_i32_0 = arith.constant 0 : i32
    %c0_i32_1 = arith.constant 0 : i32
    return %arg0, %c0_i32, %c0_i32_0 : i32, i32, i32
  }
  func.func @transform_1(%arg0: i32) -> (i32, i32, i32) {
    %c0_i32 = arith.constant 0 : i32
    %c0_i32_0 = arith.constant 0 : i32
    %c0_i32_1 = arith.constant 0 : i32
    return %arg0, %c0_i32, %c0_i32_0 : i32, i32, i32
  }
  func.func @transform_2(%arg0: i32) -> (i32, i32) {
    %c0_i32 = arith.constant 0 : i32
    %c0_i32_0 = arith.constant 0 : i32
    %c0_i32_1 = arith.constant 0 : i32
    return %c0_i32, %c0_i32_0 : i32, i32
  }
  func.func @transform_3(%arg0: i32) -> (i32, i32) {
    %c0_i32 = arith.constant 0 : i32
    %c0_i32_0 = arith.constant 0 : i32
    %c0_i32_1 = arith.constant 0 : i32
    return %c0_i32, %c0_i32_0 : i32, i32
  }
  func.func @transform_4(%arg0: i32) -> (i32, i32) {
    %c0_i32 = arith.constant 0 : i32
    %c0_i32_0 = arith.constant 0 : i32
    %c0_i32_1 = arith.constant 0 : i32
    return %c0_i32, %c0_i32_0 : i32, i32
  }
  func.func @transform_5(%arg0: i32) -> (i32, i32) {
    %c0_i32 = arith.constant 0 : i32
    %c0_i32_0 = arith.constant 0 : i32
    %c0_i32_1 = arith.constant 0 : i32
    return %c0_i32, %c0_i32_0 : i32, i32
  }
  func.func @transform_6(%arg0: i32) -> (i32, i32) {
    %c0_i32 = arith.constant 0 : i32
    %c0_i32_0 = arith.constant 0 : i32
    %c0_i32_1 = arith.constant 0 : i32
    return %c0_i32, %c0_i32_0 : i32, i32
  }
  func.func @transform_7(%arg0: i32) -> (i32, i32) {
    %c0_i32 = arith.constant 0 : i32
    %c0_i32_0 = arith.constant 0 : i32
    %c0_i32_1 = arith.constant 0 : i32
    return %c0_i32, %c0_i32_0 : i32, i32
  }
  func.func @transform_8(%arg0: i32) -> (i32, i32) {
    %c0_i32 = arith.constant 0 : i32
    %c0_i32_0 = arith.constant 0 : i32
    %c0_i32_1 = arith.constant 0 : i32
    return %c0_i32, %c0_i32_0 : i32, i32
  }
  func.func @transform_9(%arg0: i32) -> (i32, i32) {
    %c0_i32 = arith.constant 0 : i32
    %c0_i32_0 = arith.constant 0 : i32
    %c0_i32_1 = arith.constant 0 : i32
    return %c0_i32, %c0_i32_0 : i32, i32
  }
  func.func @transform_10(%arg0: i32) -> (i32, i32) {
    %c0_i32 = arith.constant 0 : i32
    %c0_i32_0 = arith.constant 0 : i32
    %c0_i32_1 = arith.constant 0 : i32
    return %c0_i32, %c0_i32_0 : i32, i32
  }
  func.func @transform_11(%arg0: i32) -> (i32, i32) {
    %c0_i32 = arith.constant 0 : i32
    %c0_i32_0 = arith.constant 0 : i32
    %c0_i32_1 = arith.constant 0 : i32
    return %c0_i32, %c0_i32_0 : i32, i32
  }
  func.func @transform_12(%arg0: i32) -> (i32, i32) {
    %c0_i32 = arith.constant 0 : i32
    %c0_i32_0 = arith.constant 0 : i32
    %c0_i32_1 = arith.constant 0 : i32
    return %c0_i32, %c0_i32_0 : i32, i32
  }
  func.func @transform_13(%arg0: i32) -> (i32, i32) {
    %c0_i32 = arith.constant 0 : i32
    %c0_i32_0 = arith.constant 0 : i32
    %c0_i32_1 = arith.constant 0 : i32
    return %c0_i32, %c0_i32_0 : i32, i32
  }
  func.func @transform_14(%arg0: i32) -> (i32, i32, i32) {
    %c0_i32 = arith.constant 0 : i32
    %c0_i32_0 = arith.constant 0 : i32
    %c0_i32_1 = arith.constant 0 : i32
    return %arg0, %c0_i32, %c0_i32_0 : i32, i32, i32
  }
}

</mosaic_0001>

<llo_original>
// kernel: _lambda_.11
$region0: #{_lambda_.11}
  #allocation0 [shape = 'u32[]', space=smem, size = 0x4, offset = 0x4, fixed_abs, tag = 'smem constant byte address 0x4 - core index']
  #allocation1 [shape = 'u32[144,128]{1,0:T(1,128)}', space=vmem, size = 0x12000, scoped, tag = 'internal scratch']
  %s0 = inlined_call_operand.vmem [shape: f32[2,32,128], index: 0, kind: input, shape index: {}]
  %s1 = inlined_call_operand.vmem [shape: f32[1,128], index: 1, kind: input, shape index: {}]
  %s2 = inlined_call_operand.vmem [shape: f32[1,128], index: 2, kind: input, shape index: {}]
  %s3 = inlined_call_operand.vmem [shape: f32[128,128], index: 3, kind: input, shape index: {}]
  %s4 = inlined_call_operand.vmem [shape: f32[1,128], index: 4, kind: input, shape index: {}]
  %s5 = inlined_call_operand.vmem [shape: f32[128,128], index: 5, kind: input, shape index: {}]
  %s6 = inlined_call_operand.vmem [shape: f32[1,128], index: 6, kind: input, shape index: {}]
  %s7 = inlined_call_operand.vmem [shape: f32[2,32,128], index: 7, kind: output, shape index: {}]
  %s8 = sld [smem:[#allocation0]]
  $region61: #{_lambda_.11} parent=0
    _
  %s10 = ssub.s32 1, %s8
  %s11 = scalar_select 0, %s10, %s8
  loop: start=0, step=1, limit=4
  $region2: #{_lambda_.11} parent=0 // loop_pre_header
    _
  $region3: #{_lambda_.11} parent=0 // loop_header
    %s13 = sphi 0, %s17
    %p14 = scmp.ge.s32.totalorder %s13, 4
    %s23 = sphi 0, %s25
    %s26 = sphi 0, %s23
    %s27 = sphi 0, %s26
    %s43 = sphi 0, %s27
    %s47 = sphi 0, %s47
    %s49 = sphi 0, %s47
    %s50 = sphi 0, %s49
    %s64 = sphi 0, %s50
    %s68 = sphi 0, %s68
    %s70 = sphi 0, %s68
    %s71 = sphi 0, %s70
    %s85 = sphi 0, %s71
    %s89 = sphi 0, %s89
    %s91 = sphi 0, %s89
    %s92 = sphi 0, %s91
    %s106 = sphi 0, %s92
    %s110 = sphi 0, %s110
    %s112 = sphi 0, %s110
    %s113 = sphi 0, %s112
    %s127 = sphi 0, %s113
    %s131 = sphi 0, %s131
    %s133 = sphi 0, %s131
    %s134 = sphi 0, %s133
    %s148 = sphi 0, %s134
    %s152 = sphi 0, %s152
    %s154 = sphi 0, %s152
    %s155 = sphi 0, %s154
    %s169 = sphi 0, %s155
    %s175 = sphi 0, %s177
    %s178 = sphi 0, %s175
    %s179 = sphi 0, %s178
    %s195 = sphi 0, %s179
  $region4: #{_lambda_.11} parent=0 // loop_header_branch
    %16 = sbr.rel (%p14) target = $region8
  $region5: #{_lambda_.11} parent=0 // loop_body
    %s18 = ssub.s32 %s13, 1
    %s19 = ssub.s32 %s13, 2
    %s20 = sadd.s32 %s13, 1
    %s21 = ssub.s32 %s13, %s20
    %p22 = scmp.eq.s32.totalorder %s21, 0
    %s24 = sadd.s32 %s23, 1
    %s25 = scalar_select %p22, %s23, %s24
    %p28 = pneg %p22
    %p29 = scmp.eq.s32.totalorder %s13, 1
    %p30 = por %p28, %p29
    %p31 = scmp.ne.s32.totalorder %s23, %s26
    %p32 = scmp.eq.s32.totalorder %s13, 0
    %p33 = por %p31, %p32
    %p34 = scmp.ne.s32.totalorder %s23, %s26
    %p35 = scmp.eq.s32.totalorder %s18, 1
    %p36 = por %p34, %p35
    %p37 = scmp.ne.s32.totalorder %s26, %s27
    %p38 = scmp.eq.s32.totalorder %s18, 0
    %p39 = por %p37, %p38
    %p40 = scmp.ne.s32.totalorder %s26, %s27
    %p41 = scmp.eq.s32.totalorder %s19, 1
    %p42 = por %p40, %p41
    %p44 = scmp.ne.s32.totalorder %s27, %s43
    %p45 = scmp.eq.s32.totalorder %s19, 0
    %p46 = por %p44, %p45
    %s48 = sadd.s32 %s47, 1
    %p51 = scmp.eq.s32.totalorder %s13, 1
    %p52 = scmp.ne.s32.totalorder %s47, %s49
    %p53 = scmp.eq.s32.totalorder %s13, 0
    %p54 = por %p52, %p53
    %p55 = scmp.ne.s32.totalorder %s47, %s49
    %p56 = scmp.eq.s32.totalorder %s18, 1
    %p57 = por %p55, %p56
    %p58 = scmp.ne.s32.totalorder %s49, %s50
    %p59 = scmp.eq.s32.totalorder %s18, 0
    %p60 = por %p58, %p59
    %p61 = scmp.ne.s32.totalorder %s49, %s50
    %p62 = scmp.eq.s32.totalorder %s19, 1
    %p63 = por %p61, %p62
    %p65 = scmp.ne.s32.totalorder %s50, %s64
    %p66 = scmp.eq.s32.totalorder %s19, 0
    %p67 = por %p65, %p66
    %s69 = sadd.s32 %s68, 1
    %p72 = scmp.eq.s32.totalorder %s13, 1
    %p73 = scmp.ne.s32.totalorder %s68, %s70
    %p74 = scmp.eq.s32.totalorder %s13, 0
    %p75 = por %p73, %p74
    %p76 = scmp.ne.s32.totalorder %s68, %s70
    %p77 = scmp.eq.s32.totalorder %s18, 1
    %p78 = por %p76, %p77
    %p79 = scmp.ne.s32.totalorder %s70, %s71
    %p80 = scmp.eq.s32.totalorder %s18, 0
    %p81 = por %p79, %p80
    %p82 = scmp.ne.s32.totalorder %s70, %s71
    %p83 = scmp.eq.s32.totalorder %s19, 1
    %p84 = por %p82, %p83
    %p86 = scmp.ne.s32.totalorder %s71, %s85
    %p87 = scmp.eq.s32.totalorder %s19, 0
    %p88 = por %p86, %p87
    %s90 = sadd.s32 %s89, 1
    %p93 = scmp.eq.s32.totalorder %s13, 1
    %p94 = scmp.ne.s32.totalorder %s89, %s91
    %p95 = scmp.eq.s32.totalorder %s13, 0
    %p96 = por %p94, %p95
    %p97 = scmp.ne.s32.totalorder %s89, %s91
    %p98 = scmp.eq.s32.totalorder %s18, 1
    %p99 = por %p97, %p98
    %p100 = scmp.ne.s32.totalorder %s91, %s92
    %p101 = scmp.eq.s32.totalorder %s18, 0
    %p102 = por %p100, %p101
    %p103 = scmp.ne.s32.totalorder %s91, %s92
    %p104 = scmp.eq.s32.totalorder %s19, 1
    %p105 = por %p103, %p104
    %p107 = scmp.ne.s32.totalorder %s92, %s106
    %p108 = scmp.eq.s32.totalorder %s19, 0
    %p109 = por %p107, %p108
    %s111 = sadd.s32 %s110, 1
    %p114 = scmp.eq.s32.totalorder %s13, 1
    %p115 = scmp.ne.s32.totalorder %s110, %s112
    %p116 = scmp.eq.s32.totalorder %s13, 0
    %p117 = por %p115, %p116
    %p118 = scmp.ne.s32.totalorder %s110, %s112
    %p119 = scmp.eq.s32.totalorder %s18, 1
    %p120 = por %p118, %p119
    %p121 = scmp.ne.s32.totalorder %s112, %s113
    %p122 = scmp.eq.s32.totalorder %s18, 0
    %p123 = por %p121, %p122
    %p124 = scmp.ne.s32.totalorder %s112, %s113
    %p125 = scmp.eq.s32.totalorder %s19, 1
    %p126 = por %p124, %p125
    %p128 = scmp.ne.s32.totalorder %s113, %s127
    %p129 = scmp.eq.s32.totalorder %s19, 0
    %p130 = por %p128, %p129
    %s132 = sadd.s32 %s131, 1
    %p135 = scmp.eq.s32.totalorder %s13, 1
    %p136 = scmp.ne.s32.totalorder %s131, %s133
    %p137 = scmp.eq.s32.totalorder %s13, 0
    %p138 = por %p136, %p137
    %p139 = scmp.ne.s32.totalorder %s131, %s133
    %p140 = scmp.eq.s32.totalorder %s18, 1
    %p141 = por %p139, %p140
    %p142 = scmp.ne.s32.totalorder %s133, %s134
    %p143 = scmp.eq.s32.totalorder %s18, 0
    %p144 = por %p142, %p143
    %p145 = scmp.ne.s32.totalorder %s133, %s134
    %p146 = scmp.eq.s32.totalorder %s19, 1
    %p147 = por %p145, %p146
    %p149 = scmp.ne.s32.totalorder %s134, %s148
    %p150 = scmp.eq.s32.totalorder %s19, 0
    %p151 = por %p149, %p150
    %s153 = sadd.s32 %s152, 1
    %p156 = scmp.eq.s32.totalorder %s13, 1
    %p157 = scmp.ne.s32.totalorder %s152, %s154
    %p158 = scmp.eq.s32.totalorder %s13, 0
    %p159 = por %p157, %p158
    %p160 = scmp.ne.s32.totalorder %s152, %s154
    %p161 = scmp.eq.s32.totalorder %s18, 1
    %p162 = por %p160, %p161
    %p163 = scmp.ne.s32.totalorder %s154, %s155
    %p164 = scmp.eq.s32.totalorder %s18, 0
    %p165 = por %p163, %p164
    %p166 = scmp.ne.s32.totalorder %s154, %s155
    %p167 = scmp.eq.s32.totalorder %s19, 1
    %p168 = por %p166, %p167
    %p170 = scmp.ne.s32.totalorder %s155, %s169
    %p171 = scmp.eq.s32.totalorder %s19, 0
    %p172 = por %p170, %p171
    %s173 = ssub.s32 %s13, %s20
    %p174 = scmp.eq.s32.totalorder %s173, 0
    %s176 = sadd.s32 %s175, 1
    %s177 = scalar_select %p174, %s175, %s176
    %p180 = pneg %p174
    %p181 = scmp.eq.s32.totalorder %s13, 1
    %p182 = por %p180, %p181
    %p183 = scmp.ne.s32.totalorder %s175, %s178
    %p184 = scmp.eq.s32.totalorder %s13, 0
    %p185 = por %p183, %p184
    %p186 = scmp.ne.s32.totalorder %s175, %s178
    %p187 = scmp.eq.s32.totalorder %s18, 1
    %p188 = por %p186, %p187
    %p189 = scmp.ne.s32.totalorder %s178, %s179
    %p190 = scmp.eq.s32.totalorder %s18, 0
    %p191 = por %p189, %p190
    %p192 = scmp.ne.s32.totalorder %s178, %s179
    %p193 = scmp.eq.s32.totalorder %s19, 1
    %p194 = por %p192, %p193
    %p196 = scmp.ne.s32.totalorder %s179, %s195
    %p197 = scmp.eq.s32.totalorder %s19, 0
    %p198 = por %p196, %p197
    %p199 = scmp.le.s32.totalorder 1, %s13
    %p200 = scmp.lt.s32.totalorder %s13, 3
    %p201 = pnand %p199, %p200
    %p202 = pneg %p201
    // Predicated region
    $region9: #{_lambda_.11} parent=5 // pred_check
      _
    $region10: #{_lambda_.11} parent=5 // pred_check_branch
      %204 = sbr.rel (%p201) target = $region12
    $region11: #{_lambda_.11} parent=5 // pred_region
      %s205 = ssub.s32 %s13, 1
      // Predicated region
      $region13: #{_lambda_.11} parent=11 // pred_check
        %p206 = pneg %p60
      $region14: #{_lambda_.11} parent=11 // pred_check_branch
        %208 = sbr.rel (%p206) target = $region16
      $region15: #{_lambda_.11} parent=11 // pred_region
        _
      $region16: #{_lambda_.11} parent=11 // pred_fallthru
        _
      // Predicated region
      $region17: #{_lambda_.11} parent=11 // pred_check
        %p209 = pneg %p81
      $region18: #{_lambda_.11} parent=11 // pred_check_branch
        %211 = sbr.rel (%p209) target = $region20
      $region19: #{_lambda_.11} parent=11 // pred_region
        _
      $region20: #{_lambda_.11} parent=11 // pred_fallthru
        _
      // Predicated region
      $region21: #{_lambda_.11} parent=11 // pred_check
        %p212 = pneg %p102
      $region22: #{_lambda_.11} parent=11 // pred_check_branch
        %214 = sbr.rel (%p212) target = $region24
      $region23: #{_lambda_.11} parent=11 // pred_region
        _
      $region24: #{_lambda_.11} parent=11 // pred_fallthru
        _
      // Predicated region
      $region25: #{_lambda_.11} parent=11 // pred_check
        %p215 = pneg %p123
      $region26: #{_lambda_.11} parent=11 // pred_check_branch
        %217 = sbr.rel (%p215) target = $region28
      $region27: #{_lambda_.11} parent=11 // pred_region
        _
      $region28: #{_lambda_.11} parent=11 // pred_fallthru
        _
      // Predicated region
      $region29: #{_lambda_.11} parent=11 // pred_check
        %p218 = pneg %p144
      $region30: #{_lambda_.11} parent=11 // pred_check_branch
        %220 = sbr.rel (%p218) target = $region32
      $region31: #{_lambda_.11} parent=11 // pred_region
        _
      $region32: #{_lambda_.11} parent=11 // pred_fallthru
        _
      // Predicated region
      $region33: #{_lambda_.11} parent=11 // pred_check
        %p221 = pneg %p165
      $region34: #{_lambda_.11} parent=11 // pred_check_branch
        %223 = sbr.rel (%p221) target = $region36
      $region35: #{_lambda_.11} parent=11 // pred_region
        _
      $region36: #{_lambda_.11} parent=11 // pred_fallthru
        _
    $region12: #{_lambda_.11} parent=5 // pred_fallthru
      _
    %p224 = scmp.lt.s32.totalorder %s13, 2
    // Predicated region
    $region37: #{_lambda_.11} parent=5 // pred_check
      %p225 = pneg %p224
    $region38: #{_lambda_.11} parent=5 // pred_check_branch
      %227 = sbr.rel (%p225) target = $region40
    $region39: #{_lambda_.11} parent=5 // pred_region
      // Predicated region
      $region41: #{_lambda_.11} parent=39 // pred_check
        %p228 = pneg %p33
      $region42: #{_lambda_.11} parent=39 // pred_check_branch
        %230 = sbr.rel (%p228) target = $region44
      $region43: #{_lambda_.11} parent=39 // pred_region
        %p231 = scmp.lt.s32.totalorder %s13, 1
        %s232 = scalar_select %p231, %s13, 1
        %s233 = smul.addr %s232, 4
        %s234 = smul.addr %s233, 8
        %s235 = scalar_lea.vmem %s0, %s234
      $region44: #{_lambda_.11} parent=39 // pred_fallthru
        _
    $region40: #{_lambda_.11} parent=5 // pred_fallthru
      _
    %p236 = scmp.le.s32.totalorder 1, %s13
    %p237 = scmp.lt.s32.totalorder %s13, 3
    %p238 = pnand %p236, %p237
    %p239 = pneg %p238
    // Predicated region
    $region45: #{_lambda_.11} parent=5 // pred_check
      _
    $region46: #{_lambda_.11} parent=5 // pred_check_branch
      %241 = sbr.rel (%p238) target = $region48
    $region47: #{_lambda_.11} parent=5 // pred_region
      %s242 = ssub.s32 %s13, 1
      %p243 = scmp.lt.s32.totalorder %s18, 1
      %s244 = scalar_select %p243, %s18, 1
      %s245 = smul.addr %s244, 4
      %s246 = smul.addr %s245, 8
      %s247 = scalar_lea.vmem %s0, %s246
      %p248 = pneg %p39
      %p249 = pneg %p36
      %p250 = pneg %p60
      %p251 = pneg %p57
      %p252 = pneg %p81
      %p253 = pneg %p78
      %p254 = pneg %p102
      %p255 = pneg %p99
      %p256 = pneg %p123
      %p257 = pneg %p120
      %p258 = pneg %p144
      %p259 = pneg %p141
      %p260 = pneg %p165
      %p261 = pneg %p162
      %p262 = pneg %p191
      %p263 = pneg %p188
      %p264 = scmp.lt.s32.totalorder %s18, 1
      %s265 = scalar_select %p264, %s18, 1
      %s266 = smul.addr %s265, 4
      %s267 = smul.addr %s266, 8
      %s268 = scalar_lea.vmem %s7, %s267
      %p269 = scmp.lt.s32.totalorder %s18, 1
      %s270 = scalar_select %p269, %s18, 1
      %s271 = smul.addr %s270, 4
      %s272 = smul.addr %s271, 8
      %s273 = scalar_lea.vmem %s0, %s272
      %p274 = scmp.lt.s32.totalorder %s18, 1
      %s275 = scalar_select %p274, %s18, 1
      %s276 = smul.addr %s275, 4
      %s277 = smul.addr %s276, 8
      %s278 = scalar_lea.vmem %s7, %s277
      %v279 = vld [vmem:[%s273] sm:$0xff]
      %v280 = vld [vmem:[%s273 + $0x8] sm:$0xff]
      %v281 = vld [vmem:[%s273 + $0x10] sm:$0xff]
      %v282 = vld [vmem:[%s273 + $0x18] sm:$0xff]
      %v283 = vld [vmem:[%s1] sm:$0x1]
      %v284 = vld [vmem:[%s2] sm:$0x1]
      %285 = vadd.xlane.f32.xlu0 %v279
      %v286 = vpop.xlane.xlu0 %285
      %287 = vadd.xlane.f32.xlu0 %v280
      %v288 = vpop.xlane.xlu0 %287
      %289 = vadd.xlane.f32.xlu0 %v281
      %v290 = vpop.xlane.xlu0 %289
      %291 = vadd.xlane.f32.xlu0 %v282
      %v292 = vpop.xlane.xlu0 %291
      %v293 = vrcp.pop 128.0
      %v294 = vmul.f32 %v286, %v293
      %v295 = vmul.f32 %v288, %v293
      %v296 = vmul.f32 %v290, %v293
      %v297 = vmul.f32 %v292, %v293
      %v298 = vsub.f32 %v279, %v294
      %v299 = vsub.f32 %v280, %v295
      %v300 = vsub.f32 %v281, %v296
      %v301 = vsub.f32 %v282, %v297
      %v302 = vmul.f32 %v298, %v298
      %v303 = vmul.f32 %v299, %v299
      %v304 = vmul.f32 %v300, %v300
      %v305 = vmul.f32 %v301, %v301
      %306 = vadd.xlane.f32.xlu0 %v302
      %v307 = vpop.xlane.xlu0 %306
      %308 = vadd.xlane.f32.xlu0 %v303
      %v309 = vpop.xlane.xlu0 %308
      %310 = vadd.xlane.f32.xlu0 %v304
      %v311 = vpop.xlane.xlu0 %310
      %312 = vadd.xlane.f32.xlu0 %v305
      %v313 = vpop.xlane.xlu0 %312
      %v314 = vmul.f32 %v307, %v293
      %v315 = vmul.f32 %v309, %v293
      %v316 = vmul.f32 %v311, %v293
      %v317 = vmul.f32 %v313, %v293
      %v318 = vadd.f32 %v314, 1e-05
      %v319 = vadd.f32 %v315, 1e-05
      %v320 = vadd.f32 %v316, 1e-05
      %v321 = vadd.f32 %v317, 1e-05
      %v322 = vrsqrt.pop %v318
      %v323 = vrsqrt.pop %v319
      %v324 = vrsqrt.pop %v320
      %v325 = vrsqrt.pop %v321
      %v326 = vmul.f32 %v298, %v322
      %v327 = vmul.f32 %v299, %v323
      %v328 = vmul.f32 %v300, %v324
      %v329 = vmul.f32 %v301, %v325
      %v331 = vlaneseq
      %v332 = vshrl.u32 %v331, 7
      %v333 = vsub.s32 0, %v332
      %v334 = vrot.slane %v283, %v333
      %v336 = vmul.f32 %v326, %v334
      %v337 = vmul.f32 %v327, %v334
      %v338 = vmul.f32 %v328, %v334
      %v339 = vmul.f32 %v329, %v334
      %v341 = vlaneseq
      %v342 = vshrl.u32 %v341, 7
      %v343 = vsub.s32 0, %v342
      %v344 = vrot.slane %v284, %v343
      %v346 = vadd.f32 %v336, %v344
      %v347 = vadd.f32 %v337, %v344
      %v348 = vadd.f32 %v338, %v344
      %v349 = vadd.f32 %v339, %v344
      %v350 = vld [vmem:[%s3] sm:$0xff]
      %v351 = vld [vmem:[%s3 + $0x8] sm:$0xff]
      %v352 = vld [vmem:[%s3 + $0x10] sm:$0xff]
      %v353 = vld [vmem:[%s3 + $0x18] sm:$0xff]
      %v354 = vld [vmem:[%s3 + $0x20] sm:$0xff]
      %v355 = vld [vmem:[%s3 + $0x28] sm:$0xff]
      %v356 = vld [vmem:[%s3 + $0x30] sm:$0xff]
      %v357 = vld [vmem:[%s3 + $0x38] sm:$0xff]
      %v358 = vld [vmem:[%s3 + $0x40] sm:$0xff]
      %v359 = vld [vmem:[%s3 + $0x48] sm:$0xff]
      %v360 = vld [vmem:[%s3 + $0x50] sm:$0xff]
      %v361 = vld [vmem:[%s3 + $0x58] sm:$0xff]
      %v362 = vld [vmem:[%s3 + $0x60] sm:$0xff]
      %v363 = vld [vmem:[%s3 + $0x68] sm:$0xff]
      %v364 = vld [vmem:[%s3 + $0x70] sm:$0xff]
      %v365 = vld [vmem:[%s3 + $0x78] sm:$0xff]
      %v366 = vld [vmem:[%s4] sm:$0x1]
      %v368 = vlaneseq
      %v369 = vshrl.u32 %v368, 7
      %v370 = vsub.s32 0, %v369
      %v371 = vrot.slane %v366, %v370
      %373 = vmatprep.subr.mxu0 0.0
      %374 = vmatpush1.msra.mxu0 %v350
      %375 = vmatprep.subr.mxu0 0.0
      %376 = vmatpush1.msra.mxu0 %v351
      %377 = vmatprep.subr.mxu0 0.0
      %378 = vmatpush1.msra.mxu0 %v352
      %379 = vmatprep.subr.mxu0 0.0
      %380 = vmatpush1.msra.mxu0 %v353
      %381 = vmatprep.subr.mxu0 0.0
      %382 = vmatpush1.msra.mxu0 %v354
      %383 = vmatprep.subr.mxu0 0.0
      %384 = vmatpush1.msra.mxu0 %v355
      %385 = vmatprep.subr.mxu0 0.0
      %386 = vmatpush1.msra.mxu0 %v356
      %387 = vmatprep.subr.mxu0 0.0
      %388 = vmatpush1.msra.mxu0 %v357
      %389 = vmatprep.subr.mxu0 0.0
      %390 = vmatpush1.msra.mxu0 %v358
      %391 = vmatprep.subr.mxu0 0.0
      %392 = vmatpush1.msra.mxu0 %v359
      %393 = vmatprep.subr.mxu0 0.0
      %394 = vmatpush1.msra.mxu0 %v360
      %395 = vmatprep.subr.mxu0 0.0
      %396 = vmatpush1.msra.mxu0 %v361
      %397 = vmatprep.subr.mxu0 0.0
      %398 = vmatpush1.msra.mxu0 %v362
      %399 = vmatprep.subr.mxu0 0.0
      %400 = vmatpush1.msra.mxu0 %v363
      %401 = vmatprep.subr.mxu0 0.0
      %402 = vmatpush1.msra.mxu0 %v364
      %403 = vmatprep.subr.mxu0 0.0
      %404 = vmatpush1.msra.mxu0 %v365
      %405 = vmatprep.subr.mxu0 0.0
      %406 = vmatpush1.msra.mxu0 0.0
      %407 = vmatprep.subr.mxu0 0.0
      %408 = vmatpush1.msra.mxu0 0.0
      %409 = vmatprep.subr.mxu0 0.0
      %410 = vmatpush1.msra.mxu0 0.0
      %411 = vmatprep.subr.mxu0 0.0
      %412 = vmatpush1.msra.mxu0 0.0
      %413 = vmatprep.subr.mxu0 0.0
      %414 = vmatpush1.msra.mxu0 0.0
      %415 = vmatprep.subr.mxu0 0.0
      %416 = vmatpush1.msra.mxu0 0.0
      %417 = vmatprep.subr.mxu0 0.0
      %418 = vmatpush1.msra.mxu0 0.0
      %419 = vmatprep.subr.mxu0 0.0
      %420 = vmatpush1.msra.mxu0 0.0
      %421 = vmatprep.subr.mxu0 0.0
      %422 = vmatpush1.msra.mxu0 0.0
      %423 = vmatprep.subr.mxu0 0.0
      %424 = vmatpush1.msra.mxu0 0.0
      %425 = vmatprep.subr.mxu0 0.0
      %426 = vmatpush1.msra.mxu0 0.0
      %427 = vmatprep.subr.mxu0 0.0
      %428 = vmatpush1.msra.mxu0 0.0
      %429 = vmatprep.subr.mxu0 0.0
      %430 = vmatpush1.msra.mxu0 0.0
      %431 = vmatprep.subr.mxu0 0.0
      %432 = vmatpush1.msra.mxu0 0.0
      %433 = vmatprep.subr.mxu0 0.0
      %434 = vmatpush1.msra.mxu0 0.0
      %435 = vmatprep.subr.mxu0 0.0
      %436 = vmatpush1.msra.mxu0 0.0
      %437 = vmatprep.mubr.f32.mxu0 0.0
      %438 = vmatmul.mubr.f32.gmra.mrb[0].mxu0 %v346
      %v439 = vpop.f32.mrb[0].mxu0
      %v440 = vadd.f32 %v371, %v439
      %v441 = vpop.f32.mrb[0].mxu0
      %442 = vmatprep.mubr.f32.mxu0 0.0
      %443 = vmatmul.mubr.f32.gmra.mrb[0].mxu0 %v347
      %v444 = vpop.f32.mrb[0].mxu0
      %v445 = vadd.f32 %v371, %v444
      %v446 = vpop.f32.mrb[0].mxu0
      %447 = vmatprep.mubr.f32.mxu0 0.0
      %448 = vmatmul.mubr.f32.gmra.mrb[0].mxu0 %v348
      %v449 = vpop.f32.mrb[0].mxu0
      %v450 = vadd.f32 %v371, %v449
      %v451 = vpop.f32.mrb[0].mxu0
      %452 = vmatprep.mubr.f32.mxu0 0.0
      %453 = vmatmul.mubr.f32.gmra.mrb[0].mxu0 %v349
      %v454 = vpop.f32.mrb[0].mxu0
      %v455 = vadd.f32 %v371, %v454
      %v456 = vpop.f32.mrb[0].mxu0
      %457 = vdwg.mxu0
      %v458 = vmul.f32 %v440, 0.5
      %v459 = vmul.f32 %v445, 0.5
      %v460 = vmul.f32 %v450, 0.5
      %v461 = vmul.f32 %v455, 0.5
      %v462 = vmul.f32 %v440, 0.044715
      %v463 = vmul.f32 %v445, 0.044715
      %v464 = vmul.f32 %v450, 0.044715
      %v465 = vmul.f32 %v455, 0.044715
      %v466 = vmul.f32 %v462, %v440
      %v467 = vmul.f32 %v463, %v445
      %v468 = vmul.f32 %v464, %v450
      %v469 = vmul.f32 %v465, %v455
      %v470 = vmul.f32 %v466, %v440
      %v471 = vmul.f32 %v467, %v445
      %v472 = vmul.f32 %v468, %v450
      %v473 = vmul.f32 %v469, %v455
      %v474 = vadd.f32 %v440, %v470
      %v475 = vadd.f32 %v445, %v471
      %v476 = vadd.f32 %v450, %v472
      %v477 = vadd.f32 %v455, %v473
      %v478 = vmul.f32 %v474, 0.7978846
      %v479 = vmul.f32 %v475, 0.7978846
      %v480 = vmul.f32 %v476, 0.7978846
      %v481 = vmul.f32 %v477, 0.7978846
      %v482 = vtanh.pop %v478
      %v483 = vtanh.pop %v479
      %v484 = vtanh.pop %v480
      %v485 = vtanh.pop %v481
      %v486 = vadd.f32 %v482, 1.0
      %v487 = vadd.f32 %v483, 1.0
      %v488 = vadd.f32 %v484, 1.0
      %v489 = vadd.f32 %v485, 1.0
      %v490 = vmul.f32 %v458, %v486
      %v491 = vmul.f32 %v459, %v487
      %v492 = vmul.f32 %v460, %v488
      %v493 = vmul.f32 %v461, %v489
      %v494 = vld [vmem:[%s5] sm:$0xff]
      %v495 = vld [vmem:[%s5 + $0x8] sm:$0xff]
      %v496 = vld [vmem:[%s5 + $0x10] sm:$0xff]
      %v497 = vld [vmem:[%s5 + $0x18] sm:$0xff]
      %v498 = vld [vmem:[%s5 + $0x20] sm:$0xff]
      %v499 = vld [vmem:[%s5 + $0x28] sm:$0xff]
      %v500 = vld [vmem:[%s5 + $0x30] sm:$0xff]
      %v501 = vld [vmem:[%s5 + $0x38] sm:$0xff]
      %v502 = vld [vmem:[%s5 + $0x40] sm:$0xff]
      %v503 = vld [vmem:[%s5 + $0x48] sm:$0xff]
      %v504 = vld [vmem:[%s5 + $0x50] sm:$0xff]
      %v505 = vld [vmem:[%s5 + $0x58] sm:$0xff]
      %v506 = vld [vmem:[%s5 + $0x60] sm:$0xff]
      %v507 = vld [vmem:[%s5 + $0x68] sm:$0xff]
      %v508 = vld [vmem:[%s5 + $0x70] sm:$0xff]
      %v509 = vld [vmem:[%s5 + $0x78] sm:$0xff]
      %v510 = vld [vmem:[%s6] sm:$0x1]
      %v512 = vlaneseq
      %v513 = vshrl.u32 %v512, 7
      %v514 = vsub.s32 0, %v513
      %v515 = vrot.slane %v510, %v514
      %517 = vmatprep.subr.mxu0 0.0
      %518 = vmatpush1.msra.mxu0 %v494
      %519 = vmatprep.subr.mxu0 0.0
      %520 = vmatpush1.msra.mxu0 %v495
      %521 = vmatprep.subr.mxu0 0.0
      %522 = vmatpush1.msra.mxu0 %v496
      %523 = vmatprep.subr.mxu0 0.0
      %524 = vmatpush1.msra.mxu0 %v497
      %525 = vmatprep.subr.mxu0 0.0
      %526 = vmatpush1.msra.mxu0 %v498
      %527 = vmatprep.subr.mxu0 0.0
      %528 = vmatpush1.msra.mxu0 %v499
      %529 = vmatprep.subr.mxu0 0.0
      %530 = vmatpush1.msra.mxu0 %v500
      %531 = vmatprep.subr.mxu0 0.0
      %532 = vmatpush1.msra.mxu0 %v501
      %533 = vmatprep.subr.mxu0 0.0
      %534 = vmatpush1.msra.mxu0 %v502
      %535 = vmatprep.subr.mxu0 0.0
      %536 = vmatpush1.msra.mxu0 %v503
      %537 = vmatprep.subr.mxu0 0.0
      %538 = vmatpush1.msra.mxu0 %v504
      %539 = vmatprep.subr.mxu0 0.0
      %540 = vmatpush1.msra.mxu0 %v505
      %541 = vmatprep.subr.mxu0 0.0
      %542 = vmatpush1.msra.mxu0 %v506
      %543 = vmatprep.subr.mxu0 0.0
      %544 = vmatpush1.msra.mxu0 %v507
      %545 = vmatprep.subr.mxu0 0.0
      %546 = vmatpush1.msra.mxu0 %v508
      %547 = vmatprep.subr.mxu0 0.0
      %548 = vmatpush1.msra.mxu0 %v509
      %549 = vmatprep.subr.mxu0 0.0
      %550 = vmatpush1.msra.mxu0 0.0
      %551 = vmatprep.subr.mxu0 0.0
      %552 = vmatpush1.msra.mxu0 0.0
      %553 = vmatprep.subr.mxu0 0.0
      %554 = vmatpush1.msra.mxu0 0.0
      %555 = vmatprep.subr.mxu0 0.0
      %556 = vmatpush1.msra.mxu0 0.0
      %557 = vmatprep.subr.mxu0 0.0
      %558 = vmatpush1.msra.mxu0 0.0
      %559 = vmatprep.subr.mxu0 0.0
      %560 = vmatpush1.msra.mxu0 0.0
      %561 = vmatprep.subr.mxu0 0.0
      %562 = vmatpush1.msra.mxu0 0.0
      %563 = vmatprep.subr.mxu0 0.0
      %564 = vmatpush1.msra.mxu0 0.0
      %565 = vmatprep.subr.mxu0 0.0
      %566 = vmatpush1.msra.mxu0 0.0
      %567 = vmatprep.subr.mxu0 0.0
      %568 = vmatpush1.msra.mxu0 0.0
      %569 = vmatprep.subr.mxu0 0.0
      %570 = vmatpush1.msra.mxu0 0.0
      %571 = vmatprep.subr.mxu0 0.0
      %572 = vmatpush1.msra.mxu0 0.0
      %573 = vmatprep.subr.mxu0 0.0
      %574 = vmatpush1.msra.mxu0 0.0
      %575 = vmatprep.subr.mxu0 0.0
      %576 = vmatpush1.msra.mxu0 0.0
      %577 = vmatprep.subr.mxu0 0.0
      %578 = vmatpush1.msra.mxu0 0.0
      %579 = vmatprep.subr.mxu0 0.0
      %580 = vmatpush1.msra.mxu0 0.0
      %581 = vmatprep.mubr.f32.mxu0 0.0
      %582 = vmatmul.mubr.f32.gmra.mrb[0].mxu0 %v490
      %v583 = vpop.f32.mrb[0].mxu0
      %v584 = vadd.f32 %v515, %v583
      %v585 = vpop.f32.mrb[0].mxu0
      %586 = vmatprep.mubr.f32.mxu0 0.0
      %587 = vmatmul.mubr.f32.gmra.mrb[0].mxu0 %v491
      %v588 = vpop.f32.mrb[0].mxu0
      %v589 = vadd.f32 %v515, %v588
      %v590 = vpop.f32.mrb[0].mxu0
      %591 = vmatprep.mubr.f32.mxu0 0.0
      %592 = vmatmul.mubr.f32.gmra.mrb[0].mxu0 %v492
      %v593 = vpop.f32.mrb[0].mxu0
      %v594 = vadd.f32 %v515, %v593
      %v595 = vpop.f32.mrb[0].mxu0
      %596 = vmatprep.mubr.f32.mxu0 0.0
      %597 = vmatmul.mubr.f32.gmra.mrb[0].mxu0 %v493
      %v598 = vpop.f32.mrb[0].mxu0
      %v599 = vadd.f32 %v515, %v598
      %v600 = vpop.f32.mrb[0].mxu0
      %601 = vdwg.mxu0
      %v602 = vadd.f32 %v584, %v279
      %v603 = vadd.f32 %v589, %v280
      %v604 = vadd.f32 %v594, %v281
      %v605 = vadd.f32 %v599, %v282
      %606 = vst [vmem:[%s278] sm:$0xff] %v602
      %607 = vst [vmem:[%s278 + $0x8] sm:$0xff] %v603
      %608 = vst [vmem:[%s278 + $0x10] sm:$0xff] %v604
      %609 = vst [vmem:[%s278 + $0x18] sm:$0xff] %v605
      %p610 = scmp.lt.s32.totalorder %s18, 1
      %s611 = scalar_select %p610, %s18, 1
      %s612 = smul.addr %s611, 4
      %s613 = smul.addr %s612, 8
      %s614 = scalar_lea.vmem %s7, %s613
      // Predicated region
      $region49: #{_lambda_.11} parent=47 // pred_check
        %p615 = pneg %p188
      $region50: #{_lambda_.11} parent=47 // pred_check_branch
        %617 = sbr.rel (%p615) target = $region52
      $region51: #{_lambda_.11} parent=47 // pred_region
        _
      $region52: #{_lambda_.11} parent=47 // pred_fallthru
        _
    $region48: #{_lambda_.11} parent=5 // pred_fallthru
      _
    %p618 = scmp.le.s32.totalorder 2, %s13
    // Predicated region
    $region53: #{_lambda_.11} parent=5 // pred_check
      %p619 = pneg %p618
    $region54: #{_lambda_.11} parent=5 // pred_check_branch
      %621 = sbr.rel (%p619) target = $region56
    $region55: #{_lambda_.11} parent=5 // pred_region
      %s622 = ssub.s32 %s13, 2
      // Predicated region
      $region57: #{_lambda_.11} parent=55 // pred_check
        %p623 = pneg %p194
      $region58: #{_lambda_.11} parent=55 // pred_check_branch
        %625 = sbr.rel (%p623) target = $region60
      $region59: #{_lambda_.11} parent=55 // pred_region
        %p626 = scmp.lt.s32.totalorder %s19, 1
        %s627 = scalar_select %p626, %s19, 1
        %s628 = smul.addr %s627, 4
        %s629 = smul.addr %s628, 8
        %s630 = scalar_lea.vmem %s7, %s629
      $region60: #{_lambda_.11} parent=55 // pred_fallthru
        _
    $region56: #{_lambda_.11} parent=5 // pred_fallthru
      _
  $region6: #{_lambda_.11} parent=0 // loop_footer
    %s17 = sadd.s32 1, %s13
  $region7: #{_lambda_.11} parent=0 // loop_footer_branch
    %12 = sbr.rel target = $region3
  $region8: #{_lambda_.11} parent=0 // loop_exit
    _

// kernel: _lambda_.19
$region0: #{_lambda_.19}
  #allocation0 [shape = 'u32[]', space=smem, size = 0x4, offset = 0x4, fixed_abs, tag = 'smem constant byte address 0x4 - core index']
  #allocation1 [shape = 'u32[144,128]{1,0:T(1,128)}', space=vmem, size = 0x12000, scoped, tag = 'internal scratch']
  %s0 = inlined_call_operand.vmem [shape: f32[2,32,128], index: 0, kind: input, shape index: {}]
  %s1 = inlined_call_operand.vmem [shape: f32[1,128], index: 1, kind: input, shape index: {}]
  %s2 = inlined_call_operand.vmem [shape: f32[1,128], index: 2, kind: input, shape index: {}]
  %s3 = inlined_call_operand.vmem [shape: f32[128,128], index: 3, kind: input, shape index: {}]
  %s4 = inlined_call_operand.vmem [shape: f32[1,128], index: 4, kind: input, shape index: {}]
  %s5 = inlined_call_operand.vmem [shape: f32[128,128], index: 5, kind: input, shape index: {}]
  %s6 = inlined_call_operand.vmem [shape: f32[1,128], index: 6, kind: input, shape index: {}]
  %s7 = inlined_call_operand.hbm [shape: f32[2,32,128], index: 7, kind: output, shape index: {}]
  %s8 = sld [smem:[#allocation0]]
  $region61: #{_lambda_.19} parent=0
    _
  %s10 = ssub.s32 1, %s8
  %s11 = scalar_select 0, %s10, %s8
  $region1: #{_lambda_.19} parent=0
    #allocation2 [shape = 'u8[32768]{0}', space=vmem, size = 0x8000, scoped, tag = 'output window, operand 0']
    #allocation3 [shape = 's32[2]{0}', space=sflag, size = 0x8, scoped, tag = 'scoped memory for _lambda_.19']
    %12 = vsyncpa [#allocation3], 0
    %s13 = scalar_lea.sflag [#allocation3], 1
    %14 = vsyncpa %s13, 0
    loop: start=0, step=1, limit=4
    $region2: #{_lambda_.19} parent=1 // loop_pre_header
      _
    $region3: #{_lambda_.19} parent=1 // loop_header
      %s16 = sphi 0, %s20
      %p17 = scmp.ge.s32.totalorder %s16, 4
      %s26 = sphi 0, %s28
      %s29 = sphi 0, %s26
      %s30 = sphi 0, %s29
      %s46 = sphi 0, %s30
      %s50 = sphi 0, %s50
      %s52 = sphi 0, %s50
      %s53 = sphi 0, %s52
      %s67 = sphi 0, %s53
      %s71 = sphi 0, %s71
      %s73 = sphi 0, %s71
      %s74 = sphi 0, %s73
      %s88 = sphi 0, %s74
      %s92 = sphi 0, %s92
      %s94 = sphi 0, %s92
      %s95 = sphi 0, %s94
      %s109 = sphi 0, %s95
      %s113 = sphi 0, %s113
      %s115 = sphi 0, %s113
      %s116 = sphi 0, %s115
      %s130 = sphi 0, %s116
      %s134 = sphi 0, %s134
      %s136 = sphi 0, %s134
      %s137 = sphi 0, %s136
      %s151 = sphi 0, %s137
      %s155 = sphi 0, %s155
      %s157 = sphi 0, %s155
      %s158 = sphi 0, %s157
      %s172 = sphi 0, %s158
      %s178 = sphi 0, %s180
      %s181 = sphi 0, %s178
      %s182 = sphi 0, %s181
      %s198 = sphi 0, %s182
    $region4: #{_lambda_.19} parent=1 // loop_header_branch
      %19 = sbr.rel (%p17) target = $region8
    $region5: #{_lambda_.19} parent=1 // loop_body
      %s21 = ssub.s32 %s16, 1
      %s22 = ssub.s32 %s16, 2
      %s23 = sadd.s32 %s16, 1
      %s24 = ssub.s32 %s16, %s23
      %p25 = scmp.eq.s32.totalorder %s24, 0
      %s27 = sadd.s32 %s26, 1
      %s28 = scalar_select %p25, %s26, %s27
      %p31 = pneg %p25
      %p32 = scmp.eq.s32.totalorder %s16, 1
      %p33 = por %p31, %p32
      %p34 = scmp.ne.s32.totalorder %s26, %s29
      %p35 = scmp.eq.s32.totalorder %s16, 0
      %p36 = por %p34, %p35
      %p37 = scmp.ne.s32.totalorder %s26, %s29
      %p38 = scmp.eq.s32.totalorder %s21, 1
      %p39 = por %p37, %p38
      %p40 = scmp.ne.s32.totalorder %s29, %s30
      %p41 = scmp.eq.s32.totalorder %s21, 0
      %p42 = por %p40, %p41
      %p43 = scmp.ne.s32.totalorder %s29, %s30
      %p44 = scmp.eq.s32.totalorder %s22, 1
      %p45 = por %p43, %p44
      %p47 = scmp.ne.s32.totalorder %s30, %s46
      %p48 = scmp.eq.s32.totalorder %s22, 0
      %p49 = por %p47, %p48
      %s51 = sadd.s32 %s50, 1
      %p54 = scmp.eq.s32.totalorder %s16, 1
      %p55 = scmp.ne.s32.totalorder %s50, %s52
      %p56 = scmp.eq.s32.totalorder %s16, 0
      %p57 = por %p55, %p56
      %p58 = scmp.ne.s32.totalorder %s50, %s52
      %p59 = scmp.eq.s32.totalorder %s21, 1
      %p60 = por %p58, %p59
      %p61 = scmp.ne.s32.totalorder %s52, %s53
      %p62 = scmp.eq.s32.totalorder %s21, 0
      %p63 = por %p61, %p62
      %p64 = scmp.ne.s32.totalorder %s52, %s53
      %p65 = scmp.eq.s32.totalorder %s22, 1
      %p66 = por %p64, %p65
      %p68 = scmp.ne.s32.totalorder %s53, %s67
      %p69 = scmp.eq.s32.totalorder %s22, 0
      %p70 = por %p68, %p69
      %s72 = sadd.s32 %s71, 1
      %p75 = scmp.eq.s32.totalorder %s16, 1
      %p76 = scmp.ne.s32.totalorder %s71, %s73
      %p77 = scmp.eq.s32.totalorder %s16, 0
      %p78 = por %p76, %p77
      %p79 = scmp.ne.s32.totalorder %s71, %s73
      %p80 = scmp.eq.s32.totalorder %s21, 1
      %p81 = por %p79, %p80
      %p82 = scmp.ne.s32.totalorder %s73, %s74
      %p83 = scmp.eq.s32.totalorder %s21, 0
      %p84 = por %p82, %p83
      %p85 = scmp.ne.s32.totalorder %s73, %s74
      %p86 = scmp.eq.s32.totalorder %s22, 1
      %p87 = por %p85, %p86
      %p89 = scmp.ne.s32.totalorder %s74, %s88
      %p90 = scmp.eq.s32.totalorder %s22, 0
      %p91 = por %p89, %p90
      %s93 = sadd.s32 %s92, 1
      %p96 = scmp.eq.s32.totalorder %s16, 1
      %p97 = scmp.ne.s32.totalorder %s92, %s94
      %p98 = scmp.eq.s32.totalorder %s16, 0
      %p99 = por %p97, %p98
      %p100 = scmp.ne.s32.totalorder %s92, %s94
      %p101 = scmp.eq.s32.totalorder %s21, 1
      %p102 = por %p100, %p101
      %p103 = scmp.ne.s32.totalorder %s94, %s95
      %p104 = scmp.eq.s32.totalorder %s21, 0
      %p105 = por %p103, %p104
      %p106 = scmp.ne.s32.totalorder %s94, %s95
      %p107 = scmp.eq.s32.totalorder %s22, 1
      %p108 = por %p106, %p107
      %p110 = scmp.ne.s32.totalorder %s95, %s109
      %p111 = scmp.eq.s32.totalorder %s22, 0
      %p112 = por %p110, %p111
      %s114 = sadd.s32 %s113, 1
      %p117 = scmp.eq.s32.totalorder %s16, 1
      %p118 = scmp.ne.s32.totalorder %s113, %s115
      %p119 = scmp.eq.s32.totalorder %s16, 0
      %p120 = por %p118, %p119
      %p121 = scmp.ne.s32.totalorder %s113, %s115
      %p122 = scmp.eq.s32.totalorder %s21, 1
      %p123 = por %p121, %p122
      %p124 = scmp.ne.s32.totalorder %s115, %s116
      %p125 = scmp.eq.s32.totalorder %s21, 0
      %p126 = por %p124, %p125
      %p127 = scmp.ne.s32.totalorder %s115, %s116
      %p128 = scmp.eq.s32.totalorder %s22, 1
      %p129 = por %p127, %p128
      %p131 = scmp.ne.s32.totalorder %s116, %s130
      %p132 = scmp.eq.s32.totalorder %s22, 0
      %p133 = por %p131, %p132
      %s135 = sadd.s32 %s134, 1
      %p138 = scmp.eq.s32.totalorder %s16, 1
      %p139 = scmp.ne.s32.totalorder %s134, %s136
      %p140 = scmp.eq.s32.totalorder %s16, 0
      %p141 = por %p139, %p140
      %p142 = scmp.ne.s32.totalorder %s134, %s136
      %p143 = scmp.eq.s32.totalorder %s21, 1
      %p144 = por %p142, %p143
      %p145 = scmp.ne.s32.totalorder %s136, %s137
      %p146 = scmp.eq.s32.totalorder %s21, 0
      %p147 = por %p145, %p146
      %p148 = scmp.ne.s32.totalorder %s136, %s137
      %p149 = scmp.eq.s32.totalorder %s22, 1
      %p150 = por %p148, %p149
      %p152 = scmp.ne.s32.totalorder %s137, %s151
      %p153 = scmp.eq.s32.totalorder %s22, 0
      %p154 = por %p152, %p153
      %s156 = sadd.s32 %s155, 1
      %p159 = scmp.eq.s32.totalorder %s16, 1
      %p160 = scmp.ne.s32.totalorder %s155, %s157
      %p161 = scmp.eq.s32.totalorder %s16, 0
      %p162 = por %p160, %p161
      %p163 = scmp.ne.s32.totalorder %s155, %s157
      %p164 = scmp.eq.s32.totalorder %s21, 1
      %p165 = por %p163, %p164
      %p166 = scmp.ne.s32.totalorder %s157, %s158
      %p167 = scmp.eq.s32.totalorder %s21, 0
      %p168 = por %p166, %p167
      %p169 = scmp.ne.s32.totalorder %s157, %s158
      %p170 = scmp.eq.s32.totalorder %s22, 1
      %p171 = por %p169, %p170
      %p173 = scmp.ne.s32.totalorder %s158, %s172
      %p174 = scmp.eq.s32.totalorder %s22, 0
      %p175 = por %p173, %p174
      %s176 = ssub.s32 %s16, %s23
      %p177 = scmp.eq.s32.totalorder %s176, 0
      %s179 = sadd.s32 %s178, 1
      %s180 = scalar_select %p177, %s178, %s179
      %p183 = pneg %p177
      %p184 = scmp.eq.s32.totalorder %s16, 1
      %p185 = por %p183, %p184
      %p186 = scmp.ne.s32.totalorder %s178, %s181
      %p187 = scmp.eq.s32.totalorder %s16, 0
      %p188 = por %p186, %p187
      %p189 = scmp.ne.s32.totalorder %s178, %s181
      %p190 = scmp.eq.s32.totalorder %s21, 1
      %p191 = por %p189, %p190
      %p192 = scmp.ne.s32.totalorder %s181, %s182
      %p193 = scmp.eq.s32.totalorder %s21, 0
      %p194 = por %p192, %p193
      %p195 = scmp.ne.s32.totalorder %s181, %s182
      %p196 = scmp.eq.s32.totalorder %s22, 1
      %p197 = por %p195, %p196
      %p199 = scmp.ne.s32.totalorder %s182, %s198
      %p200 = scmp.eq.s32.totalorder %s22, 0
      %p201 = por %p199, %p200
      %p202 = scmp.le.s32.totalorder 1, %s16
      %p203 = scmp.lt.s32.totalorder %s16, 3
      %p204 = pnand %p202, %p203
      %p205 = pneg %p204
      // Predicated region
      $region9: #{_lambda_.19} parent=5 // pred_check
        _
      $region10: #{_lambda_.19} parent=5 // pred_check_branch
        %207 = sbr.rel (%p204) target = $region12
      $region11: #{_lambda_.19} parent=5 // pred_region
        %s208 = ssub.s32 %s16, 1
        // Predicated region
        $region13: #{_lambda_.19} parent=11 // pred_check
          %p209 = pneg %p63
        $region14: #{_lambda_.19} parent=11 // pred_check_branch
          %211 = sbr.rel (%p209) target = $region16
        $region15: #{_lambda_.19} parent=11 // pred_region
          _
        $region16: #{_lambda_.19} parent=11 // pred_fallthru
          _
        // Predicated region
        $region17: #{_lambda_.19} parent=11 // pred_check
          %p212 = pneg %p84
        $region18: #{_lambda_.19} parent=11 // pred_check_branch
          %214 = sbr.rel (%p212) target = $region20
        $region19: #{_lambda_.19} parent=11 // pred_region
          _
        $region20: #{_lambda_.19} parent=11 // pred_fallthru
          _
        // Predicated region
        $region21: #{_lambda_.19} parent=11 // pred_check
          %p215 = pneg %p105
        $region22: #{_lambda_.19} parent=11 // pred_check_branch
          %217 = sbr.rel (%p215) target = $region24
        $region23: #{_lambda_.19} parent=11 // pred_region
          _
        $region24: #{_lambda_.19} parent=11 // pred_fallthru
          _
        // Predicated region
        $region25: #{_lambda_.19} parent=11 // pred_check
          %p218 = pneg %p126
        $region26: #{_lambda_.19} parent=11 // pred_check_branch
          %220 = sbr.rel (%p218) target = $region28
        $region27: #{_lambda_.19} parent=11 // pred_region
          _
        $region28: #{_lambda_.19} parent=11 // pred_fallthru
          _
        // Predicated region
        $region29: #{_lambda_.19} parent=11 // pred_check
          %p221 = pneg %p147
        $region30: #{_lambda_.19} parent=11 // pred_check_branch
          %223 = sbr.rel (%p221) target = $region32
        $region31: #{_lambda_.19} parent=11 // pred_region
          _
        $region32: #{_lambda_.19} parent=11 // pred_fallthru
          _
        // Predicated region
        $region33: #{_lambda_.19} parent=11 // pred_check
          %p224 = pneg %p168
        $region34: #{_lambda_.19} parent=11 // pred_check_branch
          %226 = sbr.rel (%p224) target = $region36
        $region35: #{_lambda_.19} parent=11 // pred_region
          _
        $region36: #{_lambda_.19} parent=11 // pred_fallthru
          _
      $region12: #{_lambda_.19} parent=5 // pred_fallthru
        _
      %p227 = scmp.lt.s32.totalorder %s16, 2
      // Predicated region
      $region37: #{_lambda_.19} parent=5 // pred_check
        %p228 = pneg %p227
      $region38: #{_lambda_.19} parent=5 // pred_check_branch
        %230 = sbr.rel (%p228) target = $region40
      $region39: #{_lambda_.19} parent=5 // pred_region
        // Predicated region
        $region41: #{_lambda_.19} parent=39 // pred_check
          %p231 = pneg %p36
        $region42: #{_lambda_.19} parent=39 // pred_check_branch
          %233 = sbr.rel (%p231) target = $region44
        $region43: #{_lambda_.19} parent=39 // pred_region
          %p234 = scmp.lt.s32.totalorder %s16, 1
          %s235 = scalar_select %p234, %s16, 1
          %s236 = smul.addr %s235, 4
          %s237 = smul.addr %s236, 8
          %s238 = scalar_lea.vmem %s0, %s237
        $region44: #{_lambda_.19} parent=39 // pred_fallthru
          _
      $region40: #{_lambda_.19} parent=5 // pred_fallthru
        _
      %p239 = scmp.le.s32.totalorder 1, %s16
      %p240 = scmp.lt.s32.totalorder %s16, 3
      %p241 = pnand %p239, %p240
      %p242 = pneg %p241
      // Predicated region
      $region45: #{_lambda_.19} parent=5 // pred_check
        _
      $region46: #{_lambda_.19} parent=5 // pred_check_branch
        %244 = sbr.rel (%p241) target = $region48
      $region47: #{_lambda_.19} parent=5 // pred_region
        %s245 = ssub.s32 %s16, 1
        %p246 = scmp.lt.s32.totalorder %s21, 1
        %s247 = scalar_select %p246, %s21, 1
        %s248 = smul.addr %s247, 4
        %s249 = smul.addr %s248, 8
        %s250 = scalar_lea.vmem %s0, %s249
        %p251 = pneg %p42
        %p252 = pneg %p39
        %p253 = pneg %p63
        %p254 = pneg %p60
        %p255 = pneg %p84
        %p256 = pneg %p81
        %p257 = pneg %p105
        %p258 = pneg %p102
        %p259 = pneg %p126
        %p260 = pneg %p123
        %p261 = pneg %p147
        %p262 = pneg %p144
        %p263 = pneg %p168
        %p264 = pneg %p165
        %p265 = pneg %p194
        %p266 = pneg %p191
        %s267 = sand.u32 %s181, 1
        %s268 = scalar_lea.sflag [#allocation3], %s267
        %s269 = sand.u32 %s181, 1
        %s270 = smul.addr %s269, 32
        %s271 = scalar_lea.vmem [#allocation2], %s270
        %p272 = scmp.lt.s32.totalorder %s21, 1
        %s273 = scalar_select %p272, %s21, 1
        %s274 = smul.addr %s273, 4
        %s275 = smul.addr %s274, 8
        %s276 = scalar_lea.vmem %s0, %s275
        %v277 = vld [vmem:[%s276] sm:$0xff]
        %v278 = vld [vmem:[%s276 + $0x8] sm:$0xff]
        %v279 = vld [vmem:[%s276 + $0x10] sm:$0xff]
        %v280 = vld [vmem:[%s276 + $0x18] sm:$0xff]
        %v281 = vld [vmem:[%s1] sm:$0x1]
        %v282 = vld [vmem:[%s2] sm:$0x1]
        %283 = vadd.xlane.f32.xlu0 %v277
        %v284 = vpop.xlane.xlu0 %283
        %285 = vadd.xlane.f32.xlu0 %v278
        %v286 = vpop.xlane.xlu0 %285
        %287 = vadd.xlane.f32.xlu0 %v279
        %v288 = vpop.xlane.xlu0 %287
        %289 = vadd.xlane.f32.xlu0 %v280
        %v290 = vpop.xlane.xlu0 %289
        %v291 = vrcp.pop 128.0
        %v292 = vmul.f32 %v284, %v291
        %v293 = vmul.f32 %v286, %v291
        %v294 = vmul.f32 %v288, %v291
        %v295 = vmul.f32 %v290, %v291
        %v296 = vsub.f32 %v277, %v292
        %v297 = vsub.f32 %v278, %v293
        %v298 = vsub.f32 %v279, %v294
        %v299 = vsub.f32 %v280, %v295
        %v300 = vmul.f32 %v296, %v296
        %v301 = vmul.f32 %v297, %v297
        %v302 = vmul.f32 %v298, %v298
        %v303 = vmul.f32 %v299, %v299
        %304 = vadd.xlane.f32.xlu0 %v300
        %v305 = vpop.xlane.xlu0 %304
        %306 = vadd.xlane.f32.xlu0 %v301
        %v307 = vpop.xlane.xlu0 %306
        %308 = vadd.xlane.f32.xlu0 %v302
        %v309 = vpop.xlane.xlu0 %308
        %310 = vadd.xlane.f32.xlu0 %v303
        %v311 = vpop.xlane.xlu0 %310
        %v312 = vmul.f32 %v305, %v291
        %v313 = vmul.f32 %v307, %v291
        %v314 = vmul.f32 %v309, %v291
        %v315 = vmul.f32 %v311, %v291
        %v316 = vadd.f32 %v312, 1e-05
        %v317 = vadd.f32 %v313, 1e-05
        %v318 = vadd.f32 %v314, 1e-05
        %v319 = vadd.f32 %v315, 1e-05
        %v320 = vrsqrt.pop %v316
        %v321 = vrsqrt.pop %v317
        %v322 = vrsqrt.pop %v318
        %v323 = vrsqrt.pop %v319
        %v324 = vmul.f32 %v296, %v320
        %v325 = vmul.f32 %v297, %v321
        %v326 = vmul.f32 %v298, %v322
        %v327 = vmul.f32 %v299, %v323
        %v329 = vlaneseq
        %v330 = vshrl.u32 %v329, 7
        %v331 = vsub.s32 0, %v330
        %v332 = vrot.slane %v281, %v331
        %v334 = vmul.f32 %v324, %v332
        %v335 = vmul.f32 %v325, %v332
        %v336 = vmul.f32 %v326, %v332
        %v337 = vmul.f32 %v327, %v332
        %v339 = vlaneseq
        %v340 = vshrl.u32 %v339, 7
        %v341 = vsub.s32 0, %v340
        %v342 = vrot.slane %v282, %v341
        %v344 = vadd.f32 %v334, %v342
        %v345 = vadd.f32 %v335, %v342
        %v346 = vadd.f32 %v336, %v342
        %v347 = vadd.f32 %v337, %v342
        %v348 = vld [vmem:[%s3] sm:$0xff]
        %v349 = vld [vmem:[%s3 + $0x8] sm:$0xff]
        %v350 = vld [vmem:[%s3 + $0x10] sm:$0xff]
        %v351 = vld [vmem:[%s3 + $0x18] sm:$0xff]
        %v352 = vld [vmem:[%s3 + $0x20] sm:$0xff]
        %v353 = vld [vmem:[%s3 + $0x28] sm:$0xff]
        %v354 = vld [vmem:[%s3 + $0x30] sm:$0xff]
        %v355 = vld [vmem:[%s3 + $0x38] sm:$0xff]
        %v356 = vld [vmem:[%s3 + $0x40] sm:$0xff]
        %v357 = vld [vmem:[%s3 + $0x48] sm:$0xff]
        %v358 = vld [vmem:[%s3 + $0x50] sm:$0xff]
        %v359 = vld [vmem:[%s3 + $0x58] sm:$0xff]
        %v360 = vld [vmem:[%s3 + $0x60] sm:$0xff]
        %v361 = vld [vmem:[%s3 + $0x68] sm:$0xff]
        %v362 = vld [vmem:[%s3 + $0x70] sm:$0xff]
        %v363 = vld [vmem:[%s3 + $0x78] sm:$0xff]
        %v364 = vld [vmem:[%s4] sm:$0x1]
        %v366 = vlaneseq
        %v367 = vshrl.u32 %v366, 7
        %v368 = vsub.s32 0, %v367
        %v369 = vrot.slane %v364, %v368
        %371 = vmatprep.subr.mxu0 0.0
        %372 = vmatpush1.msra.mxu0 %v348
        %373 = vmatprep.subr.mxu0 0.0
        %374 = vmatpush1.msra.mxu0 %v349
        %375 = vmatprep.subr.mxu0 0.0
        %376 = vmatpush1.msra.mxu0 %v350
        %377 = vmatprep.subr.mxu0 0.0
        %378 = vmatpush1.msra.mxu0 %v351
        %379 = vmatprep.subr.mxu0 0.0
        %380 = vmatpush1.msra.mxu0 %v352
        %381 = vmatprep.subr.mxu0 0.0
        %382 = vmatpush1.msra.mxu0 %v353
        %383 = vmatprep.subr.mxu0 0.0
        %384 = vmatpush1.msra.mxu0 %v354
        %385 = vmatprep.subr.mxu0 0.0
        %386 = vmatpush1.msra.mxu0 %v355
        %387 = vmatprep.subr.mxu0 0.0
        %388 = vmatpush1.msra.mxu0 %v356
        %389 = vmatprep.subr.mxu0 0.0
        %390 = vmatpush1.msra.mxu0 %v357
        %391 = vmatprep.subr.mxu0 0.0
        %392 = vmatpush1.msra.mxu0 %v358
        %393 = vmatprep.subr.mxu0 0.0
        %394 = vmatpush1.msra.mxu0 %v359
        %395 = vmatprep.subr.mxu0 0.0
        %396 = vmatpush1.msra.mxu0 %v360
        %397 = vmatprep.subr.mxu0 0.0
        %398 = vmatpush1.msra.mxu0 %v361
        %399 = vmatprep.subr.mxu0 0.0
        %400 = vmatpush1.msra.mxu0 %v362
        %401 = vmatprep.subr.mxu0 0.0
        %402 = vmatpush1.msra.mxu0 %v363
        %403 = vmatprep.subr.mxu0 0.0
        %404 = vmatpush1.msra.mxu0 0.0
        %405 = vmatprep.subr.mxu0 0.0
        %406 = vmatpush1.msra.mxu0 0.0
        %407 = vmatprep.subr.mxu0 0.0
        %408 = vmatpush1.msra.mxu0 0.0
        %409 = vmatprep.subr.mxu0 0.0
        %410 = vmatpush1.msra.mxu0 0.0
        %411 = vmatprep.subr.mxu0 0.0
        %412 = vmatpush1.msra.mxu0 0.0
        %413 = vmatprep.subr.mxu0 0.0
        %414 = vmatpush1.msra.mxu0 0.0
        %415 = vmatprep.subr.mxu0 0.0
        %416 = vmatpush1.msra.mxu0 0.0
        %417 = vmatprep.subr.mxu0 0.0
        %418 = vmatpush1.msra.mxu0 0.0
        %419 = vmatprep.subr.mxu0 0.0
        %420 = vmatpush1.msra.mxu0 0.0
        %421 = vmatprep.subr.mxu0 0.0
        %422 = vmatpush1.msra.mxu0 0.0
        %423 = vmatprep.subr.mxu0 0.0
        %424 = vmatpush1.msra.mxu0 0.0
        %425 = vmatprep.subr.mxu0 0.0
        %426 = vmatpush1.msra.mxu0 0.0
        %427 = vmatprep.subr.mxu0 0.0
        %428 = vmatpush1.msra.mxu0 0.0
        %429 = vmatprep.subr.mxu0 0.0
        %430 = vmatpush1.msra.mxu0 0.0
        %431 = vmatprep.subr.mxu0 0.0
        %432 = vmatpush1.msra.mxu0 0.0
        %433 = vmatprep.subr.mxu0 0.0
        %434 = vmatpush1.msra.mxu0 0.0
        %435 = vmatprep.mubr.f32.mxu0 0.0
        %436 = vmatmul.mubr.f32.gmra.mrb[0].mxu0 %v344
        %v437 = vpop.f32.mrb[0].mxu0
        %v438 = vadd.f32 %v369, %v437
        %v439 = vpop.f32.mrb[0].mxu0
        %440 = vmatprep.mubr.f32.mxu0 0.0
        %441 = vmatmul.mubr.f32.gmra.mrb[0].mxu0 %v345
        %v442 = vpop.f32.mrb[0].mxu0
        %v443 = vadd.f32 %v369, %v442
        %v444 = vpop.f32.mrb[0].mxu0
        %445 = vmatprep.mubr.f32.mxu0 0.0
        %446 = vmatmul.mubr.f32.gmra.mrb[0].mxu0 %v346
        %v447 = vpop.f32.mrb[0].mxu0
        %v448 = vadd.f32 %v369, %v447
        %v449 = vpop.f32.mrb[0].mxu0
        %450 = vmatprep.mubr.f32.mxu0 0.0
        %451 = vmatmul.mubr.f32.gmra.mrb[0].mxu0 %v347
        %v452 = vpop.f32.mrb[0].mxu0
        %v453 = vadd.f32 %v369, %v452
        %v454 = vpop.f32.mrb[0].mxu0
        %455 = vdwg.mxu0
        %v456 = vmul.f32 %v438, 0.5
        %v457 = vmul.f32 %v443, 0.5
        %v458 = vmul.f32 %v448, 0.5
        %v459 = vmul.f32 %v453, 0.5
        %v460 = vmul.f32 %v438, 0.044715
        %v461 = vmul.f32 %v443, 0.044715
        %v462 = vmul.f32 %v448, 0.044715
        %v463 = vmul.f32 %v453, 0.044715
        %v464 = vmul.f32 %v460, %v438
        %v465 = vmul.f32 %v461, %v443
        %v466 = vmul.f32 %v462, %v448
        %v467 = vmul.f32 %v463, %v453
        %v468 = vmul.f32 %v464, %v438
        %v469 = vmul.f32 %v465, %v443
        %v470 = vmul.f32 %v466, %v448
        %v471 = vmul.f32 %v467, %v453
        %v472 = vadd.f32 %v438, %v468
        %v473 = vadd.f32 %v443, %v469
        %v474 = vadd.f32 %v448, %v470
        %v475 = vadd.f32 %v453, %v471
        %v476 = vmul.f32 %v472, 0.7978846
        %v477 = vmul.f32 %v473, 0.7978846
        %v478 = vmul.f32 %v474, 0.7978846
        %v479 = vmul.f32 %v475, 0.7978846
        %v480 = vtanh.pop %v476
        %v481 = vtanh.pop %v477
        %v482 = vtanh.pop %v478
        %v483 = vtanh.pop %v479
        %v484 = vadd.f32 %v480, 1.0
        %v485 = vadd.f32 %v481, 1.0
        %v486 = vadd.f32 %v482, 1.0
        %v487 = vadd.f32 %v483, 1.0
        %v488 = vmul.f32 %v456, %v484
        %v489 = vmul.f32 %v457, %v485
        %v490 = vmul.f32 %v458, %v486
        %v491 = vmul.f32 %v459, %v487
        %v492 = vld [vmem:[%s5] sm:$0xff]
        %v493 = vld [vmem:[%s5 + $0x8] sm:$0xff]
        %v494 = vld [vmem:[%s5 + $0x10] sm:$0xff]
        %v495 = vld [vmem:[%s5 + $0x18] sm:$0xff]
        %v496 = vld [vmem:[%s5 + $0x20] sm:$0xff]
        %v497 = vld [vmem:[%s5 + $0x28] sm:$0xff]
        %v498 = vld [vmem:[%s5 + $0x30] sm:$0xff]
        %v499 = vld [vmem:[%s5 + $0x38] sm:$0xff]
        %v500 = vld [vmem:[%s5 + $0x40] sm:$0xff]
        %v501 = vld [vmem:[%s5 + $0x48] sm:$0xff]
        %v502 = vld [vmem:[%s5 + $0x50] sm:$0xff]
        %v503 = vld [vmem:[%s5 + $0x58] sm:$0xff]
        %v504 = vld [vmem:[%s5 + $0x60] sm:$0xff]
        %v505 = vld [vmem:[%s5 + $0x68] sm:$0xff]
        %v506 = vld [vmem:[%s5 + $0x70] sm:$0xff]
        %v507 = vld [vmem:[%s5 + $0x78] sm:$0xff]
        %v508 = vld [vmem:[%s6] sm:$0x1]
        %v510 = vlaneseq
        %v511 = vshrl.u32 %v510, 7
        %v512 = vsub.s32 0, %v511
        %v513 = vrot.slane %v508, %v512
        %515 = vmatprep.subr.mxu0 0.0
        %516 = vmatpush1.msra.mxu0 %v492
        %517 = vmatprep.subr.mxu0 0.0
        %518 = vmatpush1.msra.mxu0 %v493
        %519 = vmatprep.subr.mxu0 0.0
        %520 = vmatpush1.msra.mxu0 %v494
        %521 = vmatprep.subr.mxu0 0.0
        %522 = vmatpush1.msra.mxu0 %v495
        %523 = vmatprep.subr.mxu0 0.0
        %524 = vmatpush1.msra.mxu0 %v496
        %525 = vmatprep.subr.mxu0 0.0
        %526 = vmatpush1.msra.mxu0 %v497
        %527 = vmatprep.subr.mxu0 0.0
        %528 = vmatpush1.msra.mxu0 %v498
        %529 = vmatprep.subr.mxu0 0.0
        %530 = vmatpush1.msra.mxu0 %v499
        %531 = vmatprep.subr.mxu0 0.0
        %532 = vmatpush1.msra.mxu0 %v500
        %533 = vmatprep.subr.mxu0 0.0
        %534 = vmatpush1.msra.mxu0 %v501
        %535 = vmatprep.subr.mxu0 0.0
        %536 = vmatpush1.msra.mxu0 %v502
        %537 = vmatprep.subr.mxu0 0.0
        %538 = vmatpush1.msra.mxu0 %v503
        %539 = vmatprep.subr.mxu0 0.0
        %540 = vmatpush1.msra.mxu0 %v504
        %541 = vmatprep.subr.mxu0 0.0
        %542 = vmatpush1.msra.mxu0 %v505
        %543 = vmatprep.subr.mxu0 0.0
        %544 = vmatpush1.msra.mxu0 %v506
        %545 = vmatprep.subr.mxu0 0.0
        %546 = vmatpush1.msra.mxu0 %v507
        %547 = vmatprep.subr.mxu0 0.0
        %548 = vmatpush1.msra.mxu0 0.0
        %549 = vmatprep.subr.mxu0 0.0
        %550 = vmatpush1.msra.mxu0 0.0
        %551 = vmatprep.subr.mxu0 0.0
        %552 = vmatpush1.msra.mxu0 0.0
        %553 = vmatprep.subr.mxu0 0.0
        %554 = vmatpush1.msra.mxu0 0.0
        %555 = vmatprep.subr.mxu0 0.0
        %556 = vmatpush1.msra.mxu0 0.0
        %557 = vmatprep.subr.mxu0 0.0
        %558 = vmatpush1.msra.mxu0 0.0
        %559 = vmatprep.subr.mxu0 0.0
        %560 = vmatpush1.msra.mxu0 0.0
        %561 = vmatprep.subr.mxu0 0.0
        %562 = vmatpush1.msra.mxu0 0.0
        %563 = vmatprep.subr.mxu0 0.0
        %564 = vmatpush1.msra.mxu0 0.0
        %565 = vmatprep.subr.mxu0 0.0
        %566 = vmatpush1.msra.mxu0 0.0
        %567 = vmatprep.subr.mxu0 0.0
        %568 = vmatpush1.msra.mxu0 0.0
        %569 = vmatprep.subr.mxu0 0.0
        %570 = vmatpush1.msra.mxu0 0.0
        %571 = vmatprep.subr.mxu0 0.0
        %572 = vmatpush1.msra.mxu0 0.0
        %573 = vmatprep.subr.mxu0 0.0
        %574 = vmatpush1.msra.mxu0 0.0
        %575 = vmatprep.subr.mxu0 0.0
        %576 = vmatpush1.msra.mxu0 0.0
        %577 = vmatprep.subr.mxu0 0.0
        %578 = vmatpush1.msra.mxu0 0.0
        %579 = vmatprep.mubr.f32.mxu0 0.0
        %580 = vmatmul.mubr.f32.gmra.mrb[0].mxu0 %v488
        %v581 = vpop.f32.mrb[0].mxu0
        %v582 = vadd.f32 %v513, %v581
        %v583 = vpop.f32.mrb[0].mxu0
        %584 = vmatprep.mubr.f32.mxu0 0.0
        %585 = vmatmul.mubr.f32.gmra.mrb[0].mxu0 %v489
        %v586 = vpop.f32.mrb[0].mxu0
        %v587 = vadd.f32 %v513, %v586
        %v588 = vpop.f32.mrb[0].mxu0
        %589 = vmatprep.mubr.f32.mxu0 0.0
        %590 = vmatmul.mubr.f32.gmra.mrb[0].mxu0 %v490
        %v591 = vpop.f32.mrb[0].mxu0
        %v592 = vadd.f32 %v513, %v591
        %v593 = vpop.f32.mrb[0].mxu0
        %594 = vmatprep.mubr.f32.mxu0 0.0
        %595 = vmatmul.mubr.f32.gmra.mrb[0].mxu0 %v491
        %v596 = vpop.f32.mrb[0].mxu0
        %v597 = vadd.f32 %v513, %v596
        %v598 = vpop.f32.mrb[0].mxu0
        %599 = vdwg.mxu0
        %v600 = vadd.f32 %v582, %v277
        %v601 = vadd.f32 %v587, %v278
        %v602 = vadd.f32 %v592, %v279
        %v603 = vadd.f32 %v597, %v280
        %604 = vst [vmem:[%s271] sm:$0xff] %v600
        %605 = vst [vmem:[%s271 + $0x8] sm:$0xff] %v601
        %606 = vst [vmem:[%s271 + $0x10] sm:$0xff] %v602
        %607 = vst [vmem:[%s271 + $0x18] sm:$0xff] %v603
        %s608 = sand.u32 %s181, 1
        %s609 = scalar_lea.sflag [#allocation3], %s608
        %s610 = sand.u32 %s181, 1
        %s611 = smul.addr %s610, 32
        %s612 = scalar_lea.vmem [#allocation2], %s611
        // Predicated region
        $region49: #{_lambda_.19} parent=47 // pred_check
          %p613 = pneg %p191
        $region50: #{_lambda_.19} parent=47 // pred_check_branch
          %615 = sbr.rel (%p613) target = $region52
        $region51: #{_lambda_.19} parent=47 // pred_region
          %s617 = ssub.s32 512, 512
          %618 = vsyncadd %s609, %s617
          %s619 = smul.addr %s21, 4
          %s620 = smul.addr %s619, 128
          %s621 = scalar_lea.hbm %s7, %s620
          %s622 = sshll.u32 %s612, 4
          %s623 = int_to_ptr.vmem [resolvable:$true] %s622
          %628 = dma.vmem_to_hbm [thread:$0]  %s623, 512, %s621, %s609, 128, 128, 8
        $region52: #{_lambda_.19} parent=47 // pred_fallthru
          _
      $region48: #{_lambda_.19} parent=5 // pred_fallthru
        _
      %p629 = scmp.le.s32.totalorder 2, %s16
      // Predicated region
      $region53: #{_lambda_.19} parent=5 // pred_check
        %p630 = pneg %p629
      $region54: #{_lambda_.19} parent=5 // pred_check_branch
        %632 = sbr.rel (%p630) target = $region56
      $region55: #{_lambda_.19} parent=5 // pred_region
        %s633 = ssub.s32 %s16, 2
        // Predicated region
        $region57: #{_lambda_.19} parent=55 // pred_check
          %p634 = pneg %p197
        $region58: #{_lambda_.19} parent=55 // pred_check_branch
          %636 = sbr.rel (%p634) target = $region60
        $region59: #{_lambda_.19} parent=55 // pred_region
          %s637 = sand.u32 %s182, 1
          %s638 = scalar_lea.sflag [#allocation3], %s637
          %s639 = sand.u32 %s182, 1
          %s640 = smul.addr %s639, 32
          %s641 = scalar_lea.vmem [#allocation2], %s640
          %642 = dma.done %s638, 512
        $region60: #{_lambda_.19} parent=55 // pred_fallthru
          _
      $region56: #{_lambda_.19} parent=5 // pred_fallthru
        _
    $region6: #{_lambda_.19} parent=1 // loop_footer
      %s20 = sadd.s32 1, %s16
    $region7: #{_lambda_.19} parent=1 // loop_footer_branch
      %15 = sbr.rel target = $region3
    $region8: #{_lambda_.19} parent=1 // loop_exit
      _
    %643 = vsyncpa [#allocation3], 1
    %s644 = scalar_lea.sflag [#allocation3], 1
    %645 = vsyncpa %s644, 1

// kernel: _lambda_.12
$region0: #{_lambda_.12}
  #allocation0 [shape = 'u32[]', space=smem, size = 0x4, offset = 0x4, fixed_abs, tag = 'smem constant byte address 0x4 - core index']
  #allocation1 [shape = 'u32[144,128]{1,0:T(1,128)}', space=vmem, size = 0x12000, scoped, tag = 'internal scratch']
  %s0 = inlined_call_operand.vmem [shape: f32[2,32,128], index: 0, kind: input, shape index: {}, may-alias: {0,1}]
  %s1 = inlined_call_operand.vmem [shape: f32[2,32,128], index: 1, kind: input, shape index: {}, may-alias: {0,1}]
  %s2 = inlined_call_operand.vmem [shape: f32[1,128], index: 2, kind: input, shape index: {}]
  %s3 = inlined_call_operand.vmem [shape: f32[1,128], index: 3, kind: input, shape index: {}]
  %s4 = inlined_call_operand.vmem [shape: f32[1,128], index: 4, kind: input, shape index: {}]
  %s5 = inlined_call_operand.vmem [shape: f32[1,128], index: 5, kind: input, shape index: {}]
  %s6 = inlined_call_operand.vmem [shape: f32[128,128], index: 6, kind: input, shape index: {}]
  %s7 = inlined_call_operand.vmem [shape: f32[1,128], index: 7, kind: input, shape index: {}]
  %s8 = inlined_call_operand.vmem [shape: f32[128,128], index: 8, kind: input, shape index: {}]
  %s9 = inlined_call_operand.vmem [shape: f32[1,128], index: 9, kind: input, shape index: {}]
  %s10 = inlined_call_operand.vmem [shape: f32[128,128], index: 10, kind: input, shape index: {}]
  %s11 = inlined_call_operand.vmem [shape: f32[1,128], index: 11, kind: input, shape index: {}]
  %s12 = inlined_call_operand.vmem [shape: f32[128,128], index: 12, kind: input, shape index: {}]
  %s13 = inlined_call_operand.vmem [shape: f32[1,128], index: 13, kind: input, shape index: {}]
  %s14 = inlined_call_operand.vmem [shape: f32[2,32,128], index: 14, kind: output, shape index: {}]
  %s15 = sld [smem:[#allocation0]]
  $region89: #{_lambda_.12} parent=0
    _
  %s17 = ssub.s32 1, %s15
  %s18 = scalar_select 0, %s17, %s15
  loop: start=0, step=1, limit=4
  $region2: #{_lambda_.12} parent=0 // loop_pre_header
    _
  $region3: #{_lambda_.12} parent=0 // loop_header
    %s20 = sphi 0, %s24
    %p21 = scmp.ge.s32.totalorder %s20, 4
    %s30 = sphi 0, %s32
    %s33 = sphi 0, %s30
    %s34 = sphi 0, %s33
    %s50 = sphi 0, %s34
    %s56 = sphi 0, %s58
    %s59 = sphi 0, %s56
    %s60 = sphi 0, %s59
    %s76 = sphi 0, %s60
    %s80 = sphi 0, %s80
    %s82 = sphi 0, %s80
    %s83 = sphi 0, %s82
    %s97 = sphi 0, %s83
    %s101 = sphi 0, %s101
    %s103 = sphi 0, %s101
    %s104 = sphi 0, %s103
    %s118 = sphi 0, %s104
    %s122 = sphi 0, %s122
    %s124 = sphi 0, %s122
    %s125 = sphi 0, %s124
    %s139 = sphi 0, %s125
    %s143 = sphi 0, %s143
    %s145 = sphi 0, %s143
    %s146 = sphi 0, %s145
    %s160 = sphi 0, %s146
    %s164 = sphi 0, %s164
    %s166 = sphi 0, %s164
    %s167 = sphi 0, %s166
    %s181 = sphi 0, %s167
    %s185 = sphi 0, %s185
    %s187 = sphi 0, %s185
    %s188 = sphi 0, %s187
    %s202 = sphi 0, %s188
    %s206 = sphi 0, %s206
    %s208 = sphi 0, %s206
    %s209 = sphi 0, %s208
    %s223 = sphi 0, %s209
    %s227 = sphi 0, %s227
    %s229 = sphi 0, %s227
    %s230 = sphi 0, %s229
    %s244 = sphi 0, %s230
    %s248 = sphi 0, %s248
    %s250 = sphi 0, %s248
    %s251 = sphi 0, %s250
    %s265 = sphi 0, %s251
    %s269 = sphi 0, %s269
    %s271 = sphi 0, %s269
    %s272 = sphi 0, %s271
    %s286 = sphi 0, %s272
    %s290 = sphi 0, %s290
    %s292 = sphi 0, %s290
    %s293 = sphi 0, %s292
    %s307 = sphi 0, %s293
    %s311 = sphi 0, %s311
    %s313 = sphi 0, %s311
    %s314 = sphi 0, %s313
    %s328 = sphi 0, %s314
    %s334 = sphi 0, %s336
    %s337 = sphi 0, %s334
    %s338 = sphi 0, %s337
    %s354 = sphi 0, %s338
  $region4: #{_lambda_.12} parent=0 // loop_header_branch
    %23 = sbr.rel (%p21) target = $region8
  $region5: #{_lambda_.12} parent=0 // loop_body
    %s25 = ssub.s32 %s20, 1
    %s26 = ssub.s32 %s20, 2
    %s27 = sadd.s32 %s20, 1
    %s28 = ssub.s32 %s20, %s27
    %p29 = scmp.eq.s32.totalorder %s28, 0
    %s31 = sadd.s32 %s30, 1
    %s32 = scalar_select %p29, %s30, %s31
    %p35 = pneg %p29
    %p36 = scmp.eq.s32.totalorder %s20, 1
    %p37 = por %p35, %p36
    %p38 = scmp.ne.s32.totalorder %s30, %s33
    %p39 = scmp.eq.s32.totalorder %s20, 0
    %p40 = por %p38, %p39
    %p41 = scmp.ne.s32.totalorder %s30, %s33
    %p42 = scmp.eq.s32.totalorder %s25, 1
    %p43 = por %p41, %p42
    %p44 = scmp.ne.s32.totalorder %s33, %s34
    %p45 = scmp.eq.s32.totalorder %s25, 0
    %p46 = por %p44, %p45
    %p47 = scmp.ne.s32.totalorder %s33, %s34
    %p48 = scmp.eq.s32.totalorder %s26, 1
    %p49 = por %p47, %p48
    %p51 = scmp.ne.s32.totalorder %s34, %s50
    %p52 = scmp.eq.s32.totalorder %s26, 0
    %p53 = por %p51, %p52
    %s54 = ssub.s32 %s20, %s27
    %p55 = scmp.eq.s32.totalorder %s54, 0
    %s57 = sadd.s32 %s56, 1
    %s58 = scalar_select %p55, %s56, %s57
    %p61 = pneg %p55
    %p62 = scmp.eq.s32.totalorder %s20, 1
    %p63 = por %p61, %p62
    %p64 = scmp.ne.s32.totalorder %s56, %s59
    %p65 = scmp.eq.s32.totalorder %s20, 0
    %p66 = por %p64, %p65
    %p67 = scmp.ne.s32.totalorder %s56, %s59
    %p68 = scmp.eq.s32.totalorder %s25, 1
    %p69 = por %p67, %p68
    %p70 = scmp.ne.s32.totalorder %s59, %s60
    %p71 = scmp.eq.s32.totalorder %s25, 0
    %p72 = por %p70, %p71
    %p73 = scmp.ne.s32.totalorder %s59, %s60
    %p74 = scmp.eq.s32.totalorder %s26, 1
    %p75 = por %p73, %p74
    %p77 = scmp.ne.s32.totalorder %s60, %s76
    %p78 = scmp.eq.s32.totalorder %s26, 0
    %p79 = por %p77, %p78
    %s81 = sadd.s32 %s80, 1
    %p84 = scmp.eq.s32.totalorder %s20, 1
    %p85 = scmp.ne.s32.totalorder %s80, %s82
    %p86 = scmp.eq.s32.totalorder %s20, 0
    %p87 = por %p85, %p86
    %p88 = scmp.ne.s32.totalorder %s80, %s82
    %p89 = scmp.eq.s32.totalorder %s25, 1
    %p90 = por %p88, %p89
    %p91 = scmp.ne.s32.totalorder %s82, %s83
    %p92 = scmp.eq.s32.totalorder %s25, 0
    %p93 = por %p91, %p92
    %p94 = scmp.ne.s32.totalorder %s82, %s83
    %p95 = scmp.eq.s32.totalorder %s26, 1
    %p96 = por %p94, %p95
    %p98 = scmp.ne.s32.totalorder %s83, %s97
    %p99 = scmp.eq.s32.totalorder %s26, 0
    %p100 = por %p98, %p99
    %s102 = sadd.s32 %s101, 1
    %p105 = scmp.eq.s32.totalorder %s20, 1
    %p106 = scmp.ne.s32.totalorder %s101, %s103
    %p107 = scmp.eq.s32.totalorder %s20, 0
    %p108 = por %p106, %p107
    %p109 = scmp.ne.s32.totalorder %s101, %s103
    %p110 = scmp.eq.s32.totalorder %s25, 1
    %p111 = por %p109, %p110
    %p112 = scmp.ne.s32.totalorder %s103, %s104
    %p113 = scmp.eq.s32.totalorder %s25, 0
    %p114 = por %p112, %p113
    %p115 = scmp.ne.s32.totalorder %s103, %s104
    %p116 = scmp.eq.s32.totalorder %s26, 1
    %p117 = por %p115, %p116
    %p119 = scmp.ne.s32.totalorder %s104, %s118
    %p120 = scmp.eq.s32.totalorder %s26, 0
    %p121 = por %p119, %p120
    %s123 = sadd.s32 %s122, 1
    %p126 = scmp.eq.s32.totalorder %s20, 1
    %p127 = scmp.ne.s32.totalorder %s122, %s124
    %p128 = scmp.eq.s32.totalorder %s20, 0
    %p129 = por %p127, %p128
    %p130 = scmp.ne.s32.totalorder %s122, %s124
    %p131 = scmp.eq.s32.totalorder %s25, 1
    %p132 = por %p130, %p131
    %p133 = scmp.ne.s32.totalorder %s124, %s125
    %p134 = scmp.eq.s32.totalorder %s25, 0
    %p135 = por %p133, %p134
    %p136 = scmp.ne.s32.totalorder %s124, %s125
    %p137 = scmp.eq.s32.totalorder %s26, 1
    %p138 = por %p136, %p137
    %p140 = scmp.ne.s32.totalorder %s125, %s139
    %p141 = scmp.eq.s32.totalorder %s26, 0
    %p142 = por %p140, %p141
    %s144 = sadd.s32 %s143, 1
    %p147 = scmp.eq.s32.totalorder %s20, 1
    %p148 = scmp.ne.s32.totalorder %s143, %s145
    %p149 = scmp.eq.s32.totalorder %s20, 0
    %p150 = por %p148, %p149
    %p151 = scmp.ne.s32.totalorder %s143, %s145
    %p152 = scmp.eq.s32.totalorder %s25, 1
    %p153 = por %p151, %p152
    %p154 = scmp.ne.s32.totalorder %s145, %s146
    %p155 = scmp.eq.s32.totalorder %s25, 0
    %p156 = por %p154, %p155
    %p157 = scmp.ne.s32.totalorder %s145, %s146
    %p158 = scmp.eq.s32.totalorder %s26, 1
    %p159 = por %p157, %p158
    %p161 = scmp.ne.s32.totalorder %s146, %s160
    %p162 = scmp.eq.s32.totalorder %s26, 0
    %p163 = por %p161, %p162
    %s165 = sadd.s32 %s164, 1
    %p168 = scmp.eq.s32.totalorder %s20, 1
    %p169 = scmp.ne.s32.totalorder %s164, %s166
    %p170 = scmp.eq.s32.totalorder %s20, 0
    %p171 = por %p169, %p170
    %p172 = scmp.ne.s32.totalorder %s164, %s166
    %p173 = scmp.eq.s32.totalorder %s25, 1
    %p174 = por %p172, %p173
    %p175 = scmp.ne.s32.totalorder %s166, %s167
    %p176 = scmp.eq.s32.totalorder %s25, 0
    %p177 = por %p175, %p176
    %p178 = scmp.ne.s32.totalorder %s166, %s167
    %p179 = scmp.eq.s32.totalorder %s26, 1
    %p180 = por %p178, %p179
    %p182 = scmp.ne.s32.totalorder %s167, %s181
    %p183 = scmp.eq.s32.totalorder %s26, 0
    %p184 = por %p182, %p183
    %s186 = sadd.s32 %s185, 1
    %p189 = scmp.eq.s32.totalorder %s20, 1
    %p190 = scmp.ne.s32.totalorder %s185, %s187
    %p191 = scmp.eq.s32.totalorder %s20, 0
    %p192 = por %p190, %p191
    %p193 = scmp.ne.s32.totalorder %s185, %s187
    %p194 = scmp.eq.s32.totalorder %s25, 1
    %p195 = por %p193, %p194
    %p196 = scmp.ne.s32.totalorder %s187, %s188
    %p197 = scmp.eq.s32.totalorder %s25, 0
    %p198 = por %p196, %p197
    %p199 = scmp.ne.s32.totalorder %s187, %s188
    %p200 = scmp.eq.s32.totalorder %s26, 1
    %p201 = por %p199, %p200
    %p203 = scmp.ne.s32.totalorder %s188, %s202
    %p204 = scmp.eq.s32.totalorder %s26, 0
    %p205 = por %p203, %p204
    %s207 = sadd.s32 %s206, 1
    %p210 = scmp.eq.s32.totalorder %s20, 1
    %p211 = scmp.ne.s32.totalorder %s206, %s208
    %p212 = scmp.eq.s32.totalorder %s20, 0
    %p213 = por %p211, %p212
    %p214 = scmp.ne.s32.totalorder %s206, %s208
    %p215 = scmp.eq.s32.totalorder %s25, 1
    %p216 = por %p214, %p215
    %p217 = scmp.ne.s32.totalorder %s208, %s209
    %p218 = scmp.eq.s32.totalorder %s25, 0
    %p219 = por %p217, %p218
    %p220 = scmp.ne.s32.totalorder %s208, %s209
    %p221 = scmp.eq.s32.totalorder %s26, 1
    %p222 = por %p220, %p221
    %p224 = scmp.ne.s32.totalorder %s209, %s223
    %p225 = scmp.eq.s32.totalorder %s26, 0
    %p226 = por %p224, %p225
    %s228 = sadd.s32 %s227, 1
    %p231 = scmp.eq.s32.totalorder %s20, 1
    %p232 = scmp.ne.s32.totalorder %s227, %s229
    %p233 = scmp.eq.s32.totalorder %s20, 0
    %p234 = por %p232, %p233
    %p235 = scmp.ne.s32.totalorder %s227, %s229
    %p236 = scmp.eq.s32.totalorder %s25, 1
    %p237 = por %p235, %p236
    %p238 = scmp.ne.s32.totalorder %s229, %s230
    %p239 = scmp.eq.s32.totalorder %s25, 0
    %p240 = por %p238, %p239
    %p241 = scmp.ne.s32.totalorder %s229, %s230
    %p242 = scmp.eq.s32.totalorder %s26, 1
    %p243 = por %p241, %p242
    %p245 = scmp.ne.s32.totalorder %s230, %s244
    %p246 = scmp.eq.s32.totalorder %s26, 0
    %p247 = por %p245, %p246
    %s249 = sadd.s32 %s248, 1
    %p252 = scmp.eq.s32.totalorder %s20, 1
    %p253 = scmp.ne.s32.totalorder %s248, %s250
    %p254 = scmp.eq.s32.totalorder %s20, 0
    %p255 = por %p253, %p254
    %p256 = scmp.ne.s32.totalorder %s248, %s250
    %p257 = scmp.eq.s32.totalorder %s25, 1
    %p258 = por %p256, %p257
    %p259 = scmp.ne.s32.totalorder %s250, %s251
    %p260 = scmp.eq.s32.totalorder %s25, 0
    %p261 = por %p259, %p260
    %p262 = scmp.ne.s32.totalorder %s250, %s251
    %p263 = scmp.eq.s32.totalorder %s26, 1
    %p264 = por %p262, %p263
    %p266 = scmp.ne.s32.totalorder %s251, %s265
    %p267 = scmp.eq.s32.totalorder %s26, 0
    %p268 = por %p266, %p267
    %s270 = sadd.s32 %s269, 1
    %p273 = scmp.eq.s32.totalorder %s20, 1
    %p274 = scmp.ne.s32.totalorder %s269, %s271
    %p275 = scmp.eq.s32.totalorder %s20, 0
    %p276 = por %p274, %p275
    %p277 = scmp.ne.s32.totalorder %s269, %s271
    %p278 = scmp.eq.s32.totalorder %s25, 1
    %p279 = por %p277, %p278
    %p280 = scmp.ne.s32.totalorder %s271, %s272
    %p281 = scmp.eq.s32.totalorder %s25, 0
    %p282 = por %p280, %p281
    %p283 = scmp.ne.s32.totalorder %s271, %s272
    %p284 = scmp.eq.s32.totalorder %s26, 1
    %p285 = por %p283, %p284
    %p287 = scmp.ne.s32.totalorder %s272, %s286
    %p288 = scmp.eq.s32.totalorder %s26, 0
    %p289 = por %p287, %p288
    %s291 = sadd.s32 %s290, 1
    %p294 = scmp.eq.s32.totalorder %s20, 1
    %p295 = scmp.ne.s32.totalorder %s290, %s292
    %p296 = scmp.eq.s32.totalorder %s20, 0
    %p297 = por %p295, %p296
    %p298 = scmp.ne.s32.totalorder %s290, %s292
    %p299 = scmp.eq.s32.totalorder %s25, 1
    %p300 = por %p298, %p299
    %p301 = scmp.ne.s32.totalorder %s292, %s293
    %p302 = scmp.eq.s32.totalorder %s25, 0
    %p303 = por %p301, %p302
    %p304 = scmp.ne.s32.totalorder %s292, %s293
    %p305 = scmp.eq.s32.totalorder %s26, 1
    %p306 = por %p304, %p305
    %p308 = scmp.ne.s32.totalorder %s293, %s307
    %p309 = scmp.eq.s32.totalorder %s26, 0
    %p310 = por %p308, %p309
    %s312 = sadd.s32 %s311, 1
    %p315 = scmp.eq.s32.totalorder %s20, 1
    %p316 = scmp.ne.s32.totalorder %s311, %s313
    %p317 = scmp.eq.s32.totalorder %s20, 0
    %p318 = por %p316, %p317
    %p319 = scmp.ne.s32.totalorder %s311, %s313
    %p320 = scmp.eq.s32.totalorder %s25, 1
    %p321 = por %p319, %p320
    %p322 = scmp.ne.s32.totalorder %s313, %s314
    %p323 = scmp.eq.s32.totalorder %s25, 0
    %p324 = por %p322, %p323
    %p325 = scmp.ne.s32.totalorder %s313, %s314
    %p326 = scmp.eq.s32.totalorder %s26, 1
    %p327 = por %p325, %p326
    %p329 = scmp.ne.s32.totalorder %s314, %s328
    %p330 = scmp.eq.s32.totalorder %s26, 0
    %p331 = por %p329, %p330
    %s332 = ssub.s32 %s20, %s27
    %p333 = scmp.eq.s32.totalorder %s332, 0
    %s335 = sadd.s32 %s334, 1
    %s336 = scalar_select %p333, %s334, %s335
    %p339 = pneg %p333
    %p340 = scmp.eq.s32.totalorder %s20, 1
    %p341 = por %p339, %p340
    %p342 = scmp.ne.s32.totalorder %s334, %s337
    %p343 = scmp.eq.s32.totalorder %s20, 0
    %p344 = por %p342, %p343
    %p345 = scmp.ne.s32.totalorder %s334, %s337
    %p346 = scmp.eq.s32.totalorder %s25, 1
    %p347 = por %p345, %p346
    %p348 = scmp.ne.s32.totalorder %s337, %s338
    %p349 = scmp.eq.s32.totalorder %s25, 0
    %p350 = por %p348, %p349
    %p351 = scmp.ne.s32.totalorder %s337, %s338
    %p352 = scmp.eq.s32.totalorder %s26, 1
    %p353 = por %p351, %p352
    %p355 = scmp.ne.s32.totalorder %s338, %s354
    %p356 = scmp.eq.s32.totalorder %s26, 0
    %p357 = por %p355, %p356
    %p358 = scmp.le.s32.totalorder 1, %s20
    %p359 = scmp.lt.s32.totalorder %s20, 3
    %p360 = pnand %p358, %p359
    %p361 = pneg %p360
    // Predicated region
    $region9: #{_lambda_.12} parent=5 // pred_check
      _
    $region10: #{_lambda_.12} parent=5 // pred_check_branch
      %363 = sbr.rel (%p360) target = $region12
    $region11: #{_lambda_.12} parent=5 // pred_region
      %s364 = ssub.s32 %s20, 1
      // Predicated region
      $region13: #{_lambda_.12} parent=11 // pred_check
        %p365 = pneg %p93
      $region14: #{_lambda_.12} parent=11 // pred_check_branch
        %367 = sbr.rel (%p365) target = $region16
      $region15: #{_lambda_.12} parent=11 // pred_region
        _
      $region16: #{_lambda_.12} parent=11 // pred_fallthru
        _
      // Predicated region
      $region17: #{_lambda_.12} parent=11 // pred_check
        %p368 = pneg %p114
      $region18: #{_lambda_.12} parent=11 // pred_check_branch
        %370 = sbr.rel (%p368) target = $region20
      $region19: #{_lambda_.12} parent=11 // pred_region
        _
      $region20: #{_lambda_.12} parent=11 // pred_fallthru
        _
      // Predicated region
      $region21: #{_lambda_.12} parent=11 // pred_check
        %p371 = pneg %p135
      $region22: #{_lambda_.12} parent=11 // pred_check_branch
        %373 = sbr.rel (%p371) target = $region24
      $region23: #{_lambda_.12} parent=11 // pred_region
        _
      $region24: #{_lambda_.12} parent=11 // pred_fallthru
        _
      // Predicated region
      $region25: #{_lambda_.12} parent=11 // pred_check
        %p374 = pneg %p156
      $region26: #{_lambda_.12} parent=11 // pred_check_branch
        %376 = sbr.rel (%p374) target = $region28
      $region27: #{_lambda_.12} parent=11 // pred_region
        _
      $region28: #{_lambda_.12} parent=11 // pred_fallthru
        _
      // Predicated region
      $region29: #{_lambda_.12} parent=11 // pred_check
        %p377 = pneg %p177
      $region30: #{_lambda_.12} parent=11 // pred_check_branch
        %379 = sbr.rel (%p377) target = $region32
      $region31: #{_lambda_.12} parent=11 // pred_region
        _
      $region32: #{_lambda_.12} parent=11 // pred_fallthru
        _
      // Predicated region
      $region33: #{_lambda_.12} parent=11 // pred_check
        %p380 = pneg %p198
      $region34: #{_lambda_.12} parent=11 // pred_check_branch
        %382 = sbr.rel (%p380) target = $region36
      $region35: #{_lambda_.12} parent=11 // pred_region
        _
      $region36: #{_lambda_.12} parent=11 // pred_fallthru
        _
      // Predicated region
      $region37: #{_lambda_.12} parent=11 // pred_check
        %p383 = pneg %p219
      $region38: #{_lambda_.12} parent=11 // pred_check_branch
        %385 = sbr.rel (%p383) target = $region40
      $region39: #{_lambda_.12} parent=11 // pred_region
        _
      $region40: #{_lambda_.12} parent=11 // pred_fallthru
        _
      // Predicated region
      $region41: #{_lambda_.12} parent=11 // pred_check
        %p386 = pneg %p240
      $region42: #{_lambda_.12} parent=11 // pred_check_branch
        %388 = sbr.rel (%p386) target = $region44
      $region43: #{_lambda_.12} parent=11 // pred_region
        _
      $region44: #{_lambda_.12} parent=11 // pred_fallthru
        _
      // Predicated region
      $region45: #{_lambda_.12} parent=11 // pred_check
        %p389 = pneg %p261
      $region46: #{_lambda_.12} parent=11 // pred_check_branch
        %391 = sbr.rel (%p389) target = $region48
      $region47: #{_lambda_.12} parent=11 // pred_region
        _
      $region48: #{_lambda_.12} parent=11 // pred_fallthru
        _
      // Predicated region
      $region49: #{_lambda_.12} parent=11 // pred_check
        %p392 = pneg %p282
      $region50: #{_lambda_.12} parent=11 // pred_check_branch
        %394 = sbr.rel (%p392) target = $region52
      $region51: #{_lambda_.12} parent=11 // pred_region
        _
      $region52: #{_lambda_.12} parent=11 // pred_fallthru
        _
      // Predicated region
      $region53: #{_lambda_.12} parent=11 // pred_check
        %p395 = pneg %p303
      $region54: #{_lambda_.12} parent=11 // pred_check_branch
        %397 = sbr.rel (%p395) target = $region56
      $region55: #{_lambda_.12} parent=11 // pred_region
        _
      $region56: #{_lambda_.12} parent=11 // pred_fallthru
        _
      // Predicated region
      $region57: #{_lambda_.12} parent=11 // pred_check
        %p398 = pneg %p324
      $region58: #{_lambda_.12} parent=11 // pred_check_branch
        %400 = sbr.rel (%p398) target = $region60
      $region59: #{_lambda_.12} parent=11 // pred_region
        _
      $region60: #{_lambda_.12} parent=11 // pred_fallthru
        _
    $region12: #{_lambda_.12} parent=5 // pred_fallthru
      _
    %p401 = scmp.lt.s32.totalorder %s20, 2
    // Predicated region
    $region61: #{_lambda_.12} parent=5 // pred_check
      %p402 = pneg %p401
    $region62: #{_lambda_.12} parent=5 // pred_check_branch
      %404 = sbr.rel (%p402) target = $region64
    $region63: #{_lambda_.12} parent=5 // pred_region
      // Predicated region
      $region65: #{_lambda_.12} parent=63 // pred_check
        %p405 = pneg %p40
      $region66: #{_lambda_.12} parent=63 // pred_check_branch
        %407 = sbr.rel (%p405) target = $region68
      $region67: #{_lambda_.12} parent=63 // pred_region
        %p408 = scmp.lt.s32.totalorder %s20, 1
        %s409 = scalar_select %p408, %s20, 1
        %s410 = smul.addr %s409, 4
        %s411 = smul.addr %s410, 8
        %s412 = scalar_lea.vmem %s0, %s411
      $region68: #{_lambda_.12} parent=63 // pred_fallthru
        _
      // Predicated region
      $region69: #{_lambda_.12} parent=63 // pred_check
        %p413 = pneg %p66
      $region70: #{_lambda_.12} parent=63 // pred_check_branch
        %415 = sbr.rel (%p413) target = $region72
      $region71: #{_lambda_.12} parent=63 // pred_region
        %p416 = scmp.lt.s32.totalorder %s20, 1
        %s417 = scalar_select %p416, %s20, 1
        %s418 = smul.addr %s417, 4
        %s419 = smul.addr %s418, 8
        %s420 = scalar_lea.vmem %s1, %s419
      $region72: #{_lambda_.12} parent=63 // pred_fallthru
        _
    $region64: #{_lambda_.12} parent=5 // pred_fallthru
      _
    %p421 = scmp.le.s32.totalorder 1, %s20
    %p422 = scmp.lt.s32.totalorder %s20, 3
    %p423 = pnand %p421, %p422
    %p424 = pneg %p423
    // Predicated region
    $region73: #{_lambda_.12} parent=5 // pred_check
      _
    $region74: #{_lambda_.12} parent=5 // pred_check_branch
      %426 = sbr.rel (%p423) target = $region76
    $region75: #{_lambda_.12} parent=5 // pred_region
      %s427 = ssub.s32 %s20, 1
      %p428 = scmp.lt.s32.totalorder %s25, 1
      %s429 = scalar_select %p428, %s25, 1
      %s430 = smul.addr %s429, 4
      %s431 = smul.addr %s430, 8
      %s432 = scalar_lea.vmem %s0, %s431
      %p433 = pneg %p46
      %p434 = pneg %p43
      %p435 = scmp.lt.s32.totalorder %s25, 1
      %s436 = scalar_select %p435, %s25, 1
      %s437 = smul.addr %s436, 4
      %s438 = smul.addr %s437, 8
      %s439 = scalar_lea.vmem %s1, %s438
      %p440 = pneg %p72
      %p441 = pneg %p69
      %p442 = pneg %p93
      %p443 = pneg %p90
      %p444 = pneg %p114
      %p445 = pneg %p111
      %p446 = pneg %p135
      %p447 = pneg %p132
      %p448 = pneg %p156
      %p449 = pneg %p153
      %p450 = pneg %p177
      %p451 = pneg %p174
      %p452 = pneg %p198
      %p453 = pneg %p195
      %p454 = pneg %p219
      %p455 = pneg %p216
      %p456 = pneg %p240
      %p457 = pneg %p237
      %p458 = pneg %p261
      %p459 = pneg %p258
      %p460 = pneg %p282
      %p461 = pneg %p279
      %p462 = pneg %p303
      %p463 = pneg %p300
      %p464 = pneg %p324
      %p465 = pneg %p321
      %p466 = pneg %p350
      %p467 = pneg %p347
      %p468 = scmp.lt.s32.totalorder %s25, 1
      %s469 = scalar_select %p468, %s25, 1
      %s470 = smul.addr %s469, 4
      %s471 = smul.addr %s470, 8
      %s472 = scalar_lea.vmem %s14, %s471
      %p473 = scmp.lt.s32.totalorder %s25, 1
      %s474 = scalar_select %p473, %s25, 1
      %s475 = smul.addr %s474, 4
      %s476 = smul.addr %s475, 8
      %s477 = scalar_lea.vmem %s0, %s476
      %p478 = scmp.lt.s32.totalorder %s25, 1
      %s479 = scalar_select %p478, %s25, 1
      %s480 = smul.addr %s479, 4
      %s481 = smul.addr %s480, 8
      %s482 = scalar_lea.vmem %s1, %s481
      %p483 = scmp.lt.s32.totalorder %s25, 1
      %s484 = scalar_select %p483, %s25, 1
      %s485 = smul.addr %s484, 4
      %s486 = smul.addr %s485, 8
      %s487 = scalar_lea.vmem %s14, %s486
      %v488 = vld [vmem:[%s477] sm:$0xff]
      %v489 = vld [vmem:[%s477 + $0x8] sm:$0xff]
      %v490 = vld [vmem:[%s477 + $0x10] sm:$0xff]
      %v491 = vld [vmem:[%s477 + $0x18] sm:$0xff]
      %v492 = vld [vmem:[%s482] sm:$0xff]
      %v493 = vld [vmem:[%s482 + $0x8] sm:$0xff]
      %v494 = vld [vmem:[%s482 + $0x10] sm:$0xff]
      %v495 = vld [vmem:[%s482 + $0x18] sm:$0xff]
      %v496 = vld [vmem:[%s2] sm:$0x1]
      %v497 = vld [vmem:[%s3] sm:$0x1]
      %498 = vadd.xlane.f32.xlu0 %v488
      %v499 = vpop.xlane.xlu0 %498
      %500 = vadd.xlane.f32.xlu0 %v489
      %v501 = vpop.xlane.xlu0 %500
      %502 = vadd.xlane.f32.xlu0 %v490
      %v503 = vpop.xlane.xlu0 %502
      %504 = vadd.xlane.f32.xlu0 %v491
      %v505 = vpop.xlane.xlu0 %504
      %v506 = vrcp.pop 128.0
      %v507 = vmul.f32 %v499, %v506
      %v508 = vmul.f32 %v501, %v506
      %v509 = vmul.f32 %v503, %v506
      %v510 = vmul.f32 %v505, %v506
      %v511 = vsub.f32 %v488, %v507
      %v512 = vsub.f32 %v489, %v508
      %v513 = vsub.f32 %v490, %v509
      %v514 = vsub.f32 %v491, %v510
      %v515 = vmul.f32 %v511, %v511
      %v516 = vmul.f32 %v512, %v512
      %v517 = vmul.f32 %v513, %v513
      %v518 = vmul.f32 %v514, %v514
      %519 = vadd.xlane.f32.xlu0 %v515
      %v520 = vpop.xlane.xlu0 %519
      %521 = vadd.xlane.f32.xlu0 %v516
      %v522 = vpop.xlane.xlu0 %521
      %523 = vadd.xlane.f32.xlu0 %v517
      %v524 = vpop.xlane.xlu0 %523
      %525 = vadd.xlane.f32.xlu0 %v518
      %v526 = vpop.xlane.xlu0 %525
      %v527 = vmul.f32 %v520, %v506
      %v528 = vmul.f32 %v522, %v506
      %v529 = vmul.f32 %v524, %v506
      %v530 = vmul.f32 %v526, %v506
      %v531 = vadd.f32 %v527, 1e-05
      %v532 = vadd.f32 %v528, 1e-05
      %v533 = vadd.f32 %v529, 1e-05
      %v534 = vadd.f32 %v530, 1e-05
      %v535 = vrsqrt.pop %v531
      %v536 = vrsqrt.pop %v532
      %v537 = vrsqrt.pop %v533
      %v538 = vrsqrt.pop %v534
      %v539 = vmul.f32 %v511, %v535
      %v540 = vmul.f32 %v512, %v536
      %v541 = vmul.f32 %v513, %v537
      %v542 = vmul.f32 %v514, %v538
      %v544 = vlaneseq
      %v545 = vshrl.u32 %v544, 7
      %v546 = vsub.s32 0, %v545
      %v547 = vrot.slane %v496, %v546
      %v549 = vmul.f32 %v539, %v547
      %v550 = vmul.f32 %v540, %v547
      %v551 = vmul.f32 %v541, %v547
      %v552 = vmul.f32 %v542, %v547
      %v554 = vlaneseq
      %v555 = vshrl.u32 %v554, 7
      %v556 = vsub.s32 0, %v555
      %v557 = vrot.slane %v497, %v556
      %v559 = vadd.f32 %v549, %v557
      %v560 = vadd.f32 %v550, %v557
      %v561 = vadd.f32 %v551, %v557
      %v562 = vadd.f32 %v552, %v557
      %v563 = vld [vmem:[%s4] sm:$0x1]
      %v564 = vld [vmem:[%s5] sm:$0x1]
      %565 = vadd.xlane.f32.xlu0 %v492
      %v566 = vpop.xlane.xlu0 %565
      %567 = vadd.xlane.f32.xlu0 %v493
      %v568 = vpop.xlane.xlu0 %567
      %569 = vadd.xlane.f32.xlu0 %v494
      %v570 = vpop.xlane.xlu0 %569
      %571 = vadd.xlane.f32.xlu0 %v495
      %v572 = vpop.xlane.xlu0 %571
      %v573 = vmul.f32 %v566, %v506
      %v574 = vmul.f32 %v568, %v506
      %v575 = vmul.f32 %v570, %v506
      %v576 = vmul.f32 %v572, %v506
      %v577 = vsub.f32 %v492, %v573
      %v578 = vsub.f32 %v493, %v574
      %v579 = vsub.f32 %v494, %v575
      %v580 = vsub.f32 %v495, %v576
      %v581 = vmul.f32 %v577, %v577
      %v582 = vmul.f32 %v578, %v578
      %v583 = vmul.f32 %v579, %v579
      %v584 = vmul.f32 %v580, %v580
      %585 = vadd.xlane.f32.xlu0 %v581
      %v586 = vpop.xlane.xlu0 %585
      %587 = vadd.xlane.f32.xlu0 %v582
      %v588 = vpop.xlane.xlu0 %587
      %589 = vadd.xlane.f32.xlu0 %v583
      %v590 = vpop.xlane.xlu0 %589
      %591 = vadd.xlane.f32.xlu0 %v584
      %v592 = vpop.xlane.xlu0 %591
      %v593 = vmul.f32 %v586, %v506
      %v594 = vmul.f32 %v588, %v506
      %v595 = vmul.f32 %v590, %v506
      %v596 = vmul.f32 %v592, %v506
      %v597 = vadd.f32 %v593, 1e-05
      %v598 = vadd.f32 %v594, 1e-05
      %v599 = vadd.f32 %v595, 1e-05
      %v600 = vadd.f32 %v596, 1e-05
      %v601 = vrsqrt.pop %v597
      %v602 = vrsqrt.pop %v598
      %v603 = vrsqrt.pop %v599
      %v604 = vrsqrt.pop %v600
      %v605 = vmul.f32 %v577, %v601
      %v606 = vmul.f32 %v578, %v602
      %v607 = vmul.f32 %v579, %v603
      %v608 = vmul.f32 %v580, %v604
      %v610 = vlaneseq
      %v611 = vshrl.u32 %v610, 7
      %v612 = vsub.s32 0, %v611
      %v613 = vrot.slane %v563, %v612
      %v615 = vmul.f32 %v605, %v613
      %v616 = vmul.f32 %v606, %v613
      %v617 = vmul.f32 %v607, %v613
      %v618 = vmul.f32 %v608, %v613
      %v620 = vlaneseq
      %v621 = vshrl.u32 %v620, 7
      %v622 = vsub.s32 0, %v621
      %v623 = vrot.slane %v564, %v622
      %v625 = vadd.f32 %v615, %v623
      %v626 = vadd.f32 %v616, %v623
      %v627 = vadd.f32 %v617, %v623
      %v628 = vadd.f32 %v618, %v623
      %v629 = vld [vmem:[%s6] sm:$0xff]
      %v630 = vld [vmem:[%s6 + $0x8] sm:$0xff]
      %v631 = vld [vmem:[%s6 + $0x10] sm:$0xff]
      %v632 = vld [vmem:[%s6 + $0x18] sm:$0xff]
      %v633 = vld [vmem:[%s6 + $0x20] sm:$0xff]
      %v634 = vld [vmem:[%s6 + $0x28] sm:$0xff]
      %v635 = vld [vmem:[%s6 + $0x30] sm:$0xff]
      %v636 = vld [vmem:[%s6 + $0x38] sm:$0xff]
      %v637 = vld [vmem:[%s6 + $0x40] sm:$0xff]
      %v638 = vld [vmem:[%s6 + $0x48] sm:$0xff]
      %v639 = vld [vmem:[%s6 + $0x50] sm:$0xff]
      %v640 = vld [vmem:[%s6 + $0x58] sm:$0xff]
      %v641 = vld [vmem:[%s6 + $0x60] sm:$0xff]
      %v642 = vld [vmem:[%s6 + $0x68] sm:$0xff]
      %v643 = vld [vmem:[%s6 + $0x70] sm:$0xff]
      %v644 = vld [vmem:[%s6 + $0x78] sm:$0xff]
      %v645 = vld [vmem:[%s7] sm:$0x1]
      %v647 = vlaneseq
      %v648 = vshrl.u32 %v647, 7
      %v649 = vsub.s32 0, %v648
      %v650 = vrot.slane %v645, %v649
      %652 = vmatprep.subr.mxu0 0.0
      %653 = vmatpush1.msra.mxu0 %v629
      %654 = vmatprep.subr.mxu0 0.0
      %655 = vmatpush1.msra.mxu0 %v630
      %656 = vmatprep.subr.mxu0 0.0
      %657 = vmatpush1.msra.mxu0 %v631
      %658 = vmatprep.subr.mxu0 0.0
      %659 = vmatpush1.msra.mxu0 %v632
      %660 = vmatprep.subr.mxu0 0.0
      %661 = vmatpush1.msra.mxu0 %v633
      %662 = vmatprep.subr.mxu0 0.0
      %663 = vmatpush1.msra.mxu0 %v634
      %664 = vmatprep.subr.mxu0 0.0
      %665 = vmatpush1.msra.mxu0 %v635
      %666 = vmatprep.subr.mxu0 0.0
      %667 = vmatpush1.msra.mxu0 %v636
      %668 = vmatprep.subr.mxu0 0.0
      %669 = vmatpush1.msra.mxu0 %v637
      %670 = vmatprep.subr.mxu0 0.0
      %671 = vmatpush1.msra.mxu0 %v638
      %672 = vmatprep.subr.mxu0 0.0
      %673 = vmatpush1.msra.mxu0 %v639
      %674 = vmatprep.subr.mxu0 0.0
      %675 = vmatpush1.msra.mxu0 %v640
      %676 = vmatprep.subr.mxu0 0.0
      %677 = vmatpush1.msra.mxu0 %v641
      %678 = vmatprep.subr.mxu0 0.0
      %679 = vmatpush1.msra.mxu0 %v642
      %680 = vmatprep.subr.mxu0 0.0
      %681 = vmatpush1.msra.mxu0 %v643
      %682 = vmatprep.subr.mxu0 0.0
      %683 = vmatpush1.msra.mxu0 %v644
      %684 = vmatprep.subr.mxu0 0.0
      %685 = vmatpush1.msra.mxu0 0.0
      %686 = vmatprep.subr.mxu0 0.0
      %687 = vmatpush1.msra.mxu0 0.0
      %688 = vmatprep.subr.mxu0 0.0
      %689 = vmatpush1.msra.mxu0 0.0
      %690 = vmatprep.subr.mxu0 0.0
      %691 = vmatpush1.msra.mxu0 0.0
      %692 = vmatprep.subr.mxu0 0.0
      %693 = vmatpush1.msra.mxu0 0.0
      %694 = vmatprep.subr.mxu0 0.0
      %695 = vmatpush1.msra.mxu0 0.0
      %696 = vmatprep.subr.mxu0 0.0
      %697 = vmatpush1.msra.mxu0 0.0
      %698 = vmatprep.subr.mxu0 0.0
      %699 = vmatpush1.msra.mxu0 0.0
      %700 = vmatprep.subr.mxu0 0.0
      %701 = vmatpush1.msra.mxu0 0.0
      %702 = vmatprep.subr.mxu0 0.0
      %703 = vmatpush1.msra.mxu0 0.0
      %704 = vmatprep.subr.mxu0 0.0
      %705 = vmatpush1.msra.mxu0 0.0
      %706 = vmatprep.subr.mxu0 0.0
      %707 = vmatpush1.msra.mxu0 0.0
      %708 = vmatprep.subr.mxu0 0.0
      %709 = vmatpush1.msra.mxu0 0.0
      %710 = vmatprep.subr.mxu0 0.0
      %711 = vmatpush1.msra.mxu0 0.0
      %712 = vmatprep.subr.mxu0 0.0
      %713 = vmatpush1.msra.mxu0 0.0
      %714 = vmatprep.subr.mxu0 0.0
      %715 = vmatpush1.msra.mxu0 0.0
      %716 = vmatprep.mubr.f32.mxu0 0.0
      %717 = vmatmul.mubr.f32.gmra.mrb[0].mxu0 %v559
      %v718 = vpop.f32.mrb[0].mxu0
      %v719 = vadd.f32 %v650, %v718
      %v720 = vpop.f32.mrb[0].mxu0
      %721 = vmatprep.mubr.f32.mxu0 0.0
      %722 = vmatmul.mubr.f32.gmra.mrb[0].mxu0 %v560
      %v723 = vpop.f32.mrb[0].mxu0
      %v724 = vadd.f32 %v650, %v723
      %v725 = vpop.f32.mrb[0].mxu0
      %726 = vmatprep.mubr.f32.mxu0 0.0
      %727 = vmatmul.mubr.f32.gmra.mrb[0].mxu0 %v561
      %v728 = vpop.f32.mrb[0].mxu0
      %v729 = vadd.f32 %v650, %v728
      %v730 = vpop.f32.mrb[0].mxu0
      %731 = vmatprep.mubr.f32.mxu0 0.0
      %732 = vmatmul.mubr.f32.gmra.mrb[0].mxu0 %v562
      %v733 = vpop.f32.mrb[0].mxu0
      %v734 = vadd.f32 %v650, %v733
      %v735 = vpop.f32.mrb[0].mxu0
      %736 = vdwg.mxu0
      %v737 = vld [vmem:[%s8] sm:$0xff]
      %v738 = vld [vmem:[%s8 + $0x8] sm:$0xff]
      %v739 = vld [vmem:[%s8 + $0x10] sm:$0xff]
      %v740 = vld [vmem:[%s8 + $0x18] sm:$0xff]
      %v741 = vld [vmem:[%s8 + $0x20] sm:$0xff]
      %v742 = vld [vmem:[%s8 + $0x28] sm:$0xff]
      %v743 = vld [vmem:[%s8 + $0x30] sm:$0xff]
      %v744 = vld [vmem:[%s8 + $0x38] sm:$0xff]
      %v745 = vld [vmem:[%s8 + $0x40] sm:$0xff]
      %v746 = vld [vmem:[%s8 + $0x48] sm:$0xff]
      %v747 = vld [vmem:[%s8 + $0x50] sm:$0xff]
      %v748 = vld [vmem:[%s8 + $0x58] sm:$0xff]
      %v749 = vld [vmem:[%s8 + $0x60] sm:$0xff]
      %v750 = vld [vmem:[%s8 + $0x68] sm:$0xff]
      %v751 = vld [vmem:[%s8 + $0x70] sm:$0xff]
      %v752 = vld [vmem:[%s8 + $0x78] sm:$0xff]
      %v753 = vld [vmem:[%s9] sm:$0x1]
      %v755 = vlaneseq
      %v756 = vshrl.u32 %v755, 7
      %v757 = vsub.s32 0, %v756
      %v758 = vrot.slane %v753, %v757
      %760 = vmatprep.subr.mxu0 0.0
      %761 = vmatpush1.msra.mxu0 %v737
      %762 = vmatprep.subr.mxu0 0.0
      %763 = vmatpush1.msra.mxu0 %v738
      %764 = vmatprep.subr.mxu0 0.0
      %765 = vmatpush1.msra.mxu0 %v739
      %766 = vmatprep.subr.mxu0 0.0
      %767 = vmatpush1.msra.mxu0 %v740
      %768 = vmatprep.subr.mxu0 0.0
      %769 = vmatpush1.msra.mxu0 %v741
      %770 = vmatprep.subr.mxu0 0.0
      %771 = vmatpush1.msra.mxu0 %v742
      %772 = vmatprep.subr.mxu0 0.0
      %773 = vmatpush1.msra.mxu0 %v743
      %774 = vmatprep.subr.mxu0 0.0
      %775 = vmatpush1.msra.mxu0 %v744
      %776 = vmatprep.subr.mxu0 0.0
      %777 = vmatpush1.msra.mxu0 %v745
      %778 = vmatprep.subr.mxu0 0.0
      %779 = vmatpush1.msra.mxu0 %v746
      %780 = vmatprep.subr.mxu0 0.0
      %781 = vmatpush1.msra.mxu0 %v747
      %782 = vmatprep.subr.mxu0 0.0
      %783 = vmatpush1.msra.mxu0 %v748
      %784 = vmatprep.subr.mxu0 0.0
      %785 = vmatpush1.msra.mxu0 %v749
      %786 = vmatprep.subr.mxu0 0.0
      %787 = vmatpush1.msra.mxu0 %v750
      %788 = vmatprep.subr.mxu0 0.0
      %789 = vmatpush1.msra.mxu0 %v751
      %790 = vmatprep.subr.mxu0 0.0
      %791 = vmatpush1.msra.mxu0 %v752
      %792 = vmatprep.subr.mxu0 0.0
      %793 = vmatpush1.msra.mxu0 0.0
      %794 = vmatprep.subr.mxu0 0.0
      %795 = vmatpush1.msra.mxu0 0.0
      %796 = vmatprep.subr.mxu0 0.0
      %797 = vmatpush1.msra.mxu0 0.0
      %798 = vmatprep.subr.mxu0 0.0
      %799 = vmatpush1.msra.mxu0 0.0
      %800 = vmatprep.subr.mxu0 0.0
      %801 = vmatpush1.msra.mxu0 0.0
      %802 = vmatprep.subr.mxu0 0.0
      %803 = vmatpush1.msra.mxu0 0.0
      %804 = vmatprep.subr.mxu0 0.0
      %805 = vmatpush1.msra.mxu0 0.0
      %806 = vmatprep.subr.mxu0 0.0
      %807 = vmatpush1.msra.mxu0 0.0
      %808 = vmatprep.subr.mxu0 0.0
      %809 = vmatpush1.msra.mxu0 0.0
      %810 = vmatprep.subr.mxu0 0.0
      %811 = vmatpush1.msra.mxu0 0.0
      %812 = vmatprep.subr.mxu0 0.0
      %813 = vmatpush1.msra.mxu0 0.0
      %814 = vmatprep.subr.mxu0 0.0
      %815 = vmatpush1.msra.mxu0 0.0
      %816 = vmatprep.subr.mxu0 0.0
      %817 = vmatpush1.msra.mxu0 0.0
      %818 = vmatprep.subr.mxu0 0.0
      %819 = vmatpush1.msra.mxu0 0.0
      %820 = vmatprep.subr.mxu0 0.0
      %821 = vmatpush1.msra.mxu0 0.0
      %822 = vmatprep.subr.mxu0 0.0
      %823 = vmatpush1.msra.mxu0 0.0
      %824 = vmatprep.mubr.f32.mxu0 0.0
      %825 = vmatmul.mubr.f32.gmra.mrb[0].mxu0 %v625
      %v826 = vpop.f32.mrb[0].mxu0
      %v827 = vadd.f32 %v758, %v826
      %v828 = vpop.f32.mrb[0].mxu0
      %829 = vmatprep.mubr.f32.mxu0 0.0
      %830 = vmatmul.mubr.f32.gmra.mrb[0].mxu0 %v626
      %v831 = vpop.f32.mrb[0].mxu0
      %v832 = vadd.f32 %v758, %v831
      %v833 = vpop.f32.mrb[0].mxu0
      %834 = vmatprep.mubr.f32.mxu0 0.0
      %835 = vmatmul.mubr.f32.gmra.mrb[0].mxu0 %v627
      %v836 = vpop.f32.mrb[0].mxu0
      %v837 = vadd.f32 %v758, %v836
      %v838 = vpop.f32.mrb[0].mxu0
      %839 = vmatprep.mubr.f32.mxu0 0.0
      %840 = vmatmul.mubr.f32.gmra.mrb[0].mxu0 %v628
      %v841 = vpop.f32.mrb[0].mxu0
      %v842 = vadd.f32 %v758, %v841
      %v843 = vpop.f32.mrb[0].mxu0
      %844 = vdwg.mxu0
      %v845 = vld [vmem:[%s10] sm:$0xff]
      %v846 = vld [vmem:[%s10 + $0x8] sm:$0xff]
      %v847 = vld [vmem:[%s10 + $0x10] sm:$0xff]
      %v848 = vld [vmem:[%s10 + $0x18] sm:$0xff]
      %v849 = vld [vmem:[%s10 + $0x20] sm:$0xff]
      %v850 = vld [vmem:[%s10 + $0x28] sm:$0xff]
      %v851 = vld [vmem:[%s10 + $0x30] sm:$0xff]
      %v852 = vld [vmem:[%s10 + $0x38] sm:$0xff]
      %v853 = vld [vmem:[%s10 + $0x40] sm:$0xff]
      %v854 = vld [vmem:[%s10 + $0x48] sm:$0xff]
      %v855 = vld [vmem:[%s10 + $0x50] sm:$0xff]
      %v856 = vld [vmem:[%s10 + $0x58] sm:$0xff]
      %v857 = vld [vmem:[%s10 + $0x60] sm:$0xff]
      %v858 = vld [vmem:[%s10 + $0x68] sm:$0xff]
      %v859 = vld [vmem:[%s10 + $0x70] sm:$0xff]
      %v860 = vld [vmem:[%s10 + $0x78] sm:$0xff]
      %v861 = vld [vmem:[%s11] sm:$0x1]
      %v863 = vlaneseq
      %v864 = vshrl.u32 %v863, 7
      %v865 = vsub.s32 0, %v864
      %v866 = vrot.slane %v861, %v865
      %868 = vmatprep.subr.mxu0 0.0
      %869 = vmatpush1.msra.mxu0 %v845
      %870 = vmatprep.subr.mxu0 0.0
      %871 = vmatpush1.msra.mxu0 %v846
      %872 = vmatprep.subr.mxu0 0.0
      %873 = vmatpush1.msra.mxu0 %v847
      %874 = vmatprep.subr.mxu0 0.0
      %875 = vmatpush1.msra.mxu0 %v848
      %876 = vmatprep.subr.mxu0 0.0
      %877 = vmatpush1.msra.mxu0 %v849
      %878 = vmatprep.subr.mxu0 0.0
      %879 = vmatpush1.msra.mxu0 %v850
      %880 = vmatprep.subr.mxu0 0.0
      %881 = vmatpush1.msra.mxu0 %v851
      %882 = vmatprep.subr.mxu0 0.0
      %883 = vmatpush1.msra.mxu0 %v852
      %884 = vmatprep.subr.mxu0 0.0
      %885 = vmatpush1.msra.mxu0 %v853
      %886 = vmatprep.subr.mxu0 0.0
      %887 = vmatpush1.msra.mxu0 %v854
      %888 = vmatprep.subr.mxu0 0.0
      %889 = vmatpush1.msra.mxu0 %v855
      %890 = vmatprep.subr.mxu0 0.0
      %891 = vmatpush1.msra.mxu0 %v856
      %892 = vmatprep.subr.mxu0 0.0
      %893 = vmatpush1.msra.mxu0 %v857
      %894 = vmatprep.subr.mxu0 0.0
      %895 = vmatpush1.msra.mxu0 %v858
      %896 = vmatprep.subr.mxu0 0.0
      %897 = vmatpush1.msra.mxu0 %v859
      %898 = vmatprep.subr.mxu0 0.0
      %899 = vmatpush1.msra.mxu0 %v860
      %900 = vmatprep.subr.mxu0 0.0
      %901 = vmatpush1.msra.mxu0 0.0
      %902 = vmatprep.subr.mxu0 0.0
      %903 = vmatpush1.msra.mxu0 0.0
      %904 = vmatprep.subr.mxu0 0.0
      %905 = vmatpush1.msra.mxu0 0.0
      %906 = vmatprep.subr.mxu0 0.0
      %907 = vmatpush1.msra.mxu0 0.0
      %908 = vmatprep.subr.mxu0 0.0
      %909 = vmatpush1.msra.mxu0 0.0
      %910 = vmatprep.subr.mxu0 0.0
      %911 = vmatpush1.msra.mxu0 0.0
      %912 = vmatprep.subr.mxu0 0.0
      %913 = vmatpush1.msra.mxu0 0.0
      %914 = vmatprep.subr.mxu0 0.0
      %915 = vmatpush1.msra.mxu0 0.0
      %916 = vmatprep.subr.mxu0 0.0
      %917 = vmatpush1.msra.mxu0 0.0
      %918 = vmatprep.subr.mxu0 0.0
      %919 = vmatpush1.msra.mxu0 0.0
      %920 = vmatprep.subr.mxu0 0.0
      %921 = vmatpush1.msra.mxu0 0.0
      %922 = vmatprep.subr.mxu0 0.0
      %923 = vmatpush1.msra.mxu0 0.0
      %924 = vmatprep.subr.mxu0 0.0
      %925 = vmatpush1.msra.mxu0 0.0
      %926 = vmatprep.subr.mxu0 0.0
      %927 = vmatpush1.msra.mxu0 0.0
      %928 = vmatprep.subr.mxu0 0.0
      %929 = vmatpush1.msra.mxu0 0.0
      %930 = vmatprep.subr.mxu0 0.0
      %931 = vmatpush1.msra.mxu0 0.0
      %932 = vmatprep.mubr.f32.mxu0 0.0
      %933 = vmatmul.mubr.f32.gmra.mrb[0].mxu0 %v625
      %v934 = vpop.f32.mrb[0].mxu0
      %v935 = vadd.f32 %v866, %v934
      %v936 = vpop.f32.mrb[0].mxu0
      %937 = vmatprep.mubr.f32.mxu0 0.0
      %938 = vmatmul.mubr.f32.gmra.mrb[0].mxu0 %v626
      %v939 = vpop.f32.mrb[0].mxu0
      %v940 = vadd.f32 %v866, %v939
      %v941 = vpop.f32.mrb[0].mxu0
      %942 = vmatprep.mubr.f32.mxu0 0.0
      %943 = vmatmul.mubr.f32.gmra.mrb[0].mxu0 %v627
      %v944 = vpop.f32.mrb[0].mxu0
      %v945 = vadd.f32 %v866, %v944
      %v946 = vpop.f32.mrb[0].mxu0
      %947 = vmatprep.mubr.f32.mxu0 0.0
      %948 = vmatmul.mubr.f32.gmra.mrb[0].mxu0 %v628
      %v949 = vpop.f32.mrb[0].mxu0
      %v950 = vadd.f32 %v866, %v949
      %v951 = vpop.f32.mrb[0].mxu0
      %952 = vdwg.mxu0
      %vm953 = vcmask 261120
      %v955 = vsel %vm953, %v719, 0
      %v958 = vsel %vm953, %v724, 0
      %v961 = vsel %vm953, %v729, 0
      %v964 = vsel %vm953, %v734, 0
      %v967 = vsel %vm953, %v827, 0
      %v970 = vsel %vm953, %v832, 0
      %v973 = vsel %vm953, %v837, 0
      %v976 = vsel %vm953, %v842, 0
      %978 = vmatprep.subr.mxu0 0.0
      %979 = vmatpush1.xpose.msra.mxu0 %v967
      %980 = vmatprep.subr.mxu0 0.0
      %981 = vmatpush1.xpose.msra.mxu0 %v970
      %982 = vmatprep.subr.mxu0 0.0
      %983 = vmatpush1.xpose.msra.mxu0 %v973
      %984 = vmatprep.subr.mxu0 0.0
      %985 = vmatpush1.xpose.msra.mxu0 %v976
      %986 = vmatprep.subr.mxu0 0.0
      %987 = vmatpush1.xpose.msra.mxu0 0.0
      %988 = vmatprep.subr.mxu0 0.0
      %989 = vmatpush1.xpose.msra.mxu0 0.0
      %990 = vmatprep.subr.mxu0 0.0
      %991 = vmatpush1.xpose.msra.mxu0 0.0
      %992 = vmatprep.subr.mxu0 0.0
      %993 = vmatpush1.xpose.msra.mxu0 0.0
      %994 = vmatprep.subr.mxu0 0.0
      %995 = vmatpush1.xpose.msra.mxu0 0.0
      %996 = vmatprep.subr.mxu0 0.0
      %997 = vmatpush1.xpose.msra.mxu0 0.0
      %998 = vmatprep.subr.mxu0 0.0
      %999 = vmatpush1.xpose.msra.mxu0 0.0
      %1000 = vmatprep.subr.mxu0 0.0
      %1001 = vmatpush1.xpose.msra.mxu0 0.0
      %1002 = vmatprep.subr.mxu0 0.0
      %1003 = vmatpush1.xpose.msra.mxu0 0.0
      %1004 = vmatprep.subr.mxu0 0.0
      %1005 = vmatpush1.xpose.msra.mxu0 0.0
      %1006 = vmatprep.subr.mxu0 0.0
      %1007 = vmatpush1.xpose.msra.mxu0 0.0
      %1008 = vmatprep.subr.mxu0 0.0
      %1009 = vmatpush1.xpose.msra.mxu0 0.0
      %1010 = vmatprep.subr.mxu0 0.0
      %1011 = vmatpush1.xpose.msra.mxu0 0.0
      %1012 = vmatprep.subr.mxu0 0.0
      %1013 = vmatpush1.xpose.msra.mxu0 0.0
      %1014 = vmatprep.subr.mxu0 0.0
      %1015 = vmatpush1.xpose.msra.mxu0 0.0
      %1016 = vmatprep.subr.mxu0 0.0
      %1017 = vmatpush1.xpose.msra.mxu0 0.0
      %1018 = vmatprep.subr.mxu0 0.0
      %1019 = vmatpush1.xpose.msra.mxu0 0.0
      %1020 = vmatprep.subr.mxu0 0.0
      %1021 = vmatpush1.xpose.msra.mxu0 0.0
      %1022 = vmatprep.subr.mxu0 0.0
      %1023 = vmatpush1.xpose.msra.mxu0 0.0
      %1024 = vmatprep.subr.mxu0 0.0
      %1025 = vmatpush1.xpose.msra.mxu0 0.0
      %1026 = vmatprep.subr.mxu0 0.0
      %1027 = vmatpush1.xpose.msra.mxu0 0.0
      %1028 = vmatprep.subr.mxu0 0.0
      %1029 = vmatpush1.xpose.msra.mxu0 0.0
      %1030 = vmatprep.subr.mxu0 0.0
      %1031 = vmatpush1.xpose.msra.mxu0 0.0
      %1032 = vmatprep.subr.mxu0 0.0
      %1033 = vmatpush1.xpose.msra.mxu0 0.0
      %1034 = vmatprep.subr.mxu0 0.0
      %1035 = vmatpush1.xpose.msra.mxu0 0.0
      %1036 = vmatprep.subr.mxu0 0.0
      %1037 = vmatpush1.xpose.msra.mxu0 0.0
      %1038 = vmatprep.subr.mxu0 0.0
      %1039 = vmatpush1.xpose.msra.mxu0 0.0
      %1040 = vmatprep.subr.mxu0 0.0
      %1041 = vmatpush1.xpose.msra.mxu0 0.0
      %1042 = vmatprep.mubr.f32.mxu0 0.0
      %1043 = vmatmul.mubr.f32.gmra.mrb[0].mxu0 %v955
      %v1044 = vpop.f32.mrb[0].mxu0
      %v1045 = vadd.f32 0.0, %v1044
      %v1046 = vpop.f32.mrb[0].mxu0
      %1047 = vmatprep.mubr.f32.mxu0 0.0
      %1048 = vmatmul.mubr.f32.gmra.mrb[0].mxu0 %v958
      %v1049 = vpop.f32.mrb[0].mxu0
      %v1050 = vadd.f32 0.0, %v1049
      %v1051 = vpop.f32.mrb[0].mxu0
      %1052 = vmatprep.mubr.f32.mxu0 0.0
      %1053 = vmatmul.mubr.f32.gmra.mrb[0].mxu0 %v961
      %v1054 = vpop.f32.mrb[0].mxu0
      %v1055 = vadd.f32 0.0, %v1054
      %v1056 = vpop.f32.mrb[0].mxu0
      %1057 = vmatprep.mubr.f32.mxu0 0.0
      %1058 = vmatmul.mubr.f32.gmra.mrb[0].mxu0 %v964
      %v1059 = vpop.f32.mrb[0].mxu0
      %v1060 = vadd.f32 0.0, %v1059
      %v1061 = vpop.f32.mrb[0].mxu0
      %1062 = vdwg.mxu0
      %v1063 = vmul.f32 %v1045, 0.17677669
      %v1064 = vmul.f32 %v1050, 0.17677669
      %v1065 = vmul.f32 %v1055, 0.17677669
      %v1066 = vmul.f32 %v1060, 0.17677669
      %v1067 = vsel %vm953, %v1063, -inf
      %1068 = vmax.xlane.f32.xlu0 %v1067
      %v1069 = vpop.xlane.xlu0 %1068
      %v1070 = vsel %vm953, %v1064, -inf
      %1071 = vmax.xlane.f32.xlu0 %v1070
      %v1072 = vpop.xlane.xlu0 %1071
      %v1073 = vsel %vm953, %v1065, -inf
      %1074 = vmax.xlane.f32.xlu0 %v1073
      %v1075 = vpop.xlane.xlu0 %1074
      %v1076 = vsel %vm953, %v1066, -inf
      %1077 = vmax.xlane.f32.xlu0 %v1076
      %v1078 = vpop.xlane.xlu0 %1077
      %v1079 = vsub.f32 %v1063, %v1069
      %v1080 = vsub.f32 %v1064, %v1072
      %v1081 = vsub.f32 %v1065, %v1075
      %v1082 = vsub.f32 %v1066, %v1078
      %v1083 = vmul.f32 %v1079, 1.442695
      %v1084 = vpow.pop %v1083
      %v1085 = vmul.f32 %v1080, 1.442695
      %v1086 = vpow.pop %v1085
      %v1087 = vmul.f32 %v1081, 1.442695
      %v1088 = vpow.pop %v1087
      %v1089 = vmul.f32 %v1082, 1.442695
      %v1090 = vpow.pop %v1089
      %v1091 = vsel %vm953, %v1084, 0.0
      %1092 = vadd.xlane.f32.xlu0 %v1091
      %v1093 = vpop.xlane.xlu0 %1092
      %v1094 = vsel %vm953, %v1086, 0.0
      %1095 = vadd.xlane.f32.xlu0 %v1094
      %v1096 = vpop.xlane.xlu0 %1095
      %v1097 = vsel %vm953, %v1088, 0.0
      %1098 = vadd.xlane.f32.xlu0 %v1097
      %v1099 = vpop.xlane.xlu0 %1098
      %v1100 = vsel %vm953, %v1090, 0.0
      %1101 = vadd.xlane.f32.xlu0 %v1100
      %v1102 = vpop.xlane.xlu0 %1101
      %v1103 = vrcp.pop %v1093
      %v1104 = vmul.f32 %v1084, %v1103
      %v1105 = vrcp.pop %v1096
      %v1106 = vmul.f32 %v1086, %v1105
      %v1107 = vrcp.pop %v1099
      %v1108 = vmul.f32 %v1088, %v1107
      %v1109 = vrcp.pop %v1102
      %v1110 = vmul.f32 %v1090, %v1109
      %v1112 = vsel %vm953, %v1104, 0
      %v1115 = vsel %vm953, %v1106, 0
      %v1118 = vsel %vm953, %v1108, 0
      %v1121 = vsel %vm953, %v1110, 0
      %1123 = vmatprep.subr.mxu0 0.0
      %1124 = vmatpush1.msra.mxu0 %v935
      %1125 = vmatprep.subr.mxu0 0.0
      %1126 = vmatpush1.msra.mxu0 %v940
      %1127 = vmatprep.subr.mxu0 0.0
      %1128 = vmatpush1.msra.mxu0 %v945
      %1129 = vmatprep.subr.mxu0 0.0
      %1130 = vmatpush1.msra.mxu0 %v950
      %1131 = vmatprep.subr.mxu0 0.0
      %1132 = vmatpush1.msra.mxu0 0.0
      %1133 = vmatprep.subr.mxu0 0.0
      %1134 = vmatpush1.msra.mxu0 0.0
      %1135 = vmatprep.subr.mxu0 0.0
      %1136 = vmatpush1.msra.mxu0 0.0
      %1137 = vmatprep.subr.mxu0 0.0
      %1138 = vmatpush1.msra.mxu0 0.0
      %1139 = vmatprep.subr.mxu0 0.0
      %1140 = vmatpush1.msra.mxu0 0.0
      %1141 = vmatprep.subr.mxu0 0.0
      %1142 = vmatpush1.msra.mxu0 0.0
      %1143 = vmatprep.subr.mxu0 0.0
      %1144 = vmatpush1.msra.mxu0 0.0
      %1145 = vmatprep.subr.mxu0 0.0
      %1146 = vmatpush1.msra.mxu0 0.0
      %1147 = vmatprep.subr.mxu0 0.0
      %1148 = vmatpush1.msra.mxu0 0.0
      %1149 = vmatprep.subr.mxu0 0.0
      %1150 = vmatpush1.msra.mxu0 0.0
      %1151 = vmatprep.subr.mxu0 0.0
      %1152 = vmatpush1.msra.mxu0 0.0
      %1153 = vmatprep.subr.mxu0 0.0
      %1154 = vmatpush1.msra.mxu0 0.0
      %1155 = vmatprep.subr.mxu0 0.0
      %1156 = vmatpush1.msra.mxu0 0.0
      %1157 = vmatprep.subr.mxu0 0.0
      %1158 = vmatpush1.msra.mxu0 0.0
      %1159 = vmatprep.subr.mxu0 0.0
      %1160 = vmatpush1.msra.mxu0 0.0
      %1161 = vmatprep.subr.mxu0 0.0
      %1162 = vmatpush1.msra.mxu0 0.0
      %1163 = vmatprep.subr.mxu0 0.0
      %1164 = vmatpush1.msra.mxu0 0.0
      %1165 = vmatprep.subr.mxu0 0.0
      %1166 = vmatpush1.msra.mxu0 0.0
      %1167 = vmatprep.subr.mxu0 0.0
      %1168 = vmatpush1.msra.mxu0 0.0
      %1169 = vmatprep.subr.mxu0 0.0
      %1170 = vmatpush1.msra.mxu0 0.0
      %1171 = vmatprep.subr.mxu0 0.0
      %1172 = vmatpush1.msra.mxu0 0.0
      %1173 = vmatprep.subr.mxu0 0.0
      %1174 = vmatpush1.msra.mxu0 0.0
      %1175 = vmatprep.subr.mxu0 0.0
      %1176 = vmatpush1.msra.mxu0 0.0
      %1177 = vmatprep.subr.mxu0 0.0
      %1178 = vmatpush1.msra.mxu0 0.0
      %1179 = vmatprep.subr.mxu0 0.0
      %1180 = vmatpush1.msra.mxu0 0.0
      %1181 = vmatprep.subr.mxu0 0.0
      %1182 = vmatpush1.msra.mxu0 0.0
      %1183 = vmatprep.subr.mxu0 0.0
      %1184 = vmatpush1.msra.mxu0 0.0
      %1185 = vmatprep.subr.mxu0 0.0
      %1186 = vmatpush1.msra.mxu0 0.0
      %1187 = vmatprep.mubr.f32.mxu0 0.0
      %1188 = vmatmul.mubr.f32.gmra.mrb[0].mxu0 %v1112
      %v1189 = vpop.f32.mrb[0].mxu0
      %v1190 = vadd.f32 0.0, %v1189
      %v1191 = vpop.f32.mrb[0].mxu0
      %1192 = vmatprep.mubr.f32.mxu0 0.0
      %1193 = vmatmul.mubr.f32.gmra.mrb[0].mxu0 %v1115
      %v1194 = vpop.f32.mrb[0].mxu0
      %v1195 = vadd.f32 0.0, %v1194
      %v1196 = vpop.f32.mrb[0].mxu0
      %1197 = vmatprep.mubr.f32.mxu0 0.0
      %1198 = vmatmul.mubr.f32.gmra.mrb[0].mxu0 %v1118
      %v1199 = vpop.f32.mrb[0].mxu0
      %v1200 = vadd.f32 0.0, %v1199
      %v1201 = vpop.f32.mrb[0].mxu0
      %1202 = vmatprep.mubr.f32.mxu0 0.0
      %1203 = vmatmul.mubr.f32.gmra.mrb[0].mxu0 %v1121
      %v1204 = vpop.f32.mrb[0].mxu0
      %v1205 = vadd.f32 0.0, %v1204
      %v1206 = vpop.f32.mrb[0].mxu0
      %1207 = vdwg.mxu0
      %v1208 = vld [vmem:[%s12] sm:$0xff]
      %v1209 = vld [vmem:[%s12 + $0x8] sm:$0xff]
      %v1210 = vld [vmem:[%s12 + $0x10] sm:$0xff]
      %v1211 = vld [vmem:[%s12 + $0x18] sm:$0xff]
      %1212 = vrot.lane.b32.xlu0 %v719, 96
      %v1213 = vpop.permute.xlu0 %1212
      %1214 = vrot.lane.b32.xlu0 %v724, 96
      %v1215 = vpop.permute.xlu0 %1214
      %1216 = vrot.lane.b32.xlu0 %v729, 96
      %v1217 = vpop.permute.xlu0 %1216
      %1218 = vrot.lane.b32.xlu0 %v734, 96
      %v1219 = vpop.permute.xlu0 %1218
      %1220 = vrot.lane.b32.xlu0 %v827, 96
      %v1221 = vpop.permute.xlu0 %1220
      %1222 = vrot.lane.b32.xlu0 %v832, 96
      %v1223 = vpop.permute.xlu0 %1222
      %1224 = vrot.lane.b32.xlu0 %v837, 96
      %v1225 = vpop.permute.xlu0 %1224
      %1226 = vrot.lane.b32.xlu0 %v842, 96
      %v1227 = vpop.permute.xlu0 %1226
      %v1228 = vsel %vm953, %v1213, 0
      %v1230 = vsel %vm953, %v1215, 0
      %v1232 = vsel %vm953, %v1217, 0
      %v1234 = vsel %vm953, %v1219, 0
      %v1236 = vsel %vm953, %v1221, 0
      %v1238 = vsel %vm953, %v1223, 0
      %v1240 = vsel %vm953, %v1225, 0
      %v1242 = vsel %vm953, %v1227, 0
      %1244 = vmatprep.subr.mxu0 0.0
      %1245 = vmatpush1.xpose.msra.mxu0 %v1236
      %1246 = vmatprep.subr.mxu0 0.0
      %1247 = vmatpush1.xpose.msra.mxu0 %v1238
      %1248 = vmatprep.subr.mxu0 0.0
      %1249 = vmatpush1.xpose.msra.mxu0 %v1240
      %1250 = vmatprep.subr.mxu0 0.0
      %1251 = vmatpush1.xpose.msra.mxu0 %v1242
      %1252 = vmatprep.subr.mxu0 0.0
      %1253 = vmatpush1.xpose.msra.mxu0 0.0
      %1254 = vmatprep.subr.mxu0 0.0
      %1255 = vmatpush1.xpose.msra.mxu0 0.0
      %1256 = vmatprep.subr.mxu0 0.0
      %1257 = vmatpush1.xpose.msra.mxu0 0.0
      %1258 = vmatprep.subr.mxu0 0.0
      %1259 = vmatpush1.xpose.msra.mxu0 0.0
      %1260 = vmatprep.subr.mxu0 0.0
      %1261 = vmatpush1.xpose.msra.mxu0 0.0
      %1262 = vmatprep.subr.mxu0 0.0
      %1263 = vmatpush1.xpose.msra.mxu0 0.0
      %1264 = vmatprep.subr.mxu0 0.0
      %1265 = vmatpush1.xpose.msra.mxu0 0.0
      %1266 = vmatprep.subr.mxu0 0.0
      %1267 = vmatpush1.xpose.msra.mxu0 0.0
      %1268 = vmatprep.subr.mxu0 0.0
      %1269 = vmatpush1.xpose.msra.mxu0 0.0
      %1270 = vmatprep.subr.mxu0 0.0
      %1271 = vmatpush1.xpose.msra.mxu0 0.0
      %1272 = vmatprep.subr.mxu0 0.0
      %1273 = vmatpush1.xpose.msra.mxu0 0.0
      %1274 = vmatprep.subr.mxu0 0.0
      %1275 = vmatpush1.xpose.msra.mxu0 0.0
      %1276 = vmatprep.subr.mxu0 0.0
      %1277 = vmatpush1.xpose.msra.mxu0 0.0
      %1278 = vmatprep.subr.mxu0 0.0
      %1279 = vmatpush1.xpose.msra.mxu0 0.0
      %1280 = vmatprep.subr.mxu0 0.0
      %1281 = vmatpush1.xpose.msra.mxu0 0.0
      %1282 = vmatprep.subr.mxu0 0.0
      %1283 = vmatpush1.xpose.msra.mxu0 0.0
      %1284 = vmatprep.subr.mxu0 0.0
      %1285 = vmatpush1.xpose.msra.mxu0 0.0
      %1286 = vmatprep.subr.mxu0 0.0
      %1287 = vmatpush1.xpose.msra.mxu0 0.0
      %1288 = vmatprep.subr.mxu0 0.0
      %1289 = vmatpush1.xpose.msra.mxu0 0.0
      %1290 = vmatprep.subr.mxu0 0.0
      %1291 = vmatpush1.xpose.msra.mxu0 0.0
      %1292 = vmatprep.subr.mxu0 0.0
      %1293 = vmatpush1.xpose.msra.mxu0 0.0
      %1294 = vmatprep.subr.mxu0 0.0
      %1295 = vmatpush1.xpose.msra.mxu0 0.0
      %1296 = vmatprep.subr.mxu0 0.0
      %1297 = vmatpush1.xpose.msra.mxu0 0.0
      %1298 = vmatprep.subr.mxu0 0.0
      %1299 = vmatpush1.xpose.msra.mxu0 0.0
      %1300 = vmatprep.subr.mxu0 0.0
      %1301 = vmatpush1.xpose.msra.mxu0 0.0
      %1302 = vmatprep.subr.mxu0 0.0
      %1303 = vmatpush1.xpose.msra.mxu0 0.0
      %1304 = vmatprep.subr.mxu0 0.0
      %1305 = vmatpush1.xpose.msra.mxu0 0.0
      %1306 = vmatprep.subr.mxu0 0.0
      %1307 = vmatpush1.xpose.msra.mxu0 0.0
      %1308 = vmatprep.mubr.f32.mxu0 0.0
      %1309 = vmatmul.mubr.f32.gmra.mrb[0].mxu0 %v1228
      %v1310 = vpop.f32.mrb[0].mxu0
      %v1311 = vadd.f32 0.0, %v1310
      %v1312 = vpop.f32.mrb[0].mxu0
      %1313 = vmatprep.mubr.f32.mxu0 0.0
      %1314 = vmatmul.mubr.f32.gmra.mrb[0].mxu0 %v1230
      %v1315 = vpop.f32.mrb[0].mxu0
      %v1316 = vadd.f32 0.0, %v1315
      %v1317 = vpop.f32.mrb[0].mxu0
      %1318 = vmatprep.mubr.f32.mxu0 0.0
      %1319 = vmatmul.mubr.f32.gmra.mrb[0].mxu0 %v1232
      %v1320 = vpop.f32.mrb[0].mxu0
      %v1321 = vadd.f32 0.0, %v1320
      %v1322 = vpop.f32.mrb[0].mxu0
      %1323 = vmatprep.mubr.f32.mxu0 0.0
      %1324 = vmatmul.mubr.f32.gmra.mrb[0].mxu0 %v1234
      %v1325 = vpop.f32.mrb[0].mxu0
      %v1326 = vadd.f32 0.0, %v1325
      %v1327 = vpop.f32.mrb[0].mxu0
      %1328 = vdwg.mxu0
      %v1329 = vmul.f32 %v1311, 0.17677669
      %v1330 = vmul.f32 %v1316, 0.17677669
      %v1331 = vmul.f32 %v1321, 0.17677669
      %v1332 = vmul.f32 %v1326, 0.17677669
      %v1333 = vsel %vm953, %v1329, -inf
      %1334 = vmax.xlane.f32.xlu0 %v1333
      %v1335 = vpop.xlane.xlu0 %1334
      %v1336 = vsel %vm953, %v1330, -inf
      %1337 = vmax.xlane.f32.xlu0 %v1336
      %v1338 = vpop.xlane.xlu0 %1337
      %v1339 = vsel %vm953, %v1331, -inf
      %1340 = vmax.xlane.f32.xlu0 %v1339
      %v1341 = vpop.xlane.xlu0 %1340
      %v1342 = vsel %vm953, %v1332, -inf
      %1343 = vmax.xlane.f32.xlu0 %v1342
      %v1344 = vpop.xlane.xlu0 %1343
      %v1345 = vsub.f32 %v1329, %v1335
      %v1346 = vsub.f32 %v1330, %v1338
      %v1347 = vsub.f32 %v1331, %v1341
      %v1348 = vsub.f32 %v1332, %v1344
      %v1349 = vmul.f32 %v1345, 1.442695
      %v1350 = vpow.pop %v1349
      %v1351 = vmul.f32 %v1346, 1.442695
      %v1352 = vpow.pop %v1351
      %v1353 = vmul.f32 %v1347, 1.442695
      %v1354 = vpow.pop %v1353
      %v1355 = vmul.f32 %v1348, 1.442695
      %v1356 = vpow.pop %v1355
      %v1357 = vsel %vm953, %v1350, 0.0
      %1358 = vadd.xlane.f32.xlu0 %v1357
      %v1359 = vpop.xlane.xlu0 %1358
      %v1360 = vsel %vm953, %v1352, 0.0
      %1361 = vadd.xlane.f32.xlu0 %v1360
      %v1362 = vpop.xlane.xlu0 %1361
      %v1363 = vsel %vm953, %v1354, 0.0
      %1364 = vadd.xlane.f32.xlu0 %v1363
      %v1365 = vpop.xlane.xlu0 %1364
      %v1366 = vsel %vm953, %v1356, 0.0
      %1367 = vadd.xlane.f32.xlu0 %v1366
      %v1368 = vpop.xlane.xlu0 %1367
      %v1369 = vrcp.pop %v1359
      %v1370 = vmul.f32 %v1350, %v1369
      %v1371 = vrcp.pop %v1362
      %v1372 = vmul.f32 %v1352, %v1371
      %v1373 = vrcp.pop %v1365
      %v1374 = vmul.f32 %v1354, %v1373
      %v1375 = vrcp.pop %v1368
      %v1376 = vmul.f32 %v1356, %v1375
      %1381 = vrot.lane.b32.xlu0 %v935, 96
      %v1382 = vpop.permute.xlu0 %1381
      %1383 = vrot.lane.b32.xlu0 %v940, 96
      %v1384 = vpop.permute.xlu0 %1383
      %1385 = vrot.lane.b32.xlu0 %v945, 96
      %v1386 = vpop.permute.xlu0 %1385
      %1387 = vrot.lane.b32.xlu0 %v950, 96
      %v1388 = vpop.permute.xlu0 %1387
      %v1394 = vsel %vm953, %v1370, 0
      %v1397 = vsel %vm953, %v1372, 0
      %v1400 = vsel %vm953, %v1374, 0
      %v1403 = vsel %vm953, %v1376, 0
      %1405 = vmatprep.subr.mxu0 0.0
      %1406 = vmatpush1.msra.mxu0 %v1382
      %1407 = vmatprep.subr.mxu0 0.0
      %1408 = vmatpush1.msra.mxu0 %v1384
      %1409 = vmatprep.subr.mxu0 0.0
      %1410 = vmatpush1.msra.mxu0 %v1386
      %1411 = vmatprep.subr.mxu0 0.0
      %1412 = vmatpush1.msra.mxu0 %v1388
      %1413 = vmatprep.subr.mxu0 0.0
      %1414 = vmatpush1.msra.mxu0 0.0
      %1415 = vmatprep.subr.mxu0 0.0
      %1416 = vmatpush1.msra.mxu0 0.0
      %1417 = vmatprep.subr.mxu0 0.0
      %1418 = vmatpush1.msra.mxu0 0.0
      %1419 = vmatprep.subr.mxu0 0.0
      %1420 = vmatpush1.msra.mxu0 0.0
      %1421 = vmatprep.subr.mxu0 0.0
      %1422 = vmatpush1.msra.mxu0 0.0
      %1423 = vmatprep.subr.mxu0 0.0
      %1424 = vmatpush1.msra.mxu0 0.0
      %1425 = vmatprep.subr.mxu0 0.0
      %1426 = vmatpush1.msra.mxu0 0.0
      %1427 = vmatprep.subr.mxu0 0.0
      %1428 = vmatpush1.msra.mxu0 0.0
      %1429 = vmatprep.subr.mxu0 0.0
      %1430 = vmatpush1.msra.mxu0 0.0
      %1431 = vmatprep.subr.mxu0 0.0
      %1432 = vmatpush1.msra.mxu0 0.0
      %1433 = vmatprep.subr.mxu0 0.0
      %1434 = vmatpush1.msra.mxu0 0.0
      %1435 = vmatprep.subr.mxu0 0.0
      %1436 = vmatpush1.msra.mxu0 0.0
      %1437 = vmatprep.subr.mxu0 0.0
      %1438 = vmatpush1.msra.mxu0 0.0
      %1439 = vmatprep.subr.mxu0 0.0
      %1440 = vmatpush1.msra.mxu0 0.0
      %1441 = vmatprep.subr.mxu0 0.0
      %1442 = vmatpush1.msra.mxu0 0.0
      %1443 = vmatprep.subr.mxu0 0.0
      %1444 = vmatpush1.msra.mxu0 0.0
      %1445 = vmatprep.subr.mxu0 0.0
      %1446 = vmatpush1.msra.mxu0 0.0
      %1447 = vmatprep.subr.mxu0 0.0
      %1448 = vmatpush1.msra.mxu0 0.0
      %1449 = vmatprep.subr.mxu0 0.0
      %1450 = vmatpush1.msra.mxu0 0.0
      %1451 = vmatprep.subr.mxu0 0.0
      %1452 = vmatpush1.msra.mxu0 0.0
      %1453 = vmatprep.subr.mxu0 0.0
      %1454 = vmatpush1.msra.mxu0 0.0
      %1455 = vmatprep.subr.mxu0 0.0
      %1456 = vmatpush1.msra.mxu0 0.0
      %1457 = vmatprep.subr.mxu0 0.0
      %1458 = vmatpush1.msra.mxu0 0.0
      %1459 = vmatprep.subr.mxu0 0.0
      %1460 = vmatpush1.msra.mxu0 0.0
      %1461 = vmatprep.subr.mxu0 0.0
      %1462 = vmatpush1.msra.mxu0 0.0
      %1463 = vmatprep.subr.mxu0 0.0
      %1464 = vmatpush1.msra.mxu0 0.0
      %1465 = vmatprep.subr.mxu0 0.0
      %1466 = vmatpush1.msra.mxu0 0.0
      %1467 = vmatprep.subr.mxu0 0.0
      %1468 = vmatpush1.msra.mxu0 0.0
      %1469 = vmatprep.mubr.f32.mxu0 0.0
      %1470 = vmatmul.mubr.f32.gmra.mrb[0].mxu0 %v1394
      %v1471 = vpop.f32.mrb[0].mxu0
      %v1472 = vadd.f32 0.0, %v1471
      %v1473 = vpop.f32.mrb[0].mxu0
      %1474 = vmatprep.mubr.f32.mxu0 0.0
      %1475 = vmatmul.mubr.f32.gmra.mrb[0].mxu0 %v1397
      %v1476 = vpop.f32.mrb[0].mxu0
      %v1477 = vadd.f32 0.0, %v1476
      %v1478 = vpop.f32.mrb[0].mxu0
      %1479 = vmatprep.mubr.f32.mxu0 0.0
      %1480 = vmatmul.mubr.f32.gmra.mrb[0].mxu0 %v1400
      %v1481 = vpop.f32.mrb[0].mxu0
      %v1482 = vadd.f32 0.0, %v1481
      %v1483 = vpop.f32.mrb[0].mxu0
      %1484 = vmatprep.mubr.f32.mxu0 0.0
      %1485 = vmatmul.mubr.f32.gmra.mrb[0].mxu0 %v1403
      %v1486 = vpop.f32.mrb[0].mxu0
      %v1487 = vadd.f32 0.0, %v1486
      %v1488 = vpop.f32.mrb[0].mxu0
      %1489 = vdwg.mxu0
      %v1490 = vld [vmem:[%s12 + $0x20] sm:$0xff]
      %v1491 = vld [vmem:[%s12 + $0x28] sm:$0xff]
      %v1492 = vld [vmem:[%s12 + $0x30] sm:$0xff]
      %v1493 = vld [vmem:[%s12 + $0x38] sm:$0xff]
      %v1495 = vsel %vm953, %v1472, 0
      %v1498 = vsel %vm953, %v1477, 0
      %v1501 = vsel %vm953, %v1482, 0
      %v1504 = vsel %vm953, %v1487, 0
      %1506 = vmatprep.subr.mxu0 0.0
      %1507 = vmatpush1.msra.mxu0 %v1490
      %1508 = vmatprep.subr.mxu0 0.0
      %1509 = vmatpush1.msra.mxu0 %v1491
      %1510 = vmatprep.subr.mxu0 0.0
      %1511 = vmatpush1.msra.mxu0 %v1492
      %1512 = vmatprep.subr.mxu0 0.0
      %1513 = vmatpush1.msra.mxu0 %v1493
      %1514 = vmatprep.subr.mxu0 0.0
      %1515 = vmatpush1.msra.mxu0 0.0
      %1516 = vmatprep.subr.mxu0 0.0
      %1517 = vmatpush1.msra.mxu0 0.0
      %1518 = vmatprep.subr.mxu0 0.0
      %1519 = vmatpush1.msra.mxu0 0.0
      %1520 = vmatprep.subr.mxu0 0.0
      %1521 = vmatpush1.msra.mxu0 0.0
      %1522 = vmatprep.subr.mxu0 0.0
      %1523 = vmatpush1.msra.mxu0 0.0
      %1524 = vmatprep.subr.mxu0 0.0
      %1525 = vmatpush1.msra.mxu0 0.0
      %1526 = vmatprep.subr.mxu0 0.0
      %1527 = vmatpush1.msra.mxu0 0.0
      %1528 = vmatprep.subr.mxu0 0.0
      %1529 = vmatpush1.msra.mxu0 0.0
      %1530 = vmatprep.subr.mxu0 0.0
      %1531 = vmatpush1.msra.mxu0 0.0
      %1532 = vmatprep.subr.mxu0 0.0
      %1533 = vmatpush1.msra.mxu0 0.0
      %1534 = vmatprep.subr.mxu0 0.0
      %1535 = vmatpush1.msra.mxu0 0.0
      %1536 = vmatprep.subr.mxu0 0.0
      %1537 = vmatpush1.msra.mxu0 0.0
      %1538 = vmatprep.subr.mxu0 0.0
      %1539 = vmatpush1.msra.mxu0 0.0
      %1540 = vmatprep.subr.mxu0 0.0
      %1541 = vmatpush1.msra.mxu0 0.0
      %1542 = vmatprep.subr.mxu0 0.0
      %1543 = vmatpush1.msra.mxu0 0.0
      %1544 = vmatprep.subr.mxu0 0.0
      %1545 = vmatpush1.msra.mxu0 0.0
      %1546 = vmatprep.subr.mxu0 0.0
      %1547 = vmatpush1.msra.mxu0 0.0
      %1548 = vmatprep.subr.mxu0 0.0
      %1549 = vmatpush1.msra.mxu0 0.0
      %1550 = vmatprep.subr.mxu0 0.0
      %1551 = vmatpush1.msra.mxu0 0.0
      %1552 = vmatprep.subr.mxu0 0.0
      %1553 = vmatpush1.msra.mxu0 0.0
      %1554 = vmatprep.subr.mxu0 0.0
      %1555 = vmatpush1.msra.mxu0 0.0
      %1556 = vmatprep.subr.mxu0 0.0
      %1557 = vmatpush1.msra.mxu0 0.0
      %1558 = vmatprep.subr.mxu0 0.0
      %1559 = vmatpush1.msra.mxu0 0.0
      %1560 = vmatprep.subr.mxu0 0.0
      %1561 = vmatpush1.msra.mxu0 0.0
      %1562 = vmatprep.subr.mxu0 0.0
      %1563 = vmatpush1.msra.mxu0 0.0
      %1564 = vmatprep.subr.mxu0 0.0
      %1565 = vmatpush1.msra.mxu0 0.0
      %1566 = vmatprep.subr.mxu0 0.0
      %1567 = vmatpush1.msra.mxu0 0.0
      %1568 = vmatprep.subr.mxu0 0.0
      %1569 = vmatpush1.msra.mxu0 0.0
      %1570 = vmatprep.mubr.f32.mxu0 0.0
      %1571 = vmatmul.mubr.f32.gmra.mrb[0].mxu0 %v1495
      %v1572 = vpop.f32.mrb[0].mxu0
      %v1573 = vadd.f32 0.0, %v1572
      %v1574 = vpop.f32.mrb[0].mxu0
      %1575 = vmatprep.mubr.f32.mxu0 0.0
      %1576 = vmatmul.mubr.f32.gmra.mrb[0].mxu0 %v1498
      %v1577 = vpop.f32.mrb[0].mxu0
      %v1578 = vadd.f32 0.0, %v1577
      %v1579 = vpop.f32.mrb[0].mxu0
      %1580 = vmatprep.mubr.f32.mxu0 0.0
      %1581 = vmatmul.mubr.f32.gmra.mrb[0].mxu0 %v1501
      %v1582 = vpop.f32.mrb[0].mxu0
      %v1583 = vadd.f32 0.0, %v1582
      %v1584 = vpop.f32.mrb[0].mxu0
      %1585 = vmatprep.mubr.f32.mxu0 0.0
      %1586 = vmatmul.mubr.f32.gmra.mrb[0].mxu0 %v1504
      %v1587 = vpop.f32.mrb[0].mxu0
      %v1588 = vadd.f32 0.0, %v1587
      %v1589 = vpop.f32.mrb[0].mxu0
      %1590 = vdwg.mxu0
      %v1592 = vsel %vm953, %v1190, 0
      %v1595 = vsel %vm953, %v1195, 0
      %v1598 = vsel %vm953, %v1200, 0
      %v1601 = vsel %vm953, %v1205, 0
      %1603 = vmatprep.subr.mxu0 0.0
      %1604 = vmatpush1.msra.mxu0 %v1208
      %1605 = vmatprep.subr.mxu0 0.0
      %1606 = vmatpush1.msra.mxu0 %v1209
      %1607 = vmatprep.subr.mxu0 0.0
      %1608 = vmatpush1.msra.mxu0 %v1210
      %1609 = vmatprep.subr.mxu0 0.0
      %1610 = vmatpush1.msra.mxu0 %v1211
      %1611 = vmatprep.subr.mxu0 0.0
      %1612 = vmatpush1.msra.mxu0 0.0
      %1613 = vmatprep.subr.mxu0 0.0
      %1614 = vmatpush1.msra.mxu0 0.0
      %1615 = vmatprep.subr.mxu0 0.0
      %1616 = vmatpush1.msra.mxu0 0.0
      %1617 = vmatprep.subr.mxu0 0.0
      %1618 = vmatpush1.msra.mxu0 0.0
      %1619 = vmatprep.subr.mxu0 0.0
      %1620 = vmatpush1.msra.mxu0 0.0
      %1621 = vmatprep.subr.mxu0 0.0
      %1622 = vmatpush1.msra.mxu0 0.0
      %1623 = vmatprep.subr.mxu0 0.0
      %1624 = vmatpush1.msra.mxu0 0.0
      %1625 = vmatprep.subr.mxu0 0.0
      %1626 = vmatpush1.msra.mxu0 0.0
      %1627 = vmatprep.subr.mxu0 0.0
      %1628 = vmatpush1.msra.mxu0 0.0
      %1629 = vmatprep.subr.mxu0 0.0
      %1630 = vmatpush1.msra.mxu0 0.0
      %1631 = vmatprep.subr.mxu0 0.0
      %1632 = vmatpush1.msra.mxu0 0.0
      %1633 = vmatprep.subr.mxu0 0.0
      %1634 = vmatpush1.msra.mxu0 0.0
      %1635 = vmatprep.subr.mxu0 0.0
      %1636 = vmatpush1.msra.mxu0 0.0
      %1637 = vmatprep.subr.mxu0 0.0
      %1638 = vmatpush1.msra.mxu0 0.0
      %1639 = vmatprep.subr.mxu0 0.0
      %1640 = vmatpush1.msra.mxu0 0.0
      %1641 = vmatprep.subr.mxu0 0.0
      %1642 = vmatpush1.msra.mxu0 0.0
      %1643 = vmatprep.subr.mxu0 0.0
      %1644 = vmatpush1.msra.mxu0 0.0
      %1645 = vmatprep.subr.mxu0 0.0
      %1646 = vmatpush1.msra.mxu0 0.0
      %1647 = vmatprep.subr.mxu0 0.0
      %1648 = vmatpush1.msra.mxu0 0.0
      %1649 = vmatprep.subr.mxu0 0.0
      %1650 = vmatpush1.msra.mxu0 0.0
      %1651 = vmatprep.subr.mxu0 0.0
      %1652 = vmatpush1.msra.mxu0 0.0
      %1653 = vmatprep.subr.mxu0 0.0
      %1654 = vmatpush1.msra.mxu0 0.0
      %1655 = vmatprep.subr.mxu0 0.0
      %1656 = vmatpush1.msra.mxu0 0.0
      %1657 = vmatprep.subr.mxu0 0.0
      %1658 = vmatpush1.msra.mxu0 0.0
      %1659 = vmatprep.subr.mxu0 0.0
      %1660 = vmatpush1.msra.mxu0 0.0
      %1661 = vmatprep.subr.mxu0 0.0
      %1662 = vmatpush1.msra.mxu0 0.0
      %1663 = vmatprep.subr.mxu0 0.0
      %1664 = vmatpush1.msra.mxu0 0.0
      %1665 = vmatprep.subr.mxu0 0.0
      %1666 = vmatpush1.msra.mxu0 0.0
      %1667 = vmatprep.mubr.f32.mxu0 0.0
      %1668 = vmatmul.mubr.f32.gmra.mrb[0].mxu0 %v1592
      %v1669 = vpop.f32.mrb[0].mxu0
      %v1670 = vadd.f32 %v1573, %v1669
      %v1671 = vpop.f32.mrb[0].mxu0
      %1672 = vmatprep.mubr.f32.mxu0 0.0
      %1673 = vmatmul.mubr.f32.gmra.mrb[0].mxu0 %v1595
      %v1674 = vpop.f32.mrb[0].mxu0
      %v1675 = vadd.f32 %v1578, %v1674
      %v1676 = vpop.f32.mrb[0].mxu0
      %1677 = vmatprep.mubr.f32.mxu0 0.0
      %1678 = vmatmul.mubr.f32.gmra.mrb[0].mxu0 %v1598
      %v1679 = vpop.f32.mrb[0].mxu0
      %v1680 = vadd.f32 %v1583, %v1679
      %v1681 = vpop.f32.mrb[0].mxu0
      %1682 = vmatprep.mubr.f32.mxu0 0.0
      %1683 = vmatmul.mubr.f32.gmra.mrb[0].mxu0 %v1601
      %v1684 = vpop.f32.mrb[0].mxu0
      %v1685 = vadd.f32 %v1588, %v1684
      %v1686 = vpop.f32.mrb[0].mxu0
      %1687 = vdwg.mxu0
      %1688 = vrot.lane.b32.xlu0 %v719, 64
      %v1689 = vpop.permute.xlu0 %1688
      %1690 = vrot.lane.b32.xlu0 %v724, 64
      %v1691 = vpop.permute.xlu0 %1690
      %1692 = vrot.lane.b32.xlu0 %v729, 64
      %v1693 = vpop.permute.xlu0 %1692
      %1694 = vrot.lane.b32.xlu0 %v734, 64
      %v1695 = vpop.permute.xlu0 %1694
      %1696 = vrot.lane.b32.xlu0 %v827, 64
      %v1697 = vpop.permute.xlu0 %1696
      %1698 = vrot.lane.b32.xlu0 %v832, 64
      %v1699 = vpop.permute.xlu0 %1698
      %1700 = vrot.lane.b32.xlu0 %v837, 64
      %v1701 = vpop.permute.xlu0 %1700
      %1702 = vrot.lane.b32.xlu0 %v842, 64
      %v1703 = vpop.permute.xlu0 %1702
      %v1704 = vsel %vm953, %v1689, 0
      %v1706 = vsel %vm953, %v1691, 0
      %v1708 = vsel %vm953, %v1693, 0
      %v1710 = vsel %vm953, %v1695, 0
      %v1712 = vsel %vm953, %v1697, 0
      %v1714 = vsel %vm953, %v1699, 0
      %v1716 = vsel %vm953, %v1701, 0
      %v1718 = vsel %vm953, %v1703, 0
      %1720 = vmatprep.subr.mxu0 0.0
      %1721 = vmatpush1.xpose.msra.mxu0 %v1712
      %1722 = vmatprep.subr.mxu0 0.0
      %1723 = vmatpush1.xpose.msra.mxu0 %v1714
      %1724 = vmatprep.subr.mxu0 0.0
      %1725 = vmatpush1.xpose.msra.mxu0 %v1716
      %1726 = vmatprep.subr.mxu0 0.0
      %1727 = vmatpush1.xpose.msra.mxu0 %v1718
      %1728 = vmatprep.subr.mxu0 0.0
      %1729 = vmatpush1.xpose.msra.mxu0 0.0
      %1730 = vmatprep.subr.mxu0 0.0
      %1731 = vmatpush1.xpose.msra.mxu0 0.0
      %1732 = vmatprep.subr.mxu0 0.0
      %1733 = vmatpush1.xpose.msra.mxu0 0.0
      %1734 = vmatprep.subr.mxu0 0.0
      %1735 = vmatpush1.xpose.msra.mxu0 0.0
      %1736 = vmatprep.subr.mxu0 0.0
      %1737 = vmatpush1.xpose.msra.mxu0 0.0
      %1738 = vmatprep.subr.mxu0 0.0
      %1739 = vmatpush1.xpose.msra.mxu0 0.0
      %1740 = vmatprep.subr.mxu0 0.0
      %1741 = vmatpush1.xpose.msra.mxu0 0.0
      %1742 = vmatprep.subr.mxu0 0.0
      %1743 = vmatpush1.xpose.msra.mxu0 0.0
      %1744 = vmatprep.subr.mxu0 0.0
      %1745 = vmatpush1.xpose.msra.mxu0 0.0
      %1746 = vmatprep.subr.mxu0 0.0
      %1747 = vmatpush1.xpose.msra.mxu0 0.0
      %1748 = vmatprep.subr.mxu0 0.0
      %1749 = vmatpush1.xpose.msra.mxu0 0.0
      %1750 = vmatprep.subr.mxu0 0.0
      %1751 = vmatpush1.xpose.msra.mxu0 0.0
      %1752 = vmatprep.subr.mxu0 0.0
      %1753 = vmatpush1.xpose.msra.mxu0 0.0
      %1754 = vmatprep.subr.mxu0 0.0
      %1755 = vmatpush1.xpose.msra.mxu0 0.0
      %1756 = vmatprep.subr.mxu0 0.0
      %1757 = vmatpush1.xpose.msra.mxu0 0.0
      %1758 = vmatprep.subr.mxu0 0.0
      %1759 = vmatpush1.xpose.msra.mxu0 0.0
      %1760 = vmatprep.subr.mxu0 0.0
      %1761 = vmatpush1.xpose.msra.mxu0 0.0
      %1762 = vmatprep.subr.mxu0 0.0
      %1763 = vmatpush1.xpose.msra.mxu0 0.0
      %1764 = vmatprep.subr.mxu0 0.0
      %1765 = vmatpush1.xpose.msra.mxu0 0.0
      %1766 = vmatprep.subr.mxu0 0.0
      %1767 = vmatpush1.xpose.msra.mxu0 0.0
      %1768 = vmatprep.subr.mxu0 0.0
      %1769 = vmatpush1.xpose.msra.mxu0 0.0
      %1770 = vmatprep.subr.mxu0 0.0
      %1771 = vmatpush1.xpose.msra.mxu0 0.0
      %1772 = vmatprep.subr.mxu0 0.0
      %1773 = vmatpush1.xpose.msra.mxu0 0.0
      %1774 = vmatprep.subr.mxu0 0.0
      %1775 = vmatpush1.xpose.msra.mxu0 0.0
      %1776 = vmatprep.subr.mxu0 0.0
      %1777 = vmatpush1.xpose.msra.mxu0 0.0
      %1778 = vmatprep.subr.mxu0 0.0
      %1779 = vmatpush1.xpose.msra.mxu0 0.0
      %1780 = vmatprep.subr.mxu0 0.0
      %1781 = vmatpush1.xpose.msra.mxu0 0.0
      %1782 = vmatprep.subr.mxu0 0.0
      %1783 = vmatpush1.xpose.msra.mxu0 0.0
      %1784 = vmatprep.mubr.f32.mxu0 0.0
      %1785 = vmatmul.mubr.f32.gmra.mrb[0].mxu0 %v1704
      %v1786 = vpop.f32.mrb[0].mxu0
      %v1787 = vadd.f32 0.0, %v1786
      %v1788 = vpop.f32.mrb[0].mxu0
      %1789 = vmatprep.mubr.f32.mxu0 0.0
      %1790 = vmatmul.mubr.f32.gmra.mrb[0].mxu0 %v1706
      %v1791 = vpop.f32.mrb[0].mxu0
      %v1792 = vadd.f32 0.0, %v1791
      %v1793 = vpop.f32.mrb[0].mxu0
      %1794 = vmatprep.mubr.f32.mxu0 0.0
      %1795 = vmatmul.mubr.f32.gmra.mrb[0].mxu0 %v1708
      %v1796 = vpop.f32.mrb[0].mxu0
      %v1797 = vadd.f32 0.0, %v1796
      %v1798 = vpop.f32.mrb[0].mxu0
      %1799 = vmatprep.mubr.f32.mxu0 0.0
      %1800 = vmatmul.mubr.f32.gmra.mrb[0].mxu0 %v1710
      %v1801 = vpop.f32.mrb[0].mxu0
      %v1802 = vadd.f32 0.0, %v1801
      %v1803 = vpop.f32.mrb[0].mxu0
      %1804 = vdwg.mxu0
      %v1805 = vmul.f32 %v1787, 0.17677669
      %v1806 = vmul.f32 %v1792, 0.17677669
      %v1807 = vmul.f32 %v1797, 0.17677669
      %v1808 = vmul.f32 %v1802, 0.17677669
      %v1809 = vsel %vm953, %v1805, -inf
      %1810 = vmax.xlane.f32.xlu0 %v1809
      %v1811 = vpop.xlane.xlu0 %1810
      %v1812 = vsel %vm953, %v1806, -inf
      %1813 = vmax.xlane.f32.xlu0 %v1812
      %v1814 = vpop.xlane.xlu0 %1813
      %v1815 = vsel %vm953, %v1807, -inf
      %1816 = vmax.xlane.f32.xlu0 %v1815
      %v1817 = vpop.xlane.xlu0 %1816
      %v1818 = vsel %vm953, %v1808, -inf
      %1819 = vmax.xlane.f32.xlu0 %v1818
      %v1820 = vpop.xlane.xlu0 %1819
      %v1821 = vsub.f32 %v1805, %v1811
      %v1822 = vsub.f32 %v1806, %v1814
      %v1823 = vsub.f32 %v1807, %v1817
      %v1824 = vsub.f32 %v1808, %v1820
      %v1825 = vmul.f32 %v1821, 1.442695
      %v1826 = vpow.pop %v1825
      %v1827 = vmul.f32 %v1822, 1.442695
      %v1828 = vpow.pop %v1827
      %v1829 = vmul.f32 %v1823, 1.442695
      %v1830 = vpow.pop %v1829
      %v1831 = vmul.f32 %v1824, 1.442695
      %v1832 = vpow.pop %v1831
      %v1833 = vsel %vm953, %v1826, 0.0
      %1834 = vadd.xlane.f32.xlu0 %v1833
      %v1835 = vpop.xlane.xlu0 %1834
      %v1836 = vsel %vm953, %v1828, 0.0
      %1837 = vadd.xlane.f32.xlu0 %v1836
      %v1838 = vpop.xlane.xlu0 %1837
      %v1839 = vsel %vm953, %v1830, 0.0
      %1840 = vadd.xlane.f32.xlu0 %v1839
      %v1841 = vpop.xlane.xlu0 %1840
      %v1842 = vsel %vm953, %v1832, 0.0
      %1843 = vadd.xlane.f32.xlu0 %v1842
      %v1844 = vpop.xlane.xlu0 %1843
      %v1845 = vrcp.pop %v1835
      %v1846 = vmul.f32 %v1826, %v1845
      %v1847 = vrcp.pop %v1838
      %v1848 = vmul.f32 %v1828, %v1847
      %v1849 = vrcp.pop %v1841
      %v1850 = vmul.f32 %v1830, %v1849
      %v1851 = vrcp.pop %v1844
      %v1852 = vmul.f32 %v1832, %v1851
      %1853 = vrot.lane.b32.xlu0 %v935, 64
      %v1854 = vpop.permute.xlu0 %1853
      %1855 = vrot.lane.b32.xlu0 %v940, 64
      %v1856 = vpop.permute.xlu0 %1855
      %1857 = vrot.lane.b32.xlu0 %v945, 64
      %v1858 = vpop.permute.xlu0 %1857
      %1859 = vrot.lane.b32.xlu0 %v950, 64
      %v1860 = vpop.permute.xlu0 %1859
      %v1866 = vsel %vm953, %v1846, 0
      %v1869 = vsel %vm953, %v1848, 0
      %v1872 = vsel %vm953, %v1850, 0
      %v1875 = vsel %vm953, %v1852, 0
      %1877 = vmatprep.subr.mxu0 0.0
      %1878 = vmatpush1.msra.mxu0 %v1854
      %1879 = vmatprep.subr.mxu0 0.0
      %1880 = vmatpush1.msra.mxu0 %v1856
      %1881 = vmatprep.subr.mxu0 0.0
      %1882 = vmatpush1.msra.mxu0 %v1858
      %1883 = vmatprep.subr.mxu0 0.0
      %1884 = vmatpush1.msra.mxu0 %v1860
      %1885 = vmatprep.subr.mxu0 0.0
      %1886 = vmatpush1.msra.mxu0 0.0
      %1887 = vmatprep.subr.mxu0 0.0
      %1888 = vmatpush1.msra.mxu0 0.0
      %1889 = vmatprep.subr.mxu0 0.0
      %1890 = vmatpush1.msra.mxu0 0.0
      %1891 = vmatprep.subr.mxu0 0.0
      %1892 = vmatpush1.msra.mxu0 0.0
      %1893 = vmatprep.subr.mxu0 0.0
      %1894 = vmatpush1.msra.mxu0 0.0
      %1895 = vmatprep.subr.mxu0 0.0
      %1896 = vmatpush1.msra.mxu0 0.0
      %1897 = vmatprep.subr.mxu0 0.0
      %1898 = vmatpush1.msra.mxu0 0.0
      %1899 = vmatprep.subr.mxu0 0.0
      %1900 = vmatpush1.msra.mxu0 0.0
      %1901 = vmatprep.subr.mxu0 0.0
      %1902 = vmatpush1.msra.mxu0 0.0
      %1903 = vmatprep.subr.mxu0 0.0
      %1904 = vmatpush1.msra.mxu0 0.0
      %1905 = vmatprep.subr.mxu0 0.0
      %1906 = vmatpush1.msra.mxu0 0.0
      %1907 = vmatprep.subr.mxu0 0.0
      %1908 = vmatpush1.msra.mxu0 0.0
      %1909 = vmatprep.subr.mxu0 0.0
      %1910 = vmatpush1.msra.mxu0 0.0
      %1911 = vmatprep.subr.mxu0 0.0
      %1912 = vmatpush1.msra.mxu0 0.0
      %1913 = vmatprep.subr.mxu0 0.0
      %1914 = vmatpush1.msra.mxu0 0.0
      %1915 = vmatprep.subr.mxu0 0.0
      %1916 = vmatpush1.msra.mxu0 0.0
      %1917 = vmatprep.subr.mxu0 0.0
      %1918 = vmatpush1.msra.mxu0 0.0
      %1919 = vmatprep.subr.mxu0 0.0
      %1920 = vmatpush1.msra.mxu0 0.0
      %1921 = vmatprep.subr.mxu0 0.0
      %1922 = vmatpush1.msra.mxu0 0.0
      %1923 = vmatprep.subr.mxu0 0.0
      %1924 = vmatpush1.msra.mxu0 0.0
      %1925 = vmatprep.subr.mxu0 0.0
      %1926 = vmatpush1.msra.mxu0 0.0
      %1927 = vmatprep.subr.mxu0 0.0
      %1928 = vmatpush1.msra.mxu0 0.0
      %1929 = vmatprep.subr.mxu0 0.0
      %1930 = vmatpush1.msra.mxu0 0.0
      %1931 = vmatprep.subr.mxu0 0.0
      %1932 = vmatpush1.msra.mxu0 0.0
      %1933 = vmatprep.subr.mxu0 0.0
      %1934 = vmatpush1.msra.mxu0 0.0
      %1935 = vmatprep.subr.mxu0 0.0
      %1936 = vmatpush1.msra.mxu0 0.0
      %1937 = vmatprep.subr.mxu0 0.0
      %1938 = vmatpush1.msra.mxu0 0.0
      %1939 = vmatprep.subr.mxu0 0.0
      %1940 = vmatpush1.msra.mxu0 0.0
      %1941 = vmatprep.mubr.f32.mxu0 0.0
      %1942 = vmatmul.mubr.f32.gmra.mrb[0].mxu0 %v1866
      %v1943 = vpop.f32.mrb[0].mxu0
      %v1944 = vadd.f32 0.0, %v1943
      %v1945 = vpop.f32.mrb[0].mxu0
      %1946 = vmatprep.mubr.f32.mxu0 0.0
      %1947 = vmatmul.mubr.f32.gmra.mrb[0].mxu0 %v1869
      %v1948 = vpop.f32.mrb[0].mxu0
      %v1949 = vadd.f32 0.0, %v1948
      %v1950 = vpop.f32.mrb[0].mxu0
      %1951 = vmatprep.mubr.f32.mxu0 0.0
      %1952 = vmatmul.mubr.f32.gmra.mrb[0].mxu0 %v1872
      %v1953 = vpop.f32.mrb[0].mxu0
      %v1954 = vadd.f32 0.0, %v1953
      %v1955 = vpop.f32.mrb[0].mxu0
      %1956 = vmatprep.mubr.f32.mxu0 0.0
      %1957 = vmatmul.mubr.f32.gmra.mrb[0].mxu0 %v1875
      %v1958 = vpop.f32.mrb[0].mxu0
      %v1959 = vadd.f32 0.0, %v1958
      %v1960 = vpop.f32.mrb[0].mxu0
      %1961 = vdwg.mxu0
      %v1962 = vld [vmem:[%s12 + $0x40] sm:$0xff]
      %v1963 = vld [vmem:[%s12 + $0x48] sm:$0xff]
      %v1964 = vld [vmem:[%s12 + $0x50] sm:$0xff]
      %v1965 = vld [vmem:[%s12 + $0x58] sm:$0xff]
      %v1967 = vsel %vm953, %v1944, 0
      %v1970 = vsel %vm953, %v1949, 0
      %v1973 = vsel %vm953, %v1954, 0
      %v1976 = vsel %vm953, %v1959, 0
      %1978 = vmatprep.subr.mxu0 0.0
      %1979 = vmatpush1.msra.mxu0 %v1962
      %1980 = vmatprep.subr.mxu0 0.0
      %1981 = vmatpush1.msra.mxu0 %v1963
      %1982 = vmatprep.subr.mxu0 0.0
      %1983 = vmatpush1.msra.mxu0 %v1964
      %1984 = vmatprep.subr.mxu0 0.0
      %1985 = vmatpush1.msra.mxu0 %v1965
      %1986 = vmatprep.subr.mxu0 0.0
      %1987 = vmatpush1.msra.mxu0 0.0
      %1988 = vmatprep.subr.mxu0 0.0
      %1989 = vmatpush1.msra.mxu0 0.0
      %1990 = vmatprep.subr.mxu0 0.0
      %1991 = vmatpush1.msra.mxu0 0.0
      %1992 = vmatprep.subr.mxu0 0.0
      %1993 = vmatpush1.msra.mxu0 0.0
      %1994 = vmatprep.subr.mxu0 0.0
      %1995 = vmatpush1.msra.mxu0 0.0
      %1996 = vmatprep.subr.mxu0 0.0
      %1997 = vmatpush1.msra.mxu0 0.0
      %1998 = vmatprep.subr.mxu0 0.0
      %1999 = vmatpush1.msra.mxu0 0.0
      %2000 = vmatprep.subr.mxu0 0.0
      %2001 = vmatpush1.msra.mxu0 0.0
      %2002 = vmatprep.subr.mxu0 0.0
      %2003 = vmatpush1.msra.mxu0 0.0
      %2004 = vmatprep.subr.mxu0 0.0
      %2005 = vmatpush1.msra.mxu0 0.0
      %2006 = vmatprep.subr.mxu0 0.0
      %2007 = vmatpush1.msra.mxu0 0.0
      %2008 = vmatprep.subr.mxu0 0.0
      %2009 = vmatpush1.msra.mxu0 0.0
      %2010 = vmatprep.subr.mxu0 0.0
      %2011 = vmatpush1.msra.mxu0 0.0
      %2012 = vmatprep.subr.mxu0 0.0
      %2013 = vmatpush1.msra.mxu0 0.0
      %2014 = vmatprep.subr.mxu0 0.0
      %2015 = vmatpush1.msra.mxu0 0.0
      %2016 = vmatprep.subr.mxu0 0.0
      %2017 = vmatpush1.msra.mxu0 0.0
      %2018 = vmatprep.subr.mxu0 0.0
      %2019 = vmatpush1.msra.mxu0 0.0
      %2020 = vmatprep.subr.mxu0 0.0
      %2021 = vmatpush1.msra.mxu0 0.0
      %2022 = vmatprep.subr.mxu0 0.0
      %2023 = vmatpush1.msra.mxu0 0.0
      %2024 = vmatprep.subr.mxu0 0.0
      %2025 = vmatpush1.msra.mxu0 0.0
      %2026 = vmatprep.subr.mxu0 0.0
      %2027 = vmatpush1.msra.mxu0 0.0
      %2028 = vmatprep.subr.mxu0 0.0
      %2029 = vmatpush1.msra.mxu0 0.0
      %2030 = vmatprep.subr.mxu0 0.0
      %2031 = vmatpush1.msra.mxu0 0.0
      %2032 = vmatprep.subr.mxu0 0.0
      %2033 = vmatpush1.msra.mxu0 0.0
      %2034 = vmatprep.subr.mxu0 0.0
      %2035 = vmatpush1.msra.mxu0 0.0
      %2036 = vmatprep.subr.mxu0 0.0
      %2037 = vmatpush1.msra.mxu0 0.0
      %2038 = vmatprep.subr.mxu0 0.0
      %2039 = vmatpush1.msra.mxu0 0.0
      %2040 = vmatprep.subr.mxu0 0.0
      %2041 = vmatpush1.msra.mxu0 0.0
      %2042 = vmatprep.mubr.f32.mxu0 0.0
      %2043 = vmatmul.mubr.f32.gmra.mrb[0].mxu0 %v1967
      %v2044 = vpop.f32.mrb[0].mxu0
      %v2045 = vadd.f32 0.0, %v2044
      %v2046 = vpop.f32.mrb[0].mxu0
      %2047 = vmatprep.mubr.f32.mxu0 0.0
      %2048 = vmatmul.mubr.f32.gmra.mrb[0].mxu0 %v1970
      %v2049 = vpop.f32.mrb[0].mxu0
      %v2050 = vadd.f32 0.0, %v2049
      %v2051 = vpop.f32.mrb[0].mxu0
      %2052 = vmatprep.mubr.f32.mxu0 0.0
      %2053 = vmatmul.mubr.f32.gmra.mrb[0].mxu0 %v1973
      %v2054 = vpop.f32.mrb[0].mxu0
      %v2055 = vadd.f32 0.0, %v2054
      %v2056 = vpop.f32.mrb[0].mxu0
      %2057 = vmatprep.mubr.f32.mxu0 0.0
      %2058 = vmatmul.mubr.f32.gmra.mrb[0].mxu0 %v1976
      %v2059 = vpop.f32.mrb[0].mxu0
      %v2060 = vadd.f32 0.0, %v2059
      %v2061 = vpop.f32.mrb[0].mxu0
      %2062 = vdwg.mxu0
      %v2063 = vadd.f32 %v1670, %v2045
      %v2064 = vadd.f32 %v1675, %v2050
      %v2065 = vadd.f32 %v1680, %v2055
      %v2066 = vadd.f32 %v1685, %v2060
      %2067 = vrot.lane.b32.xlu0 %v719, 32
      %v2068 = vpop.permute.xlu0 %2067
      %2069 = vrot.lane.b32.xlu0 %v724, 32
      %v2070 = vpop.permute.xlu0 %2069
      %2071 = vrot.lane.b32.xlu0 %v729, 32
      %v2072 = vpop.permute.xlu0 %2071
      %2073 = vrot.lane.b32.xlu0 %v734, 32
      %v2074 = vpop.permute.xlu0 %2073
      %2075 = vrot.lane.b32.xlu0 %v827, 32
      %v2076 = vpop.permute.xlu0 %2075
      %2077 = vrot.lane.b32.xlu0 %v832, 32
      %v2078 = vpop.permute.xlu0 %2077
      %2079 = vrot.lane.b32.xlu0 %v837, 32
      %v2080 = vpop.permute.xlu0 %2079
      %2081 = vrot.lane.b32.xlu0 %v842, 32
      %v2082 = vpop.permute.xlu0 %2081
      %v2083 = vsel %vm953, %v2068, 0
      %v2085 = vsel %vm953, %v2070, 0
      %v2087 = vsel %vm953, %v2072, 0
      %v2089 = vsel %vm953, %v2074, 0
      %v2091 = vsel %vm953, %v2076, 0
      %v2093 = vsel %vm953, %v2078, 0
      %v2095 = vsel %vm953, %v2080, 0
      %v2097 = vsel %vm953, %v2082, 0
      %2099 = vmatprep.subr.mxu0 0.0
      %2100 = vmatpush1.xpose.msra.mxu0 %v2091
      %2101 = vmatprep.subr.mxu0 0.0
      %2102 = vmatpush1.xpose.msra.mxu0 %v2093
      %2103 = vmatprep.subr.mxu0 0.0
      %2104 = vmatpush1.xpose.msra.mxu0 %v2095
      %2105 = vmatprep.subr.mxu0 0.0
      %2106 = vmatpush1.xpose.msra.mxu0 %v2097
      %2107 = vmatprep.subr.mxu0 0.0
      %2108 = vmatpush1.xpose.msra.mxu0 0.0
      %2109 = vmatprep.subr.mxu0 0.0
      %2110 = vmatpush1.xpose.msra.mxu0 0.0
      %2111 = vmatprep.subr.mxu0 0.0
      %2112 = vmatpush1.xpose.msra.mxu0 0.0
      %2113 = vmatprep.subr.mxu0 0.0
      %2114 = vmatpush1.xpose.msra.mxu0 0.0
      %2115 = vmatprep.subr.mxu0 0.0
      %2116 = vmatpush1.xpose.msra.mxu0 0.0
      %2117 = vmatprep.subr.mxu0 0.0
      %2118 = vmatpush1.xpose.msra.mxu0 0.0
      %2119 = vmatprep.subr.mxu0 0.0
      %2120 = vmatpush1.xpose.msra.mxu0 0.0
      %2121 = vmatprep.subr.mxu0 0.0
      %2122 = vmatpush1.xpose.msra.mxu0 0.0
      %2123 = vmatprep.subr.mxu0 0.0
      %2124 = vmatpush1.xpose.msra.mxu0 0.0
      %2125 = vmatprep.subr.mxu0 0.0
      %2126 = vmatpush1.xpose.msra.mxu0 0.0
      %2127 = vmatprep.subr.mxu0 0.0
      %2128 = vmatpush1.xpose.msra.mxu0 0.0
      %2129 = vmatprep.subr.mxu0 0.0
      %2130 = vmatpush1.xpose.msra.mxu0 0.0
      %2131 = vmatprep.subr.mxu0 0.0
      %2132 = vmatpush1.xpose.msra.mxu0 0.0
      %2133 = vmatprep.subr.mxu0 0.0
      %2134 = vmatpush1.xpose.msra.mxu0 0.0
      %2135 = vmatprep.subr.mxu0 0.0
      %2136 = vmatpush1.xpose.msra.mxu0 0.0
      %2137 = vmatprep.subr.mxu0 0.0
      %2138 = vmatpush1.xpose.msra.mxu0 0.0
      %2139 = vmatprep.subr.mxu0 0.0
      %2140 = vmatpush1.xpose.msra.mxu0 0.0
      %2141 = vmatprep.subr.mxu0 0.0
      %2142 = vmatpush1.xpose.msra.mxu0 0.0
      %2143 = vmatprep.subr.mxu0 0.0
      %2144 = vmatpush1.xpose.msra.mxu0 0.0
      %2145 = vmatprep.subr.mxu0 0.0
      %2146 = vmatpush1.xpose.msra.mxu0 0.0
      %2147 = vmatprep.subr.mxu0 0.0
      %2148 = vmatpush1.xpose.msra.mxu0 0.0
      %2149 = vmatprep.subr.mxu0 0.0
      %2150 = vmatpush1.xpose.msra.mxu0 0.0
      %2151 = vmatprep.subr.mxu0 0.0
      %2152 = vmatpush1.xpose.msra.mxu0 0.0
      %2153 = vmatprep.subr.mxu0 0.0
      %2154 = vmatpush1.xpose.msra.mxu0 0.0
      %2155 = vmatprep.subr.mxu0 0.0
      %2156 = vmatpush1.xpose.msra.mxu0 0.0
      %2157 = vmatprep.subr.mxu0 0.0
      %2158 = vmatpush1.xpose.msra.mxu0 0.0
      %2159 = vmatprep.subr.mxu0 0.0
      %2160 = vmatpush1.xpose.msra.mxu0 0.0
      %2161 = vmatprep.subr.mxu0 0.0
      %2162 = vmatpush1.xpose.msra.mxu0 0.0
      %2163 = vmatprep.mubr.f32.mxu0 0.0
      %2164 = vmatmul.mubr.f32.gmra.mrb[0].mxu0 %v2083
      %v2165 = vpop.f32.mrb[0].mxu0
      %v2166 = vadd.f32 0.0, %v2165
      %v2167 = vpop.f32.mrb[0].mxu0
      %2168 = vmatprep.mubr.f32.mxu0 0.0
      %2169 = vmatmul.mubr.f32.gmra.mrb[0].mxu0 %v2085
      %v2170 = vpop.f32.mrb[0].mxu0
      %v2171 = vadd.f32 0.0, %v2170
      %v2172 = vpop.f32.mrb[0].mxu0
      %2173 = vmatprep.mubr.f32.mxu0 0.0
      %2174 = vmatmul.mubr.f32.gmra.mrb[0].mxu0 %v2087
      %v2175 = vpop.f32.mrb[0].mxu0
      %v2176 = vadd.f32 0.0, %v2175
      %v2177 = vpop.f32.mrb[0].mxu0
      %2178 = vmatprep.mubr.f32.mxu0 0.0
      %2179 = vmatmul.mubr.f32.gmra.mrb[0].mxu0 %v2089
      %v2180 = vpop.f32.mrb[0].mxu0
      %v2181 = vadd.f32 0.0, %v2180
      %v2182 = vpop.f32.mrb[0].mxu0
      %2183 = vdwg.mxu0
      %v2184 = vmul.f32 %v2166, 0.17677669
      %v2185 = vmul.f32 %v2171, 0.17677669
      %v2186 = vmul.f32 %v2176, 0.17677669
      %v2187 = vmul.f32 %v2181, 0.17677669
      %v2188 = vsel %vm953, %v2184, -inf
      %2189 = vmax.xlane.f32.xlu0 %v2188
      %v2190 = vpop.xlane.xlu0 %2189
      %v2191 = vsel %vm953, %v2185, -inf
      %2192 = vmax.xlane.f32.xlu0 %v2191
      %v2193 = vpop.xlane.xlu0 %2192
      %v2194 = vsel %vm953, %v2186, -inf
      %2195 = vmax.xlane.f32.xlu0 %v2194
      %v2196 = vpop.xlane.xlu0 %2195
      %v2197 = vsel %vm953, %v2187, -inf
      %2198 = vmax.xlane.f32.xlu0 %v2197
      %v2199 = vpop.xlane.xlu0 %2198
      %v2200 = vsub.f32 %v2184, %v2190
      %v2201 = vsub.f32 %v2185, %v2193
      %v2202 = vsub.f32 %v2186, %v2196
      %v2203 = vsub.f32 %v2187, %v2199
      %v2204 = vmul.f32 %v2200, 1.442695
      %v2205 = vpow.pop %v2204
      %v2206 = vmul.f32 %v2201, 1.442695
      %v2207 = vpow.pop %v2206
      %v2208 = vmul.f32 %v2202, 1.442695
      %v2209 = vpow.pop %v2208
      %v2210 = vmul.f32 %v2203, 1.442695
      %v2211 = vpow.pop %v2210
      %v2212 = vsel %vm953, %v2205, 0.0
      %2213 = vadd.xlane.f32.xlu0 %v2212
      %v2214 = vpop.xlane.xlu0 %2213
      %v2215 = vsel %vm953, %v2207, 0.0
      %2216 = vadd.xlane.f32.xlu0 %v2215
      %v2217 = vpop.xlane.xlu0 %2216
      %v2218 = vsel %vm953, %v2209, 0.0
      %2219 = vadd.xlane.f32.xlu0 %v2218
      %v2220 = vpop.xlane.xlu0 %2219
      %v2221 = vsel %vm953, %v2211, 0.0
      %2222 = vadd.xlane.f32.xlu0 %v2221
      %v2223 = vpop.xlane.xlu0 %2222
      %v2224 = vrcp.pop %v2214
      %v2225 = vmul.f32 %v2205, %v2224
      %v2226 = vrcp.pop %v2217
      %v2227 = vmul.f32 %v2207, %v2226
      %v2228 = vrcp.pop %v2220
      %v2229 = vmul.f32 %v2209, %v2228
      %v2230 = vrcp.pop %v2223
      %v2231 = vmul.f32 %v2211, %v2230
      %2232 = vrot.lane.b32.xlu0 %v935, 32
      %v2233 = vpop.permute.xlu0 %2232
      %2234 = vrot.lane.b32.xlu0 %v940, 32
      %v2235 = vpop.permute.xlu0 %2234
      %2236 = vrot.lane.b32.xlu0 %v945, 32
      %v2237 = vpop.permute.xlu0 %2236
      %2238 = vrot.lane.b32.xlu0 %v950, 32
      %v2239 = vpop.permute.xlu0 %2238
      %v2245 = vsel %vm953, %v2225, 0
      %v2248 = vsel %vm953, %v2227, 0
      %v2251 = vsel %vm953, %v2229, 0
      %v2254 = vsel %vm953, %v2231, 0
      %2256 = vmatprep.subr.mxu0 0.0
      %2257 = vmatpush1.msra.mxu0 %v2233
      %2258 = vmatprep.subr.mxu0 0.0
      %2259 = vmatpush1.msra.mxu0 %v2235
      %2260 = vmatprep.subr.mxu0 0.0
      %2261 = vmatpush1.msra.mxu0 %v2237
      %2262 = vmatprep.subr.mxu0 0.0
      %2263 = vmatpush1.msra.mxu0 %v2239
      %2264 = vmatprep.subr.mxu0 0.0
      %2265 = vmatpush1.msra.mxu0 0.0
      %2266 = vmatprep.subr.mxu0 0.0
      %2267 = vmatpush1.msra.mxu0 0.0
      %2268 = vmatprep.subr.mxu0 0.0
      %2269 = vmatpush1.msra.mxu0 0.0
      %2270 = vmatprep.subr.mxu0 0.0
      %2271 = vmatpush1.msra.mxu0 0.0
      %2272 = vmatprep.subr.mxu0 0.0
      %2273 = vmatpush1.msra.mxu0 0.0
      %2274 = vmatprep.subr.mxu0 0.0
      %2275 = vmatpush1.msra.mxu0 0.0
      %2276 = vmatprep.subr.mxu0 0.0
      %2277 = vmatpush1.msra.mxu0 0.0
      %2278 = vmatprep.subr.mxu0 0.0
      %2279 = vmatpush1.msra.mxu0 0.0
      %2280 = vmatprep.subr.mxu0 0.0
      %2281 = vmatpush1.msra.mxu0 0.0
      %2282 = vmatprep.subr.mxu0 0.0
      %2283 = vmatpush1.msra.mxu0 0.0
      %2284 = vmatprep.subr.mxu0 0.0
      %2285 = vmatpush1.msra.mxu0 0.0
      %2286 = vmatprep.subr.mxu0 0.0
      %2287 = vmatpush1.msra.mxu0 0.0
      %2288 = vmatprep.subr.mxu0 0.0
      %2289 = vmatpush1.msra.mxu0 0.0
      %2290 = vmatprep.subr.mxu0 0.0
      %2291 = vmatpush1.msra.mxu0 0.0
      %2292 = vmatprep.subr.mxu0 0.0
      %2293 = vmatpush1.msra.mxu0 0.0
      %2294 = vmatprep.subr.mxu0 0.0
      %2295 = vmatpush1.msra.mxu0 0.0
      %2296 = vmatprep.subr.mxu0 0.0
      %2297 = vmatpush1.msra.mxu0 0.0
      %2298 = vmatprep.subr.mxu0 0.0
      %2299 = vmatpush1.msra.mxu0 0.0
      %2300 = vmatprep.subr.mxu0 0.0
      %2301 = vmatpush1.msra.mxu0 0.0
      %2302 = vmatprep.subr.mxu0 0.0
      %2303 = vmatpush1.msra.mxu0 0.0
      %2304 = vmatprep.subr.mxu0 0.0
      %2305 = vmatpush1.msra.mxu0 0.0
      %2306 = vmatprep.subr.mxu0 0.0
      %2307 = vmatpush1.msra.mxu0 0.0
      %2308 = vmatprep.subr.mxu0 0.0
      %2309 = vmatpush1.msra.mxu0 0.0
      %2310 = vmatprep.subr.mxu0 0.0
      %2311 = vmatpush1.msra.mxu0 0.0
      %2312 = vmatprep.subr.mxu0 0.0
      %2313 = vmatpush1.msra.mxu0 0.0
      %2314 = vmatprep.subr.mxu0 0.0
      %2315 = vmatpush1.msra.mxu0 0.0
      %2316 = vmatprep.subr.mxu0 0.0
      %2317 = vmatpush1.msra.mxu0 0.0
      %2318 = vmatprep.subr.mxu0 0.0
      %2319 = vmatpush1.msra.mxu0 0.0
      %2320 = vmatprep.mubr.f32.mxu0 0.0
      %2321 = vmatmul.mubr.f32.gmra.mrb[0].mxu0 %v2245
      %v2322 = vpop.f32.mrb[0].mxu0
      %v2323 = vadd.f32 0.0, %v2322
      %v2324 = vpop.f32.mrb[0].mxu0
      %2325 = vmatprep.mubr.f32.mxu0 0.0
      %2326 = vmatmul.mubr.f32.gmra.mrb[0].mxu0 %v2248
      %v2327 = vpop.f32.mrb[0].mxu0
      %v2328 = vadd.f32 0.0, %v2327
      %v2329 = vpop.f32.mrb[0].mxu0
      %2330 = vmatprep.mubr.f32.mxu0 0.0
      %2331 = vmatmul.mubr.f32.gmra.mrb[0].mxu0 %v2251
      %v2332 = vpop.f32.mrb[0].mxu0
      %v2333 = vadd.f32 0.0, %v2332
      %v2334 = vpop.f32.mrb[0].mxu0
      %2335 = vmatprep.mubr.f32.mxu0 0.0
      %2336 = vmatmul.mubr.f32.gmra.mrb[0].mxu0 %v2254
      %v2337 = vpop.f32.mrb[0].mxu0
      %v2338 = vadd.f32 0.0, %v2337
      %v2339 = vpop.f32.mrb[0].mxu0
      %2340 = vdwg.mxu0
      %v2341 = vld [vmem:[%s12 + $0x60] sm:$0xff]
      %v2342 = vld [vmem:[%s12 + $0x68] sm:$0xff]
      %v2343 = vld [vmem:[%s12 + $0x70] sm:$0xff]
      %v2344 = vld [vmem:[%s12 + $0x78] sm:$0xff]
      %v2346 = vsel %vm953, %v2323, 0
      %v2349 = vsel %vm953, %v2328, 0
      %v2352 = vsel %vm953, %v2333, 0
      %v2355 = vsel %vm953, %v2338, 0
      %2357 = vmatprep.subr.mxu0 0.0
      %2358 = vmatpush1.msra.mxu0 %v2341
      %2359 = vmatprep.subr.mxu0 0.0
      %2360 = vmatpush1.msra.mxu0 %v2342
      %2361 = vmatprep.subr.mxu0 0.0
      %2362 = vmatpush1.msra.mxu0 %v2343
      %2363 = vmatprep.subr.mxu0 0.0
      %2364 = vmatpush1.msra.mxu0 %v2344
      %2365 = vmatprep.subr.mxu0 0.0
      %2366 = vmatpush1.msra.mxu0 0.0
      %2367 = vmatprep.subr.mxu0 0.0
      %2368 = vmatpush1.msra.mxu0 0.0
      %2369 = vmatprep.subr.mxu0 0.0
      %2370 = vmatpush1.msra.mxu0 0.0
      %2371 = vmatprep.subr.mxu0 0.0
      %2372 = vmatpush1.msra.mxu0 0.0
      %2373 = vmatprep.subr.mxu0 0.0
      %2374 = vmatpush1.msra.mxu0 0.0
      %2375 = vmatprep.subr.mxu0 0.0
      %2376 = vmatpush1.msra.mxu0 0.0
      %2377 = vmatprep.subr.mxu0 0.0
      %2378 = vmatpush1.msra.mxu0 0.0
      %2379 = vmatprep.subr.mxu0 0.0
      %2380 = vmatpush1.msra.mxu0 0.0
      %2381 = vmatprep.subr.mxu0 0.0
      %2382 = vmatpush1.msra.mxu0 0.0
      %2383 = vmatprep.subr.mxu0 0.0
      %2384 = vmatpush1.msra.mxu0 0.0
      %2385 = vmatprep.subr.mxu0 0.0
      %2386 = vmatpush1.msra.mxu0 0.0
      %2387 = vmatprep.subr.mxu0 0.0
      %2388 = vmatpush1.msra.mxu0 0.0
      %2389 = vmatprep.subr.mxu0 0.0
      %2390 = vmatpush1.msra.mxu0 0.0
      %2391 = vmatprep.subr.mxu0 0.0
      %2392 = vmatpush1.msra.mxu0 0.0
      %2393 = vmatprep.subr.mxu0 0.0
      %2394 = vmatpush1.msra.mxu0 0.0
      %2395 = vmatprep.subr.mxu0 0.0
      %2396 = vmatpush1.msra.mxu0 0.0
      %2397 = vmatprep.subr.mxu0 0.0
      %2398 = vmatpush1.msra.mxu0 0.0
      %2399 = vmatprep.subr.mxu0 0.0
      %2400 = vmatpush1.msra.mxu0 0.0
      %2401 = vmatprep.subr.mxu0 0.0
      %2402 = vmatpush1.msra.mxu0 0.0
      %2403 = vmatprep.subr.mxu0 0.0
      %2404 = vmatpush1.msra.mxu0 0.0
      %2405 = vmatprep.subr.mxu0 0.0
      %2406 = vmatpush1.msra.mxu0 0.0
      %2407 = vmatprep.subr.mxu0 0.0
      %2408 = vmatpush1.msra.mxu0 0.0
      %2409 = vmatprep.subr.mxu0 0.0
      %2410 = vmatpush1.msra.mxu0 0.0
      %2411 = vmatprep.subr.mxu0 0.0
      %2412 = vmatpush1.msra.mxu0 0.0
      %2413 = vmatprep.subr.mxu0 0.0
      %2414 = vmatpush1.msra.mxu0 0.0
      %2415 = vmatprep.subr.mxu0 0.0
      %2416 = vmatpush1.msra.mxu0 0.0
      %2417 = vmatprep.subr.mxu0 0.0
      %2418 = vmatpush1.msra.mxu0 0.0
      %2419 = vmatprep.subr.mxu0 0.0
      %2420 = vmatpush1.msra.mxu0 0.0
      %2421 = vmatprep.mubr.f32.mxu0 0.0
      %2422 = vmatmul.mubr.f32.gmra.mrb[0].mxu0 %v2346
      %v2423 = vpop.f32.mrb[0].mxu0
      %v2424 = vadd.f32 0.0, %v2423
      %v2425 = vpop.f32.mrb[0].mxu0
      %2426 = vmatprep.mubr.f32.mxu0 0.0
      %2427 = vmatmul.mubr.f32.gmra.mrb[0].mxu0 %v2349
      %v2428 = vpop.f32.mrb[0].mxu0
      %v2429 = vadd.f32 0.0, %v2428
      %v2430 = vpop.f32.mrb[0].mxu0
      %2431 = vmatprep.mubr.f32.mxu0 0.0
      %2432 = vmatmul.mubr.f32.gmra.mrb[0].mxu0 %v2352
      %v2433 = vpop.f32.mrb[0].mxu0
      %v2434 = vadd.f32 0.0, %v2433
      %v2435 = vpop.f32.mrb[0].mxu0
      %2436 = vmatprep.mubr.f32.mxu0 0.0
      %2437 = vmatmul.mubr.f32.gmra.mrb[0].mxu0 %v2355
      %v2438 = vpop.f32.mrb[0].mxu0
      %v2439 = vadd.f32 0.0, %v2438
      %v2440 = vpop.f32.mrb[0].mxu0
      %2441 = vdwg.mxu0
      %v2442 = vadd.f32 %v2063, %v2424
      %v2443 = vadd.f32 %v2064, %v2429
      %v2444 = vadd.f32 %v2065, %v2434
      %v2445 = vadd.f32 %v2066, %v2439
      %v2446 = vld [vmem:[%s13] sm:$0x1]
      %v2448 = vlaneseq
      %v2449 = vshrl.u32 %v2448, 7
      %v2450 = vsub.s32 0, %v2449
      %v2451 = vrot.slane %v2446, %v2450
      %v2453 = vadd.f32 %v2442, %v2451
      %v2454 = vadd.f32 %v2443, %v2451
      %v2455 = vadd.f32 %v2444, %v2451
      %v2456 = vadd.f32 %v2445, %v2451
      %v2457 = vadd.f32 %v2453, %v488
      %v2458 = vadd.f32 %v2454, %v489
      %v2459 = vadd.f32 %v2455, %v490
      %v2460 = vadd.f32 %v2456, %v491
      %2461 = vst [vmem:[%s487] sm:$0xff] %v2457
      %2462 = vst [vmem:[%s487 + $0x8] sm:$0xff] %v2458
      %2463 = vst [vmem:[%s487 + $0x10] sm:$0xff] %v2459
      %2464 = vst [vmem:[%s487 + $0x18] sm:$0xff] %v2460
      %p2465 = scmp.lt.s32.totalorder %s25, 1
      %s2466 = scalar_select %p2465, %s25, 1
      %s2467 = smul.addr %s2466, 4
      %s2468 = smul.addr %s2467, 8
      %s2469 = scalar_lea.vmem %s14, %s2468
      // Predicated region
      $region77: #{_lambda_.12} parent=75 // pred_check
        %p2470 = pneg %p347
      $region78: #{_lambda_.12} parent=75 // pred_check_branch
        %2472 = sbr.rel (%p2470) target = $region80
      $region79: #{_lambda_.12} parent=75 // pred_region
        _
      $region80: #{_lambda_.12} parent=75 // pred_fallthru
        _
    $region76: #{_lambda_.12} parent=5 // pred_fallthru
      _
    %p2473 = scmp.le.s32.totalorder 2, %s20
    // Predicated region
    $region81: #{_lambda_.12} parent=5 // pred_check
      %p2474 = pneg %p2473
    $region82: #{_lambda_.12} parent=5 // pred_check_branch
      %2476 = sbr.rel (%p2474) target = $region84
    $region83: #{_lambda_.12} parent=5 // pred_region
      %s2477 = ssub.s32 %s20, 2
      // Predicated region
      $region85: #{_lambda_.12} parent=83 // pred_check
        %p2478 = pneg %p353
      $region86: #{_lambda_.12} parent=83 // pred_check_branch
        %2480 = sbr.rel (%p2478) target = $region88
      $region87: #{_lambda_.12} parent=83 // pred_region
        %p2481 = scmp.lt.s32.totalorder %s26, 1
        %s2482 = scalar_select %p2481, %s26, 1
        %s2483 = smul.addr %s2482, 4
        %s2484 = smul.addr %s2483, 8
        %s2485 = scalar_lea.vmem %s14, %s2484
      $region88: #{_lambda_.12} parent=83 // pred_fallthru
        _
    $region84: #{_lambda_.12} parent=5 // pred_fallthru
      _
  $region6: #{_lambda_.12} parent=0 // loop_footer
    %s24 = sadd.s32 1, %s20
  $region7: #{_lambda_.12} parent=0 // loop_footer_branch
    %19 = sbr.rel target = $region3
  $region8: #{_lambda_.12} parent=0 // loop_exit
    _

// kernel: _lambda_.10
$region0: #{_lambda_.10}
  #allocation0 [shape = 'u32[]', space=smem, size = 0x4, offset = 0x4, fixed_abs, tag = 'smem constant byte address 0x4 - core index']
  #allocation1 [shape = 'u32[144,128]{1,0:T(1,128)}', space=vmem, size = 0x12000, scoped, tag = 'internal scratch']
  %s0 = inlined_call_operand.vmem [shape: f32[2,32,128], index: 0, kind: input, shape index: {}]
  %s1 = inlined_call_operand.vmem [shape: f32[2,256,32], index: 1, kind: input, shape index: {}]
  %s2 = inlined_call_operand.vmem [shape: f32[1,128], index: 2, kind: input, shape index: {}]
  %s3 = inlined_call_operand.vmem [shape: f32[1,128], index: 3, kind: input, shape index: {}]
  %s4 = inlined_call_operand.vmem [shape: f32[1,32], index: 4, kind: input, shape index: {}]
  %s5 = inlined_call_operand.vmem [shape: f32[1,32], index: 5, kind: input, shape index: {}]
  %s6 = inlined_call_operand.vmem [shape: f32[128,128], index: 6, kind: input, shape index: {}]
  %s7 = inlined_call_operand.vmem [shape: f32[1,128], index: 7, kind: input, shape index: {}]
  %s8 = inlined_call_operand.vmem [shape: f32[32,128], index: 8, kind: input, shape index: {}]
  %s9 = inlined_call_operand.vmem [shape: f32[1,128], index: 9, kind: input, shape index: {}]
  %s10 = inlined_call_operand.vmem [shape: f32[32,128], index: 10, kind: input, shape index: {}]
  %s11 = inlined_call_operand.vmem [shape: f32[1,128], index: 11, kind: input, shape index: {}]
  %s12 = inlined_call_operand.vmem [shape: f32[128,128], index: 12, kind: input, shape index: {}]
  %s13 = inlined_call_operand.vmem [shape: f32[1,128], index: 13, kind: input, shape index: {}]
  %s14 = inlined_call_operand.vmem [shape: f32[2,32,128], index: 14, kind: output, shape index: {}]
  %s15 = sld [smem:[#allocation0]]
  $region89: #{_lambda_.10} parent=0
    _
  %s17 = ssub.s32 1, %s15
  %s18 = scalar_select 0, %s17, %s15
  loop: start=0, step=1, limit=4
  $region2: #{_lambda_.10} parent=0 // loop_pre_header
    _
  $region3: #{_lambda_.10} parent=0 // loop_header
    %s20 = sphi 0, %s24
    %p21 = scmp.ge.s32.totalorder %s20, 4
    %s30 = sphi 0, %s32
    %s33 = sphi 0, %s30
    %s34 = sphi 0, %s33
    %s50 = sphi 0, %s34
    %s56 = sphi 0, %s58
    %s59 = sphi 0, %s56
    %s60 = sphi 0, %s59
    %s76 = sphi 0, %s60
    %s80 = sphi 0, %s80
    %s82 = sphi 0, %s80
    %s83 = sphi 0, %s82
    %s97 = sphi 0, %s83
    %s101 = sphi 0, %s101
    %s103 = sphi 0, %s101
    %s104 = sphi 0, %s103
    %s118 = sphi 0, %s104
    %s122 = sphi 0, %s122
    %s124 = sphi 0, %s122
    %s125 = sphi 0, %s124
    %s139 = sphi 0, %s125
    %s143 = sphi 0, %s143
    %s145 = sphi 0, %s143
    %s146 = sphi 0, %s145
    %s160 = sphi 0, %s146
    %s164 = sphi 0, %s164
    %s166 = sphi 0, %s164
    %s167 = sphi 0, %s166
    %s181 = sphi 0, %s167
    %s185 = sphi 0, %s185
    %s187 = sphi 0, %s185
    %s188 = sphi 0, %s187
    %s202 = sphi 0, %s188
    %s206 = sphi 0, %s206
    %s208 = sphi 0, %s206
    %s209 = sphi 0, %s208
    %s223 = sphi 0, %s209
    %s227 = sphi 0, %s227
    %s229 = sphi 0, %s227
    %s230 = sphi 0, %s229
    %s244 = sphi 0, %s230
    %s248 = sphi 0, %s248
    %s250 = sphi 0, %s248
    %s251 = sphi 0, %s250
    %s265 = sphi 0, %s251
    %s269 = sphi 0, %s269
    %s271 = sphi 0, %s269
    %s272 = sphi 0, %s271
    %s286 = sphi 0, %s272
    %s290 = sphi 0, %s290
    %s292 = sphi 0, %s290
    %s293 = sphi 0, %s292
    %s307 = sphi 0, %s293
    %s311 = sphi 0, %s311
    %s313 = sphi 0, %s311
    %s314 = sphi 0, %s313
    %s328 = sphi 0, %s314
    %s334 = sphi 0, %s336
    %s337 = sphi 0, %s334
    %s338 = sphi 0, %s337
    %s354 = sphi 0, %s338
  $region4: #{_lambda_.10} parent=0 // loop_header_branch
    %23 = sbr.rel (%p21) target = $region8
  $region5: #{_lambda_.10} parent=0 // loop_body
    %s25 = ssub.s32 %s20, 1
    %s26 = ssub.s32 %s20, 2
    %s27 = sadd.s32 %s20, 1
    %s28 = ssub.s32 %s20, %s27
    %p29 = scmp.eq.s32.totalorder %s28, 0
    %s31 = sadd.s32 %s30, 1
    %s32 = scalar_select %p29, %s30, %s31
    %p35 = pneg %p29
    %p36 = scmp.eq.s32.totalorder %s20, 1
    %p37 = por %p35, %p36
    %p38 = scmp.ne.s32.totalorder %s30, %s33
    %p39 = scmp.eq.s32.totalorder %s20, 0
    %p40 = por %p38, %p39
    %p41 = scmp.ne.s32.totalorder %s30, %s33
    %p42 = scmp.eq.s32.totalorder %s25, 1
    %p43 = por %p41, %p42
    %p44 = scmp.ne.s32.totalorder %s33, %s34
    %p45 = scmp.eq.s32.totalorder %s25, 0
    %p46 = por %p44, %p45
    %p47 = scmp.ne.s32.totalorder %s33, %s34
    %p48 = scmp.eq.s32.totalorder %s26, 1
    %p49 = por %p47, %p48
    %p51 = scmp.ne.s32.totalorder %s34, %s50
    %p52 = scmp.eq.s32.totalorder %s26, 0
    %p53 = por %p51, %p52
    %s54 = ssub.s32 %s20, %s27
    %p55 = scmp.eq.s32.totalorder %s54, 0
    %s57 = sadd.s32 %s56, 1
    %s58 = scalar_select %p55, %s56, %s57
    %p61 = pneg %p55
    %p62 = scmp.eq.s32.totalorder %s20, 1
    %p63 = por %p61, %p62
    %p64 = scmp.ne.s32.totalorder %s56, %s59
    %p65 = scmp.eq.s32.totalorder %s20, 0
    %p66 = por %p64, %p65
    %p67 = scmp.ne.s32.totalorder %s56, %s59
    %p68 = scmp.eq.s32.totalorder %s25, 1
    %p69 = por %p67, %p68
    %p70 = scmp.ne.s32.totalorder %s59, %s60
    %p71 = scmp.eq.s32.totalorder %s25, 0
    %p72 = por %p70, %p71
    %p73 = scmp.ne.s32.totalorder %s59, %s60
    %p74 = scmp.eq.s32.totalorder %s26, 1
    %p75 = por %p73, %p74
    %p77 = scmp.ne.s32.totalorder %s60, %s76
    %p78 = scmp.eq.s32.totalorder %s26, 0
    %p79 = por %p77, %p78
    %s81 = sadd.s32 %s80, 1
    %p84 = scmp.eq.s32.totalorder %s20, 1
    %p85 = scmp.ne.s32.totalorder %s80, %s82
    %p86 = scmp.eq.s32.totalorder %s20, 0
    %p87 = por %p85, %p86
    %p88 = scmp.ne.s32.totalorder %s80, %s82
    %p89 = scmp.eq.s32.totalorder %s25, 1
    %p90 = por %p88, %p89
    %p91 = scmp.ne.s32.totalorder %s82, %s83
    %p92 = scmp.eq.s32.totalorder %s25, 0
    %p93 = por %p91, %p92
    %p94 = scmp.ne.s32.totalorder %s82, %s83
    %p95 = scmp.eq.s32.totalorder %s26, 1
    %p96 = por %p94, %p95
    %p98 = scmp.ne.s32.totalorder %s83, %s97
    %p99 = scmp.eq.s32.totalorder %s26, 0
    %p100 = por %p98, %p99
    %s102 = sadd.s32 %s101, 1
    %p105 = scmp.eq.s32.totalorder %s20, 1
    %p106 = scmp.ne.s32.totalorder %s101, %s103
    %p107 = scmp.eq.s32.totalorder %s20, 0
    %p108 = por %p106, %p107
    %p109 = scmp.ne.s32.totalorder %s101, %s103
    %p110 = scmp.eq.s32.totalorder %s25, 1
    %p111 = por %p109, %p110
    %p112 = scmp.ne.s32.totalorder %s103, %s104
    %p113 = scmp.eq.s32.totalorder %s25, 0
    %p114 = por %p112, %p113
    %p115 = scmp.ne.s32.totalorder %s103, %s104
    %p116 = scmp.eq.s32.totalorder %s26, 1
    %p117 = por %p115, %p116
    %p119 = scmp.ne.s32.totalorder %s104, %s118
    %p120 = scmp.eq.s32.totalorder %s26, 0
    %p121 = por %p119, %p120
    %s123 = sadd.s32 %s122, 1
    %p126 = scmp.eq.s32.totalorder %s20, 1
    %p127 = scmp.ne.s32.totalorder %s122, %s124
    %p128 = scmp.eq.s32.totalorder %s20, 0
    %p129 = por %p127, %p128
    %p130 = scmp.ne.s32.totalorder %s122, %s124
    %p131 = scmp.eq.s32.totalorder %s25, 1
    %p132 = por %p130, %p131
    %p133 = scmp.ne.s32.totalorder %s124, %s125
    %p134 = scmp.eq.s32.totalorder %s25, 0
    %p135 = por %p133, %p134
    %p136 = scmp.ne.s32.totalorder %s124, %s125
    %p137 = scmp.eq.s32.totalorder %s26, 1
    %p138 = por %p136, %p137
    %p140 = scmp.ne.s32.totalorder %s125, %s139
    %p141 = scmp.eq.s32.totalorder %s26, 0
    %p142 = por %p140, %p141
    %s144 = sadd.s32 %s143, 1
    %p147 = scmp.eq.s32.totalorder %s20, 1
    %p148 = scmp.ne.s32.totalorder %s143, %s145
    %p149 = scmp.eq.s32.totalorder %s20, 0
    %p150 = por %p148, %p149
    %p151 = scmp.ne.s32.totalorder %s143, %s145
    %p152 = scmp.eq.s32.totalorder %s25, 1
    %p153 = por %p151, %p152
    %p154 = scmp.ne.s32.totalorder %s145, %s146
    %p155 = scmp.eq.s32.totalorder %s25, 0
    %p156 = por %p154, %p155
    %p157 = scmp.ne.s32.totalorder %s145, %s146
    %p158 = scmp.eq.s32.totalorder %s26, 1
    %p159 = por %p157, %p158
    %p161 = scmp.ne.s32.totalorder %s146, %s160
    %p162 = scmp.eq.s32.totalorder %s26, 0
    %p163 = por %p161, %p162
    %s165 = sadd.s32 %s164, 1
    %p168 = scmp.eq.s32.totalorder %s20, 1
    %p169 = scmp.ne.s32.totalorder %s164, %s166
    %p170 = scmp.eq.s32.totalorder %s20, 0
    %p171 = por %p169, %p170
    %p172 = scmp.ne.s32.totalorder %s164, %s166
    %p173 = scmp.eq.s32.totalorder %s25, 1
    %p174 = por %p172, %p173
    %p175 = scmp.ne.s32.totalorder %s166, %s167
    %p176 = scmp.eq.s32.totalorder %s25, 0
    %p177 = por %p175, %p176
    %p178 = scmp.ne.s32.totalorder %s166, %s167
    %p179 = scmp.eq.s32.totalorder %s26, 1
    %p180 = por %p178, %p179
    %p182 = scmp.ne.s32.totalorder %s167, %s181
    %p183 = scmp.eq.s32.totalorder %s26, 0
    %p184 = por %p182, %p183
    %s186 = sadd.s32 %s185, 1
    %p189 = scmp.eq.s32.totalorder %s20, 1
    %p190 = scmp.ne.s32.totalorder %s185, %s187
    %p191 = scmp.eq.s32.totalorder %s20, 0
    %p192 = por %p190, %p191
    %p193 = scmp.ne.s32.totalorder %s185, %s187
    %p194 = scmp.eq.s32.totalorder %s25, 1
    %p195 = por %p193, %p194
    %p196 = scmp.ne.s32.totalorder %s187, %s188
    %p197 = scmp.eq.s32.totalorder %s25, 0
    %p198 = por %p196, %p197
    %p199 = scmp.ne.s32.totalorder %s187, %s188
    %p200 = scmp.eq.s32.totalorder %s26, 1
    %p201 = por %p199, %p200
    %p203 = scmp.ne.s32.totalorder %s188, %s202
    %p204 = scmp.eq.s32.totalorder %s26, 0
    %p205 = por %p203, %p204
    %s207 = sadd.s32 %s206, 1
    %p210 = scmp.eq.s32.totalorder %s20, 1
    %p211 = scmp.ne.s32.totalorder %s206, %s208
    %p212 = scmp.eq.s32.totalorder %s20, 0
    %p213 = por %p211, %p212
    %p214 = scmp.ne.s32.totalorder %s206, %s208
    %p215 = scmp.eq.s32.totalorder %s25, 1
    %p216 = por %p214, %p215
    %p217 = scmp.ne.s32.totalorder %s208, %s209
    %p218 = scmp.eq.s32.totalorder %s25, 0
    %p219 = por %p217, %p218
    %p220 = scmp.ne.s32.totalorder %s208, %s209
    %p221 = scmp.eq.s32.totalorder %s26, 1
    %p222 = por %p220, %p221
    %p224 = scmp.ne.s32.totalorder %s209, %s223
    %p225 = scmp.eq.s32.totalorder %s26, 0
    %p226 = por %p224, %p225
    %s228 = sadd.s32 %s227, 1
    %p231 = scmp.eq.s32.totalorder %s20, 1
    %p232 = scmp.ne.s32.totalorder %s227, %s229
    %p233 = scmp.eq.s32.totalorder %s20, 0
    %p234 = por %p232, %p233
    %p235 = scmp.ne.s32.totalorder %s227, %s229
    %p236 = scmp.eq.s32.totalorder %s25, 1
    %p237 = por %p235, %p236
    %p238 = scmp.ne.s32.totalorder %s229, %s230
    %p239 = scmp.eq.s32.totalorder %s25, 0
    %p240 = por %p238, %p239
    %p241 = scmp.ne.s32.totalorder %s229, %s230
    %p242 = scmp.eq.s32.totalorder %s26, 1
    %p243 = por %p241, %p242
    %p245 = scmp.ne.s32.totalorder %s230, %s244
    %p246 = scmp.eq.s32.totalorder %s26, 0
    %p247 = por %p245, %p246
    %s249 = sadd.s32 %s248, 1
    %p252 = scmp.eq.s32.totalorder %s20, 1
    %p253 = scmp.ne.s32.totalorder %s248, %s250
    %p254 = scmp.eq.s32.totalorder %s20, 0
    %p255 = por %p253, %p254
    %p256 = scmp.ne.s32.totalorder %s248, %s250
    %p257 = scmp.eq.s32.totalorder %s25, 1
    %p258 = por %p256, %p257
    %p259 = scmp.ne.s32.totalorder %s250, %s251
    %p260 = scmp.eq.s32.totalorder %s25, 0
    %p261 = por %p259, %p260
    %p262 = scmp.ne.s32.totalorder %s250, %s251
    %p263 = scmp.eq.s32.totalorder %s26, 1
    %p264 = por %p262, %p263
    %p266 = scmp.ne.s32.totalorder %s251, %s265
    %p267 = scmp.eq.s32.totalorder %s26, 0
    %p268 = por %p266, %p267
    %s270 = sadd.s32 %s269, 1
    %p273 = scmp.eq.s32.totalorder %s20, 1
    %p274 = scmp.ne.s32.totalorder %s269, %s271
    %p275 = scmp.eq.s32.totalorder %s20, 0
    %p276 = por %p274, %p275
    %p277 = scmp.ne.s32.totalorder %s269, %s271
    %p278 = scmp.eq.s32.totalorder %s25, 1
    %p279 = por %p277, %p278
    %p280 = scmp.ne.s32.totalorder %s271, %s272
    %p281 = scmp.eq.s32.totalorder %s25, 0
    %p282 = por %p280, %p281
    %p283 = scmp.ne.s32.totalorder %s271, %s272
    %p284 = scmp.eq.s32.totalorder %s26, 1
    %p285 = por %p283, %p284
    %p287 = scmp.ne.s32.totalorder %s272, %s286
    %p288 = scmp.eq.s32.totalorder %s26, 0
    %p289 = por %p287, %p288
    %s291 = sadd.s32 %s290, 1
    %p294 = scmp.eq.s32.totalorder %s20, 1
    %p295 = scmp.ne.s32.totalorder %s290, %s292
    %p296 = scmp.eq.s32.totalorder %s20, 0
    %p297 = por %p295, %p296
    %p298 = scmp.ne.s32.totalorder %s290, %s292
    %p299 = scmp.eq.s32.totalorder %s25, 1
    %p300 = por %p298, %p299
    %p301 = scmp.ne.s32.totalorder %s292, %s293
    %p302 = scmp.eq.s32.totalorder %s25, 0
    %p303 = por %p301, %p302
    %p304 = scmp.ne.s32.totalorder %s292, %s293
    %p305 = scmp.eq.s32.totalorder %s26, 1
    %p306 = por %p304, %p305
    %p308 = scmp.ne.s32.totalorder %s293, %s307
    %p309 = scmp.eq.s32.totalorder %s26, 0
    %p310 = por %p308, %p309
    %s312 = sadd.s32 %s311, 1
    %p315 = scmp.eq.s32.totalorder %s20, 1
    %p316 = scmp.ne.s32.totalorder %s311, %s313
    %p317 = scmp.eq.s32.totalorder %s20, 0
    %p318 = por %p316, %p317
    %p319 = scmp.ne.s32.totalorder %s311, %s313
    %p320 = scmp.eq.s32.totalorder %s25, 1
    %p321 = por %p319, %p320
    %p322 = scmp.ne.s32.totalorder %s313, %s314
    %p323 = scmp.eq.s32.totalorder %s25, 0
    %p324 = por %p322, %p323
    %p325 = scmp.ne.s32.totalorder %s313, %s314
    %p326 = scmp.eq.s32.totalorder %s26, 1
    %p327 = por %p325, %p326
    %p329 = scmp.ne.s32.totalorder %s314, %s328
    %p330 = scmp.eq.s32.totalorder %s26, 0
    %p331 = por %p329, %p330
    %s332 = ssub.s32 %s20, %s27
    %p333 = scmp.eq.s32.totalorder %s332, 0
    %s335 = sadd.s32 %s334, 1
    %s336 = scalar_select %p333, %s334, %s335
    %p339 = pneg %p333
    %p340 = scmp.eq.s32.totalorder %s20, 1
    %p341 = por %p339, %p340
    %p342 = scmp.ne.s32.totalorder %s334, %s337
    %p343 = scmp.eq.s32.totalorder %s20, 0
    %p344 = por %p342, %p343
    %p345 = scmp.ne.s32.totalorder %s334, %s337
    %p346 = scmp.eq.s32.totalorder %s25, 1
    %p347 = por %p345, %p346
    %p348 = scmp.ne.s32.totalorder %s337, %s338
    %p349 = scmp.eq.s32.totalorder %s25, 0
    %p350 = por %p348, %p349
    %p351 = scmp.ne.s32.totalorder %s337, %s338
    %p352 = scmp.eq.s32.totalorder %s26, 1
    %p353 = por %p351, %p352
    %p355 = scmp.ne.s32.totalorder %s338, %s354
    %p356 = scmp.eq.s32.totalorder %s26, 0
    %p357 = por %p355, %p356
    %p358 = scmp.le.s32.totalorder 1, %s20
    %p359 = scmp.lt.s32.totalorder %s20, 3
    %p360 = pnand %p358, %p359
    %p361 = pneg %p360
    // Predicated region
    $region9: #{_lambda_.10} parent=5 // pred_check
      _
    $region10: #{_lambda_.10} parent=5 // pred_check_branch
      %363 = sbr.rel (%p360) target = $region12
    $region11: #{_lambda_.10} parent=5 // pred_region
      %s364 = ssub.s32 %s20, 1
      // Predicated region
      $region13: #{_lambda_.10} parent=11 // pred_check
        %p365 = pneg %p93
      $region14: #{_lambda_.10} parent=11 // pred_check_branch
        %367 = sbr.rel (%p365) target = $region16
      $region15: #{_lambda_.10} parent=11 // pred_region
        _
      $region16: #{_lambda_.10} parent=11 // pred_fallthru
        _
      // Predicated region
      $region17: #{_lambda_.10} parent=11 // pred_check
        %p368 = pneg %p114
      $region18: #{_lambda_.10} parent=11 // pred_check_branch
        %370 = sbr.rel (%p368) target = $region20
      $region19: #{_lambda_.10} parent=11 // pred_region
        _
      $region20: #{_lambda_.10} parent=11 // pred_fallthru
        _
      // Predicated region
      $region21: #{_lambda_.10} parent=11 // pred_check
        %p371 = pneg %p135
      $region22: #{_lambda_.10} parent=11 // pred_check_branch
        %373 = sbr.rel (%p371) target = $region24
      $region23: #{_lambda_.10} parent=11 // pred_region
        _
      $region24: #{_lambda_.10} parent=11 // pred_fallthru
        _
      // Predicated region
      $region25: #{_lambda_.10} parent=11 // pred_check
        %p374 = pneg %p156
      $region26: #{_lambda_.10} parent=11 // pred_check_branch
        %376 = sbr.rel (%p374) target = $region28
      $region27: #{_lambda_.10} parent=11 // pred_region
        _
      $region28: #{_lambda_.10} parent=11 // pred_fallthru
        _
      // Predicated region
      $region29: #{_lambda_.10} parent=11 // pred_check
        %p377 = pneg %p177
      $region30: #{_lambda_.10} parent=11 // pred_check_branch
        %379 = sbr.rel (%p377) target = $region32
      $region31: #{_lambda_.10} parent=11 // pred_region
        _
      $region32: #{_lambda_.10} parent=11 // pred_fallthru
        _
      // Predicated region
      $region33: #{_lambda_.10} parent=11 // pred_check
        %p380 = pneg %p198
      $region34: #{_lambda_.10} parent=11 // pred_check_branch
        %382 = sbr.rel (%p380) target = $region36
      $region35: #{_lambda_.10} parent=11 // pred_region
        _
      $region36: #{_lambda_.10} parent=11 // pred_fallthru
        _
      // Predicated region
      $region37: #{_lambda_.10} parent=11 // pred_check
        %p383 = pneg %p219
      $region38: #{_lambda_.10} parent=11 // pred_check_branch
        %385 = sbr.rel (%p383) target = $region40
      $region39: #{_lambda_.10} parent=11 // pred_region
        _
      $region40: #{_lambda_.10} parent=11 // pred_fallthru
        _
      // Predicated region
      $region41: #{_lambda_.10} parent=11 // pred_check
        %p386 = pneg %p240
      $region42: #{_lambda_.10} parent=11 // pred_check_branch
        %388 = sbr.rel (%p386) target = $region44
      $region43: #{_lambda_.10} parent=11 // pred_region
        _
      $region44: #{_lambda_.10} parent=11 // pred_fallthru
        _
      // Predicated region
      $region45: #{_lambda_.10} parent=11 // pred_check
        %p389 = pneg %p261
      $region46: #{_lambda_.10} parent=11 // pred_check_branch
        %391 = sbr.rel (%p389) target = $region48
      $region47: #{_lambda_.10} parent=11 // pred_region
        _
      $region48: #{_lambda_.10} parent=11 // pred_fallthru
        _
      // Predicated region
      $region49: #{_lambda_.10} parent=11 // pred_check
        %p392 = pneg %p282
      $region50: #{_lambda_.10} parent=11 // pred_check_branch
        %394 = sbr.rel (%p392) target = $region52
      $region51: #{_lambda_.10} parent=11 // pred_region
        _
      $region52: #{_lambda_.10} parent=11 // pred_fallthru
        _
      // Predicated region
      $region53: #{_lambda_.10} parent=11 // pred_check
        %p395 = pneg %p303
      $region54: #{_lambda_.10} parent=11 // pred_check_branch
        %397 = sbr.rel (%p395) target = $region56
      $region55: #{_lambda_.10} parent=11 // pred_region
        _
      $region56: #{_lambda_.10} parent=11 // pred_fallthru
        _
      // Predicated region
      $region57: #{_lambda_.10} parent=11 // pred_check
        %p398 = pneg %p324
      $region58: #{_lambda_.10} parent=11 // pred_check_branch
        %400 = sbr.rel (%p398) target = $region60
      $region59: #{_lambda_.10} parent=11 // pred_region
        _
      $region60: #{_lambda_.10} parent=11 // pred_fallthru
        _
    $region12: #{_lambda_.10} parent=5 // pred_fallthru
      _
    %p401 = scmp.lt.s32.totalorder %s20, 2
    // Predicated region
    $region61: #{_lambda_.10} parent=5 // pred_check
      %p402 = pneg %p401
    $region62: #{_lambda_.10} parent=5 // pred_check_branch
      %404 = sbr.rel (%p402) target = $region64
    $region63: #{_lambda_.10} parent=5 // pred_region
      // Predicated region
      $region65: #{_lambda_.10} parent=63 // pred_check
        %p405 = pneg %p40
      $region66: #{_lambda_.10} parent=63 // pred_check_branch
        %407 = sbr.rel (%p405) target = $region68
      $region67: #{_lambda_.10} parent=63 // pred_region
        %p408 = scmp.lt.s32.totalorder %s20, 1
        %s409 = scalar_select %p408, %s20, 1
        %s410 = smul.addr %s409, 4
        %s411 = smul.addr %s410, 8
        %s412 = scalar_lea.vmem %s0, %s411
      $region68: #{_lambda_.10} parent=63 // pred_fallthru
        _
      // Predicated region
      $region69: #{_lambda_.10} parent=63 // pred_check
        %p413 = pneg %p66
      $region70: #{_lambda_.10} parent=63 // pred_check_branch
        %415 = sbr.rel (%p413) target = $region72
      $region71: #{_lambda_.10} parent=63 // pred_region
        %p416 = scmp.lt.s32.totalorder %s20, 1
        %s417 = scalar_select %p416, %s20, 1
        %s418 = smul.addr %s417, 32
        %s419 = smul.addr %s418, 8
        %s420 = scalar_lea.vmem %s1, %s419
      $region72: #{_lambda_.10} parent=63 // pred_fallthru
        _
    $region64: #{_lambda_.10} parent=5 // pred_fallthru
      _
    %p421 = scmp.le.s32.totalorder 1, %s20
    %p422 = scmp.lt.s32.totalorder %s20, 3
    %p423 = pnand %p421, %p422
    %p424 = pneg %p423
    // Predicated region
    $region73: #{_lambda_.10} parent=5 // pred_check
      _
    $region74: #{_lambda_.10} parent=5 // pred_check_branch
      %426 = sbr.rel (%p423) target = $region76
    $region75: #{_lambda_.10} parent=5 // pred_region
      %s427 = ssub.s32 %s20, 1
      %p428 = scmp.lt.s32.totalorder %s25, 1
      %s429 = scalar_select %p428, %s25, 1
      %s430 = smul.addr %s429, 4
      %s431 = smul.addr %s430, 8
      %s432 = scalar_lea.vmem %s0, %s431
      %p433 = pneg %p46
      %p434 = pneg %p43
      %p435 = scmp.lt.s32.totalorder %s25, 1
      %s436 = scalar_select %p435, %s25, 1
      %s437 = smul.addr %s436, 32
      %s438 = smul.addr %s437, 8
      %s439 = scalar_lea.vmem %s1, %s438
      %p440 = pneg %p72
      %p441 = pneg %p69
      %p442 = pneg %p93
      %p443 = pneg %p90
      %p444 = pneg %p114
      %p445 = pneg %p111
      %p446 = pneg %p135
      %p447 = pneg %p132
      %p448 = pneg %p156
      %p449 = pneg %p153
      %p450 = pneg %p177
      %p451 = pneg %p174
      %p452 = pneg %p198
      %p453 = pneg %p195
      %p454 = pneg %p219
      %p455 = pneg %p216
      %p456 = pneg %p240
      %p457 = pneg %p237
      %p458 = pneg %p261
      %p459 = pneg %p258
      %p460 = pneg %p282
      %p461 = pneg %p279
      %p462 = pneg %p303
      %p463 = pneg %p300
      %p464 = pneg %p324
      %p465 = pneg %p321
      %p466 = pneg %p350
      %p467 = pneg %p347
      %p468 = scmp.lt.s32.totalorder %s25, 1
      %s469 = scalar_select %p468, %s25, 1
      %s470 = smul.addr %s469, 4
      %s471 = smul.addr %s470, 8
      %s472 = scalar_lea.vmem %s14, %s471
      %p473 = scmp.lt.s32.totalorder %s25, 1
      %s474 = scalar_select %p473, %s25, 1
      %s475 = smul.addr %s474, 4
      %s476 = smul.addr %s475, 8
      %s477 = scalar_lea.vmem %s0, %s476
      %p478 = scmp.lt.s32.totalorder %s25, 1
      %s479 = scalar_select %p478, %s25, 1
      %s480 = smul.addr %s479, 32
      %s481 = smul.addr %s480, 8
      %s482 = scalar_lea.vmem %s1, %s481
      %p483 = scmp.lt.s32.totalorder %s25, 1
      %s484 = scalar_select %p483, %s25, 1
      %s485 = smul.addr %s484, 4
      %s486 = smul.addr %s485, 8
      %s487 = scalar_lea.vmem %s14, %s486
      %v488 = vld [vmem:[%s477] sm:$0xff]
      %v489 = vld [vmem:[%s477 + $0x8] sm:$0xff]
      %v490 = vld [vmem:[%s477 + $0x10] sm:$0xff]
      %v491 = vld [vmem:[%s477 + $0x18] sm:$0xff]
      %v492 = vld [vmem:[%s482] sm:$0xff]
      %v493 = vld [vmem:[%s482 + $0x8] sm:$0xff]
      %v494 = vld [vmem:[%s482 + $0x10] sm:$0xff]
      %v495 = vld [vmem:[%s482 + $0x18] sm:$0xff]
      %v496 = vld [vmem:[%s482 + $0x20] sm:$0xff]
      %v497 = vld [vmem:[%s482 + $0x28] sm:$0xff]
      %v498 = vld [vmem:[%s482 + $0x30] sm:$0xff]
      %v499 = vld [vmem:[%s482 + $0x38] sm:$0xff]
      %v500 = vld [vmem:[%s482 + $0x40] sm:$0xff]
      %v501 = vld [vmem:[%s482 + $0x48] sm:$0xff]
      %v502 = vld [vmem:[%s482 + $0x50] sm:$0xff]
      %v503 = vld [vmem:[%s482 + $0x58] sm:$0xff]
      %v504 = vld [vmem:[%s482 + $0x60] sm:$0xff]
      %v505 = vld [vmem:[%s482 + $0x68] sm:$0xff]
      %v506 = vld [vmem:[%s482 + $0x70] sm:$0xff]
      %v507 = vld [vmem:[%s482 + $0x78] sm:$0xff]
      %v508 = vld [vmem:[%s482 + $0x80] sm:$0xff]
      %v509 = vld [vmem:[%s482 + $0x88] sm:$0xff]
      %v510 = vld [vmem:[%s482 + $0x90] sm:$0xff]
      %v511 = vld [vmem:[%s482 + $0x98] sm:$0xff]
      %v512 = vld [vmem:[%s482 + $0xa0] sm:$0xff]
      %v513 = vld [vmem:[%s482 + $0xa8] sm:$0xff]
      %v514 = vld [vmem:[%s482 + $0xb0] sm:$0xff]
      %v515 = vld [vmem:[%s482 + $0xb8] sm:$0xff]
      %v516 = vld [vmem:[%s482 + $0xc0] sm:$0xff]
      %v517 = vld [vmem:[%s482 + $0xc8] sm:$0xff]
      %v518 = vld [vmem:[%s482 + $0xd0] sm:$0xff]
      %v519 = vld [vmem:[%s482 + $0xd8] sm:$0xff]
      %v520 = vld [vmem:[%s482 + $0xe0] sm:$0xff]
      %v521 = vld [vmem:[%s482 + $0xe8] sm:$0xff]
      %v522 = vld [vmem:[%s482 + $0xf0] sm:$0xff]
      %v523 = vld [vmem:[%s482 + $0xf8] sm:$0xff]
      %v524 = vld [vmem:[%s2] sm:$0x1]
      %v525 = vld [vmem:[%s3] sm:$0x1]
      %526 = vadd.xlane.f32.xlu0 %v488
      %v527 = vpop.xlane.xlu0 %526
      %528 = vadd.xlane.f32.xlu0 %v489
      %v529 = vpop.xlane.xlu0 %528
      %530 = vadd.xlane.f32.xlu0 %v490
      %v531 = vpop.xlane.xlu0 %530
      %532 = vadd.xlane.f32.xlu0 %v491
      %v533 = vpop.xlane.xlu0 %532
      %v534 = vrcp.pop 128.0
      %v535 = vmul.f32 %v527, %v534
      %v536 = vmul.f32 %v529, %v534
      %v537 = vmul.f32 %v531, %v534
      %v538 = vmul.f32 %v533, %v534
      %v539 = vsub.f32 %v488, %v535
      %v540 = vsub.f32 %v489, %v536
      %v541 = vsub.f32 %v490, %v537
      %v542 = vsub.f32 %v491, %v538
      %v543 = vmul.f32 %v539, %v539
      %v544 = vmul.f32 %v540, %v540
      %v545 = vmul.f32 %v541, %v541
      %v546 = vmul.f32 %v542, %v542
      %547 = vadd.xlane.f32.xlu0 %v543
      %v548 = vpop.xlane.xlu0 %547
      %549 = vadd.xlane.f32.xlu0 %v544
      %v550 = vpop.xlane.xlu0 %549
      %551 = vadd.xlane.f32.xlu0 %v545
      %v552 = vpop.xlane.xlu0 %551
      %553 = vadd.xlane.f32.xlu0 %v546
      %v554 = vpop.xlane.xlu0 %553
      %v555 = vmul.f32 %v548, %v534
      %v556 = vmul.f32 %v550, %v534
      %v557 = vmul.f32 %v552, %v534
      %v558 = vmul.f32 %v554, %v534
      %v559 = vadd.f32 %v555, 1e-05
      %v560 = vadd.f32 %v556, 1e-05
      %v561 = vadd.f32 %v557, 1e-05
      %v562 = vadd.f32 %v558, 1e-05
      %v563 = vrsqrt.pop %v559
      %v564 = vrsqrt.pop %v560
      %v565 = vrsqrt.pop %v561
      %v566 = vrsqrt.pop %v562
      %v567 = vmul.f32 %v539, %v563
      %v568 = vmul.f32 %v540, %v564
      %v569 = vmul.f32 %v541, %v565
      %v570 = vmul.f32 %v542, %v566
      %v572 = vlaneseq
      %v573 = vshrl.u32 %v572, 7
      %v574 = vsub.s32 0, %v573
      %v575 = vrot.slane %v524, %v574
      %v577 = vmul.f32 %v567, %v575
      %v578 = vmul.f32 %v568, %v575
      %v579 = vmul.f32 %v569, %v575
      %v580 = vmul.f32 %v570, %v575
      %v582 = vlaneseq
      %v583 = vshrl.u32 %v582, 7
      %v584 = vsub.s32 0, %v583
      %v585 = vrot.slane %v525, %v584
      %v587 = vadd.f32 %v577, %v585
      %v588 = vadd.f32 %v578, %v585
      %v589 = vadd.f32 %v579, %v585
      %v590 = vadd.f32 %v580, %v585
      %v591 = vld [vmem:[%s4] sm:$0x1]
      %v592 = vld [vmem:[%s5] sm:$0x1]
      %vm593 = vcmask 261120
      %v594 = vsel %vm593, %v492, 0.0
      %595 = vadd.xlane.f32.xlu0 %v594
      %v596 = vpop.xlane.xlu0 %595
      %v597 = vsel %vm593, %v493, 0.0
      %598 = vadd.xlane.f32.xlu0 %v597
      %v599 = vpop.xlane.xlu0 %598
      %v600 = vsel %vm593, %v494, 0.0
      %601 = vadd.xlane.f32.xlu0 %v600
      %v602 = vpop.xlane.xlu0 %601
      %v603 = vsel %vm593, %v495, 0.0
      %604 = vadd.xlane.f32.xlu0 %v603
      %v605 = vpop.xlane.xlu0 %604
      %v606 = vsel %vm593, %v496, 0.0
      %607 = vadd.xlane.f32.xlu0 %v606
      %v608 = vpop.xlane.xlu0 %607
      %v609 = vsel %vm593, %v497, 0.0
      %610 = vadd.xlane.f32.xlu0 %v609
      %v611 = vpop.xlane.xlu0 %610
      %v612 = vsel %vm593, %v498, 0.0
      %613 = vadd.xlane.f32.xlu0 %v612
      %v614 = vpop.xlane.xlu0 %613
      %v615 = vsel %vm593, %v499, 0.0
      %616 = vadd.xlane.f32.xlu0 %v615
      %v617 = vpop.xlane.xlu0 %616
      %v618 = vsel %vm593, %v500, 0.0
      %619 = vadd.xlane.f32.xlu0 %v618
      %v620 = vpop.xlane.xlu0 %619
      %v621 = vsel %vm593, %v501, 0.0
      %622 = vadd.xlane.f32.xlu0 %v621
      %v623 = vpop.xlane.xlu0 %622
      %v624 = vsel %vm593, %v502, 0.0
      %625 = vadd.xlane.f32.xlu0 %v624
      %v626 = vpop.xlane.xlu0 %625
      %v627 = vsel %vm593, %v503, 0.0
      %628 = vadd.xlane.f32.xlu0 %v627
      %v629 = vpop.xlane.xlu0 %628
      %v630 = vsel %vm593, %v504, 0.0
      %631 = vadd.xlane.f32.xlu0 %v630
      %v632 = vpop.xlane.xlu0 %631
      %v633 = vsel %vm593, %v505, 0.0
      %634 = vadd.xlane.f32.xlu0 %v633
      %v635 = vpop.xlane.xlu0 %634
      %v636 = vsel %vm593, %v506, 0.0
      %637 = vadd.xlane.f32.xlu0 %v636
      %v638 = vpop.xlane.xlu0 %637
      %v639 = vsel %vm593, %v507, 0.0
      %640 = vadd.xlane.f32.xlu0 %v639
      %v641 = vpop.xlane.xlu0 %640
      %v642 = vsel %vm593, %v508, 0.0
      %643 = vadd.xlane.f32.xlu0 %v642
      %v644 = vpop.xlane.xlu0 %643
      %v645 = vsel %vm593, %v509, 0.0
      %646 = vadd.xlane.f32.xlu0 %v645
      %v647 = vpop.xlane.xlu0 %646
      %v648 = vsel %vm593, %v510, 0.0
      %649 = vadd.xlane.f32.xlu0 %v648
      %v650 = vpop.xlane.xlu0 %649
      %v651 = vsel %vm593, %v511, 0.0
      %652 = vadd.xlane.f32.xlu0 %v651
      %v653 = vpop.xlane.xlu0 %652
      %v654 = vsel %vm593, %v512, 0.0
      %655 = vadd.xlane.f32.xlu0 %v654
      %v656 = vpop.xlane.xlu0 %655
      %v657 = vsel %vm593, %v513, 0.0
      %658 = vadd.xlane.f32.xlu0 %v657
      %v659 = vpop.xlane.xlu0 %658
      %v660 = vsel %vm593, %v514, 0.0
      %661 = vadd.xlane.f32.xlu0 %v660
      %v662 = vpop.xlane.xlu0 %661
      %v663 = vsel %vm593, %v515, 0.0
      %664 = vadd.xlane.f32.xlu0 %v663
      %v665 = vpop.xlane.xlu0 %664
      %v666 = vsel %vm593, %v516, 0.0
      %667 = vadd.xlane.f32.xlu0 %v666
      %v668 = vpop.xlane.xlu0 %667
      %v669 = vsel %vm593, %v517, 0.0
      %670 = vadd.xlane.f32.xlu0 %v669
      %v671 = vpop.xlane.xlu0 %670
      %v672 = vsel %vm593, %v518, 0.0
      %673 = vadd.xlane.f32.xlu0 %v672
      %v674 = vpop.xlane.xlu0 %673
      %v675 = vsel %vm593, %v519, 0.0
      %676 = vadd.xlane.f32.xlu0 %v675
      %v677 = vpop.xlane.xlu0 %676
      %v678 = vsel %vm593, %v520, 0.0
      %679 = vadd.xlane.f32.xlu0 %v678
      %v680 = vpop.xlane.xlu0 %679
      %v681 = vsel %vm593, %v521, 0.0
      %682 = vadd.xlane.f32.xlu0 %v681
      %v683 = vpop.xlane.xlu0 %682
      %v684 = vsel %vm593, %v522, 0.0
      %685 = vadd.xlane.f32.xlu0 %v684
      %v686 = vpop.xlane.xlu0 %685
      %v687 = vsel %vm593, %v523, 0.0
      %688 = vadd.xlane.f32.xlu0 %v687
      %v689 = vpop.xlane.xlu0 %688
      %v690 = vrcp.pop 32.0
      %v691 = vmul.f32 %v596, %v690
      %v692 = vmul.f32 %v599, %v690
      %v693 = vmul.f32 %v602, %v690
      %v694 = vmul.f32 %v605, %v690
      %v695 = vmul.f32 %v608, %v690
      %v696 = vmul.f32 %v611, %v690
      %v697 = vmul.f32 %v614, %v690
      %v698 = vmul.f32 %v617, %v690
      %v699 = vmul.f32 %v620, %v690
      %v700 = vmul.f32 %v623, %v690
      %v701 = vmul.f32 %v626, %v690
      %v702 = vmul.f32 %v629, %v690
      %v703 = vmul.f32 %v632, %v690
      %v704 = vmul.f32 %v635, %v690
      %v705 = vmul.f32 %v638, %v690
      %v706 = vmul.f32 %v641, %v690
      %v707 = vmul.f32 %v644, %v690
      %v708 = vmul.f32 %v647, %v690
      %v709 = vmul.f32 %v650, %v690
      %v710 = vmul.f32 %v653, %v690
      %v711 = vmul.f32 %v656, %v690
      %v712 = vmul.f32 %v659, %v690
      %v713 = vmul.f32 %v662, %v690
      %v714 = vmul.f32 %v665, %v690
      %v715 = vmul.f32 %v668, %v690
      %v716 = vmul.f32 %v671, %v690
      %v717 = vmul.f32 %v674, %v690
      %v718 = vmul.f32 %v677, %v690
      %v719 = vmul.f32 %v680, %v690
      %v720 = vmul.f32 %v683, %v690
      %v721 = vmul.f32 %v686, %v690
      %v722 = vmul.f32 %v689, %v690
      %v723 = vsub.f32 %v492, %v691
      %v724 = vsub.f32 %v493, %v692
      %v725 = vsub.f32 %v494, %v693
      %v726 = vsub.f32 %v495, %v694
      %v727 = vsub.f32 %v496, %v695
      %v728 = vsub.f32 %v497, %v696
      %v729 = vsub.f32 %v498, %v697
      %v730 = vsub.f32 %v499, %v698
      %v731 = vsub.f32 %v500, %v699
      %v732 = vsub.f32 %v501, %v700
      %v733 = vsub.f32 %v502, %v701
      %v734 = vsub.f32 %v503, %v702
      %v735 = vsub.f32 %v504, %v703
      %v736 = vsub.f32 %v505, %v704
      %v737 = vsub.f32 %v506, %v705
      %v738 = vsub.f32 %v507, %v706
      %v739 = vsub.f32 %v508, %v707
      %v740 = vsub.f32 %v509, %v708
      %v741 = vsub.f32 %v510, %v709
      %v742 = vsub.f32 %v511, %v710
      %v743 = vsub.f32 %v512, %v711
      %v744 = vsub.f32 %v513, %v712
      %v745 = vsub.f32 %v514, %v713
      %v746 = vsub.f32 %v515, %v714
      %v747 = vsub.f32 %v516, %v715
      %v748 = vsub.f32 %v517, %v716
      %v749 = vsub.f32 %v518, %v717
      %v750 = vsub.f32 %v519, %v718
      %v751 = vsub.f32 %v520, %v719
      %v752 = vsub.f32 %v521, %v720
      %v753 = vsub.f32 %v522, %v721
      %v754 = vsub.f32 %v523, %v722
      %v755 = vmul.f32 %v723, %v723
      %v756 = vmul.f32 %v724, %v724
      %v757 = vmul.f32 %v725, %v725
      %v758 = vmul.f32 %v726, %v726
      %v759 = vmul.f32 %v727, %v727
      %v760 = vmul.f32 %v728, %v728
      %v761 = vmul.f32 %v729, %v729
      %v762 = vmul.f32 %v730, %v730
      %v763 = vmul.f32 %v731, %v731
      %v764 = vmul.f32 %v732, %v732
      %v765 = vmul.f32 %v733, %v733
      %v766 = vmul.f32 %v734, %v734
      %v767 = vmul.f32 %v735, %v735
      %v768 = vmul.f32 %v736, %v736
      %v769 = vmul.f32 %v737, %v737
      %v770 = vmul.f32 %v738, %v738
      %v771 = vmul.f32 %v739, %v739
      %v772 = vmul.f32 %v740, %v740
      %v773 = vmul.f32 %v741, %v741
      %v774 = vmul.f32 %v742, %v742
      %v775 = vmul.f32 %v743, %v743
      %v776 = vmul.f32 %v744, %v744
      %v777 = vmul.f32 %v745, %v745
      %v778 = vmul.f32 %v746, %v746
      %v779 = vmul.f32 %v747, %v747
      %v780 = vmul.f32 %v748, %v748
      %v781 = vmul.f32 %v749, %v749
      %v782 = vmul.f32 %v750, %v750
      %v783 = vmul.f32 %v751, %v751
      %v784 = vmul.f32 %v752, %v752
      %v785 = vmul.f32 %v753, %v753
      %v786 = vmul.f32 %v754, %v754
      %v787 = vsel %vm593, %v755, 0.0
      %788 = vadd.xlane.f32.xlu0 %v787
      %v789 = vpop.xlane.xlu0 %788
      %v790 = vsel %vm593, %v756, 0.0
      %791 = vadd.xlane.f32.xlu0 %v790
      %v792 = vpop.xlane.xlu0 %791
      %v793 = vsel %vm593, %v757, 0.0
      %794 = vadd.xlane.f32.xlu0 %v793
      %v795 = vpop.xlane.xlu0 %794
      %v796 = vsel %vm593, %v758, 0.0
      %797 = vadd.xlane.f32.xlu0 %v796
      %v798 = vpop.xlane.xlu0 %797
      %v799 = vsel %vm593, %v759, 0.0
      %800 = vadd.xlane.f32.xlu0 %v799
      %v801 = vpop.xlane.xlu0 %800
      %v802 = vsel %vm593, %v760, 0.0
      %803 = vadd.xlane.f32.xlu0 %v802
      %v804 = vpop.xlane.xlu0 %803
      %v805 = vsel %vm593, %v761, 0.0
      %806 = vadd.xlane.f32.xlu0 %v805
      %v807 = vpop.xlane.xlu0 %806
      %v808 = vsel %vm593, %v762, 0.0
      %809 = vadd.xlane.f32.xlu0 %v808
      %v810 = vpop.xlane.xlu0 %809
      %v811 = vsel %vm593, %v763, 0.0
      %812 = vadd.xlane.f32.xlu0 %v811
      %v813 = vpop.xlane.xlu0 %812
      %v814 = vsel %vm593, %v764, 0.0
      %815 = vadd.xlane.f32.xlu0 %v814
      %v816 = vpop.xlane.xlu0 %815
      %v817 = vsel %vm593, %v765, 0.0
      %818 = vadd.xlane.f32.xlu0 %v817
      %v819 = vpop.xlane.xlu0 %818
      %v820 = vsel %vm593, %v766, 0.0
      %821 = vadd.xlane.f32.xlu0 %v820
      %v822 = vpop.xlane.xlu0 %821
      %v823 = vsel %vm593, %v767, 0.0
      %824 = vadd.xlane.f32.xlu0 %v823
      %v825 = vpop.xlane.xlu0 %824
      %v826 = vsel %vm593, %v768, 0.0
      %827 = vadd.xlane.f32.xlu0 %v826
      %v828 = vpop.xlane.xlu0 %827
      %v829 = vsel %vm593, %v769, 0.0
      %830 = vadd.xlane.f32.xlu0 %v829
      %v831 = vpop.xlane.xlu0 %830
      %v832 = vsel %vm593, %v770, 0.0
      %833 = vadd.xlane.f32.xlu0 %v832
      %v834 = vpop.xlane.xlu0 %833
      %v835 = vsel %vm593, %v771, 0.0
      %836 = vadd.xlane.f32.xlu0 %v835
      %v837 = vpop.xlane.xlu0 %836
      %v838 = vsel %vm593, %v772, 0.0
      %839 = vadd.xlane.f32.xlu0 %v838
      %v840 = vpop.xlane.xlu0 %839
      %v841 = vsel %vm593, %v773, 0.0
      %842 = vadd.xlane.f32.xlu0 %v841
      %v843 = vpop.xlane.xlu0 %842
      %v844 = vsel %vm593, %v774, 0.0
      %845 = vadd.xlane.f32.xlu0 %v844
      %v846 = vpop.xlane.xlu0 %845
      %v847 = vsel %vm593, %v775, 0.0
      %848 = vadd.xlane.f32.xlu0 %v847
      %v849 = vpop.xlane.xlu0 %848
      %v850 = vsel %vm593, %v776, 0.0
      %851 = vadd.xlane.f32.xlu0 %v850
      %v852 = vpop.xlane.xlu0 %851
      %v853 = vsel %vm593, %v777, 0.0
      %854 = vadd.xlane.f32.xlu0 %v853
      %v855 = vpop.xlane.xlu0 %854
      %v856 = vsel %vm593, %v778, 0.0
      %857 = vadd.xlane.f32.xlu0 %v856
      %v858 = vpop.xlane.xlu0 %857
      %v859 = vsel %vm593, %v779, 0.0
      %860 = vadd.xlane.f32.xlu0 %v859
      %v861 = vpop.xlane.xlu0 %860
      %v862 = vsel %vm593, %v780, 0.0
      %863 = vadd.xlane.f32.xlu0 %v862
      %v864 = vpop.xlane.xlu0 %863
      %v865 = vsel %vm593, %v781, 0.0
      %866 = vadd.xlane.f32.xlu0 %v865
      %v867 = vpop.xlane.xlu0 %866
      %v868 = vsel %vm593, %v782, 0.0
      %869 = vadd.xlane.f32.xlu0 %v868
      %v870 = vpop.xlane.xlu0 %869
      %v871 = vsel %vm593, %v783, 0.0
      %872 = vadd.xlane.f32.xlu0 %v871
      %v873 = vpop.xlane.xlu0 %872
      %v874 = vsel %vm593, %v784, 0.0
      %875 = vadd.xlane.f32.xlu0 %v874
      %v876 = vpop.xlane.xlu0 %875
      %v877 = vsel %vm593, %v785, 0.0
      %878 = vadd.xlane.f32.xlu0 %v877
      %v879 = vpop.xlane.xlu0 %878
      %v880 = vsel %vm593, %v786, 0.0
      %881 = vadd.xlane.f32.xlu0 %v880
      %v882 = vpop.xlane.xlu0 %881
      %v883 = vmul.f32 %v789, %v690
      %v884 = vmul.f32 %v792, %v690
      %v885 = vmul.f32 %v795, %v690
      %v886 = vmul.f32 %v798, %v690
      %v887 = vmul.f32 %v801, %v690
      %v888 = vmul.f32 %v804, %v690
      %v889 = vmul.f32 %v807, %v690
      %v890 = vmul.f32 %v810, %v690
      %v891 = vmul.f32 %v813, %v690
      %v892 = vmul.f32 %v816, %v690
      %v893 = vmul.f32 %v819, %v690
      %v894 = vmul.f32 %v822, %v690
      %v895 = vmul.f32 %v825, %v690
      %v896 = vmul.f32 %v828, %v690
      %v897 = vmul.f32 %v831, %v690
      %v898 = vmul.f32 %v834, %v690
      %v899 = vmul.f32 %v837, %v690
      %v900 = vmul.f32 %v840, %v690
      %v901 = vmul.f32 %v843, %v690
      %v902 = vmul.f32 %v846, %v690
      %v903 = vmul.f32 %v849, %v690
      %v904 = vmul.f32 %v852, %v690
      %v905 = vmul.f32 %v855, %v690
      %v906 = vmul.f32 %v858, %v690
      %v907 = vmul.f32 %v861, %v690
      %v908 = vmul.f32 %v864, %v690
      %v909 = vmul.f32 %v867, %v690
      %v910 = vmul.f32 %v870, %v690
      %v911 = vmul.f32 %v873, %v690
      %v912 = vmul.f32 %v876, %v690
      %v913 = vmul.f32 %v879, %v690
      %v914 = vmul.f32 %v882, %v690
      %v915 = vadd.f32 %v883, 1e-05
      %v916 = vadd.f32 %v884, 1e-05
      %v917 = vadd.f32 %v885, 1e-05
      %v918 = vadd.f32 %v886, 1e-05
      %v919 = vadd.f32 %v887, 1e-05
      %v920 = vadd.f32 %v888, 1e-05
      %v921 = vadd.f32 %v889, 1e-05
      %v922 = vadd.f32 %v890, 1e-05
      %v923 = vadd.f32 %v891, 1e-05
      %v924 = vadd.f32 %v892, 1e-05
      %v925 = vadd.f32 %v893, 1e-05
      %v926 = vadd.f32 %v894, 1e-05
      %v927 = vadd.f32 %v895, 1e-05
      %v928 = vadd.f32 %v896, 1e-05
      %v929 = vadd.f32 %v897, 1e-05
      %v930 = vadd.f32 %v898, 1e-05
      %v931 = vadd.f32 %v899, 1e-05
      %v932 = vadd.f32 %v900, 1e-05
      %v933 = vadd.f32 %v901, 1e-05
      %v934 = vadd.f32 %v902, 1e-05
      %v935 = vadd.f32 %v903, 1e-05
      %v936 = vadd.f32 %v904, 1e-05
      %v937 = vadd.f32 %v905, 1e-05
      %v938 = vadd.f32 %v906, 1e-05
      %v939 = vadd.f32 %v907, 1e-05
      %v940 = vadd.f32 %v908, 1e-05
      %v941 = vadd.f32 %v909, 1e-05
      %v942 = vadd.f32 %v910, 1e-05
      %v943 = vadd.f32 %v911, 1e-05
      %v944 = vadd.f32 %v912, 1e-05
      %v945 = vadd.f32 %v913, 1e-05
      %v946 = vadd.f32 %v914, 1e-05
      %v947 = vrsqrt.pop %v915
      %v948 = vrsqrt.pop %v916
      %v949 = vrsqrt.pop %v917
      %v950 = vrsqrt.pop %v918
      %v951 = vrsqrt.pop %v919
      %v952 = vrsqrt.pop %v920
      %v953 = vrsqrt.pop %v921
      %v954 = vrsqrt.pop %v922
      %v955 = vrsqrt.pop %v923
      %v956 = vrsqrt.pop %v924
      %v957 = vrsqrt.pop %v925
      %v958 = vrsqrt.pop %v926
      %v959 = vrsqrt.pop %v927
      %v960 = vrsqrt.pop %v928
      %v961 = vrsqrt.pop %v929
      %v962 = vrsqrt.pop %v930
      %v963 = vrsqrt.pop %v931
      %v964 = vrsqrt.pop %v932
      %v965 = vrsqrt.pop %v933
      %v966 = vrsqrt.pop %v934
      %v967 = vrsqrt.pop %v935
      %v968 = vrsqrt.pop %v936
      %v969 = vrsqrt.pop %v937
      %v970 = vrsqrt.pop %v938
      %v971 = vrsqrt.pop %v939
      %v972 = vrsqrt.pop %v940
      %v973 = vrsqrt.pop %v941
      %v974 = vrsqrt.pop %v942
      %v975 = vrsqrt.pop %v943
      %v976 = vrsqrt.pop %v944
      %v977 = vrsqrt.pop %v945
      %v978 = vrsqrt.pop %v946
      %v979 = vmul.f32 %v723, %v947
      %v980 = vmul.f32 %v724, %v948
      %v981 = vmul.f32 %v725, %v949
      %v982 = vmul.f32 %v726, %v950
      %v983 = vmul.f32 %v727, %v951
      %v984 = vmul.f32 %v728, %v952
      %v985 = vmul.f32 %v729, %v953
      %v986 = vmul.f32 %v730, %v954
      %v987 = vmul.f32 %v731, %v955
      %v988 = vmul.f32 %v732, %v956
      %v989 = vmul.f32 %v733, %v957
      %v990 = vmul.f32 %v734, %v958
      %v991 = vmul.f32 %v735, %v959
      %v992 = vmul.f32 %v736, %v960
      %v993 = vmul.f32 %v737, %v961
      %v994 = vmul.f32 %v738, %v962
      %v995 = vmul.f32 %v739, %v963
      %v996 = vmul.f32 %v740, %v964
      %v997 = vmul.f32 %v741, %v965
      %v998 = vmul.f32 %v742, %v966
      %v999 = vmul.f32 %v743, %v967
      %v1000 = vmul.f32 %v744, %v968
      %v1001 = vmul.f32 %v745, %v969
      %v1002 = vmul.f32 %v746, %v970
      %v1003 = vmul.f32 %v747, %v971
      %v1004 = vmul.f32 %v748, %v972
      %v1005 = vmul.f32 %v749, %v973
      %v1006 = vmul.f32 %v750, %v974
      %v1007 = vmul.f32 %v751, %v975
      %v1008 = vmul.f32 %v752, %v976
      %v1009 = vmul.f32 %v753, %v977
      %v1010 = vmul.f32 %v754, %v978
      %v1012 = vlaneseq
      %v1013 = vshrl.u32 %v1012, 7
      %v1014 = vsub.s32 0, %v1013
      %v1015 = vrot.slane %v591, %v1014
      %v1017 = vmul.f32 %v979, %v1015
      %v1018 = vmul.f32 %v980, %v1015
      %v1019 = vmul.f32 %v981, %v1015
      %v1020 = vmul.f32 %v982, %v1015
      %v1021 = vmul.f32 %v983, %v1015
      %v1022 = vmul.f32 %v984, %v1015
      %v1023 = vmul.f32 %v985, %v1015
      %v1024 = vmul.f32 %v986, %v1015
      %v1025 = vmul.f32 %v987, %v1015
      %v1026 = vmul.f32 %v988, %v1015
      %v1027 = vmul.f32 %v989, %v1015
      %v1028 = vmul.f32 %v990, %v1015
      %v1029 = vmul.f32 %v991, %v1015
      %v1030 = vmul.f32 %v992, %v1015
      %v1031 = vmul.f32 %v993, %v1015
      %v1032 = vmul.f32 %v994, %v1015
      %v1033 = vmul.f32 %v995, %v1015
      %v1034 = vmul.f32 %v996, %v1015
      %v1035 = vmul.f32 %v997, %v1015
      %v1036 = vmul.f32 %v998, %v1015
      %v1037 = vmul.f32 %v999, %v1015
      %v1038 = vmul.f32 %v1000, %v1015
      %v1039 = vmul.f32 %v1001, %v1015
      %v1040 = vmul.f32 %v1002, %v1015
      %v1041 = vmul.f32 %v1003, %v1015
      %v1042 = vmul.f32 %v1004, %v1015
      %v1043 = vmul.f32 %v1005, %v1015
      %v1044 = vmul.f32 %v1006, %v1015
      %v1045 = vmul.f32 %v1007, %v1015
      %v1046 = vmul.f32 %v1008, %v1015
      %v1047 = vmul.f32 %v1009, %v1015
      %v1048 = vmul.f32 %v1010, %v1015
      %v1050 = vlaneseq
      %v1051 = vshrl.u32 %v1050, 7
      %v1052 = vsub.s32 0, %v1051
      %v1053 = vrot.slane %v592, %v1052
      %v1055 = vadd.f32 %v1017, %v1053
      %v1056 = vadd.f32 %v1018, %v1053
      %v1057 = vadd.f32 %v1019, %v1053
      %v1058 = vadd.f32 %v1020, %v1053
      %v1059 = vadd.f32 %v1021, %v1053
      %v1060 = vadd.f32 %v1022, %v1053
      %v1061 = vadd.f32 %v1023, %v1053
      %v1062 = vadd.f32 %v1024, %v1053
      %v1063 = vadd.f32 %v1025, %v1053
      %v1064 = vadd.f32 %v1026, %v1053
      %v1065 = vadd.f32 %v1027, %v1053
      %v1066 = vadd.f32 %v1028, %v1053
      %v1067 = vadd.f32 %v1029, %v1053
      %v1068 = vadd.f32 %v1030, %v1053
      %v1069 = vadd.f32 %v1031, %v1053
      %v1070 = vadd.f32 %v1032, %v1053
      %v1071 = vadd.f32 %v1033, %v1053
      %v1072 = vadd.f32 %v1034, %v1053
      %v1073 = vadd.f32 %v1035, %v1053
      %v1074 = vadd.f32 %v1036, %v1053
      %v1075 = vadd.f32 %v1037, %v1053
      %v1076 = vadd.f32 %v1038, %v1053
      %v1077 = vadd.f32 %v1039, %v1053
      %v1078 = vadd.f32 %v1040, %v1053
      %v1079 = vadd.f32 %v1041, %v1053
      %v1080 = vadd.f32 %v1042, %v1053
      %v1081 = vadd.f32 %v1043, %v1053
      %v1082 = vadd.f32 %v1044, %v1053
      %v1083 = vadd.f32 %v1045, %v1053
      %v1084 = vadd.f32 %v1046, %v1053
      %v1085 = vadd.f32 %v1047, %v1053
      %v1086 = vadd.f32 %v1048, %v1053
      %v1087 = vld [vmem:[%s6] sm:$0xff]
      %v1088 = vld [vmem:[%s6 + $0x8] sm:$0xff]
      %v1089 = vld [vmem:[%s6 + $0x10] sm:$0xff]
      %v1090 = vld [vmem:[%s6 + $0x18] sm:$0xff]
      %v1091 = vld [vmem:[%s6 + $0x20] sm:$0xff]
      %v1092 = vld [vmem:[%s6 + $0x28] sm:$0xff]
      %v1093 = vld [vmem:[%s6 + $0x30] sm:$0xff]
      %v1094 = vld [vmem:[%s6 + $0x38] sm:$0xff]
      %v1095 = vld [vmem:[%s6 + $0x40] sm:$0xff]
      %v1096 = vld [vmem:[%s6 + $0x48] sm:$0xff]
      %v1097 = vld [vmem:[%s6 + $0x50] sm:$0xff]
      %v1098 = vld [vmem:[%s6 + $0x58] sm:$0xff]
      %v1099 = vld [vmem:[%s6 + $0x60] sm:$0xff]
      %v1100 = vld [vmem:[%s6 + $0x68] sm:$0xff]
      %v1101 = vld [vmem:[%s6 + $0x70] sm:$0xff]
      %v1102 = vld [vmem:[%s6 + $0x78] sm:$0xff]
      %v1103 = vld [vmem:[%s7] sm:$0x1]
      %v1105 = vlaneseq
      %v1106 = vshrl.u32 %v1105, 7
      %v1107 = vsub.s32 0, %v1106
      %v1108 = vrot.slane %v1103, %v1107
      %1110 = vmatprep.subr.mxu0 0.0
      %1111 = vmatpush1.msra.mxu0 %v1087
      %1112 = vmatprep.subr.mxu0 0.0
      %1113 = vmatpush1.msra.mxu0 %v1088
      %1114 = vmatprep.subr.mxu0 0.0
      %1115 = vmatpush1.msra.mxu0 %v1089
      %1116 = vmatprep.subr.mxu0 0.0
      %1117 = vmatpush1.msra.mxu0 %v1090
      %1118 = vmatprep.subr.mxu0 0.0
      %1119 = vmatpush1.msra.mxu0 %v1091
      %1120 = vmatprep.subr.mxu0 0.0
      %1121 = vmatpush1.msra.mxu0 %v1092
      %1122 = vmatprep.subr.mxu0 0.0
      %1123 = vmatpush1.msra.mxu0 %v1093
      %1124 = vmatprep.subr.mxu0 0.0
      %1125 = vmatpush1.msra.mxu0 %v1094
      %1126 = vmatprep.subr.mxu0 0.0
      %1127 = vmatpush1.msra.mxu0 %v1095
      %1128 = vmatprep.subr.mxu0 0.0
      %1129 = vmatpush1.msra.mxu0 %v1096
      %1130 = vmatprep.subr.mxu0 0.0
      %1131 = vmatpush1.msra.mxu0 %v1097
      %1132 = vmatprep.subr.mxu0 0.0
      %1133 = vmatpush1.msra.mxu0 %v1098
      %1134 = vmatprep.subr.mxu0 0.0
      %1135 = vmatpush1.msra.mxu0 %v1099
      %1136 = vmatprep.subr.mxu0 0.0
      %1137 = vmatpush1.msra.mxu0 %v1100
      %1138 = vmatprep.subr.mxu0 0.0
      %1139 = vmatpush1.msra.mxu0 %v1101
      %1140 = vmatprep.subr.mxu0 0.0
      %1141 = vmatpush1.msra.mxu0 %v1102
      %1142 = vmatprep.subr.mxu0 0.0
      %1143 = vmatpush1.msra.mxu0 0.0
      %1144 = vmatprep.subr.mxu0 0.0
      %1145 = vmatpush1.msra.mxu0 0.0
      %1146 = vmatprep.subr.mxu0 0.0
      %1147 = vmatpush1.msra.mxu0 0.0
      %1148 = vmatprep.subr.mxu0 0.0
      %1149 = vmatpush1.msra.mxu0 0.0
      %1150 = vmatprep.subr.mxu0 0.0
      %1151 = vmatpush1.msra.mxu0 0.0
      %1152 = vmatprep.subr.mxu0 0.0
      %1153 = vmatpush1.msra.mxu0 0.0
      %1154 = vmatprep.subr.mxu0 0.0
      %1155 = vmatpush1.msra.mxu0 0.0
      %1156 = vmatprep.subr.mxu0 0.0
      %1157 = vmatpush1.msra.mxu0 0.0
      %1158 = vmatprep.subr.mxu0 0.0
      %1159 = vmatpush1.msra.mxu0 0.0
      %1160 = vmatprep.subr.mxu0 0.0
      %1161 = vmatpush1.msra.mxu0 0.0
      %1162 = vmatprep.subr.mxu0 0.0
      %1163 = vmatpush1.msra.mxu0 0.0
      %1164 = vmatprep.subr.mxu0 0.0
      %1165 = vmatpush1.msra.mxu0 0.0
      %1166 = vmatprep.subr.mxu0 0.0
      %1167 = vmatpush1.msra.mxu0 0.0
      %1168 = vmatprep.subr.mxu0 0.0
      %1169 = vmatpush1.msra.mxu0 0.0
      %1170 = vmatprep.subr.mxu0 0.0
      %1171 = vmatpush1.msra.mxu0 0.0
      %1172 = vmatprep.subr.mxu0 0.0
      %1173 = vmatpush1.msra.mxu0 0.0
      %1174 = vmatprep.mubr.f32.mxu0 0.0
      %1175 = vmatmul.mubr.f32.gmra.mrb[0].mxu0 %v587
      %v1176 = vpop.f32.mrb[0].mxu0
      %v1177 = vadd.f32 %v1108, %v1176
      %v1178 = vpop.f32.mrb[0].mxu0
      %1179 = vmatprep.mubr.f32.mxu0 0.0
      %1180 = vmatmul.mubr.f32.gmra.mrb[0].mxu0 %v588
      %v1181 = vpop.f32.mrb[0].mxu0
      %v1182 = vadd.f32 %v1108, %v1181
      %v1183 = vpop.f32.mrb[0].mxu0
      %1184 = vmatprep.mubr.f32.mxu0 0.0
      %1185 = vmatmul.mubr.f32.gmra.mrb[0].mxu0 %v589
      %v1186 = vpop.f32.mrb[0].mxu0
      %v1187 = vadd.f32 %v1108, %v1186
      %v1188 = vpop.f32.mrb[0].mxu0
      %1189 = vmatprep.mubr.f32.mxu0 0.0
      %1190 = vmatmul.mubr.f32.gmra.mrb[0].mxu0 %v590
      %v1191 = vpop.f32.mrb[0].mxu0
      %v1192 = vadd.f32 %v1108, %v1191
      %v1193 = vpop.f32.mrb[0].mxu0
      %1194 = vdwg.mxu0
      %v1195 = vld [vmem:[%s8] sm:$0xff]
      %v1196 = vld [vmem:[%s8 + $0x8] sm:$0xff]
      %v1197 = vld [vmem:[%s8 + $0x10] sm:$0xff]
      %v1198 = vld [vmem:[%s8 + $0x18] sm:$0xff]
      %v1199 = vld [vmem:[%s9] sm:$0x1]
      %v1201 = vlaneseq
      %v1202 = vshrl.u32 %v1201, 7
      %v1203 = vsub.s32 0, %v1202
      %v1204 = vrot.slane %v1199, %v1203
      %v1207 = vsel %vm593, %v1055, 0
      %v1210 = vsel %vm593, %v1056, 0
      %v1213 = vsel %vm593, %v1057, 0
      %v1216 = vsel %vm593, %v1058, 0
      %v1219 = vsel %vm593, %v1059, 0
      %v1222 = vsel %vm593, %v1060, 0
      %v1225 = vsel %vm593, %v1061, 0
      %v1228 = vsel %vm593, %v1062, 0
      %v1231 = vsel %vm593, %v1063, 0
      %v1234 = vsel %vm593, %v1064, 0
      %v1237 = vsel %vm593, %v1065, 0
      %v1240 = vsel %vm593, %v1066, 0
      %v1243 = vsel %vm593, %v1067, 0
      %v1246 = vsel %vm593, %v1068, 0
      %v1249 = vsel %vm593, %v1069, 0
      %v1252 = vsel %vm593, %v1070, 0
      %v1255 = vsel %vm593, %v1071, 0
      %v1258 = vsel %vm593, %v1072, 0
      %v1261 = vsel %vm593, %v1073, 0
      %v1264 = vsel %vm593, %v1074, 0
      %v1267 = vsel %vm593, %v1075, 0
      %v1270 = vsel %vm593, %v1076, 0
      %v1273 = vsel %vm593, %v1077, 0
      %v1276 = vsel %vm593, %v1078, 0
      %v1279 = vsel %vm593, %v1079, 0
      %v1282 = vsel %vm593, %v1080, 0
      %v1285 = vsel %vm593, %v1081, 0
      %v1288 = vsel %vm593, %v1082, 0
      %v1291 = vsel %vm593, %v1083, 0
      %v1294 = vsel %vm593, %v1084, 0
      %v1297 = vsel %vm593, %v1085, 0
      %v1300 = vsel %vm593, %v1086, 0
      %1302 = vmatprep.subr.mxu0 0.0
      %1303 = vmatpush1.msra.mxu0 %v1195
      %1304 = vmatprep.subr.mxu0 0.0
      %1305 = vmatpush1.msra.mxu0 %v1196
      %1306 = vmatprep.subr.mxu0 0.0
      %1307 = vmatpush1.msra.mxu0 %v1197
      %1308 = vmatprep.subr.mxu0 0.0
      %1309 = vmatpush1.msra.mxu0 %v1198
      %1310 = vmatprep.subr.mxu0 0.0
      %1311 = vmatpush1.msra.mxu0 0.0
      %1312 = vmatprep.subr.mxu0 0.0
      %1313 = vmatpush1.msra.mxu0 0.0
      %1314 = vmatprep.subr.mxu0 0.0
      %1315 = vmatpush1.msra.mxu0 0.0
      %1316 = vmatprep.subr.mxu0 0.0
      %1317 = vmatpush1.msra.mxu0 0.0
      %1318 = vmatprep.subr.mxu0 0.0
      %1319 = vmatpush1.msra.mxu0 0.0
      %1320 = vmatprep.subr.mxu0 0.0
      %1321 = vmatpush1.msra.mxu0 0.0
      %1322 = vmatprep.subr.mxu0 0.0
      %1323 = vmatpush1.msra.mxu0 0.0
      %1324 = vmatprep.subr.mxu0 0.0
      %1325 = vmatpush1.msra.mxu0 0.0
      %1326 = vmatprep.subr.mxu0 0.0
      %1327 = vmatpush1.msra.mxu0 0.0
      %1328 = vmatprep.subr.mxu0 0.0
      %1329 = vmatpush1.msra.mxu0 0.0
      %1330 = vmatprep.subr.mxu0 0.0
      %1331 = vmatpush1.msra.mxu0 0.0
      %1332 = vmatprep.subr.mxu0 0.0
      %1333 = vmatpush1.msra.mxu0 0.0
      %1334 = vmatprep.subr.mxu0 0.0
      %1335 = vmatpush1.msra.mxu0 0.0
      %1336 = vmatprep.subr.mxu0 0.0
      %1337 = vmatpush1.msra.mxu0 0.0
      %1338 = vmatprep.subr.mxu0 0.0
      %1339 = vmatpush1.msra.mxu0 0.0
      %1340 = vmatprep.subr.mxu0 0.0
      %1341 = vmatpush1.msra.mxu0 0.0
      %1342 = vmatprep.subr.mxu0 0.0
      %1343 = vmatpush1.msra.mxu0 0.0
      %1344 = vmatprep.subr.mxu0 0.0
      %1345 = vmatpush1.msra.mxu0 0.0
      %1346 = vmatprep.subr.mxu0 0.0
      %1347 = vmatpush1.msra.mxu0 0.0
      %1348 = vmatprep.subr.mxu0 0.0
      %1349 = vmatpush1.msra.mxu0 0.0
      %1350 = vmatprep.subr.mxu0 0.0
      %1351 = vmatpush1.msra.mxu0 0.0
      %1352 = vmatprep.subr.mxu0 0.0
      %1353 = vmatpush1.msra.mxu0 0.0
      %1354 = vmatprep.subr.mxu0 0.0
      %1355 = vmatpush1.msra.mxu0 0.0
      %1356 = vmatprep.subr.mxu0 0.0
      %1357 = vmatpush1.msra.mxu0 0.0
      %1358 = vmatprep.subr.mxu0 0.0
      %1359 = vmatpush1.msra.mxu0 0.0
      %1360 = vmatprep.subr.mxu0 0.0
      %1361 = vmatpush1.msra.mxu0 0.0
      %1362 = vmatprep.subr.mxu0 0.0
      %1363 = vmatpush1.msra.mxu0 0.0
      %1364 = vmatprep.subr.mxu0 0.0
      %1365 = vmatpush1.msra.mxu0 0.0
      %1366 = vmatprep.mubr.f32.mxu0 0.0
      %1367 = vmatmul.mubr.f32.gmra.mrb[0].mxu0 %v1207
      %v1368 = vpop.f32.mrb[0].mxu0
      %v1369 = vadd.f32 %v1204, %v1368
      %v1370 = vpop.f32.mrb[0].mxu0
      %1371 = vmatprep.mubr.f32.mxu0 0.0
      %1372 = vmatmul.mubr.f32.gmra.mrb[0].mxu0 %v1210
      %v1373 = vpop.f32.mrb[0].mxu0
      %v1374 = vadd.f32 %v1204, %v1373
      %v1375 = vpop.f32.mrb[0].mxu0
      %1376 = vmatprep.mubr.f32.mxu0 0.0
      %1377 = vmatmul.mubr.f32.gmra.mrb[0].mxu0 %v1213
      %v1378 = vpop.f32.mrb[0].mxu0
      %v1379 = vadd.f32 %v1204, %v1378
      %v1380 = vpop.f32.mrb[0].mxu0
      %1381 = vmatprep.mubr.f32.mxu0 0.0
      %1382 = vmatmul.mubr.f32.gmra.mrb[0].mxu0 %v1216
      %v1383 = vpop.f32.mrb[0].mxu0
      %v1384 = vadd.f32 %v1204, %v1383
      %v1385 = vpop.f32.mrb[0].mxu0
      %1386 = vmatprep.mubr.f32.mxu0 0.0
      %1387 = vmatmul.mubr.f32.gmra.mrb[0].mxu0 %v1219
      %v1388 = vpop.f32.mrb[0].mxu0
      %v1389 = vadd.f32 %v1204, %v1388
      %v1390 = vpop.f32.mrb[0].mxu0
      %1391 = vmatprep.mubr.f32.mxu0 0.0
      %1392 = vmatmul.mubr.f32.gmra.mrb[0].mxu0 %v1222
      %v1393 = vpop.f32.mrb[0].mxu0
      %v1394 = vadd.f32 %v1204, %v1393
      %v1395 = vpop.f32.mrb[0].mxu0
      %1396 = vmatprep.mubr.f32.mxu0 0.0
      %1397 = vmatmul.mubr.f32.gmra.mrb[0].mxu0 %v1225
      %v1398 = vpop.f32.mrb[0].mxu0
      %v1399 = vadd.f32 %v1204, %v1398
      %v1400 = vpop.f32.mrb[0].mxu0
      %1401 = vmatprep.mubr.f32.mxu0 0.0
      %1402 = vmatmul.mubr.f32.gmra.mrb[0].mxu0 %v1228
      %v1403 = vpop.f32.mrb[0].mxu0
      %v1404 = vadd.f32 %v1204, %v1403
      %v1405 = vpop.f32.mrb[0].mxu0
      %1406 = vmatprep.mubr.f32.mxu0 0.0
      %1407 = vmatmul.mubr.f32.gmra.mrb[0].mxu0 %v1231
      %v1408 = vpop.f32.mrb[0].mxu0
      %v1409 = vadd.f32 %v1204, %v1408
      %v1410 = vpop.f32.mrb[0].mxu0
      %1411 = vmatprep.mubr.f32.mxu0 0.0
      %1412 = vmatmul.mubr.f32.gmra.mrb[0].mxu0 %v1234
      %v1413 = vpop.f32.mrb[0].mxu0
      %v1414 = vadd.f32 %v1204, %v1413
      %v1415 = vpop.f32.mrb[0].mxu0
      %1416 = vmatprep.mubr.f32.mxu0 0.0
      %1417 = vmatmul.mubr.f32.gmra.mrb[0].mxu0 %v1237
      %v1418 = vpop.f32.mrb[0].mxu0
      %v1419 = vadd.f32 %v1204, %v1418
      %v1420 = vpop.f32.mrb[0].mxu0
      %1421 = vmatprep.mubr.f32.mxu0 0.0
      %1422 = vmatmul.mubr.f32.gmra.mrb[0].mxu0 %v1240
      %v1423 = vpop.f32.mrb[0].mxu0
      %v1424 = vadd.f32 %v1204, %v1423
      %v1425 = vpop.f32.mrb[0].mxu0
      %1426 = vmatprep.mubr.f32.mxu0 0.0
      %1427 = vmatmul.mubr.f32.gmra.mrb[0].mxu0 %v1243
      %v1428 = vpop.f32.mrb[0].mxu0
      %v1429 = vadd.f32 %v1204, %v1428
      %v1430 = vpop.f32.mrb[0].mxu0
      %1431 = vmatprep.mubr.f32.mxu0 0.0
      %1432 = vmatmul.mubr.f32.gmra.mrb[0].mxu0 %v1246
      %v1433 = vpop.f32.mrb[0].mxu0
      %v1434 = vadd.f32 %v1204, %v1433
      %v1435 = vpop.f32.mrb[0].mxu0
      %1436 = vmatprep.mubr.f32.mxu0 0.0
      %1437 = vmatmul.mubr.f32.gmra.mrb[0].mxu0 %v1249
      %v1438 = vpop.f32.mrb[0].mxu0
      %v1439 = vadd.f32 %v1204, %v1438
      %v1440 = vpop.f32.mrb[0].mxu0
      %1441 = vmatprep.mubr.f32.mxu0 0.0
      %1442 = vmatmul.mubr.f32.gmra.mrb[0].mxu0 %v1252
      %v1443 = vpop.f32.mrb[0].mxu0
      %v1444 = vadd.f32 %v1204, %v1443
      %v1445 = vpop.f32.mrb[0].mxu0
      %1446 = vmatprep.mubr.f32.mxu0 0.0
      %1447 = vmatmul.mubr.f32.gmra.mrb[0].mxu0 %v1255
      %v1448 = vpop.f32.mrb[0].mxu0
      %v1449 = vadd.f32 %v1204, %v1448
      %v1450 = vpop.f32.mrb[0].mxu0
      %1451 = vmatprep.mubr.f32.mxu0 0.0
      %1452 = vmatmul.mubr.f32.gmra.mrb[0].mxu0 %v1258
      %v1453 = vpop.f32.mrb[0].mxu0
      %v1454 = vadd.f32 %v1204, %v1453
      %v1455 = vpop.f32.mrb[0].mxu0
      %1456 = vmatprep.mubr.f32.mxu0 0.0
      %1457 = vmatmul.mubr.f32.gmra.mrb[0].mxu0 %v1261
      %v1458 = vpop.f32.mrb[0].mxu0
      %v1459 = vadd.f32 %v1204, %v1458
      %v1460 = vpop.f32.mrb[0].mxu0
      %1461 = vmatprep.mubr.f32.mxu0 0.0
      %1462 = vmatmul.mubr.f32.gmra.mrb[0].mxu0 %v1264
      %v1463 = vpop.f32.mrb[0].mxu0
      %v1464 = vadd.f32 %v1204, %v1463
      %v1465 = vpop.f32.mrb[0].mxu0
      %1466 = vmatprep.mubr.f32.mxu0 0.0
      %1467 = vmatmul.mubr.f32.gmra.mrb[0].mxu0 %v1267
      %v1468 = vpop.f32.mrb[0].mxu0
      %v1469 = vadd.f32 %v1204, %v1468
      %v1470 = vpop.f32.mrb[0].mxu0
      %1471 = vmatprep.mubr.f32.mxu0 0.0
      %1472 = vmatmul.mubr.f32.gmra.mrb[0].mxu0 %v1270
      %v1473 = vpop.f32.mrb[0].mxu0
      %v1474 = vadd.f32 %v1204, %v1473
      %v1475 = vpop.f32.mrb[0].mxu0
      %1476 = vmatprep.mubr.f32.mxu0 0.0
      %1477 = vmatmul.mubr.f32.gmra.mrb[0].mxu0 %v1273
      %v1478 = vpop.f32.mrb[0].mxu0
      %v1479 = vadd.f32 %v1204, %v1478
      %v1480 = vpop.f32.mrb[0].mxu0
      %1481 = vmatprep.mubr.f32.mxu0 0.0
      %1482 = vmatmul.mubr.f32.gmra.mrb[0].mxu0 %v1276
      %v1483 = vpop.f32.mrb[0].mxu0
      %v1484 = vadd.f32 %v1204, %v1483
      %v1485 = vpop.f32.mrb[0].mxu0
      %1486 = vmatprep.mubr.f32.mxu0 0.0
      %1487 = vmatmul.mubr.f32.gmra.mrb[0].mxu0 %v1279
      %v1488 = vpop.f32.mrb[0].mxu0
      %v1489 = vadd.f32 %v1204, %v1488
      %v1490 = vpop.f32.mrb[0].mxu0
      %1491 = vmatprep.mubr.f32.mxu0 0.0
      %1492 = vmatmul.mubr.f32.gmra.mrb[0].mxu0 %v1282
      %v1493 = vpop.f32.mrb[0].mxu0
      %v1494 = vadd.f32 %v1204, %v1493
      %v1495 = vpop.f32.mrb[0].mxu0
      %1496 = vmatprep.mubr.f32.mxu0 0.0
      %1497 = vmatmul.mubr.f32.gmra.mrb[0].mxu0 %v1285
      %v1498 = vpop.f32.mrb[0].mxu0
      %v1499 = vadd.f32 %v1204, %v1498
      %v1500 = vpop.f32.mrb[0].mxu0
      %1501 = vmatprep.mubr.f32.mxu0 0.0
      %1502 = vmatmul.mubr.f32.gmra.mrb[0].mxu0 %v1288
      %v1503 = vpop.f32.mrb[0].mxu0
      %v1504 = vadd.f32 %v1204, %v1503
      %v1505 = vpop.f32.mrb[0].mxu0
      %1506 = vmatprep.mubr.f32.mxu0 0.0
      %1507 = vmatmul.mubr.f32.gmra.mrb[0].mxu0 %v1291
      %v1508 = vpop.f32.mrb[0].mxu0
      %v1509 = vadd.f32 %v1204, %v1508
      %v1510 = vpop.f32.mrb[0].mxu0
      %1511 = vmatprep.mubr.f32.mxu0 0.0
      %1512 = vmatmul.mubr.f32.gmra.mrb[0].mxu0 %v1294
      %v1513 = vpop.f32.mrb[0].mxu0
      %v1514 = vadd.f32 %v1204, %v1513
      %v1515 = vpop.f32.mrb[0].mxu0
      %1516 = vmatprep.mubr.f32.mxu0 0.0
      %1517 = vmatmul.mubr.f32.gmra.mrb[0].mxu0 %v1297
      %v1518 = vpop.f32.mrb[0].mxu0
      %v1519 = vadd.f32 %v1204, %v1518
      %v1520 = vpop.f32.mrb[0].mxu0
      %1521 = vmatprep.mubr.f32.mxu0 0.0
      %1522 = vmatmul.mubr.f32.gmra.mrb[0].mxu0 %v1300
      %v1523 = vpop.f32.mrb[0].mxu0
      %v1524 = vadd.f32 %v1204, %v1523
      %v1525 = vpop.f32.mrb[0].mxu0
      %1526 = vdwg.mxu0
      %v1527 = vld [vmem:[%s10] sm:$0xff]
      %v1528 = vld [vmem:[%s10 + $0x8] sm:$0xff]
      %v1529 = vld [vmem:[%s10 + $0x10] sm:$0xff]
      %v1530 = vld [vmem:[%s10 + $0x18] sm:$0xff]
      %v1531 = vld [vmem:[%s11] sm:$0x1]
      %v1533 = vlaneseq
      %v1534 = vshrl.u32 %v1533, 7
      %v1535 = vsub.s32 0, %v1534
      %v1536 = vrot.slane %v1531, %v1535
      %1538 = vmatprep.subr.mxu0 0.0
      %1539 = vmatpush1.msra.mxu0 %v1527
      %1540 = vmatprep.subr.mxu0 0.0
      %1541 = vmatpush1.msra.mxu0 %v1528
      %1542 = vmatprep.subr.mxu0 0.0
      %1543 = vmatpush1.msra.mxu0 %v1529
      %1544 = vmatprep.subr.mxu0 0.0
      %1545 = vmatpush1.msra.mxu0 %v1530
      %1546 = vmatprep.subr.mxu0 0.0
      %1547 = vmatpush1.msra.mxu0 0.0
      %1548 = vmatprep.subr.mxu0 0.0
      %1549 = vmatpush1.msra.mxu0 0.0
      %1550 = vmatprep.subr.mxu0 0.0
      %1551 = vmatpush1.msra.mxu0 0.0
      %1552 = vmatprep.subr.mxu0 0.0
      %1553 = vmatpush1.msra.mxu0 0.0
      %1554 = vmatprep.subr.mxu0 0.0
      %1555 = vmatpush1.msra.mxu0 0.0
      %1556 = vmatprep.subr.mxu0 0.0
      %1557 = vmatpush1.msra.mxu0 0.0
      %1558 = vmatprep.subr.mxu0 0.0
      %1559 = vmatpush1.msra.mxu0 0.0
      %1560 = vmatprep.subr.mxu0 0.0
      %1561 = vmatpush1.msra.mxu0 0.0
      %1562 = vmatprep.subr.mxu0 0.0
      %1563 = vmatpush1.msra.mxu0 0.0
      %1564 = vmatprep.subr.mxu0 0.0
      %1565 = vmatpush1.msra.mxu0 0.0
      %1566 = vmatprep.subr.mxu0 0.0
      %1567 = vmatpush1.msra.mxu0 0.0
      %1568 = vmatprep.subr.mxu0 0.0
      %1569 = vmatpush1.msra.mxu0 0.0
      %1570 = vmatprep.subr.mxu0 0.0
      %1571 = vmatpush1.msra.mxu0 0.0
      %1572 = vmatprep.subr.mxu0 0.0
      %1573 = vmatpush1.msra.mxu0 0.0
      %1574 = vmatprep.subr.mxu0 0.0
      %1575 = vmatpush1.msra.mxu0 0.0
      %1576 = vmatprep.subr.mxu0 0.0
      %1577 = vmatpush1.msra.mxu0 0.0
      %1578 = vmatprep.subr.mxu0 0.0
      %1579 = vmatpush1.msra.mxu0 0.0
      %1580 = vmatprep.subr.mxu0 0.0
      %1581 = vmatpush1.msra.mxu0 0.0
      %1582 = vmatprep.subr.mxu0 0.0
      %1583 = vmatpush1.msra.mxu0 0.0
      %1584 = vmatprep.subr.mxu0 0.0
      %1585 = vmatpush1.msra.mxu0 0.0
      %1586 = vmatprep.subr.mxu0 0.0
      %1587 = vmatpush1.msra.mxu0 0.0
      %1588 = vmatprep.subr.mxu0 0.0
      %1589 = vmatpush1.msra.mxu0 0.0
      %1590 = vmatprep.subr.mxu0 0.0
      %1591 = vmatpush1.msra.mxu0 0.0
      %1592 = vmatprep.subr.mxu0 0.0
      %1593 = vmatpush1.msra.mxu0 0.0
      %1594 = vmatprep.subr.mxu0 0.0
      %1595 = vmatpush1.msra.mxu0 0.0
      %1596 = vmatprep.subr.mxu0 0.0
      %1597 = vmatpush1.msra.mxu0 0.0
      %1598 = vmatprep.subr.mxu0 0.0
      %1599 = vmatpush1.msra.mxu0 0.0
      %1600 = vmatprep.subr.mxu0 0.0
      %1601 = vmatpush1.msra.mxu0 0.0
      %1602 = vmatprep.mubr.f32.mxu0 0.0
      %1603 = vmatmul.mubr.f32.gmra.mrb[0].mxu0 %v1207
      %v1604 = vpop.f32.mrb[0].mxu0
      %v1605 = vadd.f32 %v1536, %v1604
      %v1606 = vpop.f32.mrb[0].mxu0
      %1607 = vmatprep.mubr.f32.mxu0 0.0
      %1608 = vmatmul.mubr.f32.gmra.mrb[0].mxu0 %v1210
      %v1609 = vpop.f32.mrb[0].mxu0
      %v1610 = vadd.f32 %v1536, %v1609
      %v1611 = vpop.f32.mrb[0].mxu0
      %1612 = vmatprep.mubr.f32.mxu0 0.0
      %1613 = vmatmul.mubr.f32.gmra.mrb[0].mxu0 %v1213
      %v1614 = vpop.f32.mrb[0].mxu0
      %v1615 = vadd.f32 %v1536, %v1614
      %v1616 = vpop.f32.mrb[0].mxu0
      %1617 = vmatprep.mubr.f32.mxu0 0.0
      %1618 = vmatmul.mubr.f32.gmra.mrb[0].mxu0 %v1216
      %v1619 = vpop.f32.mrb[0].mxu0
      %v1620 = vadd.f32 %v1536, %v1619
      %v1621 = vpop.f32.mrb[0].mxu0
      %1622 = vmatprep.mubr.f32.mxu0 0.0
      %1623 = vmatmul.mubr.f32.gmra.mrb[0].mxu0 %v1219
      %v1624 = vpop.f32.mrb[0].mxu0
      %v1625 = vadd.f32 %v1536, %v1624
      %v1626 = vpop.f32.mrb[0].mxu0
      %1627 = vmatprep.mubr.f32.mxu0 0.0
      %1628 = vmatmul.mubr.f32.gmra.mrb[0].mxu0 %v1222
      %v1629 = vpop.f32.mrb[0].mxu0
      %v1630 = vadd.f32 %v1536, %v1629
      %v1631 = vpop.f32.mrb[0].mxu0
      %1632 = vmatprep.mubr.f32.mxu0 0.0
      %1633 = vmatmul.mubr.f32.gmra.mrb[0].mxu0 %v1225
      %v1634 = vpop.f32.mrb[0].mxu0
      %v1635 = vadd.f32 %v1536, %v1634
      %v1636 = vpop.f32.mrb[0].mxu0
      %1637 = vmatprep.mubr.f32.mxu0 0.0
      %1638 = vmatmul.mubr.f32.gmra.mrb[0].mxu0 %v1228
      %v1639 = vpop.f32.mrb[0].mxu0
      %v1640 = vadd.f32 %v1536, %v1639
      %v1641 = vpop.f32.mrb[0].mxu0
      %1642 = vmatprep.mubr.f32.mxu0 0.0
      %1643 = vmatmul.mubr.f32.gmra.mrb[0].mxu0 %v1231
      %v1644 = vpop.f32.mrb[0].mxu0
      %v1645 = vadd.f32 %v1536, %v1644
      %v1646 = vpop.f32.mrb[0].mxu0
      %1647 = vmatprep.mubr.f32.mxu0 0.0
      %1648 = vmatmul.mubr.f32.gmra.mrb[0].mxu0 %v1234
      %v1649 = vpop.f32.mrb[0].mxu0
      %v1650 = vadd.f32 %v1536, %v1649
      %v1651 = vpop.f32.mrb[0].mxu0
      %1652 = vmatprep.mubr.f32.mxu0 0.0
      %1653 = vmatmul.mubr.f32.gmra.mrb[0].mxu0 %v1237
      %v1654 = vpop.f32.mrb[0].mxu0
      %v1655 = vadd.f32 %v1536, %v1654
      %v1656 = vpop.f32.mrb[0].mxu0
      %1657 = vmatprep.mubr.f32.mxu0 0.0
      %1658 = vmatmul.mubr.f32.gmra.mrb[0].mxu0 %v1240
      %v1659 = vpop.f32.mrb[0].mxu0
      %v1660 = vadd.f32 %v1536, %v1659
      %v1661 = vpop.f32.mrb[0].mxu0
      %1662 = vmatprep.mubr.f32.mxu0 0.0
      %1663 = vmatmul.mubr.f32.gmra.mrb[0].mxu0 %v1243
      %v1664 = vpop.f32.mrb[0].mxu0
      %v1665 = vadd.f32 %v1536, %v1664
      %v1666 = vpop.f32.mrb[0].mxu0
      %1667 = vmatprep.mubr.f32.mxu0 0.0
      %1668 = vmatmul.mubr.f32.gmra.mrb[0].mxu0 %v1246
      %v1669 = vpop.f32.mrb[0].mxu0
      %v1670 = vadd.f32 %v1536, %v1669
      %v1671 = vpop.f32.mrb[0].mxu0
      %1672 = vmatprep.mubr.f32.mxu0 0.0
      %1673 = vmatmul.mubr.f32.gmra.mrb[0].mxu0 %v1249
      %v1674 = vpop.f32.mrb[0].mxu0
      %v1675 = vadd.f32 %v1536, %v1674
      %v1676 = vpop.f32.mrb[0].mxu0
      %1677 = vmatprep.mubr.f32.mxu0 0.0
      %1678 = vmatmul.mubr.f32.gmra.mrb[0].mxu0 %v1252
      %v1679 = vpop.f32.mrb[0].mxu0
      %v1680 = vadd.f32 %v1536, %v1679
      %v1681 = vpop.f32.mrb[0].mxu0
      %1682 = vmatprep.mubr.f32.mxu0 0.0
      %1683 = vmatmul.mubr.f32.gmra.mrb[0].mxu0 %v1255
      %v1684 = vpop.f32.mrb[0].mxu0
      %v1685 = vadd.f32 %v1536, %v1684
      %v1686 = vpop.f32.mrb[0].mxu0
      %1687 = vmatprep.mubr.f32.mxu0 0.0
      %1688 = vmatmul.mubr.f32.gmra.mrb[0].mxu0 %v1258
      %v1689 = vpop.f32.mrb[0].mxu0
      %v1690 = vadd.f32 %v1536, %v1689
      %v1691 = vpop.f32.mrb[0].mxu0
      %1692 = vmatprep.mubr.f32.mxu0 0.0
      %1693 = vmatmul.mubr.f32.gmra.mrb[0].mxu0 %v1261
      %v1694 = vpop.f32.mrb[0].mxu0
      %v1695 = vadd.f32 %v1536, %v1694
      %v1696 = vpop.f32.mrb[0].mxu0
      %1697 = vmatprep.mubr.f32.mxu0 0.0
      %1698 = vmatmul.mubr.f32.gmra.mrb[0].mxu0 %v1264
      %v1699 = vpop.f32.mrb[0].mxu0
      %v1700 = vadd.f32 %v1536, %v1699
      %v1701 = vpop.f32.mrb[0].mxu0
      %1702 = vmatprep.mubr.f32.mxu0 0.0
      %1703 = vmatmul.mubr.f32.gmra.mrb[0].mxu0 %v1267
      %v1704 = vpop.f32.mrb[0].mxu0
      %v1705 = vadd.f32 %v1536, %v1704
      %v1706 = vpop.f32.mrb[0].mxu0
      %1707 = vmatprep.mubr.f32.mxu0 0.0
      %1708 = vmatmul.mubr.f32.gmra.mrb[0].mxu0 %v1270
      %v1709 = vpop.f32.mrb[0].mxu0
      %v1710 = vadd.f32 %v1536, %v1709
      %v1711 = vpop.f32.mrb[0].mxu0
      %1712 = vmatprep.mubr.f32.mxu0 0.0
      %1713 = vmatmul.mubr.f32.gmra.mrb[0].mxu0 %v1273
      %v1714 = vpop.f32.mrb[0].mxu0
      %v1715 = vadd.f32 %v1536, %v1714
      %v1716 = vpop.f32.mrb[0].mxu0
      %1717 = vmatprep.mubr.f32.mxu0 0.0
      %1718 = vmatmul.mubr.f32.gmra.mrb[0].mxu0 %v1276
      %v1719 = vpop.f32.mrb[0].mxu0
      %v1720 = vadd.f32 %v1536, %v1719
      %v1721 = vpop.f32.mrb[0].mxu0
      %1722 = vmatprep.mubr.f32.mxu0 0.0
      %1723 = vmatmul.mubr.f32.gmra.mrb[0].mxu0 %v1279
      %v1724 = vpop.f32.mrb[0].mxu0
      %v1725 = vadd.f32 %v1536, %v1724
      %v1726 = vpop.f32.mrb[0].mxu0
      %1727 = vmatprep.mubr.f32.mxu0 0.0
      %1728 = vmatmul.mubr.f32.gmra.mrb[0].mxu0 %v1282
      %v1729 = vpop.f32.mrb[0].mxu0
      %v1730 = vadd.f32 %v1536, %v1729
      %v1731 = vpop.f32.mrb[0].mxu0
      %1732 = vmatprep.mubr.f32.mxu0 0.0
      %1733 = vmatmul.mubr.f32.gmra.mrb[0].mxu0 %v1285
      %v1734 = vpop.f32.mrb[0].mxu0
      %v1735 = vadd.f32 %v1536, %v1734
      %v1736 = vpop.f32.mrb[0].mxu0
      %1737 = vmatprep.mubr.f32.mxu0 0.0
      %1738 = vmatmul.mubr.f32.gmra.mrb[0].mxu0 %v1288
      %v1739 = vpop.f32.mrb[0].mxu0
      %v1740 = vadd.f32 %v1536, %v1739
      %v1741 = vpop.f32.mrb[0].mxu0
      %1742 = vmatprep.mubr.f32.mxu0 0.0
      %1743 = vmatmul.mubr.f32.gmra.mrb[0].mxu0 %v1291
      %v1744 = vpop.f32.mrb[0].mxu0
      %v1745 = vadd.f32 %v1536, %v1744
      %v1746 = vpop.f32.mrb[0].mxu0
      %1747 = vmatprep.mubr.f32.mxu0 0.0
      %1748 = vmatmul.mubr.f32.gmra.mrb[0].mxu0 %v1294
      %v1749 = vpop.f32.mrb[0].mxu0
      %v1750 = vadd.f32 %v1536, %v1749
      %v1751 = vpop.f32.mrb[0].mxu0
      %1752 = vmatprep.mubr.f32.mxu0 0.0
      %1753 = vmatmul.mubr.f32.gmra.mrb[0].mxu0 %v1297
      %v1754 = vpop.f32.mrb[0].mxu0
      %v1755 = vadd.f32 %v1536, %v1754
      %v1756 = vpop.f32.mrb[0].mxu0
      %1757 = vmatprep.mubr.f32.mxu0 0.0
      %1758 = vmatmul.mubr.f32.gmra.mrb[0].mxu0 %v1300
      %v1759 = vpop.f32.mrb[0].mxu0
      %v1760 = vadd.f32 %v1536, %v1759
      %v1761 = vpop.f32.mrb[0].mxu0
      %1762 = vdwg.mxu0
      %v1764 = vsel %vm593, %v1177, 0
      %v1767 = vsel %vm593, %v1182, 0
      %v1770 = vsel %vm593, %v1187, 0
      %v1773 = vsel %vm593, %v1192, 0
      %v1776 = vsel %vm593, %v1369, 0
      %v1779 = vsel %vm593, %v1374, 0
      %v1782 = vsel %vm593, %v1379, 0
      %v1785 = vsel %vm593, %v1384, 0
      %v1788 = vsel %vm593, %v1389, 0
      %v1791 = vsel %vm593, %v1394, 0
      %v1794 = vsel %vm593, %v1399, 0
      %v1797 = vsel %vm593, %v1404, 0
      %v1800 = vsel %vm593, %v1409, 0
      %v1803 = vsel %vm593, %v1414, 0
      %v1806 = vsel %vm593, %v1419, 0
      %v1809 = vsel %vm593, %v1424, 0
      %v1812 = vsel %vm593, %v1429, 0
      %v1815 = vsel %vm593, %v1434, 0
      %v1818 = vsel %vm593, %v1439, 0
      %v1821 = vsel %vm593, %v1444, 0
      %v1824 = vsel %vm593, %v1449, 0
      %v1827 = vsel %vm593, %v1454, 0
      %v1830 = vsel %vm593, %v1459, 0
      %v1833 = vsel %vm593, %v1464, 0
      %v1836 = vsel %vm593, %v1469, 0
      %v1839 = vsel %vm593, %v1474, 0
      %v1842 = vsel %vm593, %v1479, 0
      %v1845 = vsel %vm593, %v1484, 0
      %v1848 = vsel %vm593, %v1489, 0
      %v1851 = vsel %vm593, %v1494, 0
      %v1854 = vsel %vm593, %v1499, 0
      %v1857 = vsel %vm593, %v1504, 0
      %v1860 = vsel %vm593, %v1509, 0
      %v1863 = vsel %vm593, %v1514, 0
      %v1866 = vsel %vm593, %v1519, 0
      %v1869 = vsel %vm593, %v1524, 0
      %1871 = vmatprep.subr.mxu0 0.0
      %1872 = vmatpush1.xpose.msra.mxu0 %v1776
      %1873 = vmatprep.subr.mxu0 0.0
      %1874 = vmatpush1.xpose.msra.mxu0 %v1779
      %1875 = vmatprep.subr.mxu0 0.0
      %1876 = vmatpush1.xpose.msra.mxu0 %v1782
      %1877 = vmatprep.subr.mxu0 0.0
      %1878 = vmatpush1.xpose.msra.mxu0 %v1785
      %1879 = vmatprep.subr.mxu0 0.0
      %1880 = vmatpush1.xpose.msra.mxu0 %v1788
      %1881 = vmatprep.subr.mxu0 0.0
      %1882 = vmatpush1.xpose.msra.mxu0 %v1791
      %1883 = vmatprep.subr.mxu0 0.0
      %1884 = vmatpush1.xpose.msra.mxu0 %v1794
      %1885 = vmatprep.subr.mxu0 0.0
      %1886 = vmatpush1.xpose.msra.mxu0 %v1797
      %1887 = vmatprep.subr.mxu0 0.0
      %1888 = vmatpush1.xpose.msra.mxu0 %v1800
      %1889 = vmatprep.subr.mxu0 0.0
      %1890 = vmatpush1.xpose.msra.mxu0 %v1803
      %1891 = vmatprep.subr.mxu0 0.0
      %1892 = vmatpush1.xpose.msra.mxu0 %v1806
      %1893 = vmatprep.subr.mxu0 0.0
      %1894 = vmatpush1.xpose.msra.mxu0 %v1809
      %1895 = vmatprep.subr.mxu0 0.0
      %1896 = vmatpush1.xpose.msra.mxu0 %v1812
      %1897 = vmatprep.subr.mxu0 0.0
      %1898 = vmatpush1.xpose.msra.mxu0 %v1815
      %1899 = vmatprep.subr.mxu0 0.0
      %1900 = vmatpush1.xpose.msra.mxu0 %v1818
      %1901 = vmatprep.subr.mxu0 0.0
      %1902 = vmatpush1.xpose.msra.mxu0 %v1821
      %1903 = vmatprep.subr.mxu0 0.0
      %1904 = vmatpush1.xpose.msra.mxu0 %v1824
      %1905 = vmatprep.subr.mxu0 0.0
      %1906 = vmatpush1.xpose.msra.mxu0 %v1827
      %1907 = vmatprep.subr.mxu0 0.0
      %1908 = vmatpush1.xpose.msra.mxu0 %v1830
      %1909 = vmatprep.subr.mxu0 0.0
      %1910 = vmatpush1.xpose.msra.mxu0 %v1833
      %1911 = vmatprep.subr.mxu0 0.0
      %1912 = vmatpush1.xpose.msra.mxu0 %v1836
      %1913 = vmatprep.subr.mxu0 0.0
      %1914 = vmatpush1.xpose.msra.mxu0 %v1839
      %1915 = vmatprep.subr.mxu0 0.0
      %1916 = vmatpush1.xpose.msra.mxu0 %v1842
      %1917 = vmatprep.subr.mxu0 0.0
      %1918 = vmatpush1.xpose.msra.mxu0 %v1845
      %1919 = vmatprep.subr.mxu0 0.0
      %1920 = vmatpush1.xpose.msra.mxu0 %v1848
      %1921 = vmatprep.subr.mxu0 0.0
      %1922 = vmatpush1.xpose.msra.mxu0 %v1851
      %1923 = vmatprep.subr.mxu0 0.0
      %1924 = vmatpush1.xpose.msra.mxu0 %v1854
      %1925 = vmatprep.subr.mxu0 0.0
      %1926 = vmatpush1.xpose.msra.mxu0 %v1857
      %1927 = vmatprep.subr.mxu0 0.0
      %1928 = vmatpush1.xpose.msra.mxu0 %v1860
      %1929 = vmatprep.subr.mxu0 0.0
      %1930 = vmatpush1.xpose.msra.mxu0 %v1863
      %1931 = vmatprep.subr.mxu0 0.0
      %1932 = vmatpush1.xpose.msra.mxu0 %v1866
      %1933 = vmatprep.subr.mxu0 0.0
      %1934 = vmatpush1.xpose.msra.mxu0 %v1869
      %1935 = vmatprep.mubr.f32.mxu0 0.0
      %1936 = vmatmul.mubr.f32.gmra.mrb[0].mxu0 %v1764
      %v1937 = vpop.f32.mrb[0].mxu0
      %v1938 = vadd.f32 0.0, %v1937
      %v1939 = vpop.f32.mrb[0].mxu0
      %v1940 = vadd.f32 0.0, %v1939
      %1941 = vmatprep.mubr.f32.mxu0 0.0
      %1942 = vmatmul.mubr.f32.gmra.mrb[0].mxu0 %v1767
      %v1943 = vpop.f32.mrb[0].mxu0
      %v1944 = vadd.f32 0.0, %v1943
      %v1945 = vpop.f32.mrb[0].mxu0
      %v1946 = vadd.f32 0.0, %v1945
      %1947 = vmatprep.mubr.f32.mxu0 0.0
      %1948 = vmatmul.mubr.f32.gmra.mrb[0].mxu0 %v1770
      %v1949 = vpop.f32.mrb[0].mxu0
      %v1950 = vadd.f32 0.0, %v1949
      %v1951 = vpop.f32.mrb[0].mxu0
      %v1952 = vadd.f32 0.0, %v1951
      %1953 = vmatprep.mubr.f32.mxu0 0.0
      %1954 = vmatmul.mubr.f32.gmra.mrb[0].mxu0 %v1773
      %v1955 = vpop.f32.mrb[0].mxu0
      %v1956 = vadd.f32 0.0, %v1955
      %v1957 = vpop.f32.mrb[0].mxu0
      %v1958 = vadd.f32 0.0, %v1957
      %1959 = vdwg.mxu0
      %v1960 = vmul.f32 %v1938, 0.17677669
      %v1961 = vmul.f32 %v1940, 0.17677669
      %v1962 = vmul.f32 %v1944, 0.17677669
      %v1963 = vmul.f32 %v1946, 0.17677669
      %v1964 = vmul.f32 %v1950, 0.17677669
      %v1965 = vmul.f32 %v1952, 0.17677669
      %v1966 = vmul.f32 %v1956, 0.17677669
      %v1967 = vmul.f32 %v1958, 0.17677669
      %v1968 = vmax.f32 %v1960, %v1961
      %1969 = vmax.xlane.f32.xlu0 %v1968
      %v1970 = vpop.xlane.xlu0 %1969
      %v1971 = vmax.f32 %v1962, %v1963
      %1972 = vmax.xlane.f32.xlu0 %v1971
      %v1973 = vpop.xlane.xlu0 %1972
      %v1974 = vmax.f32 %v1964, %v1965
      %1975 = vmax.xlane.f32.xlu0 %v1974
      %v1976 = vpop.xlane.xlu0 %1975
      %v1977 = vmax.f32 %v1966, %v1967
      %1978 = vmax.xlane.f32.xlu0 %v1977
      %v1979 = vpop.xlane.xlu0 %1978
      %v1980 = vsub.f32 %v1960, %v1970
      %v1981 = vsub.f32 %v1961, %v1970
      %v1982 = vsub.f32 %v1962, %v1973
      %v1983 = vsub.f32 %v1963, %v1973
      %v1984 = vsub.f32 %v1964, %v1976
      %v1985 = vsub.f32 %v1965, %v1976
      %v1986 = vsub.f32 %v1966, %v1979
      %v1987 = vsub.f32 %v1967, %v1979
      %v1988 = vmul.f32 %v1980, 1.442695
      %v1989 = vpow.pop %v1988
      %v1990 = vmul.f32 %v1981, 1.442695
      %v1991 = vpow.pop %v1990
      %v1992 = vmul.f32 %v1982, 1.442695
      %v1993 = vpow.pop %v1992
      %v1994 = vmul.f32 %v1983, 1.442695
      %v1995 = vpow.pop %v1994
      %v1996 = vmul.f32 %v1984, 1.442695
      %v1997 = vpow.pop %v1996
      %v1998 = vmul.f32 %v1985, 1.442695
      %v1999 = vpow.pop %v1998
      %v2000 = vmul.f32 %v1986, 1.442695
      %v2001 = vpow.pop %v2000
      %v2002 = vmul.f32 %v1987, 1.442695
      %v2003 = vpow.pop %v2002
      %v2004 = vadd.f32 %v1989, %v1991
      %2005 = vadd.xlane.f32.xlu0 %v2004
      %v2006 = vpop.xlane.xlu0 %2005
      %v2007 = vadd.f32 %v1993, %v1995
      %2008 = vadd.xlane.f32.xlu0 %v2007
      %v2009 = vpop.xlane.xlu0 %2008
      %v2010 = vadd.f32 %v1997, %v1999
      %2011 = vadd.xlane.f32.xlu0 %v2010
      %v2012 = vpop.xlane.xlu0 %2011
      %v2013 = vadd.f32 %v2001, %v2003
      %2014 = vadd.xlane.f32.xlu0 %v2013
      %v2015 = vpop.xlane.xlu0 %2014
      %v2016 = vrcp.pop %v2006
      %v2017 = vmul.f32 %v1989, %v2016
      %v2018 = vmul.f32 %v1991, %v2016
      %v2019 = vrcp.pop %v2009
      %v2020 = vmul.f32 %v1993, %v2019
      %v2021 = vmul.f32 %v1995, %v2019
      %v2022 = vrcp.pop %v2012
      %v2023 = vmul.f32 %v1997, %v2022
      %v2024 = vmul.f32 %v1999, %v2022
      %v2025 = vrcp.pop %v2015
      %v2026 = vmul.f32 %v2001, %v2025
      %v2027 = vmul.f32 %v2003, %v2025
      %2028 = vmatprep.subr.mxu0 0.0
      %2029 = vmatpush1.msra.mxu0 %v1605
      %2030 = vmatprep.subr.mxu0 0.0
      %2031 = vmatpush1.msra.mxu0 %v1610
      %2032 = vmatprep.subr.mxu0 0.0
      %2033 = vmatpush1.msra.mxu0 %v1615
      %2034 = vmatprep.subr.mxu0 0.0
      %2035 = vmatpush1.msra.mxu0 %v1620
      %2036 = vmatprep.subr.mxu0 0.0
      %2037 = vmatpush1.msra.mxu0 %v1625
      %2038 = vmatprep.subr.mxu0 0.0
      %2039 = vmatpush1.msra.mxu0 %v1630
      %2040 = vmatprep.subr.mxu0 0.0
      %2041 = vmatpush1.msra.mxu0 %v1635
      %2042 = vmatprep.subr.mxu0 0.0
      %2043 = vmatpush1.msra.mxu0 %v1640
      %2044 = vmatprep.subr.mxu0 0.0
      %2045 = vmatpush1.msra.mxu0 %v1645
      %2046 = vmatprep.subr.mxu0 0.0
      %2047 = vmatpush1.msra.mxu0 %v1650
      %2048 = vmatprep.subr.mxu0 0.0
      %2049 = vmatpush1.msra.mxu0 %v1655
      %2050 = vmatprep.subr.mxu0 0.0
      %2051 = vmatpush1.msra.mxu0 %v1660
      %2052 = vmatprep.subr.mxu0 0.0
      %2053 = vmatpush1.msra.mxu0 %v1665
      %2054 = vmatprep.subr.mxu0 0.0
      %2055 = vmatpush1.msra.mxu0 %v1670
      %2056 = vmatprep.subr.mxu0 0.0
      %2057 = vmatpush1.msra.mxu0 %v1675
      %2058 = vmatprep.subr.mxu0 0.0
      %2059 = vmatpush1.msra.mxu0 %v1680
      %2060 = vmatprep.subr.mxu0 0.0
      %2061 = vmatpush1.msra.mxu0 %v1685
      %2062 = vmatprep.subr.mxu0 0.0
      %2063 = vmatpush1.msra.mxu0 %v1690
      %2064 = vmatprep.subr.mxu0 0.0
      %2065 = vmatpush1.msra.mxu0 %v1695
      %2066 = vmatprep.subr.mxu0 0.0
      %2067 = vmatpush1.msra.mxu0 %v1700
      %2068 = vmatprep.subr.mxu0 0.0
      %2069 = vmatpush1.msra.mxu0 %v1705
      %2070 = vmatprep.subr.mxu0 0.0
      %2071 = vmatpush1.msra.mxu0 %v1710
      %2072 = vmatprep.subr.mxu0 0.0
      %2073 = vmatpush1.msra.mxu0 %v1715
      %2074 = vmatprep.subr.mxu0 0.0
      %2075 = vmatpush1.msra.mxu0 %v1720
      %2076 = vmatprep.subr.mxu0 0.0
      %2077 = vmatpush1.msra.mxu0 %v1725
      %2078 = vmatprep.subr.mxu0 0.0
      %2079 = vmatpush1.msra.mxu0 %v1730
      %2080 = vmatprep.subr.mxu0 0.0
      %2081 = vmatpush1.msra.mxu0 %v1735
      %2082 = vmatprep.subr.mxu0 0.0
      %2083 = vmatpush1.msra.mxu0 %v1740
      %2084 = vmatprep.subr.mxu0 0.0
      %2085 = vmatpush1.msra.mxu0 %v1745
      %2086 = vmatprep.subr.mxu0 0.0
      %2087 = vmatpush1.msra.mxu0 %v1750
      %2088 = vmatprep.subr.mxu0 0.0
      %2089 = vmatpush1.msra.mxu0 %v1755
      %2090 = vmatprep.subr.mxu0 0.0
      %2091 = vmatpush1.msra.mxu0 %v1760
      %2092 = vmatprep.mubr.f32.mxu0 %v2018
      %2093 = vmatmul.mubr.f32.gmra.mrb[0].mxu0 %v2017
      %v2094 = vpop.f32.mrb[0].mxu0
      %v2095 = vadd.f32 0.0, %v2094
      %v2096 = vpop.f32.mrb[0].mxu0
      %2097 = vmatprep.mubr.f32.mxu0 %v2021
      %2098 = vmatmul.mubr.f32.gmra.mrb[0].mxu0 %v2020
      %v2099 = vpop.f32.mrb[0].mxu0
      %v2100 = vadd.f32 0.0, %v2099
      %v2101 = vpop.f32.mrb[0].mxu0
      %2102 = vmatprep.mubr.f32.mxu0 %v2024
      %2103 = vmatmul.mubr.f32.gmra.mrb[0].mxu0 %v2023
      %v2104 = vpop.f32.mrb[0].mxu0
      %v2105 = vadd.f32 0.0, %v2104
      %v2106 = vpop.f32.mrb[0].mxu0
      %2107 = vmatprep.mubr.f32.mxu0 %v2027
      %2108 = vmatmul.mubr.f32.gmra.mrb[0].mxu0 %v2026
      %v2109 = vpop.f32.mrb[0].mxu0
      %v2110 = vadd.f32 0.0, %v2109
      %v2111 = vpop.f32.mrb[0].mxu0
      %2112 = vdwg.mxu0
      %v2113 = vld [vmem:[%s12] sm:$0xff]
      %v2114 = vld [vmem:[%s12 + $0x8] sm:$0xff]
      %v2115 = vld [vmem:[%s12 + $0x10] sm:$0xff]
      %v2116 = vld [vmem:[%s12 + $0x18] sm:$0xff]
      %2117 = vrot.lane.b32.xlu0 %v1177, 96
      %v2118 = vpop.permute.xlu0 %2117
      %2119 = vrot.lane.b32.xlu0 %v1182, 96
      %v2120 = vpop.permute.xlu0 %2119
      %2121 = vrot.lane.b32.xlu0 %v1187, 96
      %v2122 = vpop.permute.xlu0 %2121
      %2123 = vrot.lane.b32.xlu0 %v1192, 96
      %v2124 = vpop.permute.xlu0 %2123
      %2125 = vrot.lane.b32.xlu0 %v1369, 96
      %v2126 = vpop.permute.xlu0 %2125
      %2127 = vrot.lane.b32.xlu0 %v1374, 96
      %v2128 = vpop.permute.xlu0 %2127
      %2129 = vrot.lane.b32.xlu0 %v1379, 96
      %v2130 = vpop.permute.xlu0 %2129
      %2131 = vrot.lane.b32.xlu0 %v1384, 96
      %v2132 = vpop.permute.xlu0 %2131
      %2133 = vrot.lane.b32.xlu0 %v1389, 96
      %v2134 = vpop.permute.xlu0 %2133
      %2135 = vrot.lane.b32.xlu0 %v1394, 96
      %v2136 = vpop.permute.xlu0 %2135
      %2137 = vrot.lane.b32.xlu0 %v1399, 96
      %v2138 = vpop.permute.xlu0 %2137
      %2139 = vrot.lane.b32.xlu0 %v1404, 96
      %v2140 = vpop.permute.xlu0 %2139
      %2141 = vrot.lane.b32.xlu0 %v1409, 96
      %v2142 = vpop.permute.xlu0 %2141
      %2143 = vrot.lane.b32.xlu0 %v1414, 96
      %v2144 = vpop.permute.xlu0 %2143
      %2145 = vrot.lane.b32.xlu0 %v1419, 96
      %v2146 = vpop.permute.xlu0 %2145
      %2147 = vrot.lane.b32.xlu0 %v1424, 96
      %v2148 = vpop.permute.xlu0 %2147
      %2149 = vrot.lane.b32.xlu0 %v1429, 96
      %v2150 = vpop.permute.xlu0 %2149
      %2151 = vrot.lane.b32.xlu0 %v1434, 96
      %v2152 = vpop.permute.xlu0 %2151
      %2153 = vrot.lane.b32.xlu0 %v1439, 96
      %v2154 = vpop.permute.xlu0 %2153
      %2155 = vrot.lane.b32.xlu0 %v1444, 96
      %v2156 = vpop.permute.xlu0 %2155
      %2157 = vrot.lane.b32.xlu0 %v1449, 96
      %v2158 = vpop.permute.xlu0 %2157
      %2159 = vrot.lane.b32.xlu0 %v1454, 96
      %v2160 = vpop.permute.xlu0 %2159
      %2161 = vrot.lane.b32.xlu0 %v1459, 96
      %v2162 = vpop.permute.xlu0 %2161
      %2163 = vrot.lane.b32.xlu0 %v1464, 96
      %v2164 = vpop.permute.xlu0 %2163
      %2165 = vrot.lane.b32.xlu0 %v1469, 96
      %v2166 = vpop.permute.xlu0 %2165
      %2167 = vrot.lane.b32.xlu0 %v1474, 96
      %v2168 = vpop.permute.xlu0 %2167
      %2169 = vrot.lane.b32.xlu0 %v1479, 96
      %v2170 = vpop.permute.xlu0 %2169
      %2171 = vrot.lane.b32.xlu0 %v1484, 96
      %v2172 = vpop.permute.xlu0 %2171
      %2173 = vrot.lane.b32.xlu0 %v1489, 96
      %v2174 = vpop.permute.xlu0 %2173
      %2175 = vrot.lane.b32.xlu0 %v1494, 96
      %v2176 = vpop.permute.xlu0 %2175
      %2177 = vrot.lane.b32.xlu0 %v1499, 96
      %v2178 = vpop.permute.xlu0 %2177
      %2179 = vrot.lane.b32.xlu0 %v1504, 96
      %v2180 = vpop.permute.xlu0 %2179
      %2181 = vrot.lane.b32.xlu0 %v1509, 96
      %v2182 = vpop.permute.xlu0 %2181
      %2183 = vrot.lane.b32.xlu0 %v1514, 96
      %v2184 = vpop.permute.xlu0 %2183
      %2185 = vrot.lane.b32.xlu0 %v1519, 96
      %v2186 = vpop.permute.xlu0 %2185
      %2187 = vrot.lane.b32.xlu0 %v1524, 96
      %v2188 = vpop.permute.xlu0 %2187
      %v2189 = vsel %vm593, %v2118, 0
      %v2191 = vsel %vm593, %v2120, 0
      %v2193 = vsel %vm593, %v2122, 0
      %v2195 = vsel %vm593, %v2124, 0
      %v2197 = vsel %vm593, %v2126, 0
      %v2199 = vsel %vm593, %v2128, 0
      %v2201 = vsel %vm593, %v2130, 0
      %v2203 = vsel %vm593, %v2132, 0
      %v2205 = vsel %vm593, %v2134, 0
      %v2207 = vsel %vm593, %v2136, 0
      %v2209 = vsel %vm593, %v2138, 0
      %v2211 = vsel %vm593, %v2140, 0
      %v2213 = vsel %vm593, %v2142, 0
      %v2215 = vsel %vm593, %v2144, 0
      %v2217 = vsel %vm593, %v2146, 0
      %v2219 = vsel %vm593, %v2148, 0
      %v2221 = vsel %vm593, %v2150, 0
      %v2223 = vsel %vm593, %v2152, 0
      %v2225 = vsel %vm593, %v2154, 0
      %v2227 = vsel %vm593, %v2156, 0
      %v2229 = vsel %vm593, %v2158, 0
      %v2231 = vsel %vm593, %v2160, 0
      %v2233 = vsel %vm593, %v2162, 0
      %v2235 = vsel %vm593, %v2164, 0
      %v2237 = vsel %vm593, %v2166, 0
      %v2239 = vsel %vm593, %v2168, 0
      %v2241 = vsel %vm593, %v2170, 0
      %v2243 = vsel %vm593, %v2172, 0
      %v2245 = vsel %vm593, %v2174, 0
      %v2247 = vsel %vm593, %v2176, 0
      %v2249 = vsel %vm593, %v2178, 0
      %v2251 = vsel %vm593, %v2180, 0
      %v2253 = vsel %vm593, %v2182, 0
      %v2255 = vsel %vm593, %v2184, 0
      %v2257 = vsel %vm593, %v2186, 0
      %v2259 = vsel %vm593, %v2188, 0
      %2261 = vmatprep.subr.mxu0 0.0
      %2262 = vmatpush1.xpose.msra.mxu0 %v2197
      %2263 = vmatprep.subr.mxu0 0.0
      %2264 = vmatpush1.xpose.msra.mxu0 %v2199
      %2265 = vmatprep.subr.mxu0 0.0
      %2266 = vmatpush1.xpose.msra.mxu0 %v2201
      %2267 = vmatprep.subr.mxu0 0.0
      %2268 = vmatpush1.xpose.msra.mxu0 %v2203
      %2269 = vmatprep.subr.mxu0 0.0
      %2270 = vmatpush1.xpose.msra.mxu0 %v2205
      %2271 = vmatprep.subr.mxu0 0.0
      %2272 = vmatpush1.xpose.msra.mxu0 %v2207
      %2273 = vmatprep.subr.mxu0 0.0
      %2274 = vmatpush1.xpose.msra.mxu0 %v2209
      %2275 = vmatprep.subr.mxu0 0.0
      %2276 = vmatpush1.xpose.msra.mxu0 %v2211
      %2277 = vmatprep.subr.mxu0 0.0
      %2278 = vmatpush1.xpose.msra.mxu0 %v2213
      %2279 = vmatprep.subr.mxu0 0.0
      %2280 = vmatpush1.xpose.msra.mxu0 %v2215
      %2281 = vmatprep.subr.mxu0 0.0
      %2282 = vmatpush1.xpose.msra.mxu0 %v2217
      %2283 = vmatprep.subr.mxu0 0.0
      %2284 = vmatpush1.xpose.msra.mxu0 %v2219
      %2285 = vmatprep.subr.mxu0 0.0
      %2286 = vmatpush1.xpose.msra.mxu0 %v2221
      %2287 = vmatprep.subr.mxu0 0.0
      %2288 = vmatpush1.xpose.msra.mxu0 %v2223
      %2289 = vmatprep.subr.mxu0 0.0
      %2290 = vmatpush1.xpose.msra.mxu0 %v2225
      %2291 = vmatprep.subr.mxu0 0.0
      %2292 = vmatpush1.xpose.msra.mxu0 %v2227
      %2293 = vmatprep.subr.mxu0 0.0
      %2294 = vmatpush1.xpose.msra.mxu0 %v2229
      %2295 = vmatprep.subr.mxu0 0.0
      %2296 = vmatpush1.xpose.msra.mxu0 %v2231
      %2297 = vmatprep.subr.mxu0 0.0
      %2298 = vmatpush1.xpose.msra.mxu0 %v2233
      %2299 = vmatprep.subr.mxu0 0.0
      %2300 = vmatpush1.xpose.msra.mxu0 %v2235
      %2301 = vmatprep.subr.mxu0 0.0
      %2302 = vmatpush1.xpose.msra.mxu0 %v2237
      %2303 = vmatprep.subr.mxu0 0.0
      %2304 = vmatpush1.xpose.msra.mxu0 %v2239
      %2305 = vmatprep.subr.mxu0 0.0
      %2306 = vmatpush1.xpose.msra.mxu0 %v2241
      %2307 = vmatprep.subr.mxu0 0.0
      %2308 = vmatpush1.xpose.msra.mxu0 %v2243
      %2309 = vmatprep.subr.mxu0 0.0
      %2310 = vmatpush1.xpose.msra.mxu0 %v2245
      %2311 = vmatprep.subr.mxu0 0.0
      %2312 = vmatpush1.xpose.msra.mxu0 %v2247
      %2313 = vmatprep.subr.mxu0 0.0
      %2314 = vmatpush1.xpose.msra.mxu0 %v2249
      %2315 = vmatprep.subr.mxu0 0.0
      %2316 = vmatpush1.xpose.msra.mxu0 %v2251
      %2317 = vmatprep.subr.mxu0 0.0
      %2318 = vmatpush1.xpose.msra.mxu0 %v2253
      %2319 = vmatprep.subr.mxu0 0.0
      %2320 = vmatpush1.xpose.msra.mxu0 %v2255
      %2321 = vmatprep.subr.mxu0 0.0
      %2322 = vmatpush1.xpose.msra.mxu0 %v2257
      %2323 = vmatprep.subr.mxu0 0.0
      %2324 = vmatpush1.xpose.msra.mxu0 %v2259
      %2325 = vmatprep.mubr.f32.mxu0 0.0
      %2326 = vmatmul.mubr.f32.gmra.mrb[0].mxu0 %v2189
      %v2327 = vpop.f32.mrb[0].mxu0
      %v2328 = vadd.f32 0.0, %v2327
      %v2329 = vpop.f32.mrb[0].mxu0
      %v2330 = vadd.f32 0.0, %v2329
      %2331 = vmatprep.mubr.f32.mxu0 0.0
      %2332 = vmatmul.mubr.f32.gmra.mrb[0].mxu0 %v2191
      %v2333 = vpop.f32.mrb[0].mxu0
      %v2334 = vadd.f32 0.0, %v2333
      %v2335 = vpop.f32.mrb[0].mxu0
      %v2336 = vadd.f32 0.0, %v2335
      %2337 = vmatprep.mubr.f32.mxu0 0.0
      %2338 = vmatmul.mubr.f32.gmra.mrb[0].mxu0 %v2193
      %v2339 = vpop.f32.mrb[0].mxu0
      %v2340 = vadd.f32 0.0, %v2339
      %v2341 = vpop.f32.mrb[0].mxu0
      %v2342 = vadd.f32 0.0, %v2341
      %2343 = vmatprep.mubr.f32.mxu0 0.0
      %2344 = vmatmul.mubr.f32.gmra.mrb[0].mxu0 %v2195
      %v2345 = vpop.f32.mrb[0].mxu0
      %v2346 = vadd.f32 0.0, %v2345
      %v2347 = vpop.f32.mrb[0].mxu0
      %v2348 = vadd.f32 0.0, %v2347
      %2349 = vdwg.mxu0
      %v2350 = vmul.f32 %v2328, 0.17677669
      %v2351 = vmul.f32 %v2330, 0.17677669
      %v2352 = vmul.f32 %v2334, 0.17677669
      %v2353 = vmul.f32 %v2336, 0.17677669
      %v2354 = vmul.f32 %v2340, 0.17677669
      %v2355 = vmul.f32 %v2342, 0.17677669
      %v2356 = vmul.f32 %v2346, 0.17677669
      %v2357 = vmul.f32 %v2348, 0.17677669
      %v2358 = vmax.f32 %v2350, %v2351
      %2359 = vmax.xlane.f32.xlu0 %v2358
      %v2360 = vpop.xlane.xlu0 %2359
      %v2361 = vmax.f32 %v2352, %v2353
      %2362 = vmax.xlane.f32.xlu0 %v2361
      %v2363 = vpop.xlane.xlu0 %2362
      %v2364 = vmax.f32 %v2354, %v2355
      %2365 = vmax.xlane.f32.xlu0 %v2364
      %v2366 = vpop.xlane.xlu0 %2365
      %v2367 = vmax.f32 %v2356, %v2357
      %2368 = vmax.xlane.f32.xlu0 %v2367
      %v2369 = vpop.xlane.xlu0 %2368
      %v2370 = vsub.f32 %v2350, %v2360
      %v2371 = vsub.f32 %v2351, %v2360
      %v2372 = vsub.f32 %v2352, %v2363
      %v2373 = vsub.f32 %v2353, %v2363
      %v2374 = vsub.f32 %v2354, %v2366
      %v2375 = vsub.f32 %v2355, %v2366
      %v2376 = vsub.f32 %v2356, %v2369
      %v2377 = vsub.f32 %v2357, %v2369
      %v2378 = vmul.f32 %v2370, 1.442695
      %v2379 = vpow.pop %v2378
      %v2380 = vmul.f32 %v2371, 1.442695
      %v2381 = vpow.pop %v2380
      %v2382 = vmul.f32 %v2372, 1.442695
      %v2383 = vpow.pop %v2382
      %v2384 = vmul.f32 %v2373, 1.442695
      %v2385 = vpow.pop %v2384
      %v2386 = vmul.f32 %v2374, 1.442695
      %v2387 = vpow.pop %v2386
      %v2388 = vmul.f32 %v2375, 1.442695
      %v2389 = vpow.pop %v2388
      %v2390 = vmul.f32 %v2376, 1.442695
      %v2391 = vpow.pop %v2390
      %v2392 = vmul.f32 %v2377, 1.442695
      %v2393 = vpow.pop %v2392
      %v2394 = vadd.f32 %v2379, %v2381
      %2395 = vadd.xlane.f32.xlu0 %v2394
      %v2396 = vpop.xlane.xlu0 %2395
      %v2397 = vadd.f32 %v2383, %v2385
      %2398 = vadd.xlane.f32.xlu0 %v2397
      %v2399 = vpop.xlane.xlu0 %2398
      %v2400 = vadd.f32 %v2387, %v2389
      %2401 = vadd.xlane.f32.xlu0 %v2400
      %v2402 = vpop.xlane.xlu0 %2401
      %v2403 = vadd.f32 %v2391, %v2393
      %2404 = vadd.xlane.f32.xlu0 %v2403
      %v2405 = vpop.xlane.xlu0 %2404
      %v2406 = vrcp.pop %v2396
      %v2407 = vmul.f32 %v2379, %v2406
      %v2408 = vmul.f32 %v2381, %v2406
      %v2409 = vrcp.pop %v2399
      %v2410 = vmul.f32 %v2383, %v2409
      %v2411 = vmul.f32 %v2385, %v2409
      %v2412 = vrcp.pop %v2402
      %v2413 = vmul.f32 %v2387, %v2412
      %v2414 = vmul.f32 %v2389, %v2412
      %v2415 = vrcp.pop %v2405
      %v2416 = vmul.f32 %v2391, %v2415
      %v2417 = vmul.f32 %v2393, %v2415
      %2450 = vrot.lane.b32.xlu0 %v1605, 96
      %v2451 = vpop.permute.xlu0 %2450
      %2452 = vrot.lane.b32.xlu0 %v1610, 96
      %v2453 = vpop.permute.xlu0 %2452
      %2454 = vrot.lane.b32.xlu0 %v1615, 96
      %v2455 = vpop.permute.xlu0 %2454
      %2456 = vrot.lane.b32.xlu0 %v1620, 96
      %v2457 = vpop.permute.xlu0 %2456
      %2458 = vrot.lane.b32.xlu0 %v1625, 96
      %v2459 = vpop.permute.xlu0 %2458
      %2460 = vrot.lane.b32.xlu0 %v1630, 96
      %v2461 = vpop.permute.xlu0 %2460
      %2462 = vrot.lane.b32.xlu0 %v1635, 96
      %v2463 = vpop.permute.xlu0 %2462
      %2464 = vrot.lane.b32.xlu0 %v1640, 96
      %v2465 = vpop.permute.xlu0 %2464
      %2466 = vrot.lane.b32.xlu0 %v1645, 96
      %v2467 = vpop.permute.xlu0 %2466
      %2468 = vrot.lane.b32.xlu0 %v1650, 96
      %v2469 = vpop.permute.xlu0 %2468
      %2470 = vrot.lane.b32.xlu0 %v1655, 96
      %v2471 = vpop.permute.xlu0 %2470
      %2472 = vrot.lane.b32.xlu0 %v1660, 96
      %v2473 = vpop.permute.xlu0 %2472
      %2474 = vrot.lane.b32.xlu0 %v1665, 96
      %v2475 = vpop.permute.xlu0 %2474
      %2476 = vrot.lane.b32.xlu0 %v1670, 96
      %v2477 = vpop.permute.xlu0 %2476
      %2478 = vrot.lane.b32.xlu0 %v1675, 96
      %v2479 = vpop.permute.xlu0 %2478
      %2480 = vrot.lane.b32.xlu0 %v1680, 96
      %v2481 = vpop.permute.xlu0 %2480
      %2482 = vrot.lane.b32.xlu0 %v1685, 96
      %v2483 = vpop.permute.xlu0 %2482
      %2484 = vrot.lane.b32.xlu0 %v1690, 96
      %v2485 = vpop.permute.xlu0 %2484
      %2486 = vrot.lane.b32.xlu0 %v1695, 96
      %v2487 = vpop.permute.xlu0 %2486
      %2488 = vrot.lane.b32.xlu0 %v1700, 96
      %v2489 = vpop.permute.xlu0 %2488
      %2490 = vrot.lane.b32.xlu0 %v1705, 96
      %v2491 = vpop.permute.xlu0 %2490
      %2492 = vrot.lane.b32.xlu0 %v1710, 96
      %v2493 = vpop.permute.xlu0 %2492
      %2494 = vrot.lane.b32.xlu0 %v1715, 96
      %v2495 = vpop.permute.xlu0 %2494
      %2496 = vrot.lane.b32.xlu0 %v1720, 96
      %v2497 = vpop.permute.xlu0 %2496
      %2498 = vrot.lane.b32.xlu0 %v1725, 96
      %v2499 = vpop.permute.xlu0 %2498
      %2500 = vrot.lane.b32.xlu0 %v1730, 96
      %v2501 = vpop.permute.xlu0 %2500
      %2502 = vrot.lane.b32.xlu0 %v1735, 96
      %v2503 = vpop.permute.xlu0 %2502
      %2504 = vrot.lane.b32.xlu0 %v1740, 96
      %v2505 = vpop.permute.xlu0 %2504
      %2506 = vrot.lane.b32.xlu0 %v1745, 96
      %v2507 = vpop.permute.xlu0 %2506
      %2508 = vrot.lane.b32.xlu0 %v1750, 96
      %v2509 = vpop.permute.xlu0 %2508
      %2510 = vrot.lane.b32.xlu0 %v1755, 96
      %v2511 = vpop.permute.xlu0 %2510
      %2512 = vrot.lane.b32.xlu0 %v1760, 96
      %v2513 = vpop.permute.xlu0 %2512
      %2546 = vmatprep.subr.mxu0 0.0
      %2547 = vmatpush1.msra.mxu0 %v2451
      %2548 = vmatprep.subr.mxu0 0.0
      %2549 = vmatpush1.msra.mxu0 %v2453
      %2550 = vmatprep.subr.mxu0 0.0
      %2551 = vmatpush1.msra.mxu0 %v2455
      %2552 = vmatprep.subr.mxu0 0.0
      %2553 = vmatpush1.msra.mxu0 %v2457
      %2554 = vmatprep.subr.mxu0 0.0
      %2555 = vmatpush1.msra.mxu0 %v2459
      %2556 = vmatprep.subr.mxu0 0.0
      %2557 = vmatpush1.msra.mxu0 %v2461
      %2558 = vmatprep.subr.mxu0 0.0
      %2559 = vmatpush1.msra.mxu0 %v2463
      %2560 = vmatprep.subr.mxu0 0.0
      %2561 = vmatpush1.msra.mxu0 %v2465
      %2562 = vmatprep.subr.mxu0 0.0
      %2563 = vmatpush1.msra.mxu0 %v2467
      %2564 = vmatprep.subr.mxu0 0.0
      %2565 = vmatpush1.msra.mxu0 %v2469
      %2566 = vmatprep.subr.mxu0 0.0
      %2567 = vmatpush1.msra.mxu0 %v2471
      %2568 = vmatprep.subr.mxu0 0.0
      %2569 = vmatpush1.msra.mxu0 %v2473
      %2570 = vmatprep.subr.mxu0 0.0
      %2571 = vmatpush1.msra.mxu0 %v2475
      %2572 = vmatprep.subr.mxu0 0.0
      %2573 = vmatpush1.msra.mxu0 %v2477
      %2574 = vmatprep.subr.mxu0 0.0
      %2575 = vmatpush1.msra.mxu0 %v2479
      %2576 = vmatprep.subr.mxu0 0.0
      %2577 = vmatpush1.msra.mxu0 %v2481
      %2578 = vmatprep.subr.mxu0 0.0
      %2579 = vmatpush1.msra.mxu0 %v2483
      %2580 = vmatprep.subr.mxu0 0.0
      %2581 = vmatpush1.msra.mxu0 %v2485
      %2582 = vmatprep.subr.mxu0 0.0
      %2583 = vmatpush1.msra.mxu0 %v2487
      %2584 = vmatprep.subr.mxu0 0.0
      %2585 = vmatpush1.msra.mxu0 %v2489
      %2586 = vmatprep.subr.mxu0 0.0
      %2587 = vmatpush1.msra.mxu0 %v2491
      %2588 = vmatprep.subr.mxu0 0.0
      %2589 = vmatpush1.msra.mxu0 %v2493
      %2590 = vmatprep.subr.mxu0 0.0
      %2591 = vmatpush1.msra.mxu0 %v2495
      %2592 = vmatprep.subr.mxu0 0.0
      %2593 = vmatpush1.msra.mxu0 %v2497
      %2594 = vmatprep.subr.mxu0 0.0
      %2595 = vmatpush1.msra.mxu0 %v2499
      %2596 = vmatprep.subr.mxu0 0.0
      %2597 = vmatpush1.msra.mxu0 %v2501
      %2598 = vmatprep.subr.mxu0 0.0
      %2599 = vmatpush1.msra.mxu0 %v2503
      %2600 = vmatprep.subr.mxu0 0.0
      %2601 = vmatpush1.msra.mxu0 %v2505
      %2602 = vmatprep.subr.mxu0 0.0
      %2603 = vmatpush1.msra.mxu0 %v2507
      %2604 = vmatprep.subr.mxu0 0.0
      %2605 = vmatpush1.msra.mxu0 %v2509
      %2606 = vmatprep.subr.mxu0 0.0
      %2607 = vmatpush1.msra.mxu0 %v2511
      %2608 = vmatprep.subr.mxu0 0.0
      %2609 = vmatpush1.msra.mxu0 %v2513
      %2610 = vmatprep.mubr.f32.mxu0 %v2408
      %2611 = vmatmul.mubr.f32.gmra.mrb[0].mxu0 %v2407
      %v2612 = vpop.f32.mrb[0].mxu0
      %v2613 = vadd.f32 0.0, %v2612
      %v2614 = vpop.f32.mrb[0].mxu0
      %2615 = vmatprep.mubr.f32.mxu0 %v2411
      %2616 = vmatmul.mubr.f32.gmra.mrb[0].mxu0 %v2410
      %v2617 = vpop.f32.mrb[0].mxu0
      %v2618 = vadd.f32 0.0, %v2617
      %v2619 = vpop.f32.mrb[0].mxu0
      %2620 = vmatprep.mubr.f32.mxu0 %v2414
      %2621 = vmatmul.mubr.f32.gmra.mrb[0].mxu0 %v2413
      %v2622 = vpop.f32.mrb[0].mxu0
      %v2623 = vadd.f32 0.0, %v2622
      %v2624 = vpop.f32.mrb[0].mxu0
      %2625 = vmatprep.mubr.f32.mxu0 %v2417
      %2626 = vmatmul.mubr.f32.gmra.mrb[0].mxu0 %v2416
      %v2627 = vpop.f32.mrb[0].mxu0
      %v2628 = vadd.f32 0.0, %v2627
      %v2629 = vpop.f32.mrb[0].mxu0
      %2630 = vdwg.mxu0
      %v2631 = vld [vmem:[%s12 + $0x20] sm:$0xff]
      %v2632 = vld [vmem:[%s12 + $0x28] sm:$0xff]
      %v2633 = vld [vmem:[%s12 + $0x30] sm:$0xff]
      %v2634 = vld [vmem:[%s12 + $0x38] sm:$0xff]
      %v2636 = vsel %vm593, %v2613, 0
      %v2639 = vsel %vm593, %v2618, 0
      %v2642 = vsel %vm593, %v2623, 0
      %v2645 = vsel %vm593, %v2628, 0
      %2647 = vmatprep.subr.mxu0 0.0
      %2648 = vmatpush1.msra.mxu0 %v2631
      %2649 = vmatprep.subr.mxu0 0.0
      %2650 = vmatpush1.msra.mxu0 %v2632
      %2651 = vmatprep.subr.mxu0 0.0
      %2652 = vmatpush1.msra.mxu0 %v2633
      %2653 = vmatprep.subr.mxu0 0.0
      %2654 = vmatpush1.msra.mxu0 %v2634
      %2655 = vmatprep.subr.mxu0 0.0
      %2656 = vmatpush1.msra.mxu0 0.0
      %2657 = vmatprep.subr.mxu0 0.0
      %2658 = vmatpush1.msra.mxu0 0.0
      %2659 = vmatprep.subr.mxu0 0.0
      %2660 = vmatpush1.msra.mxu0 0.0
      %2661 = vmatprep.subr.mxu0 0.0
      %2662 = vmatpush1.msra.mxu0 0.0
      %2663 = vmatprep.subr.mxu0 0.0
      %2664 = vmatpush1.msra.mxu0 0.0
      %2665 = vmatprep.subr.mxu0 0.0
      %2666 = vmatpush1.msra.mxu0 0.0
      %2667 = vmatprep.subr.mxu0 0.0
      %2668 = vmatpush1.msra.mxu0 0.0
      %2669 = vmatprep.subr.mxu0 0.0
      %2670 = vmatpush1.msra.mxu0 0.0
      %2671 = vmatprep.subr.mxu0 0.0
      %2672 = vmatpush1.msra.mxu0 0.0
      %2673 = vmatprep.subr.mxu0 0.0
      %2674 = vmatpush1.msra.mxu0 0.0
      %2675 = vmatprep.subr.mxu0 0.0
      %2676 = vmatpush1.msra.mxu0 0.0
      %2677 = vmatprep.subr.mxu0 0.0
      %2678 = vmatpush1.msra.mxu0 0.0
      %2679 = vmatprep.subr.mxu0 0.0
      %2680 = vmatpush1.msra.mxu0 0.0
      %2681 = vmatprep.subr.mxu0 0.0
      %2682 = vmatpush1.msra.mxu0 0.0
      %2683 = vmatprep.subr.mxu0 0.0
      %2684 = vmatpush1.msra.mxu0 0.0
      %2685 = vmatprep.subr.mxu0 0.0
      %2686 = vmatpush1.msra.mxu0 0.0
      %2687 = vmatprep.subr.mxu0 0.0
      %2688 = vmatpush1.msra.mxu0 0.0
      %2689 = vmatprep.subr.mxu0 0.0
      %2690 = vmatpush1.msra.mxu0 0.0
      %2691 = vmatprep.subr.mxu0 0.0
      %2692 = vmatpush1.msra.mxu0 0.0
      %2693 = vmatprep.subr.mxu0 0.0
      %2694 = vmatpush1.msra.mxu0 0.0
      %2695 = vmatprep.subr.mxu0 0.0
      %2696 = vmatpush1.msra.mxu0 0.0
      %2697 = vmatprep.subr.mxu0 0.0
      %2698 = vmatpush1.msra.mxu0 0.0
      %2699 = vmatprep.subr.mxu0 0.0
      %2700 = vmatpush1.msra.mxu0 0.0
      %2701 = vmatprep.subr.mxu0 0.0
      %2702 = vmatpush1.msra.mxu0 0.0
      %2703 = vmatprep.subr.mxu0 0.0
      %2704 = vmatpush1.msra.mxu0 0.0
      %2705 = vmatprep.subr.mxu0 0.0
      %2706 = vmatpush1.msra.mxu0 0.0
      %2707 = vmatprep.subr.mxu0 0.0
      %2708 = vmatpush1.msra.mxu0 0.0
      %2709 = vmatprep.subr.mxu0 0.0
      %2710 = vmatpush1.msra.mxu0 0.0
      %2711 = vmatprep.mubr.f32.mxu0 0.0
      %2712 = vmatmul.mubr.f32.gmra.mrb[0].mxu0 %v2636
      %v2713 = vpop.f32.mrb[0].mxu0
      %v2714 = vadd.f32 0.0, %v2713
      %v2715 = vpop.f32.mrb[0].mxu0
      %2716 = vmatprep.mubr.f32.mxu0 0.0
      %2717 = vmatmul.mubr.f32.gmra.mrb[0].mxu0 %v2639
      %v2718 = vpop.f32.mrb[0].mxu0
      %v2719 = vadd.f32 0.0, %v2718
      %v2720 = vpop.f32.mrb[0].mxu0
      %2721 = vmatprep.mubr.f32.mxu0 0.0
      %2722 = vmatmul.mubr.f32.gmra.mrb[0].mxu0 %v2642
      %v2723 = vpop.f32.mrb[0].mxu0
      %v2724 = vadd.f32 0.0, %v2723
      %v2725 = vpop.f32.mrb[0].mxu0
      %2726 = vmatprep.mubr.f32.mxu0 0.0
      %2727 = vmatmul.mubr.f32.gmra.mrb[0].mxu0 %v2645
      %v2728 = vpop.f32.mrb[0].mxu0
      %v2729 = vadd.f32 0.0, %v2728
      %v2730 = vpop.f32.mrb[0].mxu0
      %2731 = vdwg.mxu0
      %v2733 = vsel %vm593, %v2095, 0
      %v2736 = vsel %vm593, %v2100, 0
      %v2739 = vsel %vm593, %v2105, 0
      %v2742 = vsel %vm593, %v2110, 0
      %2744 = vmatprep.subr.mxu0 0.0
      %2745 = vmatpush1.msra.mxu0 %v2113
      %2746 = vmatprep.subr.mxu0 0.0
      %2747 = vmatpush1.msra.mxu0 %v2114
      %2748 = vmatprep.subr.mxu0 0.0
      %2749 = vmatpush1.msra.mxu0 %v2115
      %2750 = vmatprep.subr.mxu0 0.0
      %2751 = vmatpush1.msra.mxu0 %v2116
      %2752 = vmatprep.subr.mxu0 0.0
      %2753 = vmatpush1.msra.mxu0 0.0
      %2754 = vmatprep.subr.mxu0 0.0
      %2755 = vmatpush1.msra.mxu0 0.0
      %2756 = vmatprep.subr.mxu0 0.0
      %2757 = vmatpush1.msra.mxu0 0.0
      %2758 = vmatprep.subr.mxu0 0.0
      %2759 = vmatpush1.msra.mxu0 0.0
      %2760 = vmatprep.subr.mxu0 0.0
      %2761 = vmatpush1.msra.mxu0 0.0
      %2762 = vmatprep.subr.mxu0 0.0
      %2763 = vmatpush1.msra.mxu0 0.0
      %2764 = vmatprep.subr.mxu0 0.0
      %2765 = vmatpush1.msra.mxu0 0.0
      %2766 = vmatprep.subr.mxu0 0.0
      %2767 = vmatpush1.msra.mxu0 0.0
      %2768 = vmatprep.subr.mxu0 0.0
      %2769 = vmatpush1.msra.mxu0 0.0
      %2770 = vmatprep.subr.mxu0 0.0
      %2771 = vmatpush1.msra.mxu0 0.0
      %2772 = vmatprep.subr.mxu0 0.0
      %2773 = vmatpush1.msra.mxu0 0.0
      %2774 = vmatprep.subr.mxu0 0.0
      %2775 = vmatpush1.msra.mxu0 0.0
      %2776 = vmatprep.subr.mxu0 0.0
      %2777 = vmatpush1.msra.mxu0 0.0
      %2778 = vmatprep.subr.mxu0 0.0
      %2779 = vmatpush1.msra.mxu0 0.0
      %2780 = vmatprep.subr.mxu0 0.0
      %2781 = vmatpush1.msra.mxu0 0.0
      %2782 = vmatprep.subr.mxu0 0.0
      %2783 = vmatpush1.msra.mxu0 0.0
      %2784 = vmatprep.subr.mxu0 0.0
      %2785 = vmatpush1.msra.mxu0 0.0
      %2786 = vmatprep.subr.mxu0 0.0
      %2787 = vmatpush1.msra.mxu0 0.0
      %2788 = vmatprep.subr.mxu0 0.0
      %2789 = vmatpush1.msra.mxu0 0.0
      %2790 = vmatprep.subr.mxu0 0.0
      %2791 = vmatpush1.msra.mxu0 0.0
      %2792 = vmatprep.subr.mxu0 0.0
      %2793 = vmatpush1.msra.mxu0 0.0
      %2794 = vmatprep.subr.mxu0 0.0
      %2795 = vmatpush1.msra.mxu0 0.0
      %2796 = vmatprep.subr.mxu0 0.0
      %2797 = vmatpush1.msra.mxu0 0.0
      %2798 = vmatprep.subr.mxu0 0.0
      %2799 = vmatpush1.msra.mxu0 0.0
      %2800 = vmatprep.subr.mxu0 0.0
      %2801 = vmatpush1.msra.mxu0 0.0
      %2802 = vmatprep.subr.mxu0 0.0
      %2803 = vmatpush1.msra.mxu0 0.0
      %2804 = vmatprep.subr.mxu0 0.0
      %2805 = vmatpush1.msra.mxu0 0.0
      %2806 = vmatprep.subr.mxu0 0.0
      %2807 = vmatpush1.msra.mxu0 0.0
      %2808 = vmatprep.mubr.f32.mxu0 0.0
      %2809 = vmatmul.mubr.f32.gmra.mrb[0].mxu0 %v2733
      %v2810 = vpop.f32.mrb[0].mxu0
      %v2811 = vadd.f32 %v2714, %v2810
      %v2812 = vpop.f32.mrb[0].mxu0
      %2813 = vmatprep.mubr.f32.mxu0 0.0
      %2814 = vmatmul.mubr.f32.gmra.mrb[0].mxu0 %v2736
      %v2815 = vpop.f32.mrb[0].mxu0
      %v2816 = vadd.f32 %v2719, %v2815
      %v2817 = vpop.f32.mrb[0].mxu0
      %2818 = vmatprep.mubr.f32.mxu0 0.0
      %2819 = vmatmul.mubr.f32.gmra.mrb[0].mxu0 %v2739
      %v2820 = vpop.f32.mrb[0].mxu0
      %v2821 = vadd.f32 %v2724, %v2820
      %v2822 = vpop.f32.mrb[0].mxu0
      %2823 = vmatprep.mubr.f32.mxu0 0.0
      %2824 = vmatmul.mubr.f32.gmra.mrb[0].mxu0 %v2742
      %v2825 = vpop.f32.mrb[0].mxu0
      %v2826 = vadd.f32 %v2729, %v2825
      %v2827 = vpop.f32.mrb[0].mxu0
      %2828 = vdwg.mxu0
      %2829 = vrot.lane.b32.xlu0 %v1177, 64
      %v2830 = vpop.permute.xlu0 %2829
      %2831 = vrot.lane.b32.xlu0 %v1182, 64
      %v2832 = vpop.permute.xlu0 %2831
      %2833 = vrot.lane.b32.xlu0 %v1187, 64
      %v2834 = vpop.permute.xlu0 %2833
      %2835 = vrot.lane.b32.xlu0 %v1192, 64
      %v2836 = vpop.permute.xlu0 %2835
      %2837 = vrot.lane.b32.xlu0 %v1369, 64
      %v2838 = vpop.permute.xlu0 %2837
      %2839 = vrot.lane.b32.xlu0 %v1374, 64
      %v2840 = vpop.permute.xlu0 %2839
      %2841 = vrot.lane.b32.xlu0 %v1379, 64
      %v2842 = vpop.permute.xlu0 %2841
      %2843 = vrot.lane.b32.xlu0 %v1384, 64
      %v2844 = vpop.permute.xlu0 %2843
      %2845 = vrot.lane.b32.xlu0 %v1389, 64
      %v2846 = vpop.permute.xlu0 %2845
      %2847 = vrot.lane.b32.xlu0 %v1394, 64
      %v2848 = vpop.permute.xlu0 %2847
      %2849 = vrot.lane.b32.xlu0 %v1399, 64
      %v2850 = vpop.permute.xlu0 %2849
      %2851 = vrot.lane.b32.xlu0 %v1404, 64
      %v2852 = vpop.permute.xlu0 %2851
      %2853 = vrot.lane.b32.xlu0 %v1409, 64
      %v2854 = vpop.permute.xlu0 %2853
      %2855 = vrot.lane.b32.xlu0 %v1414, 64
      %v2856 = vpop.permute.xlu0 %2855
      %2857 = vrot.lane.b32.xlu0 %v1419, 64
      %v2858 = vpop.permute.xlu0 %2857
      %2859 = vrot.lane.b32.xlu0 %v1424, 64
      %v2860 = vpop.permute.xlu0 %2859
      %2861 = vrot.lane.b32.xlu0 %v1429, 64
      %v2862 = vpop.permute.xlu0 %2861
      %2863 = vrot.lane.b32.xlu0 %v1434, 64
      %v2864 = vpop.permute.xlu0 %2863
      %2865 = vrot.lane.b32.xlu0 %v1439, 64
      %v2866 = vpop.permute.xlu0 %2865
      %2867 = vrot.lane.b32.xlu0 %v1444, 64
      %v2868 = vpop.permute.xlu0 %2867
      %2869 = vrot.lane.b32.xlu0 %v1449, 64
      %v2870 = vpop.permute.xlu0 %2869
      %2871 = vrot.lane.b32.xlu0 %v1454, 64
      %v2872 = vpop.permute.xlu0 %2871
      %2873 = vrot.lane.b32.xlu0 %v1459, 64
      %v2874 = vpop.permute.xlu0 %2873
      %2875 = vrot.lane.b32.xlu0 %v1464, 64
      %v2876 = vpop.permute.xlu0 %2875
      %2877 = vrot.lane.b32.xlu0 %v1469, 64
      %v2878 = vpop.permute.xlu0 %2877
      %2879 = vrot.lane.b32.xlu0 %v1474, 64
      %v2880 = vpop.permute.xlu0 %2879
      %2881 = vrot.lane.b32.xlu0 %v1479, 64
      %v2882 = vpop.permute.xlu0 %2881
      %2883 = vrot.lane.b32.xlu0 %v1484, 64
      %v2884 = vpop.permute.xlu0 %2883
      %2885 = vrot.lane.b32.xlu0 %v1489, 64
      %v2886 = vpop.permute.xlu0 %2885
      %2887 = vrot.lane.b32.xlu0 %v1494, 64
      %v2888 = vpop.permute.xlu0 %2887
      %2889 = vrot.lane.b32.xlu0 %v1499, 64
      %v2890 = vpop.permute.xlu0 %2889
      %2891 = vrot.lane.b32.xlu0 %v1504, 64
      %v2892 = vpop.permute.xlu0 %2891
      %2893 = vrot.lane.b32.xlu0 %v1509, 64
      %v2894 = vpop.permute.xlu0 %2893
      %2895 = vrot.lane.b32.xlu0 %v1514, 64
      %v2896 = vpop.permute.xlu0 %2895
      %2897 = vrot.lane.b32.xlu0 %v1519, 64
      %v2898 = vpop.permute.xlu0 %2897
      %2899 = vrot.lane.b32.xlu0 %v1524, 64
      %v2900 = vpop.permute.xlu0 %2899
      %v2901 = vsel %vm593, %v2830, 0
      %v2903 = vsel %vm593, %v2832, 0
      %v2905 = vsel %vm593, %v2834, 0
      %v2907 = vsel %vm593, %v2836, 0
      %v2909 = vsel %vm593, %v2838, 0
      %v2911 = vsel %vm593, %v2840, 0
      %v2913 = vsel %vm593, %v2842, 0
      %v2915 = vsel %vm593, %v2844, 0
      %v2917 = vsel %vm593, %v2846, 0
      %v2919 = vsel %vm593, %v2848, 0
      %v2921 = vsel %vm593, %v2850, 0
      %v2923 = vsel %vm593, %v2852, 0
      %v2925 = vsel %vm593, %v2854, 0
      %v2927 = vsel %vm593, %v2856, 0
      %v2929 = vsel %vm593, %v2858, 0
      %v2931 = vsel %vm593, %v2860, 0
      %v2933 = vsel %vm593, %v2862, 0
      %v2935 = vsel %vm593, %v2864, 0
      %v2937 = vsel %vm593, %v2866, 0
      %v2939 = vsel %vm593, %v2868, 0
      %v2941 = vsel %vm593, %v2870, 0
      %v2943 = vsel %vm593, %v2872, 0
      %v2945 = vsel %vm593, %v2874, 0
      %v2947 = vsel %vm593, %v2876, 0
      %v2949 = vsel %vm593, %v2878, 0
      %v2951 = vsel %vm593, %v2880, 0
      %v2953 = vsel %vm593, %v2882, 0
      %v2955 = vsel %vm593, %v2884, 0
      %v2957 = vsel %vm593, %v2886, 0
      %v2959 = vsel %vm593, %v2888, 0
      %v2961 = vsel %vm593, %v2890, 0
      %v2963 = vsel %vm593, %v2892, 0
      %v2965 = vsel %vm593, %v2894, 0
      %v2967 = vsel %vm593, %v2896, 0
      %v2969 = vsel %vm593, %v2898, 0
      %v2971 = vsel %vm593, %v2900, 0
      %2973 = vmatprep.subr.mxu0 0.0
      %2974 = vmatpush1.xpose.msra.mxu0 %v2909
      %2975 = vmatprep.subr.mxu0 0.0
      %2976 = vmatpush1.xpose.msra.mxu0 %v2911
      %2977 = vmatprep.subr.mxu0 0.0
      %2978 = vmatpush1.xpose.msra.mxu0 %v2913
      %2979 = vmatprep.subr.mxu0 0.0
      %2980 = vmatpush1.xpose.msra.mxu0 %v2915
      %2981 = vmatprep.subr.mxu0 0.0
      %2982 = vmatpush1.xpose.msra.mxu0 %v2917
      %2983 = vmatprep.subr.mxu0 0.0
      %2984 = vmatpush1.xpose.msra.mxu0 %v2919
      %2985 = vmatprep.subr.mxu0 0.0
      %2986 = vmatpush1.xpose.msra.mxu0 %v2921
      %2987 = vmatprep.subr.mxu0 0.0
      %2988 = vmatpush1.xpose.msra.mxu0 %v2923
      %2989 = vmatprep.subr.mxu0 0.0
      %2990 = vmatpush1.xpose.msra.mxu0 %v2925
      %2991 = vmatprep.subr.mxu0 0.0
      %2992 = vmatpush1.xpose.msra.mxu0 %v2927
      %2993 = vmatprep.subr.mxu0 0.0
      %2994 = vmatpush1.xpose.msra.mxu0 %v2929
      %2995 = vmatprep.subr.mxu0 0.0
      %2996 = vmatpush1.xpose.msra.mxu0 %v2931
      %2997 = vmatprep.subr.mxu0 0.0
      %2998 = vmatpush1.xpose.msra.mxu0 %v2933
      %2999 = vmatprep.subr.mxu0 0.0
      %3000 = vmatpush1.xpose.msra.mxu0 %v2935
      %3001 = vmatprep.subr.mxu0 0.0
      %3002 = vmatpush1.xpose.msra.mxu0 %v2937
      %3003 = vmatprep.subr.mxu0 0.0
      %3004 = vmatpush1.xpose.msra.mxu0 %v2939
      %3005 = vmatprep.subr.mxu0 0.0
      %3006 = vmatpush1.xpose.msra.mxu0 %v2941
      %3007 = vmatprep.subr.mxu0 0.0
      %3008 = vmatpush1.xpose.msra.mxu0 %v2943
      %3009 = vmatprep.subr.mxu0 0.0
      %3010 = vmatpush1.xpose.msra.mxu0 %v2945
      %3011 = vmatprep.subr.mxu0 0.0
      %3012 = vmatpush1.xpose.msra.mxu0 %v2947
      %3013 = vmatprep.subr.mxu0 0.0
      %3014 = vmatpush1.xpose.msra.mxu0 %v2949
      %3015 = vmatprep.subr.mxu0 0.0
      %3016 = vmatpush1.xpose.msra.mxu0 %v2951
      %3017 = vmatprep.subr.mxu0 0.0
      %3018 = vmatpush1.xpose.msra.mxu0 %v2953
      %3019 = vmatprep.subr.mxu0 0.0
      %3020 = vmatpush1.xpose.msra.mxu0 %v2955
      %3021 = vmatprep.subr.mxu0 0.0
      %3022 = vmatpush1.xpose.msra.mxu0 %v2957
      %3023 = vmatprep.subr.mxu0 0.0
      %3024 = vmatpush1.xpose.msra.mxu0 %v2959
      %3025 = vmatprep.subr.mxu0 0.0
      %3026 = vmatpush1.xpose.msra.mxu0 %v2961
      %3027 = vmatprep.subr.mxu0 0.0
      %3028 = vmatpush1.xpose.msra.mxu0 %v2963
      %3029 = vmatprep.subr.mxu0 0.0
      %3030 = vmatpush1.xpose.msra.mxu0 %v2965
      %3031 = vmatprep.subr.mxu0 0.0
      %3032 = vmatpush1.xpose.msra.mxu0 %v2967
      %3033 = vmatprep.subr.mxu0 0.0
      %3034 = vmatpush1.xpose.msra.mxu0 %v2969
      %3035 = vmatprep.subr.mxu0 0.0
      %3036 = vmatpush1.xpose.msra.mxu0 %v2971
      %3037 = vmatprep.mubr.f32.mxu0 0.0
      %3038 = vmatmul.mubr.f32.gmra.mrb[0].mxu0 %v2901
      %v3039 = vpop.f32.mrb[0].mxu0
      %v3040 = vadd.f32 0.0, %v3039
      %v3041 = vpop.f32.mrb[0].mxu0
      %v3042 = vadd.f32 0.0, %v3041
      %3043 = vmatprep.mubr.f32.mxu0 0.0
      %3044 = vmatmul.mubr.f32.gmra.mrb[0].mxu0 %v2903
      %v3045 = vpop.f32.mrb[0].mxu0
      %v3046 = vadd.f32 0.0, %v3045
      %v3047 = vpop.f32.mrb[0].mxu0
      %v3048 = vadd.f32 0.0, %v3047
      %3049 = vmatprep.mubr.f32.mxu0 0.0
      %3050 = vmatmul.mubr.f32.gmra.mrb[0].mxu0 %v2905
      %v3051 = vpop.f32.mrb[0].mxu0
      %v3052 = vadd.f32 0.0, %v3051
      %v3053 = vpop.f32.mrb[0].mxu0
      %v3054 = vadd.f32 0.0, %v3053
      %3055 = vmatprep.mubr.f32.mxu0 0.0
      %3056 = vmatmul.mubr.f32.gmra.mrb[0].mxu0 %v2907
      %v3057 = vpop.f32.mrb[0].mxu0
      %v3058 = vadd.f32 0.0, %v3057
      %v3059 = vpop.f32.mrb[0].mxu0
      %v3060 = vadd.f32 0.0, %v3059
      %3061 = vdwg.mxu0
      %v3062 = vmul.f32 %v3040, 0.17677669
      %v3063 = vmul.f32 %v3042, 0.17677669
      %v3064 = vmul.f32 %v3046, 0.17677669
      %v3065 = vmul.f32 %v3048, 0.17677669
      %v3066 = vmul.f32 %v3052, 0.17677669
      %v3067 = vmul.f32 %v3054, 0.17677669
      %v3068 = vmul.f32 %v3058, 0.17677669
      %v3069 = vmul.f32 %v3060, 0.17677669
      %v3070 = vmax.f32 %v3062, %v3063
      %3071 = vmax.xlane.f32.xlu0 %v3070
      %v3072 = vpop.xlane.xlu0 %3071
      %v3073 = vmax.f32 %v3064, %v3065
      %3074 = vmax.xlane.f32.xlu0 %v3073
      %v3075 = vpop.xlane.xlu0 %3074
      %v3076 = vmax.f32 %v3066, %v3067
      %3077 = vmax.xlane.f32.xlu0 %v3076
      %v3078 = vpop.xlane.xlu0 %3077
      %v3079 = vmax.f32 %v3068, %v3069
      %3080 = vmax.xlane.f32.xlu0 %v3079
      %v3081 = vpop.xlane.xlu0 %3080
      %v3082 = vsub.f32 %v3062, %v3072
      %v3083 = vsub.f32 %v3063, %v3072
      %v3084 = vsub.f32 %v3064, %v3075
      %v3085 = vsub.f32 %v3065, %v3075
      %v3086 = vsub.f32 %v3066, %v3078
      %v3087 = vsub.f32 %v3067, %v3078
      %v3088 = vsub.f32 %v3068, %v3081
      %v3089 = vsub.f32 %v3069, %v3081
      %v3090 = vmul.f32 %v3082, 1.442695
      %v3091 = vpow.pop %v3090
      %v3092 = vmul.f32 %v3083, 1.442695
      %v3093 = vpow.pop %v3092
      %v3094 = vmul.f32 %v3084, 1.442695
      %v3095 = vpow.pop %v3094
      %v3096 = vmul.f32 %v3085, 1.442695
      %v3097 = vpow.pop %v3096
      %v3098 = vmul.f32 %v3086, 1.442695
      %v3099 = vpow.pop %v3098
      %v3100 = vmul.f32 %v3087, 1.442695
      %v3101 = vpow.pop %v3100
      %v3102 = vmul.f32 %v3088, 1.442695
      %v3103 = vpow.pop %v3102
      %v3104 = vmul.f32 %v3089, 1.442695
      %v3105 = vpow.pop %v3104
      %v3106 = vadd.f32 %v3091, %v3093
      %3107 = vadd.xlane.f32.xlu0 %v3106
      %v3108 = vpop.xlane.xlu0 %3107
      %v3109 = vadd.f32 %v3095, %v3097
      %3110 = vadd.xlane.f32.xlu0 %v3109
      %v3111 = vpop.xlane.xlu0 %3110
      %v3112 = vadd.f32 %v3099, %v3101
      %3113 = vadd.xlane.f32.xlu0 %v3112
      %v3114 = vpop.xlane.xlu0 %3113
      %v3115 = vadd.f32 %v3103, %v3105
      %3116 = vadd.xlane.f32.xlu0 %v3115
      %v3117 = vpop.xlane.xlu0 %3116
      %v3118 = vrcp.pop %v3108
      %v3119 = vmul.f32 %v3091, %v3118
      %v3120 = vmul.f32 %v3093, %v3118
      %v3121 = vrcp.pop %v3111
      %v3122 = vmul.f32 %v3095, %v3121
      %v3123 = vmul.f32 %v3097, %v3121
      %v3124 = vrcp.pop %v3114
      %v3125 = vmul.f32 %v3099, %v3124
      %v3126 = vmul.f32 %v3101, %v3124
      %v3127 = vrcp.pop %v3117
      %v3128 = vmul.f32 %v3103, %v3127
      %v3129 = vmul.f32 %v3105, %v3127
      %3130 = vrot.lane.b32.xlu0 %v1605, 64
      %v3131 = vpop.permute.xlu0 %3130
      %3132 = vrot.lane.b32.xlu0 %v1610, 64
      %v3133 = vpop.permute.xlu0 %3132
      %3134 = vrot.lane.b32.xlu0 %v1615, 64
      %v3135 = vpop.permute.xlu0 %3134
      %3136 = vrot.lane.b32.xlu0 %v1620, 64
      %v3137 = vpop.permute.xlu0 %3136
      %3138 = vrot.lane.b32.xlu0 %v1625, 64
      %v3139 = vpop.permute.xlu0 %3138
      %3140 = vrot.lane.b32.xlu0 %v1630, 64
      %v3141 = vpop.permute.xlu0 %3140
      %3142 = vrot.lane.b32.xlu0 %v1635, 64
      %v3143 = vpop.permute.xlu0 %3142
      %3144 = vrot.lane.b32.xlu0 %v1640, 64
      %v3145 = vpop.permute.xlu0 %3144
      %3146 = vrot.lane.b32.xlu0 %v1645, 64
      %v3147 = vpop.permute.xlu0 %3146
      %3148 = vrot.lane.b32.xlu0 %v1650, 64
      %v3149 = vpop.permute.xlu0 %3148
      %3150 = vrot.lane.b32.xlu0 %v1655, 64
      %v3151 = vpop.permute.xlu0 %3150
      %3152 = vrot.lane.b32.xlu0 %v1660, 64
      %v3153 = vpop.permute.xlu0 %3152
      %3154 = vrot.lane.b32.xlu0 %v1665, 64
      %v3155 = vpop.permute.xlu0 %3154
      %3156 = vrot.lane.b32.xlu0 %v1670, 64
      %v3157 = vpop.permute.xlu0 %3156
      %3158 = vrot.lane.b32.xlu0 %v1675, 64
      %v3159 = vpop.permute.xlu0 %3158
      %3160 = vrot.lane.b32.xlu0 %v1680, 64
      %v3161 = vpop.permute.xlu0 %3160
      %3162 = vrot.lane.b32.xlu0 %v1685, 64
      %v3163 = vpop.permute.xlu0 %3162
      %3164 = vrot.lane.b32.xlu0 %v1690, 64
      %v3165 = vpop.permute.xlu0 %3164
      %3166 = vrot.lane.b32.xlu0 %v1695, 64
      %v3167 = vpop.permute.xlu0 %3166
      %3168 = vrot.lane.b32.xlu0 %v1700, 64
      %v3169 = vpop.permute.xlu0 %3168
      %3170 = vrot.lane.b32.xlu0 %v1705, 64
      %v3171 = vpop.permute.xlu0 %3170
      %3172 = vrot.lane.b32.xlu0 %v1710, 64
      %v3173 = vpop.permute.xlu0 %3172
      %3174 = vrot.lane.b32.xlu0 %v1715, 64
      %v3175 = vpop.permute.xlu0 %3174
      %3176 = vrot.lane.b32.xlu0 %v1720, 64
      %v3177 = vpop.permute.xlu0 %3176
      %3178 = vrot.lane.b32.xlu0 %v1725, 64
      %v3179 = vpop.permute.xlu0 %3178
      %3180 = vrot.lane.b32.xlu0 %v1730, 64
      %v3181 = vpop.permute.xlu0 %3180
      %3182 = vrot.lane.b32.xlu0 %v1735, 64
      %v3183 = vpop.permute.xlu0 %3182
      %3184 = vrot.lane.b32.xlu0 %v1740, 64
      %v3185 = vpop.permute.xlu0 %3184
      %3186 = vrot.lane.b32.xlu0 %v1745, 64
      %v3187 = vpop.permute.xlu0 %3186
      %3188 = vrot.lane.b32.xlu0 %v1750, 64
      %v3189 = vpop.permute.xlu0 %3188
      %3190 = vrot.lane.b32.xlu0 %v1755, 64
      %v3191 = vpop.permute.xlu0 %3190
      %3192 = vrot.lane.b32.xlu0 %v1760, 64
      %v3193 = vpop.permute.xlu0 %3192
      %3226 = vmatprep.subr.mxu0 0.0
      %3227 = vmatpush1.msra.mxu0 %v3131
      %3228 = vmatprep.subr.mxu0 0.0
      %3229 = vmatpush1.msra.mxu0 %v3133
      %3230 = vmatprep.subr.mxu0 0.0
      %3231 = vmatpush1.msra.mxu0 %v3135
      %3232 = vmatprep.subr.mxu0 0.0
      %3233 = vmatpush1.msra.mxu0 %v3137
      %3234 = vmatprep.subr.mxu0 0.0
      %3235 = vmatpush1.msra.mxu0 %v3139
      %3236 = vmatprep.subr.mxu0 0.0
      %3237 = vmatpush1.msra.mxu0 %v3141
      %3238 = vmatprep.subr.mxu0 0.0
      %3239 = vmatpush1.msra.mxu0 %v3143
      %3240 = vmatprep.subr.mxu0 0.0
      %3241 = vmatpush1.msra.mxu0 %v3145
      %3242 = vmatprep.subr.mxu0 0.0
      %3243 = vmatpush1.msra.mxu0 %v3147
      %3244 = vmatprep.subr.mxu0 0.0
      %3245 = vmatpush1.msra.mxu0 %v3149
      %3246 = vmatprep.subr.mxu0 0.0
      %3247 = vmatpush1.msra.mxu0 %v3151
      %3248 = vmatprep.subr.mxu0 0.0
      %3249 = vmatpush1.msra.mxu0 %v3153
      %3250 = vmatprep.subr.mxu0 0.0
      %3251 = vmatpush1.msra.mxu0 %v3155
      %3252 = vmatprep.subr.mxu0 0.0
      %3253 = vmatpush1.msra.mxu0 %v3157
      %3254 = vmatprep.subr.mxu0 0.0
      %3255 = vmatpush1.msra.mxu0 %v3159
      %3256 = vmatprep.subr.mxu0 0.0
      %3257 = vmatpush1.msra.mxu0 %v3161
      %3258 = vmatprep.subr.mxu0 0.0
      %3259 = vmatpush1.msra.mxu0 %v3163
      %3260 = vmatprep.subr.mxu0 0.0
      %3261 = vmatpush1.msra.mxu0 %v3165
      %3262 = vmatprep.subr.mxu0 0.0
      %3263 = vmatpush1.msra.mxu0 %v3167
      %3264 = vmatprep.subr.mxu0 0.0
      %3265 = vmatpush1.msra.mxu0 %v3169
      %3266 = vmatprep.subr.mxu0 0.0
      %3267 = vmatpush1.msra.mxu0 %v3171
      %3268 = vmatprep.subr.mxu0 0.0
      %3269 = vmatpush1.msra.mxu0 %v3173
      %3270 = vmatprep.subr.mxu0 0.0
      %3271 = vmatpush1.msra.mxu0 %v3175
      %3272 = vmatprep.subr.mxu0 0.0
      %3273 = vmatpush1.msra.mxu0 %v3177
      %3274 = vmatprep.subr.mxu0 0.0
      %3275 = vmatpush1.msra.mxu0 %v3179
      %3276 = vmatprep.subr.mxu0 0.0
      %3277 = vmatpush1.msra.mxu0 %v3181
      %3278 = vmatprep.subr.mxu0 0.0
      %3279 = vmatpush1.msra.mxu0 %v3183
      %3280 = vmatprep.subr.mxu0 0.0
      %3281 = vmatpush1.msra.mxu0 %v3185
      %3282 = vmatprep.subr.mxu0 0.0
      %3283 = vmatpush1.msra.mxu0 %v3187
      %3284 = vmatprep.subr.mxu0 0.0
      %3285 = vmatpush1.msra.mxu0 %v3189
      %3286 = vmatprep.subr.mxu0 0.0
      %3287 = vmatpush1.msra.mxu0 %v3191
      %3288 = vmatprep.subr.mxu0 0.0
      %3289 = vmatpush1.msra.mxu0 %v3193
      %3290 = vmatprep.mubr.f32.mxu0 %v3120
      %3291 = vmatmul.mubr.f32.gmra.mrb[0].mxu0 %v3119
      %v3292 = vpop.f32.mrb[0].mxu0
      %v3293 = vadd.f32 0.0, %v3292
      %v3294 = vpop.f32.mrb[0].mxu0
      %3295 = vmatprep.mubr.f32.mxu0 %v3123
      %3296 = vmatmul.mubr.f32.gmra.mrb[0].mxu0 %v3122
      %v3297 = vpop.f32.mrb[0].mxu0
      %v3298 = vadd.f32 0.0, %v3297
      %v3299 = vpop.f32.mrb[0].mxu0
      %3300 = vmatprep.mubr.f32.mxu0 %v3126
      %3301 = vmatmul.mubr.f32.gmra.mrb[0].mxu0 %v3125
      %v3302 = vpop.f32.mrb[0].mxu0
      %v3303 = vadd.f32 0.0, %v3302
      %v3304 = vpop.f32.mrb[0].mxu0
      %3305 = vmatprep.mubr.f32.mxu0 %v3129
      %3306 = vmatmul.mubr.f32.gmra.mrb[0].mxu0 %v3128
      %v3307 = vpop.f32.mrb[0].mxu0
      %v3308 = vadd.f32 0.0, %v3307
      %v3309 = vpop.f32.mrb[0].mxu0
      %3310 = vdwg.mxu0
      %v3311 = vld [vmem:[%s12 + $0x40] sm:$0xff]
      %v3312 = vld [vmem:[%s12 + $0x48] sm:$0xff]
      %v3313 = vld [vmem:[%s12 + $0x50] sm:$0xff]
      %v3314 = vld [vmem:[%s12 + $0x58] sm:$0xff]
      %v3316 = vsel %vm593, %v3293, 0
      %v3319 = vsel %vm593, %v3298, 0
      %v3322 = vsel %vm593, %v3303, 0
      %v3325 = vsel %vm593, %v3308, 0
      %3327 = vmatprep.subr.mxu0 0.0
      %3328 = vmatpush1.msra.mxu0 %v3311
      %3329 = vmatprep.subr.mxu0 0.0
      %3330 = vmatpush1.msra.mxu0 %v3312
      %3331 = vmatprep.subr.mxu0 0.0
      %3332 = vmatpush1.msra.mxu0 %v3313
      %3333 = vmatprep.subr.mxu0 0.0
      %3334 = vmatpush1.msra.mxu0 %v3314
      %3335 = vmatprep.subr.mxu0 0.0
      %3336 = vmatpush1.msra.mxu0 0.0
      %3337 = vmatprep.subr.mxu0 0.0
      %3338 = vmatpush1.msra.mxu0 0.0
      %3339 = vmatprep.subr.mxu0 0.0
      %3340 = vmatpush1.msra.mxu0 0.0
      %3341 = vmatprep.subr.mxu0 0.0
      %3342 = vmatpush1.msra.mxu0 0.0
      %3343 = vmatprep.subr.mxu0 0.0
      %3344 = vmatpush1.msra.mxu0 0.0
      %3345 = vmatprep.subr.mxu0 0.0
      %3346 = vmatpush1.msra.mxu0 0.0
      %3347 = vmatprep.subr.mxu0 0.0
      %3348 = vmatpush1.msra.mxu0 0.0
      %3349 = vmatprep.subr.mxu0 0.0
      %3350 = vmatpush1.msra.mxu0 0.0
      %3351 = vmatprep.subr.mxu0 0.0
      %3352 = vmatpush1.msra.mxu0 0.0
      %3353 = vmatprep.subr.mxu0 0.0
      %3354 = vmatpush1.msra.mxu0 0.0
      %3355 = vmatprep.subr.mxu0 0.0
      %3356 = vmatpush1.msra.mxu0 0.0
      %3357 = vmatprep.subr.mxu0 0.0
      %3358 = vmatpush1.msra.mxu0 0.0
      %3359 = vmatprep.subr.mxu0 0.0
      %3360 = vmatpush1.msra.mxu0 0.0
      %3361 = vmatprep.subr.mxu0 0.0
      %3362 = vmatpush1.msra.mxu0 0.0
      %3363 = vmatprep.subr.mxu0 0.0
      %3364 = vmatpush1.msra.mxu0 0.0
      %3365 = vmatprep.subr.mxu0 0.0
      %3366 = vmatpush1.msra.mxu0 0.0
      %3367 = vmatprep.subr.mxu0 0.0
      %3368 = vmatpush1.msra.mxu0 0.0
      %3369 = vmatprep.subr.mxu0 0.0
      %3370 = vmatpush1.msra.mxu0 0.0
      %3371 = vmatprep.subr.mxu0 0.0
      %3372 = vmatpush1.msra.mxu0 0.0
      %3373 = vmatprep.subr.mxu0 0.0
      %3374 = vmatpush1.msra.mxu0 0.0
      %3375 = vmatprep.subr.mxu0 0.0
      %3376 = vmatpush1.msra.mxu0 0.0
      %3377 = vmatprep.subr.mxu0 0.0
      %3378 = vmatpush1.msra.mxu0 0.0
      %3379 = vmatprep.subr.mxu0 0.0
      %3380 = vmatpush1.msra.mxu0 0.0
      %3381 = vmatprep.subr.mxu0 0.0
      %3382 = vmatpush1.msra.mxu0 0.0
      %3383 = vmatprep.subr.mxu0 0.0
      %3384 = vmatpush1.msra.mxu0 0.0
      %3385 = vmatprep.subr.mxu0 0.0
      %3386 = vmatpush1.msra.mxu0 0.0
      %3387 = vmatprep.subr.mxu0 0.0
      %3388 = vmatpush1.msra.mxu0 0.0
      %3389 = vmatprep.subr.mxu0 0.0
      %3390 = vmatpush1.msra.mxu0 0.0
      %3391 = vmatprep.mubr.f32.mxu0 0.0
      %3392 = vmatmul.mubr.f32.gmra.mrb[0].mxu0 %v3316
      %v3393 = vpop.f32.mrb[0].mxu0
      %v3394 = vadd.f32 0.0, %v3393
      %v3395 = vpop.f32.mrb[0].mxu0
      %3396 = vmatprep.mubr.f32.mxu0 0.0
      %3397 = vmatmul.mubr.f32.gmra.mrb[0].mxu0 %v3319
      %v3398 = vpop.f32.mrb[0].mxu0
      %v3399 = vadd.f32 0.0, %v3398
      %v3400 = vpop.f32.mrb[0].mxu0
      %3401 = vmatprep.mubr.f32.mxu0 0.0
      %3402 = vmatmul.mubr.f32.gmra.mrb[0].mxu0 %v3322
      %v3403 = vpop.f32.mrb[0].mxu0
      %v3404 = vadd.f32 0.0, %v3403
      %v3405 = vpop.f32.mrb[0].mxu0
      %3406 = vmatprep.mubr.f32.mxu0 0.0
      %3407 = vmatmul.mubr.f32.gmra.mrb[0].mxu0 %v3325
      %v3408 = vpop.f32.mrb[0].mxu0
      %v3409 = vadd.f32 0.0, %v3408
      %v3410 = vpop.f32.mrb[0].mxu0
      %3411 = vdwg.mxu0
      %v3412 = vadd.f32 %v2811, %v3394
      %v3413 = vadd.f32 %v2816, %v3399
      %v3414 = vadd.f32 %v2821, %v3404
      %v3415 = vadd.f32 %v2826, %v3409
      %3416 = vrot.lane.b32.xlu0 %v1177, 32
      %v3417 = vpop.permute.xlu0 %3416
      %3418 = vrot.lane.b32.xlu0 %v1182, 32
      %v3419 = vpop.permute.xlu0 %3418
      %3420 = vrot.lane.b32.xlu0 %v1187, 32
      %v3421 = vpop.permute.xlu0 %3420
      %3422 = vrot.lane.b32.xlu0 %v1192, 32
      %v3423 = vpop.permute.xlu0 %3422
      %3424 = vrot.lane.b32.xlu0 %v1369, 32
      %v3425 = vpop.permute.xlu0 %3424
      %3426 = vrot.lane.b32.xlu0 %v1374, 32
      %v3427 = vpop.permute.xlu0 %3426
      %3428 = vrot.lane.b32.xlu0 %v1379, 32
      %v3429 = vpop.permute.xlu0 %3428
      %3430 = vrot.lane.b32.xlu0 %v1384, 32
      %v3431 = vpop.permute.xlu0 %3430
      %3432 = vrot.lane.b32.xlu0 %v1389, 32
      %v3433 = vpop.permute.xlu0 %3432
      %3434 = vrot.lane.b32.xlu0 %v1394, 32
      %v3435 = vpop.permute.xlu0 %3434
      %3436 = vrot.lane.b32.xlu0 %v1399, 32
      %v3437 = vpop.permute.xlu0 %3436
      %3438 = vrot.lane.b32.xlu0 %v1404, 32
      %v3439 = vpop.permute.xlu0 %3438
      %3440 = vrot.lane.b32.xlu0 %v1409, 32
      %v3441 = vpop.permute.xlu0 %3440
      %3442 = vrot.lane.b32.xlu0 %v1414, 32
      %v3443 = vpop.permute.xlu0 %3442
      %3444 = vrot.lane.b32.xlu0 %v1419, 32
      %v3445 = vpop.permute.xlu0 %3444
      %3446 = vrot.lane.b32.xlu0 %v1424, 32
      %v3447 = vpop.permute.xlu0 %3446
      %3448 = vrot.lane.b32.xlu0 %v1429, 32
      %v3449 = vpop.permute.xlu0 %3448
      %3450 = vrot.lane.b32.xlu0 %v1434, 32
      %v3451 = vpop.permute.xlu0 %3450
      %3452 = vrot.lane.b32.xlu0 %v1439, 32
      %v3453 = vpop.permute.xlu0 %3452
      %3454 = vrot.lane.b32.xlu0 %v1444, 32
      %v3455 = vpop.permute.xlu0 %3454
      %3456 = vrot.lane.b32.xlu0 %v1449, 32
      %v3457 = vpop.permute.xlu0 %3456
      %3458 = vrot.lane.b32.xlu0 %v1454, 32
      %v3459 = vpop.permute.xlu0 %3458
      %3460 = vrot.lane.b32.xlu0 %v1459, 32
      %v3461 = vpop.permute.xlu0 %3460
      %3462 = vrot.lane.b32.xlu0 %v1464, 32
      %v3463 = vpop.permute.xlu0 %3462
      %3464 = vrot.lane.b32.xlu0 %v1469, 32
      %v3465 = vpop.permute.xlu0 %3464
      %3466 = vrot.lane.b32.xlu0 %v1474, 32
      %v3467 = vpop.permute.xlu0 %3466
      %3468 = vrot.lane.b32.xlu0 %v1479, 32
      %v3469 = vpop.permute.xlu0 %3468
      %3470 = vrot.lane.b32.xlu0 %v1484, 32
      %v3471 = vpop.permute.xlu0 %3470
      %3472 = vrot.lane.b32.xlu0 %v1489, 32
      %v3473 = vpop.permute.xlu0 %3472
      %3474 = vrot.lane.b32.xlu0 %v1494, 32
      %v3475 = vpop.permute.xlu0 %3474
      %3476 = vrot.lane.b32.xlu0 %v1499, 32
      %v3477 = vpop.permute.xlu0 %3476
      %3478 = vrot.lane.b32.xlu0 %v1504, 32
      %v3479 = vpop.permute.xlu0 %3478
      %3480 = vrot.lane.b32.xlu0 %v1509, 32
      %v3481 = vpop.permute.xlu0 %3480
      %3482 = vrot.lane.b32.xlu0 %v1514, 32
      %v3483 = vpop.permute.xlu0 %3482
      %3484 = vrot.lane.b32.xlu0 %v1519, 32
      %v3485 = vpop.permute.xlu0 %3484
      %3486 = vrot.lane.b32.xlu0 %v1524, 32
      %v3487 = vpop.permute.xlu0 %3486
      %v3488 = vsel %vm593, %v3417, 0
      %v3490 = vsel %vm593, %v3419, 0
      %v3492 = vsel %vm593, %v3421, 0
      %v3494 = vsel %vm593, %v3423, 0
      %v3496 = vsel %vm593, %v3425, 0
      %v3498 = vsel %vm593, %v3427, 0
      %v3500 = vsel %vm593, %v3429, 0
      %v3502 = vsel %vm593, %v3431, 0
      %v3504 = vsel %vm593, %v3433, 0
      %v3506 = vsel %vm593, %v3435, 0
      %v3508 = vsel %vm593, %v3437, 0
      %v3510 = vsel %vm593, %v3439, 0
      %v3512 = vsel %vm593, %v3441, 0
      %v3514 = vsel %vm593, %v3443, 0
      %v3516 = vsel %vm593, %v3445, 0
      %v3518 = vsel %vm593, %v3447, 0
      %v3520 = vsel %vm593, %v3449, 0
      %v3522 = vsel %vm593, %v3451, 0
      %v3524 = vsel %vm593, %v3453, 0
      %v3526 = vsel %vm593, %v3455, 0
      %v3528 = vsel %vm593, %v3457, 0
      %v3530 = vsel %vm593, %v3459, 0
      %v3532 = vsel %vm593, %v3461, 0
      %v3534 = vsel %vm593, %v3463, 0
      %v3536 = vsel %vm593, %v3465, 0
      %v3538 = vsel %vm593, %v3467, 0
      %v3540 = vsel %vm593, %v3469, 0
      %v3542 = vsel %vm593, %v3471, 0
      %v3544 = vsel %vm593, %v3473, 0
      %v3546 = vsel %vm593, %v3475, 0
      %v3548 = vsel %vm593, %v3477, 0
      %v3550 = vsel %vm593, %v3479, 0
      %v3552 = vsel %vm593, %v3481, 0
      %v3554 = vsel %vm593, %v3483, 0
      %v3556 = vsel %vm593, %v3485, 0
      %v3558 = vsel %vm593, %v3487, 0
      %3560 = vmatprep.subr.mxu0 0.0
      %3561 = vmatpush1.xpose.msra.mxu0 %v3496
      %3562 = vmatprep.subr.mxu0 0.0
      %3563 = vmatpush1.xpose.msra.mxu0 %v3498
      %3564 = vmatprep.subr.mxu0 0.0
      %3565 = vmatpush1.xpose.msra.mxu0 %v3500
      %3566 = vmatprep.subr.mxu0 0.0
      %3567 = vmatpush1.xpose.msra.mxu0 %v3502
      %3568 = vmatprep.subr.mxu0 0.0
      %3569 = vmatpush1.xpose.msra.mxu0 %v3504
      %3570 = vmatprep.subr.mxu0 0.0
      %3571 = vmatpush1.xpose.msra.mxu0 %v3506
      %3572 = vmatprep.subr.mxu0 0.0
      %3573 = vmatpush1.xpose.msra.mxu0 %v3508
      %3574 = vmatprep.subr.mxu0 0.0
      %3575 = vmatpush1.xpose.msra.mxu0 %v3510
      %3576 = vmatprep.subr.mxu0 0.0
      %3577 = vmatpush1.xpose.msra.mxu0 %v3512
      %3578 = vmatprep.subr.mxu0 0.0
      %3579 = vmatpush1.xpose.msra.mxu0 %v3514
      %3580 = vmatprep.subr.mxu0 0.0
      %3581 = vmatpush1.xpose.msra.mxu0 %v3516
      %3582 = vmatprep.subr.mxu0 0.0
      %3583 = vmatpush1.xpose.msra.mxu0 %v3518
      %3584 = vmatprep.subr.mxu0 0.0
      %3585 = vmatpush1.xpose.msra.mxu0 %v3520
      %3586 = vmatprep.subr.mxu0 0.0
      %3587 = vmatpush1.xpose.msra.mxu0 %v3522
      %3588 = vmatprep.subr.mxu0 0.0
      %3589 = vmatpush1.xpose.msra.mxu0 %v3524
      %3590 = vmatprep.subr.mxu0 0.0
      %3591 = vmatpush1.xpose.msra.mxu0 %v3526
      %3592 = vmatprep.subr.mxu0 0.0
      %3593 = vmatpush1.xpose.msra.mxu0 %v3528
      %3594 = vmatprep.subr.mxu0 0.0
      %3595 = vmatpush1.xpose.msra.mxu0 %v3530
      %3596 = vmatprep.subr.mxu0 0.0
      %3597 = vmatpush1.xpose.msra.mxu0 %v3532
      %3598 = vmatprep.subr.mxu0 0.0
      %3599 = vmatpush1.xpose.msra.mxu0 %v3534
      %3600 = vmatprep.subr.mxu0 0.0
      %3601 = vmatpush1.xpose.msra.mxu0 %v3536
      %3602 = vmatprep.subr.mxu0 0.0
      %3603 = vmatpush1.xpose.msra.mxu0 %v3538
      %3604 = vmatprep.subr.mxu0 0.0
      %3605 = vmatpush1.xpose.msra.mxu0 %v3540
      %3606 = vmatprep.subr.mxu0 0.0
      %3607 = vmatpush1.xpose.msra.mxu0 %v3542
      %3608 = vmatprep.subr.mxu0 0.0
      %3609 = vmatpush1.xpose.msra.mxu0 %v3544
      %3610 = vmatprep.subr.mxu0 0.0
      %3611 = vmatpush1.xpose.msra.mxu0 %v3546
      %3612 = vmatprep.subr.mxu0 0.0
      %3613 = vmatpush1.xpose.msra.mxu0 %v3548
      %3614 = vmatprep.subr.mxu0 0.0
      %3615 = vmatpush1.xpose.msra.mxu0 %v3550
      %3616 = vmatprep.subr.mxu0 0.0
      %3617 = vmatpush1.xpose.msra.mxu0 %v3552
      %3618 = vmatprep.subr.mxu0 0.0
      %3619 = vmatpush1.xpose.msra.mxu0 %v3554
      %3620 = vmatprep.subr.mxu0 0.0
      %3621 = vmatpush1.xpose.msra.mxu0 %v3556
      %3622 = vmatprep.subr.mxu0 0.0
      %3623 = vmatpush1.xpose.msra.mxu0 %v3558
      %3624 = vmatprep.mubr.f32.mxu0 0.0
      %3625 = vmatmul.mubr.f32.gmra.mrb[0].mxu0 %v3488
      %v3626 = vpop.f32.mrb[0].mxu0
      %v3627 = vadd.f32 0.0, %v3626
      %v3628 = vpop.f32.mrb[0].mxu0
      %v3629 = vadd.f32 0.0, %v3628
      %3630 = vmatprep.mubr.f32.mxu0 0.0
      %3631 = vmatmul.mubr.f32.gmra.mrb[0].mxu0 %v3490
      %v3632 = vpop.f32.mrb[0].mxu0
      %v3633 = vadd.f32 0.0, %v3632
      %v3634 = vpop.f32.mrb[0].mxu0
      %v3635 = vadd.f32 0.0, %v3634
      %3636 = vmatprep.mubr.f32.mxu0 0.0
      %3637 = vmatmul.mubr.f32.gmra.mrb[0].mxu0 %v3492
      %v3638 = vpop.f32.mrb[0].mxu0
      %v3639 = vadd.f32 0.0, %v3638
      %v3640 = vpop.f32.mrb[0].mxu0
      %v3641 = vadd.f32 0.0, %v3640
      %3642 = vmatprep.mubr.f32.mxu0 0.0
      %3643 = vmatmul.mubr.f32.gmra.mrb[0].mxu0 %v3494
      %v3644 = vpop.f32.mrb[0].mxu0
      %v3645 = vadd.f32 0.0, %v3644
      %v3646 = vpop.f32.mrb[0].mxu0
      %v3647 = vadd.f32 0.0, %v3646
      %3648 = vdwg.mxu0
      %v3649 = vmul.f32 %v3627, 0.17677669
      %v3650 = vmul.f32 %v3629, 0.17677669
      %v3651 = vmul.f32 %v3633, 0.17677669
      %v3652 = vmul.f32 %v3635, 0.17677669
      %v3653 = vmul.f32 %v3639, 0.17677669
      %v3654 = vmul.f32 %v3641, 0.17677669
      %v3655 = vmul.f32 %v3645, 0.17677669
      %v3656 = vmul.f32 %v3647, 0.17677669
      %v3657 = vmax.f32 %v3649, %v3650
      %3658 = vmax.xlane.f32.xlu0 %v3657
      %v3659 = vpop.xlane.xlu0 %3658
      %v3660 = vmax.f32 %v3651, %v3652
      %3661 = vmax.xlane.f32.xlu0 %v3660
      %v3662 = vpop.xlane.xlu0 %3661
      %v3663 = vmax.f32 %v3653, %v3654
      %3664 = vmax.xlane.f32.xlu0 %v3663
      %v3665 = vpop.xlane.xlu0 %3664
      %v3666 = vmax.f32 %v3655, %v3656
      %3667 = vmax.xlane.f32.xlu0 %v3666
      %v3668 = vpop.xlane.xlu0 %3667
      %v3669 = vsub.f32 %v3649, %v3659
      %v3670 = vsub.f32 %v3650, %v3659
      %v3671 = vsub.f32 %v3651, %v3662
      %v3672 = vsub.f32 %v3652, %v3662
      %v3673 = vsub.f32 %v3653, %v3665
      %v3674 = vsub.f32 %v3654, %v3665
      %v3675 = vsub.f32 %v3655, %v3668
      %v3676 = vsub.f32 %v3656, %v3668
      %v3677 = vmul.f32 %v3669, 1.442695
      %v3678 = vpow.pop %v3677
      %v3679 = vmul.f32 %v3670, 1.442695
      %v3680 = vpow.pop %v3679
      %v3681 = vmul.f32 %v3671, 1.442695
      %v3682 = vpow.pop %v3681
      %v3683 = vmul.f32 %v3672, 1.442695
      %v3684 = vpow.pop %v3683
      %v3685 = vmul.f32 %v3673, 1.442695
      %v3686 = vpow.pop %v3685
      %v3687 = vmul.f32 %v3674, 1.442695
      %v3688 = vpow.pop %v3687
      %v3689 = vmul.f32 %v3675, 1.442695
      %v3690 = vpow.pop %v3689
      %v3691 = vmul.f32 %v3676, 1.442695
      %v3692 = vpow.pop %v3691
      %v3693 = vadd.f32 %v3678, %v3680
      %3694 = vadd.xlane.f32.xlu0 %v3693
      %v3695 = vpop.xlane.xlu0 %3694
      %v3696 = vadd.f32 %v3682, %v3684
      %3697 = vadd.xlane.f32.xlu0 %v3696
      %v3698 = vpop.xlane.xlu0 %3697
      %v3699 = vadd.f32 %v3686, %v3688
      %3700 = vadd.xlane.f32.xlu0 %v3699
      %v3701 = vpop.xlane.xlu0 %3700
      %v3702 = vadd.f32 %v3690, %v3692
      %3703 = vadd.xlane.f32.xlu0 %v3702
      %v3704 = vpop.xlane.xlu0 %3703
      %v3705 = vrcp.pop %v3695
      %v3706 = vmul.f32 %v3678, %v3705
      %v3707 = vmul.f32 %v3680, %v3705
      %v3708 = vrcp.pop %v3698
      %v3709 = vmul.f32 %v3682, %v3708
      %v3710 = vmul.f32 %v3684, %v3708
      %v3711 = vrcp.pop %v3701
      %v3712 = vmul.f32 %v3686, %v3711
      %v3713 = vmul.f32 %v3688, %v3711
      %v3714 = vrcp.pop %v3704
      %v3715 = vmul.f32 %v3690, %v3714
      %v3716 = vmul.f32 %v3692, %v3714
      %3717 = vrot.lane.b32.xlu0 %v1605, 32
      %v3718 = vpop.permute.xlu0 %3717
      %3719 = vrot.lane.b32.xlu0 %v1610, 32
      %v3720 = vpop.permute.xlu0 %3719
      %3721 = vrot.lane.b32.xlu0 %v1615, 32
      %v3722 = vpop.permute.xlu0 %3721
      %3723 = vrot.lane.b32.xlu0 %v1620, 32
      %v3724 = vpop.permute.xlu0 %3723
      %3725 = vrot.lane.b32.xlu0 %v1625, 32
      %v3726 = vpop.permute.xlu0 %3725
      %3727 = vrot.lane.b32.xlu0 %v1630, 32
      %v3728 = vpop.permute.xlu0 %3727
      %3729 = vrot.lane.b32.xlu0 %v1635, 32
      %v3730 = vpop.permute.xlu0 %3729
      %3731 = vrot.lane.b32.xlu0 %v1640, 32
      %v3732 = vpop.permute.xlu0 %3731
      %3733 = vrot.lane.b32.xlu0 %v1645, 32
      %v3734 = vpop.permute.xlu0 %3733
      %3735 = vrot.lane.b32.xlu0 %v1650, 32
      %v3736 = vpop.permute.xlu0 %3735
      %3737 = vrot.lane.b32.xlu0 %v1655, 32
      %v3738 = vpop.permute.xlu0 %3737
      %3739 = vrot.lane.b32.xlu0 %v1660, 32
      %v3740 = vpop.permute.xlu0 %3739
      %3741 = vrot.lane.b32.xlu0 %v1665, 32
      %v3742 = vpop.permute.xlu0 %3741
      %3743 = vrot.lane.b32.xlu0 %v1670, 32
      %v3744 = vpop.permute.xlu0 %3743
      %3745 = vrot.lane.b32.xlu0 %v1675, 32
      %v3746 = vpop.permute.xlu0 %3745
      %3747 = vrot.lane.b32.xlu0 %v1680, 32
      %v3748 = vpop.permute.xlu0 %3747
      %3749 = vrot.lane.b32.xlu0 %v1685, 32
      %v3750 = vpop.permute.xlu0 %3749
      %3751 = vrot.lane.b32.xlu0 %v1690, 32
      %v3752 = vpop.permute.xlu0 %3751
      %3753 = vrot.lane.b32.xlu0 %v1695, 32
      %v3754 = vpop.permute.xlu0 %3753
      %3755 = vrot.lane.b32.xlu0 %v1700, 32
      %v3756 = vpop.permute.xlu0 %3755
      %3757 = vrot.lane.b32.xlu0 %v1705, 32
      %v3758 = vpop.permute.xlu0 %3757
      %3759 = vrot.lane.b32.xlu0 %v1710, 32
      %v3760 = vpop.permute.xlu0 %3759
      %3761 = vrot.lane.b32.xlu0 %v1715, 32
      %v3762 = vpop.permute.xlu0 %3761
      %3763 = vrot.lane.b32.xlu0 %v1720, 32
      %v3764 = vpop.permute.xlu0 %3763
      %3765 = vrot.lane.b32.xlu0 %v1725, 32
      %v3766 = vpop.permute.xlu0 %3765
      %3767 = vrot.lane.b32.xlu0 %v1730, 32
      %v3768 = vpop.permute.xlu0 %3767
      %3769 = vrot.lane.b32.xlu0 %v1735, 32
      %v3770 = vpop.permute.xlu0 %3769
      %3771 = vrot.lane.b32.xlu0 %v1740, 32
      %v3772 = vpop.permute.xlu0 %3771
      %3773 = vrot.lane.b32.xlu0 %v1745, 32
      %v3774 = vpop.permute.xlu0 %3773
      %3775 = vrot.lane.b32.xlu0 %v1750, 32
      %v3776 = vpop.permute.xlu0 %3775
      %3777 = vrot.lane.b32.xlu0 %v1755, 32
      %v3778 = vpop.permute.xlu0 %3777
      %3779 = vrot.lane.b32.xlu0 %v1760, 32
      %v3780 = vpop.permute.xlu0 %3779
      %3813 = vmatprep.subr.mxu0 0.0
      %3814 = vmatpush1.msra.mxu0 %v3718
      %3815 = vmatprep.subr.mxu0 0.0
      %3816 = vmatpush1.msra.mxu0 %v3720
      %3817 = vmatprep.subr.mxu0 0.0
      %3818 = vmatpush1.msra.mxu0 %v3722
      %3819 = vmatprep.subr.mxu0 0.0
      %3820 = vmatpush1.msra.mxu0 %v3724
      %3821 = vmatprep.subr.mxu0 0.0
      %3822 = vmatpush1.msra.mxu0 %v3726
      %3823 = vmatprep.subr.mxu0 0.0
      %3824 = vmatpush1.msra.mxu0 %v3728
      %3825 = vmatprep.subr.mxu0 0.0
      %3826 = vmatpush1.msra.mxu0 %v3730
      %3827 = vmatprep.subr.mxu0 0.0
      %3828 = vmatpush1.msra.mxu0 %v3732
      %3829 = vmatprep.subr.mxu0 0.0
      %3830 = vmatpush1.msra.mxu0 %v3734
      %3831 = vmatprep.subr.mxu0 0.0
      %3832 = vmatpush1.msra.mxu0 %v3736
      %3833 = vmatprep.subr.mxu0 0.0
      %3834 = vmatpush1.msra.mxu0 %v3738
      %3835 = vmatprep.subr.mxu0 0.0
      %3836 = vmatpush1.msra.mxu0 %v3740
      %3837 = vmatprep.subr.mxu0 0.0
      %3838 = vmatpush1.msra.mxu0 %v3742
      %3839 = vmatprep.subr.mxu0 0.0
      %3840 = vmatpush1.msra.mxu0 %v3744
      %3841 = vmatprep.subr.mxu0 0.0
      %3842 = vmatpush1.msra.mxu0 %v3746
      %3843 = vmatprep.subr.mxu0 0.0
      %3844 = vmatpush1.msra.mxu0 %v3748
      %3845 = vmatprep.subr.mxu0 0.0
      %3846 = vmatpush1.msra.mxu0 %v3750
      %3847 = vmatprep.subr.mxu0 0.0
      %3848 = vmatpush1.msra.mxu0 %v3752
      %3849 = vmatprep.subr.mxu0 0.0
      %3850 = vmatpush1.msra.mxu0 %v3754
      %3851 = vmatprep.subr.mxu0 0.0
      %3852 = vmatpush1.msra.mxu0 %v3756
      %3853 = vmatprep.subr.mxu0 0.0
      %3854 = vmatpush1.msra.mxu0 %v3758
      %3855 = vmatprep.subr.mxu0 0.0
      %3856 = vmatpush1.msra.mxu0 %v3760
      %3857 = vmatprep.subr.mxu0 0.0
      %3858 = vmatpush1.msra.mxu0 %v3762
      %3859 = vmatprep.subr.mxu0 0.0
      %3860 = vmatpush1.msra.mxu0 %v3764
      %3861 = vmatprep.subr.mxu0 0.0
      %3862 = vmatpush1.msra.mxu0 %v3766
      %3863 = vmatprep.subr.mxu0 0.0
      %3864 = vmatpush1.msra.mxu0 %v3768
      %3865 = vmatprep.subr.mxu0 0.0
      %3866 = vmatpush1.msra.mxu0 %v3770
      %3867 = vmatprep.subr.mxu0 0.0
      %3868 = vmatpush1.msra.mxu0 %v3772
      %3869 = vmatprep.subr.mxu0 0.0
      %3870 = vmatpush1.msra.mxu0 %v3774
      %3871 = vmatprep.subr.mxu0 0.0
      %3872 = vmatpush1.msra.mxu0 %v3776
      %3873 = vmatprep.subr.mxu0 0.0
      %3874 = vmatpush1.msra.mxu0 %v3778
      %3875 = vmatprep.subr.mxu0 0.0
      %3876 = vmatpush1.msra.mxu0 %v3780
      %3877 = vmatprep.mubr.f32.mxu0 %v3707
      %3878 = vmatmul.mubr.f32.gmra.mrb[0].mxu0 %v3706
      %v3879 = vpop.f32.mrb[0].mxu0
      %v3880 = vadd.f32 0.0, %v3879
      %v3881 = vpop.f32.mrb[0].mxu0
      %3882 = vmatprep.mubr.f32.mxu0 %v3710
      %3883 = vmatmul.mubr.f32.gmra.mrb[0].mxu0 %v3709
      %v3884 = vpop.f32.mrb[0].mxu0
      %v3885 = vadd.f32 0.0, %v3884
      %v3886 = vpop.f32.mrb[0].mxu0
      %3887 = vmatprep.mubr.f32.mxu0 %v3713
      %3888 = vmatmul.mubr.f32.gmra.mrb[0].mxu0 %v3712
      %v3889 = vpop.f32.mrb[0].mxu0
      %v3890 = vadd.f32 0.0, %v3889
      %v3891 = vpop.f32.mrb[0].mxu0
      %3892 = vmatprep.mubr.f32.mxu0 %v3716
      %3893 = vmatmul.mubr.f32.gmra.mrb[0].mxu0 %v3715
      %v3894 = vpop.f32.mrb[0].mxu0
      %v3895 = vadd.f32 0.0, %v3894
      %v3896 = vpop.f32.mrb[0].mxu0
      %3897 = vdwg.mxu0
      %v3898 = vld [vmem:[%s12 + $0x60] sm:$0xff]
      %v3899 = vld [vmem:[%s12 + $0x68] sm:$0xff]
      %v3900 = vld [vmem:[%s12 + $0x70] sm:$0xff]
      %v3901 = vld [vmem:[%s12 + $0x78] sm:$0xff]
      %v3903 = vsel %vm593, %v3880, 0
      %v3906 = vsel %vm593, %v3885, 0
      %v3909 = vsel %vm593, %v3890, 0
      %v3912 = vsel %vm593, %v3895, 0
      %3914 = vmatprep.subr.mxu0 0.0
      %3915 = vmatpush1.msra.mxu0 %v3898
      %3916 = vmatprep.subr.mxu0 0.0
      %3917 = vmatpush1.msra.mxu0 %v3899
      %3918 = vmatprep.subr.mxu0 0.0
      %3919 = vmatpush1.msra.mxu0 %v3900
      %3920 = vmatprep.subr.mxu0 0.0
      %3921 = vmatpush1.msra.mxu0 %v3901
      %3922 = vmatprep.subr.mxu0 0.0
      %3923 = vmatpush1.msra.mxu0 0.0
      %3924 = vmatprep.subr.mxu0 0.0
      %3925 = vmatpush1.msra.mxu0 0.0
      %3926 = vmatprep.subr.mxu0 0.0
      %3927 = vmatpush1.msra.mxu0 0.0
      %3928 = vmatprep.subr.mxu0 0.0
      %3929 = vmatpush1.msra.mxu0 0.0
      %3930 = vmatprep.subr.mxu0 0.0
      %3931 = vmatpush1.msra.mxu0 0.0
      %3932 = vmatprep.subr.mxu0 0.0
      %3933 = vmatpush1.msra.mxu0 0.0
      %3934 = vmatprep.subr.mxu0 0.0
      %3935 = vmatpush1.msra.mxu0 0.0
      %3936 = vmatprep.subr.mxu0 0.0
      %3937 = vmatpush1.msra.mxu0 0.0
      %3938 = vmatprep.subr.mxu0 0.0
      %3939 = vmatpush1.msra.mxu0 0.0
      %3940 = vmatprep.subr.mxu0 0.0
      %3941 = vmatpush1.msra.mxu0 0.0
      %3942 = vmatprep.subr.mxu0 0.0
      %3943 = vmatpush1.msra.mxu0 0.0
      %3944 = vmatprep.subr.mxu0 0.0
      %3945 = vmatpush1.msra.mxu0 0.0
      %3946 = vmatprep.subr.mxu0 0.0
      %3947 = vmatpush1.msra.mxu0 0.0
      %3948 = vmatprep.subr.mxu0 0.0
      %3949 = vmatpush1.msra.mxu0 0.0
      %3950 = vmatprep.subr.mxu0 0.0
      %3951 = vmatpush1.msra.mxu0 0.0
      %3952 = vmatprep.subr.mxu0 0.0
      %3953 = vmatpush1.msra.mxu0 0.0
      %3954 = vmatprep.subr.mxu0 0.0
      %3955 = vmatpush1.msra.mxu0 0.0
      %3956 = vmatprep.subr.mxu0 0.0
      %3957 = vmatpush1.msra.mxu0 0.0
      %3958 = vmatprep.subr.mxu0 0.0
      %3959 = vmatpush1.msra.mxu0 0.0
      %3960 = vmatprep.subr.mxu0 0.0
      %3961 = vmatpush1.msra.mxu0 0.0
      %3962 = vmatprep.subr.mxu0 0.0
      %3963 = vmatpush1.msra.mxu0 0.0
      %3964 = vmatprep.subr.mxu0 0.0
      %3965 = vmatpush1.msra.mxu0 0.0
      %3966 = vmatprep.subr.mxu0 0.0
      %3967 = vmatpush1.msra.mxu0 0.0
      %3968 = vmatprep.subr.mxu0 0.0
      %3969 = vmatpush1.msra.mxu0 0.0
      %3970 = vmatprep.subr.mxu0 0.0
      %3971 = vmatpush1.msra.mxu0 0.0
      %3972 = vmatprep.subr.mxu0 0.0
      %3973 = vmatpush1.msra.mxu0 0.0
      %3974 = vmatprep.subr.mxu0 0.0
      %3975 = vmatpush1.msra.mxu0 0.0
      %3976 = vmatprep.subr.mxu0 0.0
      %3977 = vmatpush1.msra.mxu0 0.0
      %3978 = vmatprep.mubr.f32.mxu0 0.0
      %3979 = vmatmul.mubr.f32.gmra.mrb[0].mxu0 %v3903
      %v3980 = vpop.f32.mrb[0].mxu0
      %v3981 = vadd.f32 0.0, %v3980
      %v3982 = vpop.f32.mrb[0].mxu0
      %3983 = vmatprep.mubr.f32.mxu0 0.0
      %3984 = vmatmul.mubr.f32.gmra.mrb[0].mxu0 %v3906
      %v3985 = vpop.f32.mrb[0].mxu0
      %v3986 = vadd.f32 0.0, %v3985
      %v3987 = vpop.f32.mrb[0].mxu0
      %3988 = vmatprep.mubr.f32.mxu0 0.0
      %3989 = vmatmul.mubr.f32.gmra.mrb[0].mxu0 %v3909
      %v3990 = vpop.f32.mrb[0].mxu0
      %v3991 = vadd.f32 0.0, %v3990
      %v3992 = vpop.f32.mrb[0].mxu0
      %3993 = vmatprep.mubr.f32.mxu0 0.0
      %3994 = vmatmul.mubr.f32.gmra.mrb[0].mxu0 %v3912
      %v3995 = vpop.f32.mrb[0].mxu0
      %v3996 = vadd.f32 0.0, %v3995
      %v3997 = vpop.f32.mrb[0].mxu0
      %3998 = vdwg.mxu0
      %v3999 = vadd.f32 %v3412, %v3981
      %v4000 = vadd.f32 %v3413, %v3986
      %v4001 = vadd.f32 %v3414, %v3991
      %v4002 = vadd.f32 %v3415, %v3996
      %v4003 = vld [vmem:[%s13] sm:$0x1]
      %v4005 = vlaneseq
      %v4006 = vshrl.u32 %v4005, 7
      %v4007 = vsub.s32 0, %v4006
      %v4008 = vrot.slane %v4003, %v4007
      %v4010 = vadd.f32 %v3999, %v4008
      %v4011 = vadd.f32 %v4000, %v4008
      %v4012 = vadd.f32 %v4001, %v4008
      %v4013 = vadd.f32 %v4002, %v4008
      %v4014 = vadd.f32 %v4010, %v488
      %v4015 = vadd.f32 %v4011, %v489
      %v4016 = vadd.f32 %v4012, %v490
      %v4017 = vadd.f32 %v4013, %v491
      %4018 = vst [vmem:[%s487] sm:$0xff] %v4014
      %4019 = vst [vmem:[%s487 + $0x8] sm:$0xff] %v4015
      %4020 = vst [vmem:[%s487 + $0x10] sm:$0xff] %v4016
      %4021 = vst [vmem:[%s487 + $0x18] sm:$0xff] %v4017
      %p4022 = scmp.lt.s32.totalorder %s25, 1
      %s4023 = scalar_select %p4022, %s25, 1
      %s4024 = smul.addr %s4023, 4
      %s4025 = smul.addr %s4024, 8
      %s4026 = scalar_lea.vmem %s14, %s4025
      // Predicated region
      $region77: #{_lambda_.10} parent=75 // pred_check
        %p4027 = pneg %p347
      $region78: #{_lambda_.10} parent=75 // pred_check_branch
        %4029 = sbr.rel (%p4027) target = $region80
      $region79: #{_lambda_.10} parent=75 // pred_region
        _
      $region80: #{_lambda_.10} parent=75 // pred_fallthru
        _
    $region76: #{_lambda_.10} parent=5 // pred_fallthru
      _
    %p4030 = scmp.le.s32.totalorder 2, %s20
    // Predicated region
    $region81: #{_lambda_.10} parent=5 // pred_check
      %p4031 = pneg %p4030
    $region82: #{_lambda_.10} parent=5 // pred_check_branch
      %4033 = sbr.rel (%p4031) target = $region84
    $region83: #{_lambda_.10} parent=5 // pred_region
      %s4034 = ssub.s32 %s20, 2
      // Predicated region
      $region85: #{_lambda_.10} parent=83 // pred_check
        %p4035 = pneg %p353
      $region86: #{_lambda_.10} parent=83 // pred_check_branch
        %4037 = sbr.rel (%p4035) target = $region88
      $region87: #{_lambda_.10} parent=83 // pred_region
        %p4038 = scmp.lt.s32.totalorder %s26, 1
        %s4039 = scalar_select %p4038, %s26, 1
        %s4040 = smul.addr %s4039, 4
        %s4041 = smul.addr %s4040, 8
        %s4042 = scalar_lea.vmem %s14, %s4041
      $region88: #{_lambda_.10} parent=83 // pred_fallthru
        _
    $region84: #{_lambda_.10} parent=5 // pred_fallthru
      _
  $region6: #{_lambda_.10} parent=0 // loop_footer
    %s24 = sadd.s32 1, %s20
  $region7: #{_lambda_.10} parent=0 // loop_footer_branch
    %19 = sbr.rel target = $region3
  $region8: #{_lambda_.10} parent=0 // loop_exit
    _

</llo_original>
